<compile_context>
chip_gen: v5e
topology: v5e:2x2
jax: 0.10.0
libtpu: 0.0.40
codegen_flags: <defaults>
</compile_context>

<pallas_src>
import jax
import jax.numpy as jnp
from jax.experimental import pallas as pl
from jax.experimental.pallas import tpu as pltpu

X_DIM = 784           # flattened 28x28 image
LAB_DIM = 2           # 2-dim conditioning label
K_IN = X_DIM + LAB_DIM
H1, H2, H3 = 1024, 1024, 256
OUT_PAD = 128         # lane-dense output block width (logit lives in column 0)


def _disc_kernel(x_ref, lab_ref,
                 w1x_ref, w1l_ref, b1_ref,
                 w2_ref, b2_ref,
                 w3_ref, b3_ref,
                 w4_ref,
                 o_ref):
    """Full 4-layer MLP forward for one (TM,) batch tile. Weights VMEM-resident."""
    # Layer 1: image part on the MXU (f32->bf16 cast fused in-kernel); the 2-wide
    # label part is a VPU broadcast-multiply-add in f32 (avoids a K=2 matmul and
    # the wrapper-side concat/pad HBM pass entirely).
    x = x_ref[...].astype(jnp.bfloat16)                                  # (TM, 784)
    h = jnp.dot(x, w1x_ref[...], preferred_element_type=jnp.float32)    # (TM, 1024) f32
    lab = lab_ref[...]                                                   # (TM, 2)  f32
    w1l = w1l_ref[...]                                                   # (2, 1024) f32
    h = h + lab[:, 0:1] * w1l[0:1, :] + lab[:, 1:2] * w1l[1:2, :] + b1_ref[...]
    h = jnp.maximum(h, 0.0).astype(jnp.bfloat16)                         # (TM, 1024)

    h = jnp.dot(h, w2_ref[...], preferred_element_type=jnp.float32) + b2_ref[...]
    h = jnp.maximum(h, 0.0).astype(jnp.bfloat16)                         # (TM, 1024)

    h = jnp.dot(h, w3_ref[...], preferred_element_type=jnp.float32) + b3_ref[...]
    h = jnp.maximum(h, 0.0).astype(jnp.bfloat16)                         # (TM, 256)

    # Lane-dense final matmul: w4 is zero-padded to 128 output columns, so the
    # logit is column 0 and the store is an unmasked (TM, 128) block.
    o_ref[...] = jnp.dot(h, w4_ref[...], preferred_element_type=jnp.float32)


def _round_up(n, m):
    return (n + m - 1) // m * m


def discriminator_forward(x, label, params, *, tm=512):
    """x: (B, 784) or (B, 1, 28, 28); label: (B, 2). Returns (B, 1) f32 logits.

    tm = batch tile rows (default 512: multiple of 256 for the MXU, multiple of
    16 for bf16 sublane packing; works well on v5e/v6e/v7x). At very large B on
    v7x, keep tm <= B/2 so the two TensorCores each get at least one tile.
    """
    B = x.shape[0]
    x_flat = x.reshape(B, -1)                              # x.view(B, -1) (free reshape)
    assert x_flat.shape[1] == X_DIM and label.shape[1] == LAB_DIM
    label = label.astype(jnp.float32)

    # Tile selection: round to bf16 sublane packing (16), clamp for small batches.
    tm = min(_round_up(tm, 16), _round_up(B, 16))
    Bp = _round_up(B, tm)
    if Bp != B:
        # Only pay this extra HBM pass when the batch is not already tile-aligned.
        x_flat = jnp.pad(x_flat, ((0, Bp - B), (0, 0)))
        label = jnp.pad(label, ((0, Bp - B), (0, 0)))

    (w1, b1), (w2, b2), (w3, b3), (w4, b4) = params
    # In a real model these casts/splits/pads would be done once at parameter load.
    w1x = w1[:X_DIM].astype(jnp.bfloat16)                  # (784, 1024)  MXU part
    w1l = w1[X_DIM:].astype(jnp.float32)                   # (2, 1024)    label part (VPU)
    w2p = w2.astype(jnp.bfloat16)
    w3p = w3.astype(jnp.bfloat16)
    w4p = jnp.pad(w4, ((0, 0), (0, OUT_PAD - w4.shape[1]))).astype(jnp.bfloat16)

    grid = (Bp // tm,)

    def resident(arr):
        # Same block for every grid step -> stays in VMEM, fetched once.
        nd = arr.ndim
        return pl.BlockSpec(arr.shape, lambda i, _n=nd: (0,) * _n)

    flops = 2 * Bp * (X_DIM * H1 + LAB_DIM * H1 + H1 * H2 + H2 * H3 + H3 * OUT_PAD)
    bytes_accessed = (x_flat.size * x_flat.dtype.itemsize
                      + label.size * 4
                      + (w1x.size + w2p.size + w3p.size + w4p.size) * 2
                      + w1l.size * 4
                      + (b1.size + b2.size + b3.size) * 4
                      + Bp * OUT_PAD * 4)

    out = pl.pallas_call(
        _disc_kernel,
        out_shape=jax.ShapeDtypeStruct((Bp, OUT_PAD), jnp.float32),
        grid=grid,
        in_specs=[
            pl.BlockSpec((tm, X_DIM), lambda i: (i, 0)),    # streamed image rows
            pl.BlockSpec((tm, LAB_DIM), lambda i: (i, 0)),  # streamed label rows
            resident(w1x), resident(w1l), resident(b1),
            resident(w2p), resident(b2),
            resident(w3p), resident(b3),
            resident(w4p),
        ],
        out_specs=pl.BlockSpec((tm, OUT_PAD), lambda i: (i, 0)),
        compiler_params=pltpu.CompilerParams(
            dimension_semantics=("parallel",),
            vmem_limit_bytes=32 << 20),
        cost_estimate=pl.CostEstimate(flops=flops, transcendentals=0,
                                      bytes_accessed=bytes_accessed),
    )(x_flat, label, w1x, w1l, b1, w2p, b2, w3p, b3, w4p)

    # Slice off batch padding + the 127 zero lanes, and fold in the final bias.
    return out[:B, :1] + b4


def init_params(key):
    """Deterministic init mimicking nn.Linear default (U[-1/sqrt(fan_in), +]), fp32."""
    dims = [(K_IN, H1), (H1, H2), (H2, H3), (H3, 1)]
    params = []
    for fan_in, fan_out in dims:
        kw, kb, key = jax.random.split(key, 3)
        bound = 1.0 / jnp.sqrt(jnp.float32(fan_in))
        w = jax.random.uniform(kw, (fan_in, fan_out), jnp.float32, -bound, bound)
        b = jax.random.uniform(kb, (1, fan_out), jnp.float32, -bound, bound)
        params.append((w, b))
    return params


def reference_forward(x, label, params):
    """Plain fp32 JAX reference of the PyTorch forward."""
    B = x.shape[0]
    h = jnp.concatenate([x.reshape(B, -1), label], axis=1)
    (w1, b1), (w2, b2), (w3, b3), (w4, b4) = params
    for w, b in ((w1, b1), (w2, b2), (w3, b3)):
        h = jnp.maximum(jnp.dot(h, w) + b, 0.0)
    return jnp.dot(h, w4) + b4


def matched_reference(x, label, params):
    """Mirrors the kernel's mixed-precision recipe (bf16 MXU operands, f32
    accumulation, f32 label path) for a tight numerical check."""
    B = x.shape[0]
    (w1, b1), (w2, b2), (w3, b3), (w4, b4) = params
    xf = x.reshape(B, -1).astype(jnp.bfloat16)
    h = jnp.dot(xf, w1[:X_DIM].astype(jnp.bfloat16), preferred_element_type=jnp.float32)
    h = h + jnp.dot(label.astype(jnp.float32), w1[X_DIM:].astype(jnp.float32)) + b1
    h = jnp.maximum(h, 0.0).astype(jnp.bfloat16)
    for w, b in ((w2, b2), (w3, b3)):
        h = jnp.dot(h, w.astype(jnp.bfloat16), preferred_element_type=jnp.float32) + b
        h = jnp.maximum(h, 0.0).astype(jnp.bfloat16)
    return jnp.dot(h, w4.astype(jnp.bfloat16), preferred_element_type=jnp.float32) + b4


if __name__ == "__main__":
    key = jax.random.PRNGKey(0)
    kx, klabel, kparams = jax.random.split(key, 3)

    B = 8
    x = jax.random.normal(kx, (B, 1, 28, 28), jnp.float32)      # MNIST-shaped image
    label = jax.random.normal(klabel, (B, 2), jnp.float32)      # 2-dim conditioning label
    params = init_params(kparams)

    out = jax.block_until_ready(discriminator_forward(x, label, params))
    assert out.shape == (B, 1)

    # Tight check against a reference that matches the kernel's precision recipe.
    ref_match = matched_reference(x, label, params)
    assert jnp.allclose(out, ref_match, atol=2e-3, rtol=2e-3), "mismatch vs matched reference"

    # Sanity check against the full-fp32 PyTorch-equivalent forward.
    ref_f32 = reference_forward(x, label, params)
    assert jnp.allclose(out, ref_f32, atol=1e-1, rtol=1e-1), "mismatch vs fp32 reference"

    print("KERNEL_OK")
</pallas_src>

<mosaic_0001>
module attributes {stable_mosaic.version = 11 : i64} {
  func.func @_disc_kernel(%arg0: i32, %arg1: memref<16x784xf32, #tpu.memory_space<vmem>>, %arg2: memref<16x2xf32, #tpu.memory_space<vmem>>, %arg3: memref<784x1024xbf16, #tpu.memory_space<vmem>>, %arg4: memref<2x1024xf32, #tpu.memory_space<vmem>>, %arg5: memref<1x1024xf32, #tpu.memory_space<vmem>>, %arg6: memref<1024x1024xbf16, #tpu.memory_space<vmem>>, %arg7: memref<1x1024xf32, #tpu.memory_space<vmem>>, %arg8: memref<1024x256xbf16, #tpu.memory_space<vmem>>, %arg9: memref<1x256xf32, #tpu.memory_space<vmem>>, %arg10: memref<256x128xbf16, #tpu.memory_space<vmem>>, %arg11: memref<16x128xf32, #tpu.memory_space<vmem>>) attributes {dimension_semantics = [#tpu.dimension_semantics<parallel>], iteration_bounds = array<i64: 1>, scalar_prefetch = 0 : i64, scratch_operands = 0 : i64, tpu.core_type = #tpu.core_type<tc>, window_params = [{transform_indices = @transform_0, window_bounds = array<i64: 16, 784>}, {transform_indices = @transform_1, window_bounds = array<i64: 16, 2>}, {pipeline_mode = #tpu.pipeline_mode<synchronous>, transform_indices = @transform_2, window_bounds = array<i64: 784, 1024>}, {pipeline_mode = #tpu.pipeline_mode<synchronous>, transform_indices = @transform_3, window_bounds = array<i64: 2, 1024>}, {pipeline_mode = #tpu.pipeline_mode<synchronous>, transform_indices = @transform_4, window_bounds = array<i64: 1, 1024>}, {pipeline_mode = #tpu.pipeline_mode<synchronous>, transform_indices = @transform_5, window_bounds = array<i64: 1024, 1024>}, {pipeline_mode = #tpu.pipeline_mode<synchronous>, transform_indices = @transform_6, window_bounds = array<i64: 1, 1024>}, {pipeline_mode = #tpu.pipeline_mode<synchronous>, transform_indices = @transform_7, window_bounds = array<i64: 1024, 256>}, {pipeline_mode = #tpu.pipeline_mode<synchronous>, transform_indices = @transform_8, window_bounds = array<i64: 1, 256>}, {pipeline_mode = #tpu.pipeline_mode<synchronous>, transform_indices = @transform_9, window_bounds = array<i64: 256, 128>}, {transform_indices = @transform_10, window_bounds = array<i64: 16, 128>}]} {
    %c0 = arith.constant 0 : index
    %c0_0 = arith.constant 0 : index
    %0 = vector.load %arg1[%c0, %c0_0] : memref<16x784xf32, #tpu.memory_space<vmem>>, vector<16x784xf32>
    %1 = arith.truncf %0 : vector<16x784xf32> to vector<16x784xbf16>
    %c0_1 = arith.constant 0 : index
    %c0_2 = arith.constant 0 : index
    %2 = vector.load %arg3[%c0_1, %c0_2] : memref<784x1024xbf16, #tpu.memory_space<vmem>>, vector<784x1024xbf16>
    %cst = arith.constant dense<0.000000e+00> : vector<16x1024xf32>
    %3 = tpu.matmul %1, %2, %cst {dimension_numbers = #tpu.dot_dimension_numbers<[1], [0], [0], [1], [0, 0, 1, 1], [], []>} : vector<16x784xbf16>, vector<784x1024xbf16>, vector<16x1024xf32> -> vector<16x1024xf32>
    %c0_3 = arith.constant 0 : index
    %c0_4 = arith.constant 0 : index
    %4 = vector.load %arg2[%c0_3, %c0_4] : memref<16x2xf32, #tpu.memory_space<vmem>>, vector<16x2xf32>
    %c0_5 = arith.constant 0 : index
    %c0_6 = arith.constant 0 : index
    %5 = vector.load %arg4[%c0_5, %c0_6] : memref<2x1024xf32, #tpu.memory_space<vmem>>, vector<2x1024xf32>
    %6 = vector.extract_strided_slice %4 {offsets = [0, 0], sizes = [16, 1], strides = [1, 1]} : vector<16x2xf32> to vector<16x1xf32>
    %7 = vector.extract_strided_slice %5 {offsets = [0, 0], sizes = [1, 1024], strides = [1, 1]} : vector<2x1024xf32> to vector<1x1024xf32>
    %8 = vector.broadcast %6 : vector<16x1xf32> to vector<16x1024xf32>
    %9 = vector.broadcast %7 : vector<1x1024xf32> to vector<16x1024xf32>
    %10 = arith.mulf %8, %9 : vector<16x1024xf32>
    %11 = arith.addf %3, %10 : vector<16x1024xf32>
    %12 = vector.extract_strided_slice %4 {offsets = [0, 1], sizes = [16, 1], strides = [1, 1]} : vector<16x2xf32> to vector<16x1xf32>
    %13 = vector.extract_strided_slice %5 {offsets = [1, 0], sizes = [1, 1024], strides = [1, 1]} : vector<2x1024xf32> to vector<1x1024xf32>
    %14 = vector.broadcast %12 : vector<16x1xf32> to vector<16x1024xf32>
    %15 = vector.broadcast %13 : vector<1x1024xf32> to vector<16x1024xf32>
    %16 = arith.mulf %14, %15 : vector<16x1024xf32>
    %17 = arith.addf %11, %16 : vector<16x1024xf32>
    %c0_7 = arith.constant 0 : index
    %c0_8 = arith.constant 0 : index
    %18 = vector.load %arg5[%c0_7, %c0_8] : memref<1x1024xf32, #tpu.memory_space<vmem>>, vector<1x1024xf32>
    %19 = vector.broadcast %18 : vector<1x1024xf32> to vector<16x1024xf32>
    %20 = arith.addf %17, %19 : vector<16x1024xf32>
    %cst_9 = arith.constant 0.000000e+00 : f32
    %21 = vector.broadcast %cst_9 : f32 to vector<16x1024xf32>
    %22 = arith.maximumf %20, %21 : vector<16x1024xf32>
    %23 = arith.truncf %22 : vector<16x1024xf32> to vector<16x1024xbf16>
    %c0_10 = arith.constant 0 : index
    %c0_11 = arith.constant 0 : index
    %24 = vector.load %arg6[%c0_10, %c0_11] : memref<1024x1024xbf16, #tpu.memory_space<vmem>>, vector<1024x1024xbf16>
    %cst_12 = arith.constant dense<0.000000e+00> : vector<16x1024xf32>
    %25 = tpu.matmul %23, %24, %cst_12 {dimension_numbers = #tpu.dot_dimension_numbers<[1], [0], [0], [1], [0, 0, 1, 1], [], []>} : vector<16x1024xbf16>, vector<1024x1024xbf16>, vector<16x1024xf32> -> vector<16x1024xf32>
    %c0_13 = arith.constant 0 : index
    %c0_14 = arith.constant 0 : index
    %26 = vector.load %arg7[%c0_13, %c0_14] : memref<1x1024xf32, #tpu.memory_space<vmem>>, vector<1x1024xf32>
    %27 = vector.broadcast %26 : vector<1x1024xf32> to vector<16x1024xf32>
    %28 = arith.addf %25, %27 : vector<16x1024xf32>
    %cst_15 = arith.constant 0.000000e+00 : f32
    %29 = vector.broadcast %cst_15 : f32 to vector<16x1024xf32>
    %30 = arith.maximumf %28, %29 : vector<16x1024xf32>
    %31 = arith.truncf %30 : vector<16x1024xf32> to vector<16x1024xbf16>
    %c0_16 = arith.constant 0 : index
    %c0_17 = arith.constant 0 : index
    %32 = vector.load %arg8[%c0_16, %c0_17] : memref<1024x256xbf16, #tpu.memory_space<vmem>>, vector<1024x256xbf16>
    %cst_18 = arith.constant dense<0.000000e+00> : vector<16x256xf32>
    %33 = tpu.matmul %31, %32, %cst_18 {dimension_numbers = #tpu.dot_dimension_numbers<[1], [0], [0], [1], [0, 0, 1, 1], [], []>} : vector<16x1024xbf16>, vector<1024x256xbf16>, vector<16x256xf32> -> vector<16x256xf32>
    %c0_19 = arith.constant 0 : index
    %c0_20 = arith.constant 0 : index
    %34 = vector.load %arg9[%c0_19, %c0_20] : memref<1x256xf32, #tpu.memory_space<vmem>>, vector<1x256xf32>
    %35 = vector.broadcast %34 : vector<1x256xf32> to vector<16x256xf32>
    %36 = arith.addf %33, %35 : vector<16x256xf32>
    %cst_21 = arith.constant 0.000000e+00 : f32
    %37 = vector.broadcast %cst_21 : f32 to vector<16x256xf32>
    %38 = arith.maximumf %36, %37 : vector<16x256xf32>
    %39 = arith.truncf %38 : vector<16x256xf32> to vector<16x256xbf16>
    %c0_22 = arith.constant 0 : index
    %c0_23 = arith.constant 0 : index
    %40 = vector.load %arg10[%c0_22, %c0_23] : memref<256x128xbf16, #tpu.memory_space<vmem>>, vector<256x128xbf16>
    %cst_24 = arith.constant dense<0.000000e+00> : vector<16x128xf32>
    %41 = tpu.matmul %39, %40, %cst_24 {dimension_numbers = #tpu.dot_dimension_numbers<[1], [0], [0], [1], [0, 0, 1, 1], [], []>} : vector<16x256xbf16>, vector<256x128xbf16>, vector<16x128xf32> -> vector<16x128xf32>
    %c0_25 = arith.constant 0 : index
    %c0_26 = arith.constant 0 : index
    %42 = vector.load %arg11[%c0_25, %c0_26] : memref<16x128xf32, #tpu.memory_space<vmem>>, vector<16x128xf32>
    tpu.vector_store %arg11[%c0_25, %c0_26], %41 {strides = array<i32>} : memref<16x128xf32, #tpu.memory_space<vmem>>, vector<16x128xf32>,
    return
  }
  func.func @transform_0(%arg0: i32) -> (i32, i32) {
    %c0_i32 = arith.constant 0 : i32
    %c0_i32_0 = arith.constant 0 : i32
    return %arg0, %c0_i32 : i32, i32
  }
  func.func @transform_1(%arg0: i32) -> (i32, i32) {
    %c0_i32 = arith.constant 0 : i32
    %c0_i32_0 = arith.constant 0 : i32
    return %arg0, %c0_i32 : i32, i32
  }
  func.func @transform_2(%arg0: i32) -> (i32, i32) {
    %c0_i32 = arith.constant 0 : i32
    %c0_i32_0 = arith.constant 0 : i32
    %c0_i32_1 = arith.constant 0 : i32
    return %c0_i32, %c0_i32_0 : i32, i32
  }
  func.func @transform_3(%arg0: i32) -> (i32, i32) {
    %c0_i32 = arith.constant 0 : i32
    %c0_i32_0 = arith.constant 0 : i32
    %c0_i32_1 = arith.constant 0 : i32
    return %c0_i32, %c0_i32_0 : i32, i32
  }
  func.func @transform_4(%arg0: i32) -> (i32, i32) {
    %c0_i32 = arith.constant 0 : i32
    %c0_i32_0 = arith.constant 0 : i32
    %c0_i32_1 = arith.constant 0 : i32
    return %c0_i32, %c0_i32_0 : i32, i32
  }
  func.func @transform_5(%arg0: i32) -> (i32, i32) {
    %c0_i32 = arith.constant 0 : i32
    %c0_i32_0 = arith.constant 0 : i32
    %c0_i32_1 = arith.constant 0 : i32
    return %c0_i32, %c0_i32_0 : i32, i32
  }
  func.func @transform_6(%arg0: i32) -> (i32, i32) {
    %c0_i32 = arith.constant 0 : i32
    %c0_i32_0 = arith.constant 0 : i32
    %c0_i32_1 = arith.constant 0 : i32
    return %c0_i32, %c0_i32_0 : i32, i32
  }
  func.func @transform_7(%arg0: i32) -> (i32, i32) {
    %c0_i32 = arith.constant 0 : i32
    %c0_i32_0 = arith.constant 0 : i32
    %c0_i32_1 = arith.constant 0 : i32
    return %c0_i32, %c0_i32_0 : i32, i32
  }
  func.func @transform_8(%arg0: i32) -> (i32, i32) {
    %c0_i32 = arith.constant 0 : i32
    %c0_i32_0 = arith.constant 0 : i32
    %c0_i32_1 = arith.constant 0 : i32
    return %c0_i32, %c0_i32_0 : i32, i32
  }
  func.func @transform_9(%arg0: i32) -> (i32, i32) {
    %c0_i32 = arith.constant 0 : i32
    %c0_i32_0 = arith.constant 0 : i32
    %c0_i32_1 = arith.constant 0 : i32
    return %c0_i32, %c0_i32_0 : i32, i32
  }
  func.func @transform_10(%arg0: i32) -> (i32, i32) {
    %c0_i32 = arith.constant 0 : i32
    %c0_i32_0 = arith.constant 0 : i32
    return %arg0, %c0_i32 : i32, i32
  }
}

</mosaic_0001>

<llo_original>
// kernel: tpu_custom_call.1
$region0: #{tpu_custom_call.1}
  #allocation0 [shape = 'u32[]', space=smem, size = 0x4, offset = 0x4, fixed_abs, tag = 'smem constant byte address 0x4 - core index']
  #allocation1 [shape = 'u32[72,128]{1,0:T(1,128)}', space=vmem, size = 0x9000, scoped, tag = 'internal scratch']
  %s0 = inlined_call_operand.hbm [shape: f32[16,784], index: 0, kind: input, shape index: {}]
  %s1 = inlined_call_operand.vmem [shape: f32[16,2], index: 1, kind: input, shape index: {}]
  %s2 = inlined_call_operand.hbm [shape: bf16[784,1024], index: 2, kind: input, shape index: {}]
  %s3 = inlined_call_operand.hbm [shape: f32[2,1024], index: 3, kind: input, shape index: {}]
  %s4 = inlined_call_operand.hbm [shape: f32[1,1024], index: 4, kind: input, shape index: {}]
  %s5 = inlined_call_operand.hbm [shape: bf16[1024,1024], index: 5, kind: input, shape index: {}]
  %s6 = inlined_call_operand.hbm [shape: f32[1,1024], index: 6, kind: input, shape index: {}]
  %s7 = inlined_call_operand.hbm [shape: bf16[1024,256], index: 7, kind: input, shape index: {}]
  %s8 = inlined_call_operand.hbm [shape: f32[1,256], index: 8, kind: input, shape index: {}]
  %s9 = inlined_call_operand.hbm [shape: bf16[256,128], index: 9, kind: input, shape index: {}]
  %s10 = inlined_call_operand.hbm [shape: f32[16,128], index: 10, kind: output, shape index: {}]
  %s11 = sld [smem:[#allocation0]]
  $region86: #{tpu_custom_call.1} parent=0
    _
  %s13 = ssub.s32 1, %s11
  %s14 = scalar_select 0, %s13, %s11
  $region1: #{tpu_custom_call.1} parent=0
    #allocation2 [shape = 'u8[57344]{0}', space=vmem, size = 0xe000, scoped, tag = 'input window, operand 0, single buffered']
    #allocation3 [shape = 's32[1]{0}', space=sflag, size = 0x4, scoped, tag = 'scoped memory for tpu_custom_call.1']
    #allocation4 [shape = 's32[1]{0}', space=sflag, size = 0x4, scoped, tag = 'scoped memory for tpu_custom_call.1']
    #allocation5 [shape = 'u8[1605632]{0}', space=vmem, size = 0x188000, scoped, tag = 'input window, operand 2, single buffered']
    #allocation6 [shape = 's32[1]{0}', space=sflag, size = 0x4, scoped, tag = 'scoped memory for tpu_custom_call.1']
    #allocation7 [shape = 'u8[8192]{0}', space=vmem, size = 0x2000, scoped, tag = 'input window, operand 3, single buffered']
    #allocation8 [shape = 'u8[4096]{0}', space=vmem, size = 0x1000, scoped, tag = 'input window, operand 4, single buffered']
    #allocation9 [shape = 's32[1]{0}', space=sflag, size = 0x4, scoped, tag = 'scoped memory for tpu_custom_call.1']
    #allocation10 [shape = 'u8[2097152]{0}', space=vmem, size = 0x200000, scoped, tag = 'input window, operand 5, single buffered']
    #allocation11 [shape = 'u8[4096]{0}', space=vmem, size = 0x1000, scoped, tag = 'input window, operand 6, single buffered']
    #allocation12 [shape = 's32[1]{0}', space=sflag, size = 0x4, scoped, tag = 'scoped memory for tpu_custom_call.1']
    #allocation13 [shape = 'u8[524288]{0}', space=vmem, size = 0x80000, scoped, tag = 'input window, operand 7, single buffered']
    #allocation14 [shape = 'u8[1024]{0}', space=vmem, size = 0x400, scoped, tag = 'input window, operand 8, single buffered']
    #allocation15 [shape = 's32[1]{0}', space=sflag, size = 0x4, scoped, tag = 'scoped memory for tpu_custom_call.1']
    #allocation16 [shape = 'u8[65536]{0}', space=vmem, size = 0x10000, scoped, tag = 'input window, operand 9, single buffered']
    #allocation17 [shape = 'u8[8192]{0}', space=vmem, size = 0x2000, scoped, tag = 'output window, operand 0, single buffered']
    %15 = vsyncpa [#allocation3], 0
    %16 = vsyncpa [#allocation6], 0
    %17 = vsyncpa [#allocation9], 0
    %18 = vsyncpa [#allocation12], 0
    %19 = vsyncpa [#allocation15], 0
    %20 = vsyncpa [#allocation4], 0
    // Predicated region
    $region2: #{tpu_custom_call.1} parent=1 // pred_check
      _
    $region3: #{tpu_custom_call.1} parent=1 // pred_check_branch
      %22 = sbr.rel (0) target = $region5
    $region4: #{tpu_custom_call.1} parent=1 // pred_region
      %24 = vsyncadd [#allocation3], 0
      %s25 = sshll.u32 %s0, 4
      %s26 = int_to_ptr.hbm [resolvable:$true] %s25
      %s27 = sshll.u32 [#allocation2], 4
      %s28 = int_to_ptr.vmem [resolvable:$true] %s27
      %33 = dma.hbm_to_vmem [thread:$0]  %s26, 1792, %s28, [#allocation3], 896, 896, 56
    $region5: #{tpu_custom_call.1} parent=1 // pred_fallthru
      _
    // Predicated region
    $region6: #{tpu_custom_call.1} parent=1 // pred_check
      _
    $region7: #{tpu_custom_call.1} parent=1 // pred_check_branch
      %35 = sbr.rel (0) target = $region9
    $region8: #{tpu_custom_call.1} parent=1 // pred_region
      _
    $region9: #{tpu_custom_call.1} parent=1 // pred_fallthru
      _
    // Predicated region
    $region10: #{tpu_custom_call.1} parent=1 // pred_check
      _
    $region11: #{tpu_custom_call.1} parent=1 // pred_check_branch
      %37 = sbr.rel (0) target = $region13
    $region12: #{tpu_custom_call.1} parent=1 // pred_region
      %39 = vsyncadd [#allocation6], 0
      %s40 = sshll.u32 %s2, 4
      %s41 = int_to_ptr.hbm [resolvable:$true] %s40
      %s42 = sshll.u32 [#allocation5], 4
      %s43 = int_to_ptr.vmem [resolvable:$true] %s42
      %48 = dma.hbm_to_vmem [thread:$0]  %s41, 50176, %s43, [#allocation6], 512, 512, 32
    $region13: #{tpu_custom_call.1} parent=1 // pred_fallthru
      _
    // Predicated region
    $region14: #{tpu_custom_call.1} parent=1 // pred_check
      _
    $region15: #{tpu_custom_call.1} parent=1 // pred_check_branch
      %50 = sbr.rel (0) target = $region17
    $region16: #{tpu_custom_call.1} parent=1 // pred_region
      %52 = vsyncadd [#allocation6], 0
      %s54 = sshll.u32 %s3, 4
      %s55 = int_to_ptr.hbm [resolvable:$true] %s54
      %s56 = sshll.u32 [#allocation7], 4
      %s57 = int_to_ptr.vmem [resolvable:$true] %s56
      %59 = dma.hbm_to_vmem [thread:$0]  %s55, 256, %s57, [#allocation6]
    $region17: #{tpu_custom_call.1} parent=1 // pred_fallthru
      _
    // Predicated region
    $region18: #{tpu_custom_call.1} parent=1 // pred_check
      _
    $region19: #{tpu_custom_call.1} parent=1 // pred_check_branch
      %61 = sbr.rel (0) target = $region21
    $region20: #{tpu_custom_call.1} parent=1 // pred_region
      %63 = vsyncadd [#allocation9], 0
      %s65 = sshll.u32 %s4, 4
      %s66 = int_to_ptr.hbm [resolvable:$true] %s65
      %s67 = sshll.u32 [#allocation8], 4
      %s68 = int_to_ptr.vmem [resolvable:$true] %s67
      %70 = dma.hbm_to_vmem [thread:$0]  %s66, 128, %s68, [#allocation9]
    $region21: #{tpu_custom_call.1} parent=1 // pred_fallthru
      _
    // Predicated region
    $region22: #{tpu_custom_call.1} parent=1 // pred_check
      _
    $region23: #{tpu_custom_call.1} parent=1 // pred_check_branch
      %72 = sbr.rel (0) target = $region25
    $region24: #{tpu_custom_call.1} parent=1 // pred_region
      %74 = vsyncadd [#allocation9], 0
      %s75 = sshll.u32 %s5, 4
      %s76 = int_to_ptr.hbm [resolvable:$true] %s75
      %s77 = sshll.u32 [#allocation10], 4
      %s78 = int_to_ptr.vmem [resolvable:$true] %s77
      %83 = dma.hbm_to_vmem [thread:$0]  %s76, 65536, %s78, [#allocation9], 512, 512, 32
    $region25: #{tpu_custom_call.1} parent=1 // pred_fallthru
      _
    // Predicated region
    $region26: #{tpu_custom_call.1} parent=1 // pred_check
      _
    $region27: #{tpu_custom_call.1} parent=1 // pred_check_branch
      %85 = sbr.rel (0) target = $region29
    $region28: #{tpu_custom_call.1} parent=1 // pred_region
      %87 = vsyncadd [#allocation12], 0
      %s89 = sshll.u32 %s6, 4
      %s90 = int_to_ptr.hbm [resolvable:$true] %s89
      %s91 = sshll.u32 [#allocation11], 4
      %s92 = int_to_ptr.vmem [resolvable:$true] %s91
      %94 = dma.hbm_to_vmem [thread:$0]  %s90, 128, %s92, [#allocation12]
    $region29: #{tpu_custom_call.1} parent=1 // pred_fallthru
      _
    // Predicated region
    $region30: #{tpu_custom_call.1} parent=1 // pred_check
      _
    $region31: #{tpu_custom_call.1} parent=1 // pred_check_branch
      %96 = sbr.rel (0) target = $region33
    $region32: #{tpu_custom_call.1} parent=1 // pred_region
      %98 = vsyncadd [#allocation12], 0
      %s99 = sshll.u32 %s7, 4
      %s100 = int_to_ptr.hbm [resolvable:$true] %s99
      %s101 = sshll.u32 [#allocation13], 4
      %s102 = int_to_ptr.vmem [resolvable:$true] %s101
      %107 = dma.hbm_to_vmem [thread:$0]  %s100, 16384, %s102, [#allocation12], 128, 128, 8
    $region33: #{tpu_custom_call.1} parent=1 // pred_fallthru
      _
    // Predicated region
    $region34: #{tpu_custom_call.1} parent=1 // pred_check
      _
    $region35: #{tpu_custom_call.1} parent=1 // pred_check_branch
      %109 = sbr.rel (0) target = $region37
    $region36: #{tpu_custom_call.1} parent=1 // pred_region
      %111 = vsyncadd [#allocation15], 0
      %s113 = sshll.u32 %s8, 4
      %s114 = int_to_ptr.hbm [resolvable:$true] %s113
      %s115 = sshll.u32 [#allocation14], 4
      %s116 = int_to_ptr.vmem [resolvable:$true] %s115
      %118 = dma.hbm_to_vmem [thread:$0]  %s114, 32, %s116, [#allocation15]
    $region37: #{tpu_custom_call.1} parent=1 // pred_fallthru
      _
    // Predicated region
    $region38: #{tpu_custom_call.1} parent=1 // pred_check
      _
    $region39: #{tpu_custom_call.1} parent=1 // pred_check_branch
      %120 = sbr.rel (0) target = $region41
    $region40: #{tpu_custom_call.1} parent=1 // pred_region
      %122 = vsyncadd [#allocation15], 0
      %s123 = sshll.u32 %s9, 4
      %s124 = int_to_ptr.hbm [resolvable:$true] %s123
      %s125 = sshll.u32 [#allocation16], 4
      %s126 = int_to_ptr.vmem [resolvable:$true] %s125
      %131 = dma.hbm_to_vmem [thread:$0]  %s124, 2048, %s126, [#allocation15], 64, 64, 4
    $region41: #{tpu_custom_call.1} parent=1 // pred_fallthru
      _
    // Predicated region
    $region42: #{tpu_custom_call.1} parent=1 // pred_check
      _
    $region43: #{tpu_custom_call.1} parent=1 // pred_check_branch
      %133 = sbr.rel (0) target = $region45
    $region44: #{tpu_custom_call.1} parent=1 // pred_region
      %135 = dma.done [#allocation3], 1792
    $region45: #{tpu_custom_call.1} parent=1 // pred_fallthru
      _
    // Predicated region
    $region46: #{tpu_custom_call.1} parent=1 // pred_check
      _
    $region47: #{tpu_custom_call.1} parent=1 // pred_check_branch
      %137 = sbr.rel (0) target = $region49
    $region48: #{tpu_custom_call.1} parent=1 // pred_region
      %139 = dma.done [#allocation6], 50176
    $region49: #{tpu_custom_call.1} parent=1 // pred_fallthru
      _
    // Predicated region
    $region50: #{tpu_custom_call.1} parent=1 // pred_check
      _
    $region51: #{tpu_custom_call.1} parent=1 // pred_check_branch
      %141 = sbr.rel (0) target = $region53
    $region52: #{tpu_custom_call.1} parent=1 // pred_region
      %143 = dma.done [#allocation6], 256
    $region53: #{tpu_custom_call.1} parent=1 // pred_fallthru
      _
    // Predicated region
    $region54: #{tpu_custom_call.1} parent=1 // pred_check
      _
    $region55: #{tpu_custom_call.1} parent=1 // pred_check_branch
      %145 = sbr.rel (0) target = $region57
    $region56: #{tpu_custom_call.1} parent=1 // pred_region
      %147 = dma.done [#allocation9], 128
    $region57: #{tpu_custom_call.1} parent=1 // pred_fallthru
      _
    // Predicated region
    $region58: #{tpu_custom_call.1} parent=1 // pred_check
      _
    $region59: #{tpu_custom_call.1} parent=1 // pred_check_branch
      %149 = sbr.rel (0) target = $region61
    $region60: #{tpu_custom_call.1} parent=1 // pred_region
      %151 = dma.done [#allocation9], 65536
    $region61: #{tpu_custom_call.1} parent=1 // pred_fallthru
      _
    // Predicated region
    $region62: #{tpu_custom_call.1} parent=1 // pred_check
      _
    $region63: #{tpu_custom_call.1} parent=1 // pred_check_branch
      %153 = sbr.rel (0) target = $region65
    $region64: #{tpu_custom_call.1} parent=1 // pred_region
      %155 = dma.done [#allocation12], 128
    $region65: #{tpu_custom_call.1} parent=1 // pred_fallthru
      _
    // Predicated region
    $region66: #{tpu_custom_call.1} parent=1 // pred_check
      _
    $region67: #{tpu_custom_call.1} parent=1 // pred_check_branch
      %157 = sbr.rel (0) target = $region69
    $region68: #{tpu_custom_call.1} parent=1 // pred_region
      %159 = dma.done [#allocation12], 16384
    $region69: #{tpu_custom_call.1} parent=1 // pred_fallthru
      _
    // Predicated region
    $region70: #{tpu_custom_call.1} parent=1 // pred_check
      _
    $region71: #{tpu_custom_call.1} parent=1 // pred_check_branch
      %161 = sbr.rel (0) target = $region73
    $region72: #{tpu_custom_call.1} parent=1 // pred_region
      %163 = dma.done [#allocation15], 32
    $region73: #{tpu_custom_call.1} parent=1 // pred_fallthru
      _
    // Predicated region
    $region74: #{tpu_custom_call.1} parent=1 // pred_check
      _
    $region75: #{tpu_custom_call.1} parent=1 // pred_check_branch
      %165 = sbr.rel (0) target = $region77
    $region76: #{tpu_custom_call.1} parent=1 // pred_region
      %167 = dma.done [#allocation15], 2048
    $region77: #{tpu_custom_call.1} parent=1 // pred_fallthru
      _
    %v169 = vld [vmem:[#allocation2] sm:$0xff]
    %v170 = vld [vmem:[#allocation2 + $0x8] sm:$0xff]
    %v171 = vld [vmem:[#allocation2 + $0x10] sm:$0xff]
    %v172 = vld [vmem:[#allocation2 + $0x18] sm:$0xff]
    %v173 = vld [vmem:[#allocation2 + $0x20] sm:$0xff]
    %v174 = vld [vmem:[#allocation2 + $0x28] sm:$0xff]
    %v175 = vld [vmem:[#allocation2 + $0x30] sm:$0xff]
    %v176 = vld [vmem:[#allocation2 + $0x38] sm:$0xff]
    %v177 = vld [vmem:[#allocation2 + $0x40] sm:$0xff]
    %v178 = vld [vmem:[#allocation2 + $0x48] sm:$0xff]
    %v179 = vld [vmem:[#allocation2 + $0x50] sm:$0xff]
    %v180 = vld [vmem:[#allocation2 + $0x58] sm:$0xff]
    %v181 = vld [vmem:[#allocation2 + $0x60] sm:$0xff]
    %v182 = vld [vmem:[#allocation2 + $0x68] sm:$0xff]
    %v183 = vpack.c.bf16 %v176, %v169
    %v184 = vpack.c.bf16 %v177, %v170
    %v185 = vpack.c.bf16 %v178, %v171
    %v186 = vpack.c.bf16 %v179, %v172
    %v187 = vpack.c.bf16 %v180, %v173
    %v188 = vpack.c.bf16 %v181, %v174
    %v189 = vpack.c.bf16 %v182, %v175
    %v190 = vld [vmem:[#allocation5] sm:$0xff]
    %v191 = vld [vmem:[#allocation5 + $0x8] sm:$0xff]
    %v192 = vld [vmem:[#allocation5 + $0x10] sm:$0xff]
    %v193 = vld [vmem:[#allocation5 + $0x18] sm:$0xff]
    %v194 = vld [vmem:[#allocation5 + $0x20] sm:$0xff]
    %v195 = vld [vmem:[#allocation5 + $0x28] sm:$0xff]
    %v196 = vld [vmem:[#allocation5 + $0x30] sm:$0xff]
    %v197 = vld [vmem:[#allocation5 + $0x38] sm:$0xff]
    %v198 = vld [vmem:[#allocation5 + $0x40] sm:$0xff]
    %v199 = vld [vmem:[#allocation5 + $0x48] sm:$0xff]
    %v200 = vld [vmem:[#allocation5 + $0x50] sm:$0xff]
    %v201 = vld [vmem:[#allocation5 + $0x58] sm:$0xff]
    %v202 = vld [vmem:[#allocation5 + $0x60] sm:$0xff]
    %v203 = vld [vmem:[#allocation5 + $0x68] sm:$0xff]
    %v204 = vld [vmem:[#allocation5 + $0x70] sm:$0xff]
    %v205 = vld [vmem:[#allocation5 + $0x78] sm:$0xff]
    %v206 = vld [vmem:[#allocation5 + $0x80] sm:$0xff]
    %v207 = vld [vmem:[#allocation5 + $0x88] sm:$0xff]
    %v208 = vld [vmem:[#allocation5 + $0x90] sm:$0xff]
    %v209 = vld [vmem:[#allocation5 + $0x98] sm:$0xff]
    %v210 = vld [vmem:[#allocation5 + $0xa0] sm:$0xff]
    %v211 = vld [vmem:[#allocation5 + $0xa8] sm:$0xff]
    %v212 = vld [vmem:[#allocation5 + $0xb0] sm:$0xff]
    %v213 = vld [vmem:[#allocation5 + $0xb8] sm:$0xff]
    %v214 = vld [vmem:[#allocation5 + $0xc0] sm:$0xff]
    %v215 = vld [vmem:[#allocation5 + $0xc8] sm:$0xff]
    %v216 = vld [vmem:[#allocation5 + $0xd0] sm:$0xff]
    %v217 = vld [vmem:[#allocation5 + $0xd8] sm:$0xff]
    %v218 = vld [vmem:[#allocation5 + $0xe0] sm:$0xff]
    %v219 = vld [vmem:[#allocation5 + $0xe8] sm:$0xff]
    %v220 = vld [vmem:[#allocation5 + $0xf0] sm:$0xff]
    %v221 = vld [vmem:[#allocation5 + $0xf8] sm:$0xff]
    %v222 = vld [vmem:[#allocation5 + $0x100] sm:$0xff]
    %v223 = vld [vmem:[#allocation5 + $0x108] sm:$0xff]
    %v224 = vld [vmem:[#allocation5 + $0x110] sm:$0xff]
    %v225 = vld [vmem:[#allocation5 + $0x118] sm:$0xff]
    %v226 = vld [vmem:[#allocation5 + $0x120] sm:$0xff]
    %v227 = vld [vmem:[#allocation5 + $0x128] sm:$0xff]
    %v228 = vld [vmem:[#allocation5 + $0x130] sm:$0xff]
    %v229 = vld [vmem:[#allocation5 + $0x138] sm:$0xff]
    %v230 = vld [vmem:[#allocation5 + $0x140] sm:$0xff]
    %v231 = vld [vmem:[#allocation5 + $0x148] sm:$0xff]
    %v232 = vld [vmem:[#allocation5 + $0x150] sm:$0xff]
    %v233 = vld [vmem:[#allocation5 + $0x158] sm:$0xff]
    %v234 = vld [vmem:[#allocation5 + $0x160] sm:$0xff]
    %v235 = vld [vmem:[#allocation5 + $0x168] sm:$0xff]
    %v236 = vld [vmem:[#allocation5 + $0x170] sm:$0xff]
    %v237 = vld [vmem:[#allocation5 + $0x178] sm:$0xff]
    %v238 = vld [vmem:[#allocation5 + $0x180] sm:$0xff]
    %v239 = vld [vmem:[#allocation5 + $0x188] sm:$0xff]
    %v240 = vld [vmem:[#allocation5 + $0x190] sm:$0xff]
    %v241 = vld [vmem:[#allocation5 + $0x198] sm:$0xff]
    %v242 = vld [vmem:[#allocation5 + $0x1a0] sm:$0xff]
    %v243 = vld [vmem:[#allocation5 + $0x1a8] sm:$0xff]
    %v244 = vld [vmem:[#allocation5 + $0x1b0] sm:$0xff]
    %v245 = vld [vmem:[#allocation5 + $0x1b8] sm:$0xff]
    %v246 = vld [vmem:[#allocation5 + $0x1c0] sm:$0xff]
    %v247 = vld [vmem:[#allocation5 + $0x1c8] sm:$0xff]
    %v248 = vld [vmem:[#allocation5 + $0x1d0] sm:$0xff]
    %v249 = vld [vmem:[#allocation5 + $0x1d8] sm:$0xff]
    %v250 = vld [vmem:[#allocation5 + $0x1e0] sm:$0xff]
    %v251 = vld [vmem:[#allocation5 + $0x1e8] sm:$0xff]
    %v252 = vld [vmem:[#allocation5 + $0x1f0] sm:$0xff]
    %v253 = vld [vmem:[#allocation5 + $0x1f8] sm:$0xff]
    %v254 = vld [vmem:[#allocation5 + $0x200] sm:$0xff]
    %v255 = vld [vmem:[#allocation5 + $0x208] sm:$0xff]
    %v256 = vld [vmem:[#allocation5 + $0x210] sm:$0xff]
    %v257 = vld [vmem:[#allocation5 + $0x218] sm:$0xff]
    %v258 = vld [vmem:[#allocation5 + $0x220] sm:$0xff]
    %v259 = vld [vmem:[#allocation5 + $0x228] sm:$0xff]
    %v260 = vld [vmem:[#allocation5 + $0x230] sm:$0xff]
    %v261 = vld [vmem:[#allocation5 + $0x238] sm:$0xff]
    %v262 = vld [vmem:[#allocation5 + $0x240] sm:$0xff]
    %v263 = vld [vmem:[#allocation5 + $0x248] sm:$0xff]
    %v264 = vld [vmem:[#allocation5 + $0x250] sm:$0xff]
    %v265 = vld [vmem:[#allocation5 + $0x258] sm:$0xff]
    %v266 = vld [vmem:[#allocation5 + $0x260] sm:$0xff]
    %v267 = vld [vmem:[#allocation5 + $0x268] sm:$0xff]
    %v268 = vld [vmem:[#allocation5 + $0x270] sm:$0xff]
    %v269 = vld [vmem:[#allocation5 + $0x278] sm:$0xff]
    %v270 = vld [vmem:[#allocation5 + $0x280] sm:$0xff]
    %v271 = vld [vmem:[#allocation5 + $0x288] sm:$0xff]
    %v272 = vld [vmem:[#allocation5 + $0x290] sm:$0xff]
    %v273 = vld [vmem:[#allocation5 + $0x298] sm:$0xff]
    %v274 = vld [vmem:[#allocation5 + $0x2a0] sm:$0xff]
    %v275 = vld [vmem:[#allocation5 + $0x2a8] sm:$0xff]
    %v276 = vld [vmem:[#allocation5 + $0x2b0] sm:$0xff]
    %v277 = vld [vmem:[#allocation5 + $0x2b8] sm:$0xff]
    %v278 = vld [vmem:[#allocation5 + $0x2c0] sm:$0xff]
    %v279 = vld [vmem:[#allocation5 + $0x2c8] sm:$0xff]
    %v280 = vld [vmem:[#allocation5 + $0x2d0] sm:$0xff]
    %v281 = vld [vmem:[#allocation5 + $0x2d8] sm:$0xff]
    %v282 = vld [vmem:[#allocation5 + $0x2e0] sm:$0xff]
    %v283 = vld [vmem:[#allocation5 + $0x2e8] sm:$0xff]
    %v284 = vld [vmem:[#allocation5 + $0x2f0] sm:$0xff]
    %v285 = vld [vmem:[#allocation5 + $0x2f8] sm:$0xff]
    %v286 = vld [vmem:[#allocation5 + $0x300] sm:$0xff]
    %v287 = vld [vmem:[#allocation5 + $0x308] sm:$0xff]
    %v288 = vld [vmem:[#allocation5 + $0x310] sm:$0xff]
    %v289 = vld [vmem:[#allocation5 + $0x318] sm:$0xff]
    %v290 = vld [vmem:[#allocation5 + $0x320] sm:$0xff]
    %v291 = vld [vmem:[#allocation5 + $0x328] sm:$0xff]
    %v292 = vld [vmem:[#allocation5 + $0x330] sm:$0xff]
    %v293 = vld [vmem:[#allocation5 + $0x338] sm:$0xff]
    %v294 = vld [vmem:[#allocation5 + $0x340] sm:$0xff]
    %v295 = vld [vmem:[#allocation5 + $0x348] sm:$0xff]
    %v296 = vld [vmem:[#allocation5 + $0x350] sm:$0xff]
    %v297 = vld [vmem:[#allocation5 + $0x358] sm:$0xff]
    %v298 = vld [vmem:[#allocation5 + $0x360] sm:$0xff]
    %v299 = vld [vmem:[#allocation5 + $0x368] sm:$0xff]
    %v300 = vld [vmem:[#allocation5 + $0x370] sm:$0xff]
    %v301 = vld [vmem:[#allocation5 + $0x378] sm:$0xff]
    %v302 = vld [vmem:[#allocation5 + $0x380] sm:$0xff]
    %v303 = vld [vmem:[#allocation5 + $0x388] sm:$0xff]
    %v304 = vld [vmem:[#allocation5 + $0x390] sm:$0xff]
    %v305 = vld [vmem:[#allocation5 + $0x398] sm:$0xff]
    %v306 = vld [vmem:[#allocation5 + $0x3a0] sm:$0xff]
    %v307 = vld [vmem:[#allocation5 + $0x3a8] sm:$0xff]
    %v308 = vld [vmem:[#allocation5 + $0x3b0] sm:$0xff]
    %v309 = vld [vmem:[#allocation5 + $0x3b8] sm:$0xff]
    %v310 = vld [vmem:[#allocation5 + $0x3c0] sm:$0xff]
    %v311 = vld [vmem:[#allocation5 + $0x3c8] sm:$0xff]
    %v312 = vld [vmem:[#allocation5 + $0x3d0] sm:$0xff]
    %v313 = vld [vmem:[#allocation5 + $0x3d8] sm:$0xff]
    %v314 = vld [vmem:[#allocation5 + $0x3e0] sm:$0xff]
    %v315 = vld [vmem:[#allocation5 + $0x3e8] sm:$0xff]
    %v316 = vld [vmem:[#allocation5 + $0x3f0] sm:$0xff]
    %v317 = vld [vmem:[#allocation5 + $0x3f8] sm:$0xff]
    %v318 = vld [vmem:[#allocation5 + $0x400] sm:$0xff]
    %v319 = vld [vmem:[#allocation5 + $0x408] sm:$0xff]
    %v320 = vld [vmem:[#allocation5 + $0x410] sm:$0xff]
    %v321 = vld [vmem:[#allocation5 + $0x418] sm:$0xff]
    %v322 = vld [vmem:[#allocation5 + $0x420] sm:$0xff]
    %v323 = vld [vmem:[#allocation5 + $0x428] sm:$0xff]
    %v324 = vld [vmem:[#allocation5 + $0x430] sm:$0xff]
    %v325 = vld [vmem:[#allocation5 + $0x438] sm:$0xff]
    %v326 = vld [vmem:[#allocation5 + $0x440] sm:$0xff]
    %v327 = vld [vmem:[#allocation5 + $0x448] sm:$0xff]
    %v328 = vld [vmem:[#allocation5 + $0x450] sm:$0xff]
    %v329 = vld [vmem:[#allocation5 + $0x458] sm:$0xff]
    %v330 = vld [vmem:[#allocation5 + $0x460] sm:$0xff]
    %v331 = vld [vmem:[#allocation5 + $0x468] sm:$0xff]
    %v332 = vld [vmem:[#allocation5 + $0x470] sm:$0xff]
    %v333 = vld [vmem:[#allocation5 + $0x478] sm:$0xff]
    %v334 = vld [vmem:[#allocation5 + $0x480] sm:$0xff]
    %v335 = vld [vmem:[#allocation5 + $0x488] sm:$0xff]
    %v336 = vld [vmem:[#allocation5 + $0x490] sm:$0xff]
    %v337 = vld [vmem:[#allocation5 + $0x498] sm:$0xff]
    %v338 = vld [vmem:[#allocation5 + $0x4a0] sm:$0xff]
    %v339 = vld [vmem:[#allocation5 + $0x4a8] sm:$0xff]
    %v340 = vld [vmem:[#allocation5 + $0x4b0] sm:$0xff]
    %v341 = vld [vmem:[#allocation5 + $0x4b8] sm:$0xff]
    %v342 = vld [vmem:[#allocation5 + $0x4c0] sm:$0xff]
    %v343 = vld [vmem:[#allocation5 + $0x4c8] sm:$0xff]
    %v344 = vld [vmem:[#allocation5 + $0x4d0] sm:$0xff]
    %v345 = vld [vmem:[#allocation5 + $0x4d8] sm:$0xff]
    %v346 = vld [vmem:[#allocation5 + $0x4e0] sm:$0xff]
    %v347 = vld [vmem:[#allocation5 + $0x4e8] sm:$0xff]
    %v348 = vld [vmem:[#allocation5 + $0x4f0] sm:$0xff]
    %v349 = vld [vmem:[#allocation5 + $0x4f8] sm:$0xff]
    %v350 = vld [vmem:[#allocation5 + $0x500] sm:$0xff]
    %v351 = vld [vmem:[#allocation5 + $0x508] sm:$0xff]
    %v352 = vld [vmem:[#allocation5 + $0x510] sm:$0xff]
    %v353 = vld [vmem:[#allocation5 + $0x518] sm:$0xff]
    %v354 = vld [vmem:[#allocation5 + $0x520] sm:$0xff]
    %v355 = vld [vmem:[#allocation5 + $0x528] sm:$0xff]
    %v356 = vld [vmem:[#allocation5 + $0x530] sm:$0xff]
    %v357 = vld [vmem:[#allocation5 + $0x538] sm:$0xff]
    %v358 = vld [vmem:[#allocation5 + $0x540] sm:$0xff]
    %v359 = vld [vmem:[#allocation5 + $0x548] sm:$0xff]
    %v360 = vld [vmem:[#allocation5 + $0x550] sm:$0xff]
    %v361 = vld [vmem:[#allocation5 + $0x558] sm:$0xff]
    %v362 = vld [vmem:[#allocation5 + $0x560] sm:$0xff]
    %v363 = vld [vmem:[#allocation5 + $0x568] sm:$0xff]
    %v364 = vld [vmem:[#allocation5 + $0x570] sm:$0xff]
    %v365 = vld [vmem:[#allocation5 + $0x578] sm:$0xff]
    %v366 = vld [vmem:[#allocation5 + $0x580] sm:$0xff]
    %v367 = vld [vmem:[#allocation5 + $0x588] sm:$0xff]
    %v368 = vld [vmem:[#allocation5 + $0x590] sm:$0xff]
    %v369 = vld [vmem:[#allocation5 + $0x598] sm:$0xff]
    %v370 = vld [vmem:[#allocation5 + $0x5a0] sm:$0xff]
    %v371 = vld [vmem:[#allocation5 + $0x5a8] sm:$0xff]
    %v372 = vld [vmem:[#allocation5 + $0x5b0] sm:$0xff]
    %v373 = vld [vmem:[#allocation5 + $0x5b8] sm:$0xff]
    %v374 = vld [vmem:[#allocation5 + $0x5c0] sm:$0xff]
    %v375 = vld [vmem:[#allocation5 + $0x5c8] sm:$0xff]
    %v376 = vld [vmem:[#allocation5 + $0x5d0] sm:$0xff]
    %v377 = vld [vmem:[#allocation5 + $0x5d8] sm:$0xff]
    %v378 = vld [vmem:[#allocation5 + $0x5e0] sm:$0xff]
    %v379 = vld [vmem:[#allocation5 + $0x5e8] sm:$0xff]
    %v380 = vld [vmem:[#allocation5 + $0x5f0] sm:$0xff]
    %v381 = vld [vmem:[#allocation5 + $0x5f8] sm:$0xff]
    %v382 = vld [vmem:[#allocation5 + $0x600] sm:$0xff]
    %v383 = vld [vmem:[#allocation5 + $0x608] sm:$0xff]
    %v384 = vld [vmem:[#allocation5 + $0x610] sm:$0xff]
    %v385 = vld [vmem:[#allocation5 + $0x618] sm:$0xff]
    %v386 = vld [vmem:[#allocation5 + $0x620] sm:$0xff]
    %v387 = vld [vmem:[#allocation5 + $0x628] sm:$0xff]
    %v388 = vld [vmem:[#allocation5 + $0x630] sm:$0xff]
    %v389 = vld [vmem:[#allocation5 + $0x638] sm:$0xff]
    %v390 = vld [vmem:[#allocation5 + $0x640] sm:$0xff]
    %v391 = vld [vmem:[#allocation5 + $0x648] sm:$0xff]
    %v392 = vld [vmem:[#allocation5 + $0x650] sm:$0xff]
    %v393 = vld [vmem:[#allocation5 + $0x658] sm:$0xff]
    %v394 = vld [vmem:[#allocation5 + $0x660] sm:$0xff]
    %v395 = vld [vmem:[#allocation5 + $0x668] sm:$0xff]
    %v396 = vld [vmem:[#allocation5 + $0x670] sm:$0xff]
    %v397 = vld [vmem:[#allocation5 + $0x678] sm:$0xff]
    %v398 = vld [vmem:[#allocation5 + $0x680] sm:$0xff]
    %v399 = vld [vmem:[#allocation5 + $0x688] sm:$0xff]
    %v400 = vld [vmem:[#allocation5 + $0x690] sm:$0xff]
    %v401 = vld [vmem:[#allocation5 + $0x698] sm:$0xff]
    %v402 = vld [vmem:[#allocation5 + $0x6a0] sm:$0xff]
    %v403 = vld [vmem:[#allocation5 + $0x6a8] sm:$0xff]
    %v404 = vld [vmem:[#allocation5 + $0x6b0] sm:$0xff]
    %v405 = vld [vmem:[#allocation5 + $0x6b8] sm:$0xff]
    %v406 = vld [vmem:[#allocation5 + $0x6c0] sm:$0xff]
    %v407 = vld [vmem:[#allocation5 + $0x6c8] sm:$0xff]
    %v408 = vld [vmem:[#allocation5 + $0x6d0] sm:$0xff]
    %v409 = vld [vmem:[#allocation5 + $0x6d8] sm:$0xff]
    %v410 = vld [vmem:[#allocation5 + $0x6e0] sm:$0xff]
    %v411 = vld [vmem:[#allocation5 + $0x6e8] sm:$0xff]
    %v412 = vld [vmem:[#allocation5 + $0x6f0] sm:$0xff]
    %v413 = vld [vmem:[#allocation5 + $0x6f8] sm:$0xff]
    %v414 = vld [vmem:[#allocation5 + $0x700] sm:$0xff]
    %v415 = vld [vmem:[#allocation5 + $0x708] sm:$0xff]
    %v416 = vld [vmem:[#allocation5 + $0x710] sm:$0xff]
    %v417 = vld [vmem:[#allocation5 + $0x718] sm:$0xff]
    %v418 = vld [vmem:[#allocation5 + $0x720] sm:$0xff]
    %v419 = vld [vmem:[#allocation5 + $0x728] sm:$0xff]
    %v420 = vld [vmem:[#allocation5 + $0x730] sm:$0xff]
    %v421 = vld [vmem:[#allocation5 + $0x738] sm:$0xff]
    %v422 = vld [vmem:[#allocation5 + $0x740] sm:$0xff]
    %v423 = vld [vmem:[#allocation5 + $0x748] sm:$0xff]
    %v424 = vld [vmem:[#allocation5 + $0x750] sm:$0xff]
    %v425 = vld [vmem:[#allocation5 + $0x758] sm:$0xff]
    %v426 = vld [vmem:[#allocation5 + $0x760] sm:$0xff]
    %v427 = vld [vmem:[#allocation5 + $0x768] sm:$0xff]
    %v428 = vld [vmem:[#allocation5 + $0x770] sm:$0xff]
    %v429 = vld [vmem:[#allocation5 + $0x778] sm:$0xff]
    %v430 = vld [vmem:[#allocation5 + $0x780] sm:$0xff]
    %v431 = vld [vmem:[#allocation5 + $0x788] sm:$0xff]
    %v432 = vld [vmem:[#allocation5 + $0x790] sm:$0xff]
    %v433 = vld [vmem:[#allocation5 + $0x798] sm:$0xff]
    %v434 = vld [vmem:[#allocation5 + $0x7a0] sm:$0xff]
    %v435 = vld [vmem:[#allocation5 + $0x7a8] sm:$0xff]
    %v436 = vld [vmem:[#allocation5 + $0x7b0] sm:$0xff]
    %v437 = vld [vmem:[#allocation5 + $0x7b8] sm:$0xff]
    %v438 = vld [vmem:[#allocation5 + $0x7c0] sm:$0xff]
    %v439 = vld [vmem:[#allocation5 + $0x7c8] sm:$0xff]
    %v440 = vld [vmem:[#allocation5 + $0x7d0] sm:$0xff]
    %v441 = vld [vmem:[#allocation5 + $0x7d8] sm:$0xff]
    %v442 = vld [vmem:[#allocation5 + $0x7e0] sm:$0xff]
    %v443 = vld [vmem:[#allocation5 + $0x7e8] sm:$0xff]
    %v444 = vld [vmem:[#allocation5 + $0x7f0] sm:$0xff]
    %v445 = vld [vmem:[#allocation5 + $0x7f8] sm:$0xff]
    %v446 = vld [vmem:[#allocation5 + $0x800] sm:$0xff]
    %v447 = vld [vmem:[#allocation5 + $0x808] sm:$0xff]
    %v448 = vld [vmem:[#allocation5 + $0x810] sm:$0xff]
    %v449 = vld [vmem:[#allocation5 + $0x818] sm:$0xff]
    %v450 = vld [vmem:[#allocation5 + $0x820] sm:$0xff]
    %v451 = vld [vmem:[#allocation5 + $0x828] sm:$0xff]
    %v452 = vld [vmem:[#allocation5 + $0x830] sm:$0xff]
    %v453 = vld [vmem:[#allocation5 + $0x838] sm:$0xff]
    %v454 = vld [vmem:[#allocation5 + $0x840] sm:$0xff]
    %v455 = vld [vmem:[#allocation5 + $0x848] sm:$0xff]
    %v456 = vld [vmem:[#allocation5 + $0x850] sm:$0xff]
    %v457 = vld [vmem:[#allocation5 + $0x858] sm:$0xff]
    %v458 = vld [vmem:[#allocation5 + $0x860] sm:$0xff]
    %v459 = vld [vmem:[#allocation5 + $0x868] sm:$0xff]
    %v460 = vld [vmem:[#allocation5 + $0x870] sm:$0xff]
    %v461 = vld [vmem:[#allocation5 + $0x878] sm:$0xff]
    %v462 = vld [vmem:[#allocation5 + $0x880] sm:$0xff]
    %v463 = vld [vmem:[#allocation5 + $0x888] sm:$0xff]
    %v464 = vld [vmem:[#allocation5 + $0x890] sm:$0xff]
    %v465 = vld [vmem:[#allocation5 + $0x898] sm:$0xff]
    %v466 = vld [vmem:[#allocation5 + $0x8a0] sm:$0xff]
    %v467 = vld [vmem:[#allocation5 + $0x8a8] sm:$0xff]
    %v468 = vld [vmem:[#allocation5 + $0x8b0] sm:$0xff]
    %v469 = vld [vmem:[#allocation5 + $0x8b8] sm:$0xff]
    %v470 = vld [vmem:[#allocation5 + $0x8c0] sm:$0xff]
    %v471 = vld [vmem:[#allocation5 + $0x8c8] sm:$0xff]
    %v472 = vld [vmem:[#allocation5 + $0x8d0] sm:$0xff]
    %v473 = vld [vmem:[#allocation5 + $0x8d8] sm:$0xff]
    %v474 = vld [vmem:[#allocation5 + $0x8e0] sm:$0xff]
    %v475 = vld [vmem:[#allocation5 + $0x8e8] sm:$0xff]
    %v476 = vld [vmem:[#allocation5 + $0x8f0] sm:$0xff]
    %v477 = vld [vmem:[#allocation5 + $0x8f8] sm:$0xff]
    %v478 = vld [vmem:[#allocation5 + $0x900] sm:$0xff]
    %v479 = vld [vmem:[#allocation5 + $0x908] sm:$0xff]
    %v480 = vld [vmem:[#allocation5 + $0x910] sm:$0xff]
    %v481 = vld [vmem:[#allocation5 + $0x918] sm:$0xff]
    %v482 = vld [vmem:[#allocation5 + $0x920] sm:$0xff]
    %v483 = vld [vmem:[#allocation5 + $0x928] sm:$0xff]
    %v484 = vld [vmem:[#allocation5 + $0x930] sm:$0xff]
    %v485 = vld [vmem:[#allocation5 + $0x938] sm:$0xff]
    %v486 = vld [vmem:[#allocation5 + $0x940] sm:$0xff]
    %v487 = vld [vmem:[#allocation5 + $0x948] sm:$0xff]
    %v488 = vld [vmem:[#allocation5 + $0x950] sm:$0xff]
    %v489 = vld [vmem:[#allocation5 + $0x958] sm:$0xff]
    %v490 = vld [vmem:[#allocation5 + $0x960] sm:$0xff]
    %v491 = vld [vmem:[#allocation5 + $0x968] sm:$0xff]
    %v492 = vld [vmem:[#allocation5 + $0x970] sm:$0xff]
    %v493 = vld [vmem:[#allocation5 + $0x978] sm:$0xff]
    %v494 = vld [vmem:[#allocation5 + $0x980] sm:$0xff]
    %v495 = vld [vmem:[#allocation5 + $0x988] sm:$0xff]
    %v496 = vld [vmem:[#allocation5 + $0x990] sm:$0xff]
    %v497 = vld [vmem:[#allocation5 + $0x998] sm:$0xff]
    %v498 = vld [vmem:[#allocation5 + $0x9a0] sm:$0xff]
    %v499 = vld [vmem:[#allocation5 + $0x9a8] sm:$0xff]
    %v500 = vld [vmem:[#allocation5 + $0x9b0] sm:$0xff]
    %v501 = vld [vmem:[#allocation5 + $0x9b8] sm:$0xff]
    %v502 = vld [vmem:[#allocation5 + $0x9c0] sm:$0xff]
    %v503 = vld [vmem:[#allocation5 + $0x9c8] sm:$0xff]
    %v504 = vld [vmem:[#allocation5 + $0x9d0] sm:$0xff]
    %v505 = vld [vmem:[#allocation5 + $0x9d8] sm:$0xff]
    %v506 = vld [vmem:[#allocation5 + $0x9e0] sm:$0xff]
    %v507 = vld [vmem:[#allocation5 + $0x9e8] sm:$0xff]
    %v508 = vld [vmem:[#allocation5 + $0x9f0] sm:$0xff]
    %v509 = vld [vmem:[#allocation5 + $0x9f8] sm:$0xff]
    %v510 = vld [vmem:[#allocation5 + $0xa00] sm:$0xff]
    %v511 = vld [vmem:[#allocation5 + $0xa08] sm:$0xff]
    %v512 = vld [vmem:[#allocation5 + $0xa10] sm:$0xff]
    %v513 = vld [vmem:[#allocation5 + $0xa18] sm:$0xff]
    %v514 = vld [vmem:[#allocation5 + $0xa20] sm:$0xff]
    %v515 = vld [vmem:[#allocation5 + $0xa28] sm:$0xff]
    %v516 = vld [vmem:[#allocation5 + $0xa30] sm:$0xff]
    %v517 = vld [vmem:[#allocation5 + $0xa38] sm:$0xff]
    %v518 = vld [vmem:[#allocation5 + $0xa40] sm:$0xff]
    %v519 = vld [vmem:[#allocation5 + $0xa48] sm:$0xff]
    %v520 = vld [vmem:[#allocation5 + $0xa50] sm:$0xff]
    %v521 = vld [vmem:[#allocation5 + $0xa58] sm:$0xff]
    %v522 = vld [vmem:[#allocation5 + $0xa60] sm:$0xff]
    %v523 = vld [vmem:[#allocation5 + $0xa68] sm:$0xff]
    %v524 = vld [vmem:[#allocation5 + $0xa70] sm:$0xff]
    %v525 = vld [vmem:[#allocation5 + $0xa78] sm:$0xff]
    %v526 = vld [vmem:[#allocation5 + $0xa80] sm:$0xff]
    %v527 = vld [vmem:[#allocation5 + $0xa88] sm:$0xff]
    %v528 = vld [vmem:[#allocation5 + $0xa90] sm:$0xff]
    %v529 = vld [vmem:[#allocation5 + $0xa98] sm:$0xff]
    %v530 = vld [vmem:[#allocation5 + $0xaa0] sm:$0xff]
    %v531 = vld [vmem:[#allocation5 + $0xaa8] sm:$0xff]
    %v532 = vld [vmem:[#allocation5 + $0xab0] sm:$0xff]
    %v533 = vld [vmem:[#allocation5 + $0xab8] sm:$0xff]
    %v534 = vld [vmem:[#allocation5 + $0xac0] sm:$0xff]
    %v535 = vld [vmem:[#allocation5 + $0xac8] sm:$0xff]
    %v536 = vld [vmem:[#allocation5 + $0xad0] sm:$0xff]
    %v537 = vld [vmem:[#allocation5 + $0xad8] sm:$0xff]
    %v538 = vld [vmem:[#allocation5 + $0xae0] sm:$0xff]
    %v539 = vld [vmem:[#allocation5 + $0xae8] sm:$0xff]
    %v540 = vld [vmem:[#allocation5 + $0xaf0] sm:$0xff]
    %v541 = vld [vmem:[#allocation5 + $0xaf8] sm:$0xff]
    %v542 = vld [vmem:[#allocation5 + $0xb00] sm:$0xff]
    %v543 = vld [vmem:[#allocation5 + $0xb08] sm:$0xff]
    %v544 = vld [vmem:[#allocation5 + $0xb10] sm:$0xff]
    %v545 = vld [vmem:[#allocation5 + $0xb18] sm:$0xff]
    %v546 = vld [vmem:[#allocation5 + $0xb20] sm:$0xff]
    %v547 = vld [vmem:[#allocation5 + $0xb28] sm:$0xff]
    %v548 = vld [vmem:[#allocation5 + $0xb30] sm:$0xff]
    %v549 = vld [vmem:[#allocation5 + $0xb38] sm:$0xff]
    %v550 = vld [vmem:[#allocation5 + $0xb40] sm:$0xff]
    %v551 = vld [vmem:[#allocation5 + $0xb48] sm:$0xff]
    %v552 = vld [vmem:[#allocation5 + $0xb50] sm:$0xff]
    %v553 = vld [vmem:[#allocation5 + $0xb58] sm:$0xff]
    %v554 = vld [vmem:[#allocation5 + $0xb60] sm:$0xff]
    %v555 = vld [vmem:[#allocation5 + $0xb68] sm:$0xff]
    %v556 = vld [vmem:[#allocation5 + $0xb70] sm:$0xff]
    %v557 = vld [vmem:[#allocation5 + $0xb78] sm:$0xff]
    %v558 = vld [vmem:[#allocation5 + $0xb80] sm:$0xff]
    %v559 = vld [vmem:[#allocation5 + $0xb88] sm:$0xff]
    %v560 = vld [vmem:[#allocation5 + $0xb90] sm:$0xff]
    %v561 = vld [vmem:[#allocation5 + $0xb98] sm:$0xff]
    %v562 = vld [vmem:[#allocation5 + $0xba0] sm:$0xff]
    %v563 = vld [vmem:[#allocation5 + $0xba8] sm:$0xff]
    %v564 = vld [vmem:[#allocation5 + $0xbb0] sm:$0xff]
    %v565 = vld [vmem:[#allocation5 + $0xbb8] sm:$0xff]
    %v566 = vld [vmem:[#allocation5 + $0xbc0] sm:$0xff]
    %v567 = vld [vmem:[#allocation5 + $0xbc8] sm:$0xff]
    %v568 = vld [vmem:[#allocation5 + $0xbd0] sm:$0xff]
    %v569 = vld [vmem:[#allocation5 + $0xbd8] sm:$0xff]
    %v570 = vld [vmem:[#allocation5 + $0xbe0] sm:$0xff]
    %v571 = vld [vmem:[#allocation5 + $0xbe8] sm:$0xff]
    %v572 = vld [vmem:[#allocation5 + $0xbf0] sm:$0xff]
    %v573 = vld [vmem:[#allocation5 + $0xbf8] sm:$0xff]
    %v574 = vld [vmem:[#allocation5 + $0xc00] sm:$0xff]
    %v575 = vld [vmem:[#allocation5 + $0xc08] sm:$0xff]
    %v576 = vld [vmem:[#allocation5 + $0xc10] sm:$0xff]
    %v577 = vld [vmem:[#allocation5 + $0xc18] sm:$0xff]
    %v578 = vld [vmem:[#allocation5 + $0xc20] sm:$0xff]
    %v579 = vld [vmem:[#allocation5 + $0xc28] sm:$0xff]
    %v580 = vld [vmem:[#allocation5 + $0xc30] sm:$0xff]
    %v581 = vld [vmem:[#allocation5 + $0xc38] sm:$0xff]
    %v582 = vld [vmem:[%s1] sm:$0xff]
    %v583 = vld [vmem:[%s1 + $0x8] sm:$0xff]
    %v584 = vld [vmem:[#allocation7] sm:$0xff]
    %v585 = vld [vmem:[#allocation7 + $0x8] sm:$0xff]
    %587 = vset.pattern.permute.xlu0 0
    %588 = vperm.xlu0 %587, %v582
    %v589 = vpop.permute.xlu0 %588
    %592 = vset.pattern.permute.xlu0 0
    %593 = vperm.xlu0 %592, %v583
    %v594 = vpop.permute.xlu0 %593
    %v598 = vperm.slane %v584, 0
    %v599 = vperm.slane %v584, 2
    %v600 = vperm.slane %v584, 4
    %v601 = vperm.slane %v584, 6
    %v602 = vperm.slane %v585, 0
    %v603 = vperm.slane %v585, 2
    %v604 = vperm.slane %v585, 4
    %v605 = vperm.slane %v585, 6
    %v614 = vperm.slane %v598, 0
    %v615 = vperm.slane %v599, 0
    %v616 = vperm.slane %v600, 0
    %v617 = vperm.slane %v601, 0
    %v618 = vperm.slane %v602, 0
    %v619 = vperm.slane %v603, 0
    %v620 = vperm.slane %v604, 0
    %v621 = vperm.slane %v605, 0
    %v622 = vmul.f32 %v589, %v614
    %v623 = vmul.f32 %v589, %v615
    %v624 = vmul.f32 %v589, %v616
    %v625 = vmul.f32 %v589, %v617
    %v626 = vmul.f32 %v589, %v618
    %v627 = vmul.f32 %v589, %v619
    %v628 = vmul.f32 %v589, %v620
    %v629 = vmul.f32 %v589, %v621
    %v630 = vmul.f32 %v594, %v614
    %v631 = vmul.f32 %v594, %v615
    %v632 = vmul.f32 %v594, %v616
    %v633 = vmul.f32 %v594, %v617
    %v634 = vmul.f32 %v594, %v618
    %v635 = vmul.f32 %v594, %v619
    %v636 = vmul.f32 %v594, %v620
    %v637 = vmul.f32 %v594, %v621
    %v1030 = vunpack.c.l.b16 %v190
    %v1031 = vunpack.c.h.b16 %v190
    %v1032 = vunpack.c.l.b16 %v191
    %v1033 = vunpack.c.h.b16 %v191
    %v1034 = vunpack.c.l.b16 %v192
    %v1035 = vunpack.c.h.b16 %v192
    %v1036 = vunpack.c.l.b16 %v193
    %v1037 = vunpack.c.h.b16 %v193
    %v1038 = vunpack.c.l.b16 %v194
    %v1039 = vunpack.c.h.b16 %v194
    %v1040 = vunpack.c.l.b16 %v195
    %v1041 = vunpack.c.h.b16 %v195
    %v1042 = vunpack.c.l.b16 %v196
    %v1043 = vunpack.c.h.b16 %v196
    %v1044 = vunpack.c.l.b16 %v197
    %v1045 = vunpack.c.h.b16 %v197
    %v1046 = vunpack.c.l.b16 %v198
    %v1047 = vunpack.c.h.b16 %v198
    %v1048 = vunpack.c.l.b16 %v199
    %v1049 = vunpack.c.h.b16 %v199
    %v1050 = vunpack.c.l.b16 %v200
    %v1051 = vunpack.c.h.b16 %v200
    %v1052 = vunpack.c.l.b16 %v201
    %v1053 = vunpack.c.h.b16 %v201
    %v1054 = vunpack.c.l.b16 %v202
    %v1055 = vunpack.c.h.b16 %v202
    %v1056 = vunpack.c.l.b16 %v203
    %v1057 = vunpack.c.h.b16 %v203
    %v1058 = vunpack.c.l.b16 %v204
    %v1059 = vunpack.c.h.b16 %v204
    %v1060 = vunpack.c.l.b16 %v205
    %v1061 = vunpack.c.h.b16 %v205
    %v1062 = vunpack.c.l.b16 %v206
    %v1063 = vunpack.c.h.b16 %v206
    %v1064 = vunpack.c.l.b16 %v207
    %v1065 = vunpack.c.h.b16 %v207
    %v1066 = vunpack.c.l.b16 %v208
    %v1067 = vunpack.c.h.b16 %v208
    %v1068 = vunpack.c.l.b16 %v209
    %v1069 = vunpack.c.h.b16 %v209
    %v1070 = vunpack.c.l.b16 %v210
    %v1071 = vunpack.c.h.b16 %v210
    %v1072 = vunpack.c.l.b16 %v211
    %v1073 = vunpack.c.h.b16 %v211
    %v1074 = vunpack.c.l.b16 %v212
    %v1075 = vunpack.c.h.b16 %v212
    %v1076 = vunpack.c.l.b16 %v213
    %v1077 = vunpack.c.h.b16 %v213
    %v1078 = vunpack.c.l.b16 %v214
    %v1079 = vunpack.c.h.b16 %v214
    %v1080 = vunpack.c.l.b16 %v215
    %v1081 = vunpack.c.h.b16 %v215
    %v1082 = vunpack.c.l.b16 %v216
    %v1083 = vunpack.c.h.b16 %v216
    %v1084 = vunpack.c.l.b16 %v217
    %v1085 = vunpack.c.h.b16 %v217
    %v1086 = vunpack.c.l.b16 %v218
    %v1087 = vunpack.c.h.b16 %v218
    %v1088 = vunpack.c.l.b16 %v219
    %v1089 = vunpack.c.h.b16 %v219
    %v1090 = vunpack.c.l.b16 %v220
    %v1091 = vunpack.c.h.b16 %v220
    %v1092 = vunpack.c.l.b16 %v221
    %v1093 = vunpack.c.h.b16 %v221
    %v1094 = vunpack.c.l.b16 %v222
    %v1095 = vunpack.c.h.b16 %v222
    %v1096 = vunpack.c.l.b16 %v223
    %v1097 = vunpack.c.h.b16 %v223
    %v1098 = vunpack.c.l.b16 %v224
    %v1099 = vunpack.c.h.b16 %v224
    %v1100 = vunpack.c.l.b16 %v225
    %v1101 = vunpack.c.h.b16 %v225
    %v1102 = vunpack.c.l.b16 %v226
    %v1103 = vunpack.c.h.b16 %v226
    %v1104 = vunpack.c.l.b16 %v227
    %v1105 = vunpack.c.h.b16 %v227
    %v1106 = vunpack.c.l.b16 %v228
    %v1107 = vunpack.c.h.b16 %v228
    %v1108 = vunpack.c.l.b16 %v229
    %v1109 = vunpack.c.h.b16 %v229
    %v1110 = vunpack.c.l.b16 %v230
    %v1111 = vunpack.c.h.b16 %v230
    %v1112 = vunpack.c.l.b16 %v231
    %v1113 = vunpack.c.h.b16 %v231
    %v1114 = vunpack.c.l.b16 %v232
    %v1115 = vunpack.c.h.b16 %v232
    %v1116 = vunpack.c.l.b16 %v233
    %v1117 = vunpack.c.h.b16 %v233
    %v1118 = vunpack.c.l.b16 %v234
    %v1119 = vunpack.c.h.b16 %v234
    %v1120 = vunpack.c.l.b16 %v235
    %v1121 = vunpack.c.h.b16 %v235
    %v1122 = vunpack.c.l.b16 %v236
    %v1123 = vunpack.c.h.b16 %v236
    %v1124 = vunpack.c.l.b16 %v237
    %v1125 = vunpack.c.h.b16 %v237
    %v1126 = vunpack.c.l.b16 %v238
    %v1127 = vunpack.c.h.b16 %v238
    %v1128 = vunpack.c.l.b16 %v239
    %v1129 = vunpack.c.h.b16 %v239
    %v1130 = vunpack.c.l.b16 %v240
    %v1131 = vunpack.c.h.b16 %v240
    %v1132 = vunpack.c.l.b16 %v241
    %v1133 = vunpack.c.h.b16 %v241
    %v1134 = vunpack.c.l.b16 %v242
    %v1135 = vunpack.c.h.b16 %v242
    %v1136 = vunpack.c.l.b16 %v243
    %v1137 = vunpack.c.h.b16 %v243
    %v1138 = vunpack.c.l.b16 %v244
    %v1139 = vunpack.c.h.b16 %v244
    %v1140 = vunpack.c.l.b16 %v245
    %v1141 = vunpack.c.h.b16 %v245
    %v1142 = vunpack.c.l.b16 %v246
    %v1143 = vunpack.c.h.b16 %v246
    %v1144 = vunpack.c.l.b16 %v247
    %v1145 = vunpack.c.h.b16 %v247
    %v1146 = vunpack.c.l.b16 %v248
    %v1147 = vunpack.c.h.b16 %v248
    %v1148 = vunpack.c.l.b16 %v249
    %v1149 = vunpack.c.h.b16 %v249
    %v1150 = vunpack.c.l.b16 %v250
    %v1151 = vunpack.c.h.b16 %v250
    %v1152 = vunpack.c.l.b16 %v251
    %v1153 = vunpack.c.h.b16 %v251
    %v1154 = vunpack.c.l.b16 %v252
    %v1155 = vunpack.c.h.b16 %v252
    %v1156 = vunpack.c.l.b16 %v253
    %v1157 = vunpack.c.h.b16 %v253
    %v1158 = vunpack.c.l.b16 %v254
    %v1159 = vunpack.c.h.b16 %v254
    %v1160 = vunpack.c.l.b16 %v255
    %v1161 = vunpack.c.h.b16 %v255
    %v1162 = vunpack.c.l.b16 %v256
    %v1163 = vunpack.c.h.b16 %v256
    %v1164 = vunpack.c.l.b16 %v257
    %v1165 = vunpack.c.h.b16 %v257
    %v1166 = vunpack.c.l.b16 %v258
    %v1167 = vunpack.c.h.b16 %v258
    %v1168 = vunpack.c.l.b16 %v259
    %v1169 = vunpack.c.h.b16 %v259
    %v1170 = vunpack.c.l.b16 %v260
    %v1171 = vunpack.c.h.b16 %v260
    %v1172 = vunpack.c.l.b16 %v261
    %v1173 = vunpack.c.h.b16 %v261
    %v1174 = vunpack.c.l.b16 %v262
    %v1175 = vunpack.c.h.b16 %v262
    %v1176 = vunpack.c.l.b16 %v263
    %v1177 = vunpack.c.h.b16 %v263
    %v1178 = vunpack.c.l.b16 %v264
    %v1179 = vunpack.c.h.b16 %v264
    %v1180 = vunpack.c.l.b16 %v265
    %v1181 = vunpack.c.h.b16 %v265
    %v1182 = vunpack.c.l.b16 %v266
    %v1183 = vunpack.c.h.b16 %v266
    %v1184 = vunpack.c.l.b16 %v267
    %v1185 = vunpack.c.h.b16 %v267
    %v1186 = vunpack.c.l.b16 %v268
    %v1187 = vunpack.c.h.b16 %v268
    %v1188 = vunpack.c.l.b16 %v269
    %v1189 = vunpack.c.h.b16 %v269
    %v1190 = vunpack.c.l.b16 %v270
    %v1191 = vunpack.c.h.b16 %v270
    %v1192 = vunpack.c.l.b16 %v271
    %v1193 = vunpack.c.h.b16 %v271
    %v1194 = vunpack.c.l.b16 %v272
    %v1195 = vunpack.c.h.b16 %v272
    %v1196 = vunpack.c.l.b16 %v273
    %v1197 = vunpack.c.h.b16 %v273
    %v1198 = vunpack.c.l.b16 %v274
    %v1199 = vunpack.c.h.b16 %v274
    %v1200 = vunpack.c.l.b16 %v275
    %v1201 = vunpack.c.h.b16 %v275
    %v1202 = vunpack.c.l.b16 %v276
    %v1203 = vunpack.c.h.b16 %v276
    %v1204 = vunpack.c.l.b16 %v277
    %v1205 = vunpack.c.h.b16 %v277
    %v1206 = vunpack.c.l.b16 %v278
    %v1207 = vunpack.c.h.b16 %v278
    %v1208 = vunpack.c.l.b16 %v279
    %v1209 = vunpack.c.h.b16 %v279
    %v1210 = vunpack.c.l.b16 %v280
    %v1211 = vunpack.c.h.b16 %v280
    %v1212 = vunpack.c.l.b16 %v281
    %v1213 = vunpack.c.h.b16 %v281
    %v1214 = vunpack.c.l.b16 %v282
    %v1215 = vunpack.c.h.b16 %v282
    %v1216 = vunpack.c.l.b16 %v283
    %v1217 = vunpack.c.h.b16 %v283
    %v1218 = vunpack.c.l.b16 %v284
    %v1219 = vunpack.c.h.b16 %v284
    %v1220 = vunpack.c.l.b16 %v285
    %v1221 = vunpack.c.h.b16 %v285
    %v1222 = vunpack.c.l.b16 %v286
    %v1223 = vunpack.c.h.b16 %v286
    %v1224 = vunpack.c.l.b16 %v287
    %v1225 = vunpack.c.h.b16 %v287
    %v1226 = vunpack.c.l.b16 %v288
    %v1227 = vunpack.c.h.b16 %v288
    %v1228 = vunpack.c.l.b16 %v289
    %v1229 = vunpack.c.h.b16 %v289
    %v1230 = vunpack.c.l.b16 %v290
    %v1231 = vunpack.c.h.b16 %v290
    %v1232 = vunpack.c.l.b16 %v291
    %v1233 = vunpack.c.h.b16 %v291
    %v1234 = vunpack.c.l.b16 %v292
    %v1235 = vunpack.c.h.b16 %v292
    %v1236 = vunpack.c.l.b16 %v293
    %v1237 = vunpack.c.h.b16 %v293
    %v1238 = vunpack.c.l.b16 %v294
    %v1239 = vunpack.c.h.b16 %v294
    %v1240 = vunpack.c.l.b16 %v295
    %v1241 = vunpack.c.h.b16 %v295
    %v1242 = vunpack.c.l.b16 %v296
    %v1243 = vunpack.c.h.b16 %v296
    %v1244 = vunpack.c.l.b16 %v297
    %v1245 = vunpack.c.h.b16 %v297
    %v1246 = vunpack.c.l.b16 %v298
    %v1247 = vunpack.c.h.b16 %v298
    %v1248 = vunpack.c.l.b16 %v299
    %v1249 = vunpack.c.h.b16 %v299
    %v1250 = vunpack.c.l.b16 %v300
    %v1251 = vunpack.c.h.b16 %v300
    %v1252 = vunpack.c.l.b16 %v301
    %v1253 = vunpack.c.h.b16 %v301
    %v1254 = vunpack.c.l.b16 %v302
    %v1255 = vunpack.c.h.b16 %v302
    %v1256 = vunpack.c.l.b16 %v303
    %v1257 = vunpack.c.h.b16 %v303
    %v1258 = vunpack.c.l.b16 %v304
    %v1259 = vunpack.c.h.b16 %v304
    %v1260 = vunpack.c.l.b16 %v305
    %v1261 = vunpack.c.h.b16 %v305
    %v1262 = vunpack.c.l.b16 %v306
    %v1263 = vunpack.c.h.b16 %v306
    %v1264 = vunpack.c.l.b16 %v307
    %v1265 = vunpack.c.h.b16 %v307
    %v1266 = vunpack.c.l.b16 %v308
    %v1267 = vunpack.c.h.b16 %v308
    %v1268 = vunpack.c.l.b16 %v309
    %v1269 = vunpack.c.h.b16 %v309
    %v1270 = vunpack.c.l.b16 %v310
    %v1271 = vunpack.c.h.b16 %v310
    %v1272 = vunpack.c.l.b16 %v311
    %v1273 = vunpack.c.h.b16 %v311
    %v1274 = vunpack.c.l.b16 %v312
    %v1275 = vunpack.c.h.b16 %v312
    %v1276 = vunpack.c.l.b16 %v313
    %v1277 = vunpack.c.h.b16 %v313
    %v1278 = vunpack.c.l.b16 %v314
    %v1279 = vunpack.c.h.b16 %v314
    %v1280 = vunpack.c.l.b16 %v315
    %v1281 = vunpack.c.h.b16 %v315
    %v1282 = vunpack.c.l.b16 %v316
    %v1283 = vunpack.c.h.b16 %v316
    %v1284 = vunpack.c.l.b16 %v317
    %v1285 = vunpack.c.h.b16 %v317
    %v1286 = vunpack.c.l.b16 %v318
    %v1287 = vunpack.c.h.b16 %v318
    %v1288 = vunpack.c.l.b16 %v319
    %v1289 = vunpack.c.h.b16 %v319
    %v1290 = vunpack.c.l.b16 %v320
    %v1291 = vunpack.c.h.b16 %v320
    %v1292 = vunpack.c.l.b16 %v321
    %v1293 = vunpack.c.h.b16 %v321
    %v1294 = vunpack.c.l.b16 %v322
    %v1295 = vunpack.c.h.b16 %v322
    %v1296 = vunpack.c.l.b16 %v323
    %v1297 = vunpack.c.h.b16 %v323
    %v1298 = vunpack.c.l.b16 %v324
    %v1299 = vunpack.c.h.b16 %v324
    %v1300 = vunpack.c.l.b16 %v325
    %v1301 = vunpack.c.h.b16 %v325
    %v1302 = vunpack.c.l.b16 %v326
    %v1303 = vunpack.c.h.b16 %v326
    %v1304 = vunpack.c.l.b16 %v327
    %v1305 = vunpack.c.h.b16 %v327
    %v1306 = vunpack.c.l.b16 %v328
    %v1307 = vunpack.c.h.b16 %v328
    %v1308 = vunpack.c.l.b16 %v329
    %v1309 = vunpack.c.h.b16 %v329
    %v1310 = vunpack.c.l.b16 %v330
    %v1311 = vunpack.c.h.b16 %v330
    %v1312 = vunpack.c.l.b16 %v331
    %v1313 = vunpack.c.h.b16 %v331
    %v1314 = vunpack.c.l.b16 %v332
    %v1315 = vunpack.c.h.b16 %v332
    %v1316 = vunpack.c.l.b16 %v333
    %v1317 = vunpack.c.h.b16 %v333
    %v1318 = vunpack.c.l.b16 %v334
    %v1319 = vunpack.c.h.b16 %v334
    %v1320 = vunpack.c.l.b16 %v335
    %v1321 = vunpack.c.h.b16 %v335
    %v1322 = vunpack.c.l.b16 %v336
    %v1323 = vunpack.c.h.b16 %v336
    %v1324 = vunpack.c.l.b16 %v337
    %v1325 = vunpack.c.h.b16 %v337
    %v1326 = vunpack.c.l.b16 %v338
    %v1327 = vunpack.c.h.b16 %v338
    %v1328 = vunpack.c.l.b16 %v339
    %v1329 = vunpack.c.h.b16 %v339
    %v1330 = vunpack.c.l.b16 %v340
    %v1331 = vunpack.c.h.b16 %v340
    %v1332 = vunpack.c.l.b16 %v341
    %v1333 = vunpack.c.h.b16 %v341
    %v1334 = vunpack.c.l.b16 %v342
    %v1335 = vunpack.c.h.b16 %v342
    %v1336 = vunpack.c.l.b16 %v343
    %v1337 = vunpack.c.h.b16 %v343
    %v1338 = vunpack.c.l.b16 %v344
    %v1339 = vunpack.c.h.b16 %v344
    %v1340 = vunpack.c.l.b16 %v345
    %v1341 = vunpack.c.h.b16 %v345
    %v1342 = vunpack.c.l.b16 %v346
    %v1343 = vunpack.c.h.b16 %v346
    %v1344 = vunpack.c.l.b16 %v347
    %v1345 = vunpack.c.h.b16 %v347
    %v1346 = vunpack.c.l.b16 %v348
    %v1347 = vunpack.c.h.b16 %v348
    %v1348 = vunpack.c.l.b16 %v349
    %v1349 = vunpack.c.h.b16 %v349
    %v1350 = vunpack.c.l.b16 %v350
    %v1351 = vunpack.c.h.b16 %v350
    %v1352 = vunpack.c.l.b16 %v351
    %v1353 = vunpack.c.h.b16 %v351
    %v1354 = vunpack.c.l.b16 %v352
    %v1355 = vunpack.c.h.b16 %v352
    %v1356 = vunpack.c.l.b16 %v353
    %v1357 = vunpack.c.h.b16 %v353
    %v1358 = vunpack.c.l.b16 %v354
    %v1359 = vunpack.c.h.b16 %v354
    %v1360 = vunpack.c.l.b16 %v355
    %v1361 = vunpack.c.h.b16 %v355
    %v1362 = vunpack.c.l.b16 %v356
    %v1363 = vunpack.c.h.b16 %v356
    %v1364 = vunpack.c.l.b16 %v357
    %v1365 = vunpack.c.h.b16 %v357
    %v1366 = vunpack.c.l.b16 %v358
    %v1367 = vunpack.c.h.b16 %v358
    %v1368 = vunpack.c.l.b16 %v359
    %v1369 = vunpack.c.h.b16 %v359
    %v1370 = vunpack.c.l.b16 %v360
    %v1371 = vunpack.c.h.b16 %v360
    %v1372 = vunpack.c.l.b16 %v361
    %v1373 = vunpack.c.h.b16 %v361
    %v1374 = vunpack.c.l.b16 %v362
    %v1375 = vunpack.c.h.b16 %v362
    %v1376 = vunpack.c.l.b16 %v363
    %v1377 = vunpack.c.h.b16 %v363
    %v1378 = vunpack.c.l.b16 %v364
    %v1379 = vunpack.c.h.b16 %v364
    %v1380 = vunpack.c.l.b16 %v365
    %v1381 = vunpack.c.h.b16 %v365
    %v1382 = vunpack.c.l.b16 %v366
    %v1383 = vunpack.c.h.b16 %v366
    %v1384 = vunpack.c.l.b16 %v367
    %v1385 = vunpack.c.h.b16 %v367
    %v1386 = vunpack.c.l.b16 %v368
    %v1387 = vunpack.c.h.b16 %v368
    %v1388 = vunpack.c.l.b16 %v369
    %v1389 = vunpack.c.h.b16 %v369
    %v1390 = vunpack.c.l.b16 %v370
    %v1391 = vunpack.c.h.b16 %v370
    %v1392 = vunpack.c.l.b16 %v371
    %v1393 = vunpack.c.h.b16 %v371
    %v1394 = vunpack.c.l.b16 %v372
    %v1395 = vunpack.c.h.b16 %v372
    %v1396 = vunpack.c.l.b16 %v373
    %v1397 = vunpack.c.h.b16 %v373
    %v1398 = vunpack.c.l.b16 %v374
    %v1399 = vunpack.c.h.b16 %v374
    %v1400 = vunpack.c.l.b16 %v375
    %v1401 = vunpack.c.h.b16 %v375
    %v1402 = vunpack.c.l.b16 %v376
    %v1403 = vunpack.c.h.b16 %v376
    %v1404 = vunpack.c.l.b16 %v377
    %v1405 = vunpack.c.h.b16 %v377
    %v1406 = vunpack.c.l.b16 %v378
    %v1407 = vunpack.c.h.b16 %v378
    %v1408 = vunpack.c.l.b16 %v379
    %v1409 = vunpack.c.h.b16 %v379
    %v1410 = vunpack.c.l.b16 %v380
    %v1411 = vunpack.c.h.b16 %v380
    %v1412 = vunpack.c.l.b16 %v381
    %v1413 = vunpack.c.h.b16 %v381
    %v1414 = vunpack.c.l.b16 %v382
    %v1415 = vunpack.c.h.b16 %v382
    %v1416 = vunpack.c.l.b16 %v383
    %v1417 = vunpack.c.h.b16 %v383
    %v1418 = vunpack.c.l.b16 %v384
    %v1419 = vunpack.c.h.b16 %v384
    %v1420 = vunpack.c.l.b16 %v385
    %v1421 = vunpack.c.h.b16 %v385
    %v1422 = vunpack.c.l.b16 %v386
    %v1423 = vunpack.c.h.b16 %v386
    %v1424 = vunpack.c.l.b16 %v387
    %v1425 = vunpack.c.h.b16 %v387
    %v1426 = vunpack.c.l.b16 %v388
    %v1427 = vunpack.c.h.b16 %v388
    %v1428 = vunpack.c.l.b16 %v389
    %v1429 = vunpack.c.h.b16 %v389
    %v1430 = vunpack.c.l.b16 %v390
    %v1431 = vunpack.c.h.b16 %v390
    %v1432 = vunpack.c.l.b16 %v391
    %v1433 = vunpack.c.h.b16 %v391
    %v1434 = vunpack.c.l.b16 %v392
    %v1435 = vunpack.c.h.b16 %v392
    %v1436 = vunpack.c.l.b16 %v393
    %v1437 = vunpack.c.h.b16 %v393
    %v1438 = vunpack.c.l.b16 %v394
    %v1439 = vunpack.c.h.b16 %v394
    %v1440 = vunpack.c.l.b16 %v395
    %v1441 = vunpack.c.h.b16 %v395
    %v1442 = vunpack.c.l.b16 %v396
    %v1443 = vunpack.c.h.b16 %v396
    %v1444 = vunpack.c.l.b16 %v397
    %v1445 = vunpack.c.h.b16 %v397
    %v1446 = vunpack.c.l.b16 %v398
    %v1447 = vunpack.c.h.b16 %v398
    %v1448 = vunpack.c.l.b16 %v399
    %v1449 = vunpack.c.h.b16 %v399
    %v1450 = vunpack.c.l.b16 %v400
    %v1451 = vunpack.c.h.b16 %v400
    %v1452 = vunpack.c.l.b16 %v401
    %v1453 = vunpack.c.h.b16 %v401
    %v1454 = vunpack.c.l.b16 %v402
    %v1455 = vunpack.c.h.b16 %v402
    %v1456 = vunpack.c.l.b16 %v403
    %v1457 = vunpack.c.h.b16 %v403
    %v1458 = vunpack.c.l.b16 %v404
    %v1459 = vunpack.c.h.b16 %v404
    %v1460 = vunpack.c.l.b16 %v405
    %v1461 = vunpack.c.h.b16 %v405
    %v1462 = vunpack.c.l.b16 %v406
    %v1463 = vunpack.c.h.b16 %v406
    %v1464 = vunpack.c.l.b16 %v407
    %v1465 = vunpack.c.h.b16 %v407
    %v1466 = vunpack.c.l.b16 %v408
    %v1467 = vunpack.c.h.b16 %v408
    %v1468 = vunpack.c.l.b16 %v409
    %v1469 = vunpack.c.h.b16 %v409
    %v1470 = vunpack.c.l.b16 %v410
    %v1471 = vunpack.c.h.b16 %v410
    %v1472 = vunpack.c.l.b16 %v411
    %v1473 = vunpack.c.h.b16 %v411
    %v1474 = vunpack.c.l.b16 %v412
    %v1475 = vunpack.c.h.b16 %v412
    %v1476 = vunpack.c.l.b16 %v413
    %v1477 = vunpack.c.h.b16 %v413
    %v1478 = vunpack.c.l.b16 %v414
    %v1479 = vunpack.c.h.b16 %v414
    %v1480 = vunpack.c.l.b16 %v415
    %v1481 = vunpack.c.h.b16 %v415
    %v1482 = vunpack.c.l.b16 %v416
    %v1483 = vunpack.c.h.b16 %v416
    %v1484 = vunpack.c.l.b16 %v417
    %v1485 = vunpack.c.h.b16 %v417
    %v1486 = vunpack.c.l.b16 %v418
    %v1487 = vunpack.c.h.b16 %v418
    %v1488 = vunpack.c.l.b16 %v419
    %v1489 = vunpack.c.h.b16 %v419
    %v1490 = vunpack.c.l.b16 %v420
    %v1491 = vunpack.c.h.b16 %v420
    %v1492 = vunpack.c.l.b16 %v421
    %v1493 = vunpack.c.h.b16 %v421
    %v1494 = vunpack.c.l.b16 %v422
    %v1495 = vunpack.c.h.b16 %v422
    %v1496 = vunpack.c.l.b16 %v423
    %v1497 = vunpack.c.h.b16 %v423
    %v1498 = vunpack.c.l.b16 %v424
    %v1499 = vunpack.c.h.b16 %v424
    %v1500 = vunpack.c.l.b16 %v425
    %v1501 = vunpack.c.h.b16 %v425
    %v1502 = vunpack.c.l.b16 %v426
    %v1503 = vunpack.c.h.b16 %v426
    %v1504 = vunpack.c.l.b16 %v427
    %v1505 = vunpack.c.h.b16 %v427
    %v1506 = vunpack.c.l.b16 %v428
    %v1507 = vunpack.c.h.b16 %v428
    %v1508 = vunpack.c.l.b16 %v429
    %v1509 = vunpack.c.h.b16 %v429
    %v1510 = vunpack.c.l.b16 %v430
    %v1511 = vunpack.c.h.b16 %v430
    %v1512 = vunpack.c.l.b16 %v431
    %v1513 = vunpack.c.h.b16 %v431
    %v1514 = vunpack.c.l.b16 %v432
    %v1515 = vunpack.c.h.b16 %v432
    %v1516 = vunpack.c.l.b16 %v433
    %v1517 = vunpack.c.h.b16 %v433
    %v1518 = vunpack.c.l.b16 %v434
    %v1519 = vunpack.c.h.b16 %v434
    %v1520 = vunpack.c.l.b16 %v435
    %v1521 = vunpack.c.h.b16 %v435
    %v1522 = vunpack.c.l.b16 %v436
    %v1523 = vunpack.c.h.b16 %v436
    %v1524 = vunpack.c.l.b16 %v437
    %v1525 = vunpack.c.h.b16 %v437
    %v1526 = vunpack.c.l.b16 %v438
    %v1527 = vunpack.c.h.b16 %v438
    %v1528 = vunpack.c.l.b16 %v439
    %v1529 = vunpack.c.h.b16 %v439
    %v1530 = vunpack.c.l.b16 %v440
    %v1531 = vunpack.c.h.b16 %v440
    %v1532 = vunpack.c.l.b16 %v441
    %v1533 = vunpack.c.h.b16 %v441
    %v1534 = vunpack.c.l.b16 %v442
    %v1535 = vunpack.c.h.b16 %v442
    %v1536 = vunpack.c.l.b16 %v443
    %v1537 = vunpack.c.h.b16 %v443
    %v1538 = vunpack.c.l.b16 %v444
    %v1539 = vunpack.c.h.b16 %v444
    %v1540 = vunpack.c.l.b16 %v445
    %v1541 = vunpack.c.h.b16 %v445
    %v1542 = vunpack.c.l.b16 %v446
    %v1543 = vunpack.c.h.b16 %v446
    %v1544 = vunpack.c.l.b16 %v447
    %v1545 = vunpack.c.h.b16 %v447
    %v1546 = vunpack.c.l.b16 %v448
    %v1547 = vunpack.c.h.b16 %v448
    %v1548 = vunpack.c.l.b16 %v449
    %v1549 = vunpack.c.h.b16 %v449
    %v1550 = vunpack.c.l.b16 %v450
    %v1551 = vunpack.c.h.b16 %v450
    %v1552 = vunpack.c.l.b16 %v451
    %v1553 = vunpack.c.h.b16 %v451
    %v1554 = vunpack.c.l.b16 %v452
    %v1555 = vunpack.c.h.b16 %v452
    %v1556 = vunpack.c.l.b16 %v453
    %v1557 = vunpack.c.h.b16 %v453
    %v1558 = vunpack.c.l.b16 %v454
    %v1559 = vunpack.c.h.b16 %v454
    %v1560 = vunpack.c.l.b16 %v455
    %v1561 = vunpack.c.h.b16 %v455
    %v1562 = vunpack.c.l.b16 %v456
    %v1563 = vunpack.c.h.b16 %v456
    %v1564 = vunpack.c.l.b16 %v457
    %v1565 = vunpack.c.h.b16 %v457
    %v1566 = vunpack.c.l.b16 %v458
    %v1567 = vunpack.c.h.b16 %v458
    %v1568 = vunpack.c.l.b16 %v459
    %v1569 = vunpack.c.h.b16 %v459
    %v1570 = vunpack.c.l.b16 %v460
    %v1571 = vunpack.c.h.b16 %v460
    %v1572 = vunpack.c.l.b16 %v461
    %v1573 = vunpack.c.h.b16 %v461
    %v1574 = vunpack.c.l.b16 %v462
    %v1575 = vunpack.c.h.b16 %v462
    %v1576 = vunpack.c.l.b16 %v463
    %v1577 = vunpack.c.h.b16 %v463
    %v1578 = vunpack.c.l.b16 %v464
    %v1579 = vunpack.c.h.b16 %v464
    %v1580 = vunpack.c.l.b16 %v465
    %v1581 = vunpack.c.h.b16 %v465
    %v1582 = vunpack.c.l.b16 %v466
    %v1583 = vunpack.c.h.b16 %v466
    %v1584 = vunpack.c.l.b16 %v467
    %v1585 = vunpack.c.h.b16 %v467
    %v1586 = vunpack.c.l.b16 %v468
    %v1587 = vunpack.c.h.b16 %v468
    %v1588 = vunpack.c.l.b16 %v469
    %v1589 = vunpack.c.h.b16 %v469
    %v1590 = vunpack.c.l.b16 %v470
    %v1591 = vunpack.c.h.b16 %v470
    %v1592 = vunpack.c.l.b16 %v471
    %v1593 = vunpack.c.h.b16 %v471
    %v1594 = vunpack.c.l.b16 %v472
    %v1595 = vunpack.c.h.b16 %v472
    %v1596 = vunpack.c.l.b16 %v473
    %v1597 = vunpack.c.h.b16 %v473
    %v1598 = vunpack.c.l.b16 %v474
    %v1599 = vunpack.c.h.b16 %v474
    %v1600 = vunpack.c.l.b16 %v475
    %v1601 = vunpack.c.h.b16 %v475
    %v1602 = vunpack.c.l.b16 %v476
    %v1603 = vunpack.c.h.b16 %v476
    %v1604 = vunpack.c.l.b16 %v477
    %v1605 = vunpack.c.h.b16 %v477
    %v1606 = vunpack.c.l.b16 %v478
    %v1607 = vunpack.c.h.b16 %v478
    %v1608 = vunpack.c.l.b16 %v479
    %v1609 = vunpack.c.h.b16 %v479
    %v1610 = vunpack.c.l.b16 %v480
    %v1611 = vunpack.c.h.b16 %v480
    %v1612 = vunpack.c.l.b16 %v481
    %v1613 = vunpack.c.h.b16 %v481
    %v1614 = vunpack.c.l.b16 %v482
    %v1615 = vunpack.c.h.b16 %v482
    %v1616 = vunpack.c.l.b16 %v483
    %v1617 = vunpack.c.h.b16 %v483
    %v1618 = vunpack.c.l.b16 %v484
    %v1619 = vunpack.c.h.b16 %v484
    %v1620 = vunpack.c.l.b16 %v485
    %v1621 = vunpack.c.h.b16 %v485
    %v1622 = vunpack.c.l.b16 %v486
    %v1623 = vunpack.c.h.b16 %v486
    %v1624 = vunpack.c.l.b16 %v487
    %v1625 = vunpack.c.h.b16 %v487
    %v1626 = vunpack.c.l.b16 %v488
    %v1627 = vunpack.c.h.b16 %v488
    %v1628 = vunpack.c.l.b16 %v489
    %v1629 = vunpack.c.h.b16 %v489
    %v1630 = vunpack.c.l.b16 %v490
    %v1631 = vunpack.c.h.b16 %v490
    %v1632 = vunpack.c.l.b16 %v491
    %v1633 = vunpack.c.h.b16 %v491
    %v1634 = vunpack.c.l.b16 %v492
    %v1635 = vunpack.c.h.b16 %v492
    %v1636 = vunpack.c.l.b16 %v493
    %v1637 = vunpack.c.h.b16 %v493
    %v1638 = vunpack.c.l.b16 %v494
    %v1639 = vunpack.c.h.b16 %v494
    %v1640 = vunpack.c.l.b16 %v495
    %v1641 = vunpack.c.h.b16 %v495
    %v1642 = vunpack.c.l.b16 %v496
    %v1643 = vunpack.c.h.b16 %v496
    %v1644 = vunpack.c.l.b16 %v497
    %v1645 = vunpack.c.h.b16 %v497
    %v1646 = vunpack.c.l.b16 %v498
    %v1647 = vunpack.c.h.b16 %v498
    %v1648 = vunpack.c.l.b16 %v499
    %v1649 = vunpack.c.h.b16 %v499
    %v1650 = vunpack.c.l.b16 %v500
    %v1651 = vunpack.c.h.b16 %v500
    %v1652 = vunpack.c.l.b16 %v501
    %v1653 = vunpack.c.h.b16 %v501
    %v1654 = vunpack.c.l.b16 %v502
    %v1655 = vunpack.c.h.b16 %v502
    %v1656 = vunpack.c.l.b16 %v503
    %v1657 = vunpack.c.h.b16 %v503
    %v1658 = vunpack.c.l.b16 %v504
    %v1659 = vunpack.c.h.b16 %v504
    %v1660 = vunpack.c.l.b16 %v505
    %v1661 = vunpack.c.h.b16 %v505
    %v1662 = vunpack.c.l.b16 %v506
    %v1663 = vunpack.c.h.b16 %v506
    %v1664 = vunpack.c.l.b16 %v507
    %v1665 = vunpack.c.h.b16 %v507
    %v1666 = vunpack.c.l.b16 %v508
    %v1667 = vunpack.c.h.b16 %v508
    %v1668 = vunpack.c.l.b16 %v509
    %v1669 = vunpack.c.h.b16 %v509
    %v1670 = vunpack.c.l.b16 %v510
    %v1671 = vunpack.c.h.b16 %v510
    %v1672 = vunpack.c.l.b16 %v511
    %v1673 = vunpack.c.h.b16 %v511
    %v1674 = vunpack.c.l.b16 %v512
    %v1675 = vunpack.c.h.b16 %v512
    %v1676 = vunpack.c.l.b16 %v513
    %v1677 = vunpack.c.h.b16 %v513
    %v1678 = vunpack.c.l.b16 %v514
    %v1679 = vunpack.c.h.b16 %v514
    %v1680 = vunpack.c.l.b16 %v515
    %v1681 = vunpack.c.h.b16 %v515
    %v1682 = vunpack.c.l.b16 %v516
    %v1683 = vunpack.c.h.b16 %v516
    %v1684 = vunpack.c.l.b16 %v517
    %v1685 = vunpack.c.h.b16 %v517
    %v1686 = vunpack.c.l.b16 %v518
    %v1687 = vunpack.c.h.b16 %v518
    %v1688 = vunpack.c.l.b16 %v519
    %v1689 = vunpack.c.h.b16 %v519
    %v1690 = vunpack.c.l.b16 %v520
    %v1691 = vunpack.c.h.b16 %v520
    %v1692 = vunpack.c.l.b16 %v521
    %v1693 = vunpack.c.h.b16 %v521
    %v1694 = vunpack.c.l.b16 %v522
    %v1695 = vunpack.c.h.b16 %v522
    %v1696 = vunpack.c.l.b16 %v523
    %v1697 = vunpack.c.h.b16 %v523
    %v1698 = vunpack.c.l.b16 %v524
    %v1699 = vunpack.c.h.b16 %v524
    %v1700 = vunpack.c.l.b16 %v525
    %v1701 = vunpack.c.h.b16 %v525
    %v1702 = vunpack.c.l.b16 %v526
    %v1703 = vunpack.c.h.b16 %v526
    %v1704 = vunpack.c.l.b16 %v527
    %v1705 = vunpack.c.h.b16 %v527
    %v1706 = vunpack.c.l.b16 %v528
    %v1707 = vunpack.c.h.b16 %v528
    %v1708 = vunpack.c.l.b16 %v529
    %v1709 = vunpack.c.h.b16 %v529
    %v1710 = vunpack.c.l.b16 %v530
    %v1711 = vunpack.c.h.b16 %v530
    %v1712 = vunpack.c.l.b16 %v531
    %v1713 = vunpack.c.h.b16 %v531
    %v1714 = vunpack.c.l.b16 %v532
    %v1715 = vunpack.c.h.b16 %v532
    %v1716 = vunpack.c.l.b16 %v533
    %v1717 = vunpack.c.h.b16 %v533
    %v1718 = vunpack.c.l.b16 %v534
    %v1719 = vunpack.c.h.b16 %v534
    %v1720 = vunpack.c.l.b16 %v535
    %v1721 = vunpack.c.h.b16 %v535
    %v1722 = vunpack.c.l.b16 %v536
    %v1723 = vunpack.c.h.b16 %v536
    %v1724 = vunpack.c.l.b16 %v537
    %v1725 = vunpack.c.h.b16 %v537
    %v1726 = vunpack.c.l.b16 %v538
    %v1727 = vunpack.c.h.b16 %v538
    %v1728 = vunpack.c.l.b16 %v539
    %v1729 = vunpack.c.h.b16 %v539
    %v1730 = vunpack.c.l.b16 %v540
    %v1731 = vunpack.c.h.b16 %v540
    %v1732 = vunpack.c.l.b16 %v541
    %v1733 = vunpack.c.h.b16 %v541
    %v1734 = vunpack.c.l.b16 %v542
    %v1735 = vunpack.c.h.b16 %v542
    %v1736 = vunpack.c.l.b16 %v543
    %v1737 = vunpack.c.h.b16 %v543
    %v1738 = vunpack.c.l.b16 %v544
    %v1739 = vunpack.c.h.b16 %v544
    %v1740 = vunpack.c.l.b16 %v545
    %v1741 = vunpack.c.h.b16 %v545
    %v1742 = vunpack.c.l.b16 %v546
    %v1743 = vunpack.c.h.b16 %v546
    %v1744 = vunpack.c.l.b16 %v547
    %v1745 = vunpack.c.h.b16 %v547
    %v1746 = vunpack.c.l.b16 %v548
    %v1747 = vunpack.c.h.b16 %v548
    %v1748 = vunpack.c.l.b16 %v549
    %v1749 = vunpack.c.h.b16 %v549
    %v1750 = vunpack.c.l.b16 %v550
    %v1751 = vunpack.c.h.b16 %v550
    %v1752 = vunpack.c.l.b16 %v551
    %v1753 = vunpack.c.h.b16 %v551
    %v1754 = vunpack.c.l.b16 %v552
    %v1755 = vunpack.c.h.b16 %v552
    %v1756 = vunpack.c.l.b16 %v553
    %v1757 = vunpack.c.h.b16 %v553
    %v1758 = vunpack.c.l.b16 %v554
    %v1759 = vunpack.c.h.b16 %v554
    %v1760 = vunpack.c.l.b16 %v555
    %v1761 = vunpack.c.h.b16 %v555
    %v1762 = vunpack.c.l.b16 %v556
    %v1763 = vunpack.c.h.b16 %v556
    %v1764 = vunpack.c.l.b16 %v557
    %v1765 = vunpack.c.h.b16 %v557
    %v1766 = vunpack.c.l.b16 %v558
    %v1767 = vunpack.c.h.b16 %v558
    %v1768 = vunpack.c.l.b16 %v559
    %v1769 = vunpack.c.h.b16 %v559
    %v1770 = vunpack.c.l.b16 %v560
    %v1771 = vunpack.c.h.b16 %v560
    %v1772 = vunpack.c.l.b16 %v561
    %v1773 = vunpack.c.h.b16 %v561
    %v1774 = vunpack.c.l.b16 %v562
    %v1775 = vunpack.c.h.b16 %v562
    %v1776 = vunpack.c.l.b16 %v563
    %v1777 = vunpack.c.h.b16 %v563
    %v1778 = vunpack.c.l.b16 %v564
    %v1779 = vunpack.c.h.b16 %v564
    %v1780 = vunpack.c.l.b16 %v565
    %v1781 = vunpack.c.h.b16 %v565
    %v1782 = vunpack.c.l.b16 %v566
    %v1783 = vunpack.c.h.b16 %v566
    %v1784 = vunpack.c.l.b16 %v567
    %v1785 = vunpack.c.h.b16 %v567
    %v1786 = vunpack.c.l.b16 %v568
    %v1787 = vunpack.c.h.b16 %v568
    %v1788 = vunpack.c.l.b16 %v569
    %v1789 = vunpack.c.h.b16 %v569
    %v1790 = vunpack.c.l.b16 %v570
    %v1791 = vunpack.c.h.b16 %v570
    %v1792 = vunpack.c.l.b16 %v571
    %v1793 = vunpack.c.h.b16 %v571
    %v1794 = vunpack.c.l.b16 %v572
    %v1795 = vunpack.c.h.b16 %v572
    %v1796 = vunpack.c.l.b16 %v573
    %v1797 = vunpack.c.h.b16 %v573
    %v1798 = vunpack.c.l.b16 %v574
    %v1799 = vunpack.c.h.b16 %v574
    %v1800 = vunpack.c.l.b16 %v575
    %v1801 = vunpack.c.h.b16 %v575
    %v1802 = vunpack.c.l.b16 %v576
    %v1803 = vunpack.c.h.b16 %v576
    %v1804 = vunpack.c.l.b16 %v577
    %v1805 = vunpack.c.h.b16 %v577
    %v1806 = vunpack.c.l.b16 %v578
    %v1807 = vunpack.c.h.b16 %v578
    %v1808 = vunpack.c.l.b16 %v579
    %v1809 = vunpack.c.h.b16 %v579
    %v1810 = vunpack.c.l.b16 %v580
    %v1811 = vunpack.c.h.b16 %v580
    %v1812 = vunpack.c.l.b16 %v581
    %v1813 = vunpack.c.h.b16 %v581
    %v1814 = vpack.c.b16 %v1038, %v1030
    %v1815 = vpack.c.b16 %v1039, %v1031
    %v1816 = vpack.c.b16 %v1040, %v1032
    %v1817 = vpack.c.b16 %v1041, %v1033
    %v1818 = vpack.c.b16 %v1042, %v1034
    %v1819 = vpack.c.b16 %v1043, %v1035
    %v1820 = vpack.c.b16 %v1044, %v1036
    %v1821 = vpack.c.b16 %v1045, %v1037
    %v1822 = vpack.c.b16 %v1054, %v1046
    %v1823 = vpack.c.b16 %v1055, %v1047
    %v1824 = vpack.c.b16 %v1056, %v1048
    %v1825 = vpack.c.b16 %v1057, %v1049
    %v1826 = vpack.c.b16 %v1058, %v1050
    %v1827 = vpack.c.b16 %v1059, %v1051
    %v1828 = vpack.c.b16 %v1060, %v1052
    %v1829 = vpack.c.b16 %v1061, %v1053
    %v1830 = vpack.c.b16 %v1070, %v1062
    %v1831 = vpack.c.b16 %v1071, %v1063
    %v1832 = vpack.c.b16 %v1072, %v1064
    %v1833 = vpack.c.b16 %v1073, %v1065
    %v1834 = vpack.c.b16 %v1074, %v1066
    %v1835 = vpack.c.b16 %v1075, %v1067
    %v1836 = vpack.c.b16 %v1076, %v1068
    %v1837 = vpack.c.b16 %v1077, %v1069
    %v1838 = vpack.c.b16 %v1086, %v1078
    %v1839 = vpack.c.b16 %v1087, %v1079
    %v1840 = vpack.c.b16 %v1088, %v1080
    %v1841 = vpack.c.b16 %v1089, %v1081
    %v1842 = vpack.c.b16 %v1090, %v1082
    %v1843 = vpack.c.b16 %v1091, %v1083
    %v1844 = vpack.c.b16 %v1092, %v1084
    %v1845 = vpack.c.b16 %v1093, %v1085
    %v1846 = vpack.c.b16 %v1102, %v1094
    %v1847 = vpack.c.b16 %v1103, %v1095
    %v1848 = vpack.c.b16 %v1104, %v1096
    %v1849 = vpack.c.b16 %v1105, %v1097
    %v1850 = vpack.c.b16 %v1106, %v1098
    %v1851 = vpack.c.b16 %v1107, %v1099
    %v1852 = vpack.c.b16 %v1108, %v1100
    %v1853 = vpack.c.b16 %v1109, %v1101
    %v1854 = vpack.c.b16 %v1118, %v1110
    %v1855 = vpack.c.b16 %v1119, %v1111
    %v1856 = vpack.c.b16 %v1120, %v1112
    %v1857 = vpack.c.b16 %v1121, %v1113
    %v1858 = vpack.c.b16 %v1122, %v1114
    %v1859 = vpack.c.b16 %v1123, %v1115
    %v1860 = vpack.c.b16 %v1124, %v1116
    %v1861 = vpack.c.b16 %v1125, %v1117
    %v1862 = vpack.c.b16 %v1134, %v1126
    %v1863 = vpack.c.b16 %v1135, %v1127
    %v1864 = vpack.c.b16 %v1136, %v1128
    %v1865 = vpack.c.b16 %v1137, %v1129
    %v1866 = vpack.c.b16 %v1138, %v1130
    %v1867 = vpack.c.b16 %v1139, %v1131
    %v1868 = vpack.c.b16 %v1140, %v1132
    %v1869 = vpack.c.b16 %v1141, %v1133
    %v1870 = vpack.c.b16 %v1150, %v1142
    %v1871 = vpack.c.b16 %v1151, %v1143
    %v1872 = vpack.c.b16 %v1152, %v1144
    %v1873 = vpack.c.b16 %v1153, %v1145
    %v1874 = vpack.c.b16 %v1154, %v1146
    %v1875 = vpack.c.b16 %v1155, %v1147
    %v1876 = vpack.c.b16 %v1156, %v1148
    %v1877 = vpack.c.b16 %v1157, %v1149
    %v1878 = vpack.c.b16 %v1166, %v1158
    %v1879 = vpack.c.b16 %v1167, %v1159
    %v1880 = vpack.c.b16 %v1168, %v1160
    %v1881 = vpack.c.b16 %v1169, %v1161
    %v1882 = vpack.c.b16 %v1170, %v1162
    %v1883 = vpack.c.b16 %v1171, %v1163
    %v1884 = vpack.c.b16 %v1172, %v1164
    %v1885 = vpack.c.b16 %v1173, %v1165
    %v1886 = vpack.c.b16 %v1182, %v1174
    %v1887 = vpack.c.b16 %v1183, %v1175
    %v1888 = vpack.c.b16 %v1184, %v1176
    %v1889 = vpack.c.b16 %v1185, %v1177
    %v1890 = vpack.c.b16 %v1186, %v1178
    %v1891 = vpack.c.b16 %v1187, %v1179
    %v1892 = vpack.c.b16 %v1188, %v1180
    %v1893 = vpack.c.b16 %v1189, %v1181
    %v1894 = vpack.c.b16 %v1198, %v1190
    %v1895 = vpack.c.b16 %v1199, %v1191
    %v1896 = vpack.c.b16 %v1200, %v1192
    %v1897 = vpack.c.b16 %v1201, %v1193
    %v1898 = vpack.c.b16 %v1202, %v1194
    %v1899 = vpack.c.b16 %v1203, %v1195
    %v1900 = vpack.c.b16 %v1204, %v1196
    %v1901 = vpack.c.b16 %v1205, %v1197
    %v1902 = vpack.c.b16 %v1214, %v1206
    %v1903 = vpack.c.b16 %v1215, %v1207
    %v1904 = vpack.c.b16 %v1216, %v1208
    %v1905 = vpack.c.b16 %v1217, %v1209
    %v1906 = vpack.c.b16 %v1218, %v1210
    %v1907 = vpack.c.b16 %v1219, %v1211
    %v1908 = vpack.c.b16 %v1220, %v1212
    %v1909 = vpack.c.b16 %v1221, %v1213
    %v1910 = vpack.c.b16 %v1230, %v1222
    %v1911 = vpack.c.b16 %v1231, %v1223
    %v1912 = vpack.c.b16 %v1232, %v1224
    %v1913 = vpack.c.b16 %v1233, %v1225
    %v1914 = vpack.c.b16 %v1234, %v1226
    %v1915 = vpack.c.b16 %v1235, %v1227
    %v1916 = vpack.c.b16 %v1236, %v1228
    %v1917 = vpack.c.b16 %v1237, %v1229
    %v1918 = vpack.c.b16 %v1246, %v1238
    %v1919 = vpack.c.b16 %v1247, %v1239
    %v1920 = vpack.c.b16 %v1248, %v1240
    %v1921 = vpack.c.b16 %v1249, %v1241
    %v1922 = vpack.c.b16 %v1250, %v1242
    %v1923 = vpack.c.b16 %v1251, %v1243
    %v1924 = vpack.c.b16 %v1252, %v1244
    %v1925 = vpack.c.b16 %v1253, %v1245
    %v1926 = vpack.c.b16 %v1262, %v1254
    %v1927 = vpack.c.b16 %v1263, %v1255
    %v1928 = vpack.c.b16 %v1264, %v1256
    %v1929 = vpack.c.b16 %v1265, %v1257
    %v1930 = vpack.c.b16 %v1266, %v1258
    %v1931 = vpack.c.b16 %v1267, %v1259
    %v1932 = vpack.c.b16 %v1268, %v1260
    %v1933 = vpack.c.b16 %v1269, %v1261
    %v1934 = vpack.c.b16 %v1278, %v1270
    %v1935 = vpack.c.b16 %v1279, %v1271
    %v1936 = vpack.c.b16 %v1280, %v1272
    %v1937 = vpack.c.b16 %v1281, %v1273
    %v1938 = vpack.c.b16 %v1282, %v1274
    %v1939 = vpack.c.b16 %v1283, %v1275
    %v1940 = vpack.c.b16 %v1284, %v1276
    %v1941 = vpack.c.b16 %v1285, %v1277
    %v1942 = vpack.c.b16 %v1294, %v1286
    %v1943 = vpack.c.b16 %v1295, %v1287
    %v1944 = vpack.c.b16 %v1296, %v1288
    %v1945 = vpack.c.b16 %v1297, %v1289
    %v1946 = vpack.c.b16 %v1298, %v1290
    %v1947 = vpack.c.b16 %v1299, %v1291
    %v1948 = vpack.c.b16 %v1300, %v1292
    %v1949 = vpack.c.b16 %v1301, %v1293
    %v1950 = vpack.c.b16 %v1310, %v1302
    %v1951 = vpack.c.b16 %v1311, %v1303
    %v1952 = vpack.c.b16 %v1312, %v1304
    %v1953 = vpack.c.b16 %v1313, %v1305
    %v1954 = vpack.c.b16 %v1314, %v1306
    %v1955 = vpack.c.b16 %v1315, %v1307
    %v1956 = vpack.c.b16 %v1316, %v1308
    %v1957 = vpack.c.b16 %v1317, %v1309
    %v1958 = vpack.c.b16 %v1326, %v1318
    %v1959 = vpack.c.b16 %v1327, %v1319
    %v1960 = vpack.c.b16 %v1328, %v1320
    %v1961 = vpack.c.b16 %v1329, %v1321
    %v1962 = vpack.c.b16 %v1330, %v1322
    %v1963 = vpack.c.b16 %v1331, %v1323
    %v1964 = vpack.c.b16 %v1332, %v1324
    %v1965 = vpack.c.b16 %v1333, %v1325
    %v1966 = vpack.c.b16 %v1342, %v1334
    %v1967 = vpack.c.b16 %v1343, %v1335
    %v1968 = vpack.c.b16 %v1344, %v1336
    %v1969 = vpack.c.b16 %v1345, %v1337
    %v1970 = vpack.c.b16 %v1346, %v1338
    %v1971 = vpack.c.b16 %v1347, %v1339
    %v1972 = vpack.c.b16 %v1348, %v1340
    %v1973 = vpack.c.b16 %v1349, %v1341
    %v1974 = vpack.c.b16 %v1358, %v1350
    %v1975 = vpack.c.b16 %v1359, %v1351
    %v1976 = vpack.c.b16 %v1360, %v1352
    %v1977 = vpack.c.b16 %v1361, %v1353
    %v1978 = vpack.c.b16 %v1362, %v1354
    %v1979 = vpack.c.b16 %v1363, %v1355
    %v1980 = vpack.c.b16 %v1364, %v1356
    %v1981 = vpack.c.b16 %v1365, %v1357
    %v1982 = vpack.c.b16 %v1374, %v1366
    %v1983 = vpack.c.b16 %v1375, %v1367
    %v1984 = vpack.c.b16 %v1376, %v1368
    %v1985 = vpack.c.b16 %v1377, %v1369
    %v1986 = vpack.c.b16 %v1378, %v1370
    %v1987 = vpack.c.b16 %v1379, %v1371
    %v1988 = vpack.c.b16 %v1380, %v1372
    %v1989 = vpack.c.b16 %v1381, %v1373
    %v1990 = vpack.c.b16 %v1390, %v1382
    %v1991 = vpack.c.b16 %v1391, %v1383
    %v1992 = vpack.c.b16 %v1392, %v1384
    %v1993 = vpack.c.b16 %v1393, %v1385
    %v1994 = vpack.c.b16 %v1394, %v1386
    %v1995 = vpack.c.b16 %v1395, %v1387
    %v1996 = vpack.c.b16 %v1396, %v1388
    %v1997 = vpack.c.b16 %v1397, %v1389
    %v1998 = vpack.c.b16 %v1406, %v1398
    %v1999 = vpack.c.b16 %v1407, %v1399
    %v2000 = vpack.c.b16 %v1408, %v1400
    %v2001 = vpack.c.b16 %v1409, %v1401
    %v2002 = vpack.c.b16 %v1410, %v1402
    %v2003 = vpack.c.b16 %v1411, %v1403
    %v2004 = vpack.c.b16 %v1412, %v1404
    %v2005 = vpack.c.b16 %v1413, %v1405
    %v2006 = vpack.c.b16 %v1422, %v1414
    %v2007 = vpack.c.b16 %v1423, %v1415
    %v2008 = vpack.c.b16 %v1424, %v1416
    %v2009 = vpack.c.b16 %v1425, %v1417
    %v2010 = vpack.c.b16 %v1426, %v1418
    %v2011 = vpack.c.b16 %v1427, %v1419
    %v2012 = vpack.c.b16 %v1428, %v1420
    %v2013 = vpack.c.b16 %v1429, %v1421
    %v2014 = vpack.c.b16 %v1438, %v1430
    %v2015 = vpack.c.b16 %v1439, %v1431
    %v2016 = vpack.c.b16 %v1440, %v1432
    %v2017 = vpack.c.b16 %v1441, %v1433
    %v2018 = vpack.c.b16 %v1442, %v1434
    %v2019 = vpack.c.b16 %v1443, %v1435
    %v2020 = vpack.c.b16 %v1444, %v1436
    %v2021 = vpack.c.b16 %v1445, %v1437
    %v2022 = vpack.c.b16 %v1454, %v1446
    %v2023 = vpack.c.b16 %v1455, %v1447
    %v2024 = vpack.c.b16 %v1456, %v1448
    %v2025 = vpack.c.b16 %v1457, %v1449
    %v2026 = vpack.c.b16 %v1458, %v1450
    %v2027 = vpack.c.b16 %v1459, %v1451
    %v2028 = vpack.c.b16 %v1460, %v1452
    %v2029 = vpack.c.b16 %v1461, %v1453
    %v2030 = vpack.c.b16 %v1470, %v1462
    %v2031 = vpack.c.b16 %v1471, %v1463
    %v2032 = vpack.c.b16 %v1472, %v1464
    %v2033 = vpack.c.b16 %v1473, %v1465
    %v2034 = vpack.c.b16 %v1474, %v1466
    %v2035 = vpack.c.b16 %v1475, %v1467
    %v2036 = vpack.c.b16 %v1476, %v1468
    %v2037 = vpack.c.b16 %v1477, %v1469
    %v2038 = vpack.c.b16 %v1486, %v1478
    %v2039 = vpack.c.b16 %v1487, %v1479
    %v2040 = vpack.c.b16 %v1488, %v1480
    %v2041 = vpack.c.b16 %v1489, %v1481
    %v2042 = vpack.c.b16 %v1490, %v1482
    %v2043 = vpack.c.b16 %v1491, %v1483
    %v2044 = vpack.c.b16 %v1492, %v1484
    %v2045 = vpack.c.b16 %v1493, %v1485
    %v2046 = vpack.c.b16 %v1502, %v1494
    %v2047 = vpack.c.b16 %v1503, %v1495
    %v2048 = vpack.c.b16 %v1504, %v1496
    %v2049 = vpack.c.b16 %v1505, %v1497
    %v2050 = vpack.c.b16 %v1506, %v1498
    %v2051 = vpack.c.b16 %v1507, %v1499
    %v2052 = vpack.c.b16 %v1508, %v1500
    %v2053 = vpack.c.b16 %v1509, %v1501
    %v2054 = vpack.c.b16 %v1518, %v1510
    %v2055 = vpack.c.b16 %v1519, %v1511
    %v2056 = vpack.c.b16 %v1520, %v1512
    %v2057 = vpack.c.b16 %v1521, %v1513
    %v2058 = vpack.c.b16 %v1522, %v1514
    %v2059 = vpack.c.b16 %v1523, %v1515
    %v2060 = vpack.c.b16 %v1524, %v1516
    %v2061 = vpack.c.b16 %v1525, %v1517
    %v2062 = vpack.c.b16 %v1534, %v1526
    %v2063 = vpack.c.b16 %v1535, %v1527
    %v2064 = vpack.c.b16 %v1536, %v1528
    %v2065 = vpack.c.b16 %v1537, %v1529
    %v2066 = vpack.c.b16 %v1538, %v1530
    %v2067 = vpack.c.b16 %v1539, %v1531
    %v2068 = vpack.c.b16 %v1540, %v1532
    %v2069 = vpack.c.b16 %v1541, %v1533
    %v2070 = vpack.c.b16 %v1550, %v1542
    %v2071 = vpack.c.b16 %v1551, %v1543
    %v2072 = vpack.c.b16 %v1552, %v1544
    %v2073 = vpack.c.b16 %v1553, %v1545
    %v2074 = vpack.c.b16 %v1554, %v1546
    %v2075 = vpack.c.b16 %v1555, %v1547
    %v2076 = vpack.c.b16 %v1556, %v1548
    %v2077 = vpack.c.b16 %v1557, %v1549
    %v2078 = vpack.c.b16 %v1566, %v1558
    %v2079 = vpack.c.b16 %v1567, %v1559
    %v2080 = vpack.c.b16 %v1568, %v1560
    %v2081 = vpack.c.b16 %v1569, %v1561
    %v2082 = vpack.c.b16 %v1570, %v1562
    %v2083 = vpack.c.b16 %v1571, %v1563
    %v2084 = vpack.c.b16 %v1572, %v1564
    %v2085 = vpack.c.b16 %v1573, %v1565
    %v2086 = vpack.c.b16 %v1582, %v1574
    %v2087 = vpack.c.b16 %v1583, %v1575
    %v2088 = vpack.c.b16 %v1584, %v1576
    %v2089 = vpack.c.b16 %v1585, %v1577
    %v2090 = vpack.c.b16 %v1586, %v1578
    %v2091 = vpack.c.b16 %v1587, %v1579
    %v2092 = vpack.c.b16 %v1588, %v1580
    %v2093 = vpack.c.b16 %v1589, %v1581
    %v2094 = vpack.c.b16 %v1598, %v1590
    %v2095 = vpack.c.b16 %v1599, %v1591
    %v2096 = vpack.c.b16 %v1600, %v1592
    %v2097 = vpack.c.b16 %v1601, %v1593
    %v2098 = vpack.c.b16 %v1602, %v1594
    %v2099 = vpack.c.b16 %v1603, %v1595
    %v2100 = vpack.c.b16 %v1604, %v1596
    %v2101 = vpack.c.b16 %v1605, %v1597
    %v2102 = vpack.c.b16 %v1614, %v1606
    %v2103 = vpack.c.b16 %v1615, %v1607
    %v2104 = vpack.c.b16 %v1616, %v1608
    %v2105 = vpack.c.b16 %v1617, %v1609
    %v2106 = vpack.c.b16 %v1618, %v1610
    %v2107 = vpack.c.b16 %v1619, %v1611
    %v2108 = vpack.c.b16 %v1620, %v1612
    %v2109 = vpack.c.b16 %v1621, %v1613
    %v2110 = vpack.c.b16 %v1630, %v1622
    %v2111 = vpack.c.b16 %v1631, %v1623
    %v2112 = vpack.c.b16 %v1632, %v1624
    %v2113 = vpack.c.b16 %v1633, %v1625
    %v2114 = vpack.c.b16 %v1634, %v1626
    %v2115 = vpack.c.b16 %v1635, %v1627
    %v2116 = vpack.c.b16 %v1636, %v1628
    %v2117 = vpack.c.b16 %v1637, %v1629
    %v2118 = vpack.c.b16 %v1646, %v1638
    %v2119 = vpack.c.b16 %v1647, %v1639
    %v2120 = vpack.c.b16 %v1648, %v1640
    %v2121 = vpack.c.b16 %v1649, %v1641
    %v2122 = vpack.c.b16 %v1650, %v1642
    %v2123 = vpack.c.b16 %v1651, %v1643
    %v2124 = vpack.c.b16 %v1652, %v1644
    %v2125 = vpack.c.b16 %v1653, %v1645
    %v2126 = vpack.c.b16 %v1662, %v1654
    %v2127 = vpack.c.b16 %v1663, %v1655
    %v2128 = vpack.c.b16 %v1664, %v1656
    %v2129 = vpack.c.b16 %v1665, %v1657
    %v2130 = vpack.c.b16 %v1666, %v1658
    %v2131 = vpack.c.b16 %v1667, %v1659
    %v2132 = vpack.c.b16 %v1668, %v1660
    %v2133 = vpack.c.b16 %v1669, %v1661
    %v2134 = vpack.c.b16 %v1678, %v1670
    %v2135 = vpack.c.b16 %v1679, %v1671
    %v2136 = vpack.c.b16 %v1680, %v1672
    %v2137 = vpack.c.b16 %v1681, %v1673
    %v2138 = vpack.c.b16 %v1682, %v1674
    %v2139 = vpack.c.b16 %v1683, %v1675
    %v2140 = vpack.c.b16 %v1684, %v1676
    %v2141 = vpack.c.b16 %v1685, %v1677
    %v2142 = vpack.c.b16 %v1694, %v1686
    %v2143 = vpack.c.b16 %v1695, %v1687
    %v2144 = vpack.c.b16 %v1696, %v1688
    %v2145 = vpack.c.b16 %v1697, %v1689
    %v2146 = vpack.c.b16 %v1698, %v1690
    %v2147 = vpack.c.b16 %v1699, %v1691
    %v2148 = vpack.c.b16 %v1700, %v1692
    %v2149 = vpack.c.b16 %v1701, %v1693
    %v2150 = vpack.c.b16 %v1710, %v1702
    %v2151 = vpack.c.b16 %v1711, %v1703
    %v2152 = vpack.c.b16 %v1712, %v1704
    %v2153 = vpack.c.b16 %v1713, %v1705
    %v2154 = vpack.c.b16 %v1714, %v1706
    %v2155 = vpack.c.b16 %v1715, %v1707
    %v2156 = vpack.c.b16 %v1716, %v1708
    %v2157 = vpack.c.b16 %v1717, %v1709
    %v2158 = vpack.c.b16 %v1726, %v1718
    %v2159 = vpack.c.b16 %v1727, %v1719
    %v2160 = vpack.c.b16 %v1728, %v1720
    %v2161 = vpack.c.b16 %v1729, %v1721
    %v2162 = vpack.c.b16 %v1730, %v1722
    %v2163 = vpack.c.b16 %v1731, %v1723
    %v2164 = vpack.c.b16 %v1732, %v1724
    %v2165 = vpack.c.b16 %v1733, %v1725
    %v2166 = vpack.c.b16 %v1742, %v1734
    %v2167 = vpack.c.b16 %v1743, %v1735
    %v2168 = vpack.c.b16 %v1744, %v1736
    %v2169 = vpack.c.b16 %v1745, %v1737
    %v2170 = vpack.c.b16 %v1746, %v1738
    %v2171 = vpack.c.b16 %v1747, %v1739
    %v2172 = vpack.c.b16 %v1748, %v1740
    %v2173 = vpack.c.b16 %v1749, %v1741
    %v2174 = vpack.c.b16 %v1758, %v1750
    %v2175 = vpack.c.b16 %v1759, %v1751
    %v2176 = vpack.c.b16 %v1760, %v1752
    %v2177 = vpack.c.b16 %v1761, %v1753
    %v2178 = vpack.c.b16 %v1762, %v1754
    %v2179 = vpack.c.b16 %v1763, %v1755
    %v2180 = vpack.c.b16 %v1764, %v1756
    %v2181 = vpack.c.b16 %v1765, %v1757
    %v2182 = vpack.c.b16 %v1774, %v1766
    %v2183 = vpack.c.b16 %v1775, %v1767
    %v2184 = vpack.c.b16 %v1776, %v1768
    %v2185 = vpack.c.b16 %v1777, %v1769
    %v2186 = vpack.c.b16 %v1778, %v1770
    %v2187 = vpack.c.b16 %v1779, %v1771
    %v2188 = vpack.c.b16 %v1780, %v1772
    %v2189 = vpack.c.b16 %v1781, %v1773
    %v2190 = vpack.c.b16 %v1790, %v1782
    %v2191 = vpack.c.b16 %v1791, %v1783
    %v2192 = vpack.c.b16 %v1792, %v1784
    %v2193 = vpack.c.b16 %v1793, %v1785
    %v2194 = vpack.c.b16 %v1794, %v1786
    %v2195 = vpack.c.b16 %v1795, %v1787
    %v2196 = vpack.c.b16 %v1796, %v1788
    %v2197 = vpack.c.b16 %v1797, %v1789
    %v2198 = vpack.c.b16 %v1806, %v1798
    %v2199 = vpack.c.b16 %v1807, %v1799
    %v2200 = vpack.c.b16 %v1808, %v1800
    %v2201 = vpack.c.b16 %v1809, %v1801
    %v2202 = vpack.c.b16 %v1810, %v1802
    %v2203 = vpack.c.b16 %v1811, %v1803
    %v2204 = vpack.c.b16 %v1812, %v1804
    %v2205 = vpack.c.b16 %v1813, %v1805
    %vm2598 = vcmask 130048
    %v2600 = vsel %vm2598, %v189, 0
    %2602 = vmatpush.bf16.msra.mxu0 %v1870
    %2603 = vmatpush.bf16.msra.mxu0 %v1862
    %2604 = vmatpush.bf16.msra.mxu0 %v1854
    %2605 = vmatpush.bf16.msra.mxu0 %v1846
    %2606 = vmatpush.bf16.msra.mxu0 %v1838
    %2607 = vmatpush.bf16.msra.mxu0 %v1830
    %2608 = vmatpush.bf16.msra.mxu0 %v1822
    %2609 = vmatpush.bf16.msra.mxu0 %v1814
    %2610 = vmatmul.bf16.gmra.mxu0 %v183
    %v2611 = vpop.f32.mrf.mxu0
    %v2612 = vadd.f32 %v622, %v2611
    %v2613 = vpop.f32.mrf.mxu0
    %v2614 = vadd.f32 %v630, %v2613
    %2615 = vdwg.mxu0
    %2616 = vmatpush.bf16.msra.mxu0 %v1934
    %2617 = vmatpush.bf16.msra.mxu0 %v1926
    %2618 = vmatpush.bf16.msra.mxu0 %v1918
    %2619 = vmatpush.bf16.msra.mxu0 %v1910
    %2620 = vmatpush.bf16.msra.mxu0 %v1902
    %2621 = vmatpush.bf16.msra.mxu0 %v1894
    %2622 = vmatpush.bf16.msra.mxu0 %v1886
    %2623 = vmatpush.bf16.msra.mxu0 %v1878
    %2624 = vmatmul.bf16.gmra.mxu0 %v184
    %v2625 = vpop.f32.mrf.mxu0
    %v2626 = vadd.f32 %v2612, %v2625
    %v2627 = vpop.f32.mrf.mxu0
    %v2628 = vadd.f32 %v2614, %v2627
    %2629 = vdwg.mxu0
    %2630 = vmatpush.bf16.msra.mxu0 %v1998
    %2631 = vmatpush.bf16.msra.mxu0 %v1990
    %2632 = vmatpush.bf16.msra.mxu0 %v1982
    %2633 = vmatpush.bf16.msra.mxu0 %v1974
    %2634 = vmatpush.bf16.msra.mxu0 %v1966
    %2635 = vmatpush.bf16.msra.mxu0 %v1958
    %2636 = vmatpush.bf16.msra.mxu0 %v1950
    %2637 = vmatpush.bf16.msra.mxu0 %v1942
    %2638 = vmatmul.bf16.gmra.mxu0 %v185
    %v2639 = vpop.f32.mrf.mxu0
    %v2640 = vadd.f32 %v2626, %v2639
    %v2641 = vpop.f32.mrf.mxu0
    %v2642 = vadd.f32 %v2628, %v2641
    %2643 = vdwg.mxu0
    %2644 = vmatpush.bf16.msra.mxu0 %v2062
    %2645 = vmatpush.bf16.msra.mxu0 %v2054
    %2646 = vmatpush.bf16.msra.mxu0 %v2046
    %2647 = vmatpush.bf16.msra.mxu0 %v2038
    %2648 = vmatpush.bf16.msra.mxu0 %v2030
    %2649 = vmatpush.bf16.msra.mxu0 %v2022
    %2650 = vmatpush.bf16.msra.mxu0 %v2014
    %2651 = vmatpush.bf16.msra.mxu0 %v2006
    %2652 = vmatmul.bf16.gmra.mxu0 %v186
    %v2653 = vpop.f32.mrf.mxu0
    %v2654 = vadd.f32 %v2640, %v2653
    %v2655 = vpop.f32.mrf.mxu0
    %v2656 = vadd.f32 %v2642, %v2655
    %2657 = vdwg.mxu0
    %2658 = vmatpush.bf16.msra.mxu0 %v2126
    %2659 = vmatpush.bf16.msra.mxu0 %v2118
    %2660 = vmatpush.bf16.msra.mxu0 %v2110
    %2661 = vmatpush.bf16.msra.mxu0 %v2102
    %2662 = vmatpush.bf16.msra.mxu0 %v2094
    %2663 = vmatpush.bf16.msra.mxu0 %v2086
    %2664 = vmatpush.bf16.msra.mxu0 %v2078
    %2665 = vmatpush.bf16.msra.mxu0 %v2070
    %2666 = vmatmul.bf16.gmra.mxu0 %v187
    %v2667 = vpop.f32.mrf.mxu0
    %v2668 = vadd.f32 %v2654, %v2667
    %v2669 = vpop.f32.mrf.mxu0
    %v2670 = vadd.f32 %v2656, %v2669
    %2671 = vdwg.mxu0
    %2672 = vmatpush.bf16.msra.mxu0 %v2190
    %2673 = vmatpush.bf16.msra.mxu0 %v2182
    %2674 = vmatpush.bf16.msra.mxu0 %v2174
    %2675 = vmatpush.bf16.msra.mxu0 %v2166
    %2676 = vmatpush.bf16.msra.mxu0 %v2158
    %2677 = vmatpush.bf16.msra.mxu0 %v2150
    %2678 = vmatpush.bf16.msra.mxu0 %v2142
    %2679 = vmatpush.bf16.msra.mxu0 %v2134
    %2680 = vmatmul.bf16.gmra.mxu0 %v188
    %v2681 = vpop.f32.mrf.mxu0
    %v2682 = vadd.f32 %v2668, %v2681
    %v2683 = vpop.f32.mrf.mxu0
    %v2684 = vadd.f32 %v2670, %v2683
    %2685 = vdwg.mxu0
    %2686 = vmatpush.bf16.msra.mxu0 0
    %2687 = vmatpush.bf16.msra.mxu0 0
    %2688 = vmatpush.bf16.msra.mxu0 0
    %2689 = vmatpush.bf16.msra.mxu0 0
    %2690 = vmatpush.bf16.msra.mxu0 0
    %2691 = vmatpush.bf16.msra.mxu0 0
    %2692 = vmatpush.bf16.msra.mxu0 0
    %2693 = vmatpush.bf16.msra.mxu0 %v2198
    %2694 = vmatmul.bf16.gmra.mxu0 %v2600
    %v2695 = vpop.f32.mrf.mxu0
    %v2696 = vadd.f32 %v2682, %v2695
    %v2697 = vpop.f32.mrf.mxu0
    %v2698 = vadd.f32 %v2684, %v2697
    %2699 = vdwg.mxu0
    %2700 = vmatpush.bf16.msra.mxu0 %v1871
    %2701 = vmatpush.bf16.msra.mxu0 %v1863
    %2702 = vmatpush.bf16.msra.mxu0 %v1855
    %2703 = vmatpush.bf16.msra.mxu0 %v1847
    %2704 = vmatpush.bf16.msra.mxu0 %v1839
    %2705 = vmatpush.bf16.msra.mxu0 %v1831
    %2706 = vmatpush.bf16.msra.mxu0 %v1823
    %2707 = vmatpush.bf16.msra.mxu0 %v1815
    %2708 = vmatmul.bf16.gmra.mxu0 %v183
    %v2709 = vpop.f32.mrf.mxu0
    %v2710 = vadd.f32 %v623, %v2709
    %v2711 = vpop.f32.mrf.mxu0
    %v2712 = vadd.f32 %v631, %v2711
    %2713 = vdwg.mxu0
    %2714 = vmatpush.bf16.msra.mxu0 %v1935
    %2715 = vmatpush.bf16.msra.mxu0 %v1927
    %2716 = vmatpush.bf16.msra.mxu0 %v1919
    %2717 = vmatpush.bf16.msra.mxu0 %v1911
    %2718 = vmatpush.bf16.msra.mxu0 %v1903
    %2719 = vmatpush.bf16.msra.mxu0 %v1895
    %2720 = vmatpush.bf16.msra.mxu0 %v1887
    %2721 = vmatpush.bf16.msra.mxu0 %v1879
    %2722 = vmatmul.bf16.gmra.mxu0 %v184
    %v2723 = vpop.f32.mrf.mxu0
    %v2724 = vadd.f32 %v2710, %v2723
    %v2725 = vpop.f32.mrf.mxu0
    %v2726 = vadd.f32 %v2712, %v2725
    %2727 = vdwg.mxu0
    %2728 = vmatpush.bf16.msra.mxu0 %v1999
    %2729 = vmatpush.bf16.msra.mxu0 %v1991
    %2730 = vmatpush.bf16.msra.mxu0 %v1983
    %2731 = vmatpush.bf16.msra.mxu0 %v1975
    %2732 = vmatpush.bf16.msra.mxu0 %v1967
    %2733 = vmatpush.bf16.msra.mxu0 %v1959
    %2734 = vmatpush.bf16.msra.mxu0 %v1951
    %2735 = vmatpush.bf16.msra.mxu0 %v1943
    %2736 = vmatmul.bf16.gmra.mxu0 %v185
    %v2737 = vpop.f32.mrf.mxu0
    %v2738 = vadd.f32 %v2724, %v2737
    %v2739 = vpop.f32.mrf.mxu0
    %v2740 = vadd.f32 %v2726, %v2739
    %2741 = vdwg.mxu0
    %2742 = vmatpush.bf16.msra.mxu0 %v2063
    %2743 = vmatpush.bf16.msra.mxu0 %v2055
    %2744 = vmatpush.bf16.msra.mxu0 %v2047
    %2745 = vmatpush.bf16.msra.mxu0 %v2039
    %2746 = vmatpush.bf16.msra.mxu0 %v2031
    %2747 = vmatpush.bf16.msra.mxu0 %v2023
    %2748 = vmatpush.bf16.msra.mxu0 %v2015
    %2749 = vmatpush.bf16.msra.mxu0 %v2007
    %2750 = vmatmul.bf16.gmra.mxu0 %v186
    %v2751 = vpop.f32.mrf.mxu0
    %v2752 = vadd.f32 %v2738, %v2751
    %v2753 = vpop.f32.mrf.mxu0
    %v2754 = vadd.f32 %v2740, %v2753
    %2755 = vdwg.mxu0
    %2756 = vmatpush.bf16.msra.mxu0 %v2127
    %2757 = vmatpush.bf16.msra.mxu0 %v2119
    %2758 = vmatpush.bf16.msra.mxu0 %v2111
    %2759 = vmatpush.bf16.msra.mxu0 %v2103
    %2760 = vmatpush.bf16.msra.mxu0 %v2095
    %2761 = vmatpush.bf16.msra.mxu0 %v2087
    %2762 = vmatpush.bf16.msra.mxu0 %v2079
    %2763 = vmatpush.bf16.msra.mxu0 %v2071
    %2764 = vmatmul.bf16.gmra.mxu0 %v187
    %v2765 = vpop.f32.mrf.mxu0
    %v2766 = vadd.f32 %v2752, %v2765
    %v2767 = vpop.f32.mrf.mxu0
    %v2768 = vadd.f32 %v2754, %v2767
    %2769 = vdwg.mxu0
    %2770 = vmatpush.bf16.msra.mxu0 %v2191
    %2771 = vmatpush.bf16.msra.mxu0 %v2183
    %2772 = vmatpush.bf16.msra.mxu0 %v2175
    %2773 = vmatpush.bf16.msra.mxu0 %v2167
    %2774 = vmatpush.bf16.msra.mxu0 %v2159
    %2775 = vmatpush.bf16.msra.mxu0 %v2151
    %2776 = vmatpush.bf16.msra.mxu0 %v2143
    %2777 = vmatpush.bf16.msra.mxu0 %v2135
    %2778 = vmatmul.bf16.gmra.mxu0 %v188
    %v2779 = vpop.f32.mrf.mxu0
    %v2780 = vadd.f32 %v2766, %v2779
    %v2781 = vpop.f32.mrf.mxu0
    %v2782 = vadd.f32 %v2768, %v2781
    %2783 = vdwg.mxu0
    %2784 = vmatpush.bf16.msra.mxu0 0
    %2785 = vmatpush.bf16.msra.mxu0 0
    %2786 = vmatpush.bf16.msra.mxu0 0
    %2787 = vmatpush.bf16.msra.mxu0 0
    %2788 = vmatpush.bf16.msra.mxu0 0
    %2789 = vmatpush.bf16.msra.mxu0 0
    %2790 = vmatpush.bf16.msra.mxu0 0
    %2791 = vmatpush.bf16.msra.mxu0 %v2199
    %2792 = vmatmul.bf16.gmra.mxu0 %v2600
    %v2793 = vpop.f32.mrf.mxu0
    %v2794 = vadd.f32 %v2780, %v2793
    %v2795 = vpop.f32.mrf.mxu0
    %v2796 = vadd.f32 %v2782, %v2795
    %2797 = vdwg.mxu0
    %2798 = vmatpush.bf16.msra.mxu0 %v1872
    %2799 = vmatpush.bf16.msra.mxu0 %v1864
    %2800 = vmatpush.bf16.msra.mxu0 %v1856
    %2801 = vmatpush.bf16.msra.mxu0 %v1848
    %2802 = vmatpush.bf16.msra.mxu0 %v1840
    %2803 = vmatpush.bf16.msra.mxu0 %v1832
    %2804 = vmatpush.bf16.msra.mxu0 %v1824
    %2805 = vmatpush.bf16.msra.mxu0 %v1816
    %2806 = vmatmul.bf16.gmra.mxu0 %v183
    %v2807 = vpop.f32.mrf.mxu0
    %v2808 = vadd.f32 %v624, %v2807
    %v2809 = vpop.f32.mrf.mxu0
    %v2810 = vadd.f32 %v632, %v2809
    %2811 = vdwg.mxu0
    %2812 = vmatpush.bf16.msra.mxu0 %v1936
    %2813 = vmatpush.bf16.msra.mxu0 %v1928
    %2814 = vmatpush.bf16.msra.mxu0 %v1920
    %2815 = vmatpush.bf16.msra.mxu0 %v1912
    %2816 = vmatpush.bf16.msra.mxu0 %v1904
    %2817 = vmatpush.bf16.msra.mxu0 %v1896
    %2818 = vmatpush.bf16.msra.mxu0 %v1888
    %2819 = vmatpush.bf16.msra.mxu0 %v1880
    %2820 = vmatmul.bf16.gmra.mxu0 %v184
    %v2821 = vpop.f32.mrf.mxu0
    %v2822 = vadd.f32 %v2808, %v2821
    %v2823 = vpop.f32.mrf.mxu0
    %v2824 = vadd.f32 %v2810, %v2823
    %2825 = vdwg.mxu0
    %2826 = vmatpush.bf16.msra.mxu0 %v2000
    %2827 = vmatpush.bf16.msra.mxu0 %v1992
    %2828 = vmatpush.bf16.msra.mxu0 %v1984
    %2829 = vmatpush.bf16.msra.mxu0 %v1976
    %2830 = vmatpush.bf16.msra.mxu0 %v1968
    %2831 = vmatpush.bf16.msra.mxu0 %v1960
    %2832 = vmatpush.bf16.msra.mxu0 %v1952
    %2833 = vmatpush.bf16.msra.mxu0 %v1944
    %2834 = vmatmul.bf16.gmra.mxu0 %v185
    %v2835 = vpop.f32.mrf.mxu0
    %v2836 = vadd.f32 %v2822, %v2835
    %v2837 = vpop.f32.mrf.mxu0
    %v2838 = vadd.f32 %v2824, %v2837
    %2839 = vdwg.mxu0
    %2840 = vmatpush.bf16.msra.mxu0 %v2064
    %2841 = vmatpush.bf16.msra.mxu0 %v2056
    %2842 = vmatpush.bf16.msra.mxu0 %v2048
    %2843 = vmatpush.bf16.msra.mxu0 %v2040
    %2844 = vmatpush.bf16.msra.mxu0 %v2032
    %2845 = vmatpush.bf16.msra.mxu0 %v2024
    %2846 = vmatpush.bf16.msra.mxu0 %v2016
    %2847 = vmatpush.bf16.msra.mxu0 %v2008
    %2848 = vmatmul.bf16.gmra.mxu0 %v186
    %v2849 = vpop.f32.mrf.mxu0
    %v2850 = vadd.f32 %v2836, %v2849
    %v2851 = vpop.f32.mrf.mxu0
    %v2852 = vadd.f32 %v2838, %v2851
    %2853 = vdwg.mxu0
    %2854 = vmatpush.bf16.msra.mxu0 %v2128
    %2855 = vmatpush.bf16.msra.mxu0 %v2120
    %2856 = vmatpush.bf16.msra.mxu0 %v2112
    %2857 = vmatpush.bf16.msra.mxu0 %v2104
    %2858 = vmatpush.bf16.msra.mxu0 %v2096
    %2859 = vmatpush.bf16.msra.mxu0 %v2088
    %2860 = vmatpush.bf16.msra.mxu0 %v2080
    %2861 = vmatpush.bf16.msra.mxu0 %v2072
    %2862 = vmatmul.bf16.gmra.mxu0 %v187
    %v2863 = vpop.f32.mrf.mxu0
    %v2864 = vadd.f32 %v2850, %v2863
    %v2865 = vpop.f32.mrf.mxu0
    %v2866 = vadd.f32 %v2852, %v2865
    %2867 = vdwg.mxu0
    %2868 = vmatpush.bf16.msra.mxu0 %v2192
    %2869 = vmatpush.bf16.msra.mxu0 %v2184
    %2870 = vmatpush.bf16.msra.mxu0 %v2176
    %2871 = vmatpush.bf16.msra.mxu0 %v2168
    %2872 = vmatpush.bf16.msra.mxu0 %v2160
    %2873 = vmatpush.bf16.msra.mxu0 %v2152
    %2874 = vmatpush.bf16.msra.mxu0 %v2144
    %2875 = vmatpush.bf16.msra.mxu0 %v2136
    %2876 = vmatmul.bf16.gmra.mxu0 %v188
    %v2877 = vpop.f32.mrf.mxu0
    %v2878 = vadd.f32 %v2864, %v2877
    %v2879 = vpop.f32.mrf.mxu0
    %v2880 = vadd.f32 %v2866, %v2879
    %2881 = vdwg.mxu0
    %2882 = vmatpush.bf16.msra.mxu0 0
    %2883 = vmatpush.bf16.msra.mxu0 0
    %2884 = vmatpush.bf16.msra.mxu0 0
    %2885 = vmatpush.bf16.msra.mxu0 0
    %2886 = vmatpush.bf16.msra.mxu0 0
    %2887 = vmatpush.bf16.msra.mxu0 0
    %2888 = vmatpush.bf16.msra.mxu0 0
    %2889 = vmatpush.bf16.msra.mxu0 %v2200
    %2890 = vmatmul.bf16.gmra.mxu0 %v2600
    %v2891 = vpop.f32.mrf.mxu0
    %v2892 = vadd.f32 %v2878, %v2891
    %v2893 = vpop.f32.mrf.mxu0
    %v2894 = vadd.f32 %v2880, %v2893
    %2895 = vdwg.mxu0
    %2896 = vmatpush.bf16.msra.mxu0 %v1873
    %2897 = vmatpush.bf16.msra.mxu0 %v1865
    %2898 = vmatpush.bf16.msra.mxu0 %v1857
    %2899 = vmatpush.bf16.msra.mxu0 %v1849
    %2900 = vmatpush.bf16.msra.mxu0 %v1841
    %2901 = vmatpush.bf16.msra.mxu0 %v1833
    %2902 = vmatpush.bf16.msra.mxu0 %v1825
    %2903 = vmatpush.bf16.msra.mxu0 %v1817
    %2904 = vmatmul.bf16.gmra.mxu0 %v183
    %v2905 = vpop.f32.mrf.mxu0
    %v2906 = vadd.f32 %v625, %v2905
    %v2907 = vpop.f32.mrf.mxu0
    %v2908 = vadd.f32 %v633, %v2907
    %2909 = vdwg.mxu0
    %2910 = vmatpush.bf16.msra.mxu0 %v1937
    %2911 = vmatpush.bf16.msra.mxu0 %v1929
    %2912 = vmatpush.bf16.msra.mxu0 %v1921
    %2913 = vmatpush.bf16.msra.mxu0 %v1913
    %2914 = vmatpush.bf16.msra.mxu0 %v1905
    %2915 = vmatpush.bf16.msra.mxu0 %v1897
    %2916 = vmatpush.bf16.msra.mxu0 %v1889
    %2917 = vmatpush.bf16.msra.mxu0 %v1881
    %2918 = vmatmul.bf16.gmra.mxu0 %v184
    %v2919 = vpop.f32.mrf.mxu0
    %v2920 = vadd.f32 %v2906, %v2919
    %v2921 = vpop.f32.mrf.mxu0
    %v2922 = vadd.f32 %v2908, %v2921
    %2923 = vdwg.mxu0
    %2924 = vmatpush.bf16.msra.mxu0 %v2001
    %2925 = vmatpush.bf16.msra.mxu0 %v1993
    %2926 = vmatpush.bf16.msra.mxu0 %v1985
    %2927 = vmatpush.bf16.msra.mxu0 %v1977
    %2928 = vmatpush.bf16.msra.mxu0 %v1969
    %2929 = vmatpush.bf16.msra.mxu0 %v1961
    %2930 = vmatpush.bf16.msra.mxu0 %v1953
    %2931 = vmatpush.bf16.msra.mxu0 %v1945
    %2932 = vmatmul.bf16.gmra.mxu0 %v185
    %v2933 = vpop.f32.mrf.mxu0
    %v2934 = vadd.f32 %v2920, %v2933
    %v2935 = vpop.f32.mrf.mxu0
    %v2936 = vadd.f32 %v2922, %v2935
    %2937 = vdwg.mxu0
    %2938 = vmatpush.bf16.msra.mxu0 %v2065
    %2939 = vmatpush.bf16.msra.mxu0 %v2057
    %2940 = vmatpush.bf16.msra.mxu0 %v2049
    %2941 = vmatpush.bf16.msra.mxu0 %v2041
    %2942 = vmatpush.bf16.msra.mxu0 %v2033
    %2943 = vmatpush.bf16.msra.mxu0 %v2025
    %2944 = vmatpush.bf16.msra.mxu0 %v2017
    %2945 = vmatpush.bf16.msra.mxu0 %v2009
    %2946 = vmatmul.bf16.gmra.mxu0 %v186
    %v2947 = vpop.f32.mrf.mxu0
    %v2948 = vadd.f32 %v2934, %v2947
    %v2949 = vpop.f32.mrf.mxu0
    %v2950 = vadd.f32 %v2936, %v2949
    %2951 = vdwg.mxu0
    %2952 = vmatpush.bf16.msra.mxu0 %v2129
    %2953 = vmatpush.bf16.msra.mxu0 %v2121
    %2954 = vmatpush.bf16.msra.mxu0 %v2113
    %2955 = vmatpush.bf16.msra.mxu0 %v2105
    %2956 = vmatpush.bf16.msra.mxu0 %v2097
    %2957 = vmatpush.bf16.msra.mxu0 %v2089
    %2958 = vmatpush.bf16.msra.mxu0 %v2081
    %2959 = vmatpush.bf16.msra.mxu0 %v2073
    %2960 = vmatmul.bf16.gmra.mxu0 %v187
    %v2961 = vpop.f32.mrf.mxu0
    %v2962 = vadd.f32 %v2948, %v2961
    %v2963 = vpop.f32.mrf.mxu0
    %v2964 = vadd.f32 %v2950, %v2963
    %2965 = vdwg.mxu0
    %2966 = vmatpush.bf16.msra.mxu0 %v2193
    %2967 = vmatpush.bf16.msra.mxu0 %v2185
    %2968 = vmatpush.bf16.msra.mxu0 %v2177
    %2969 = vmatpush.bf16.msra.mxu0 %v2169
    %2970 = vmatpush.bf16.msra.mxu0 %v2161
    %2971 = vmatpush.bf16.msra.mxu0 %v2153
    %2972 = vmatpush.bf16.msra.mxu0 %v2145
    %2973 = vmatpush.bf16.msra.mxu0 %v2137
    %2974 = vmatmul.bf16.gmra.mxu0 %v188
    %v2975 = vpop.f32.mrf.mxu0
    %v2976 = vadd.f32 %v2962, %v2975
    %v2977 = vpop.f32.mrf.mxu0
    %v2978 = vadd.f32 %v2964, %v2977
    %2979 = vdwg.mxu0
    %2980 = vmatpush.bf16.msra.mxu0 0
    %2981 = vmatpush.bf16.msra.mxu0 0
    %2982 = vmatpush.bf16.msra.mxu0 0
    %2983 = vmatpush.bf16.msra.mxu0 0
    %2984 = vmatpush.bf16.msra.mxu0 0
    %2985 = vmatpush.bf16.msra.mxu0 0
    %2986 = vmatpush.bf16.msra.mxu0 0
    %2987 = vmatpush.bf16.msra.mxu0 %v2201
    %2988 = vmatmul.bf16.gmra.mxu0 %v2600
    %v2989 = vpop.f32.mrf.mxu0
    %v2990 = vadd.f32 %v2976, %v2989
    %v2991 = vpop.f32.mrf.mxu0
    %v2992 = vadd.f32 %v2978, %v2991
    %2993 = vdwg.mxu0
    %2994 = vmatpush.bf16.msra.mxu0 %v1874
    %2995 = vmatpush.bf16.msra.mxu0 %v1866
    %2996 = vmatpush.bf16.msra.mxu0 %v1858
    %2997 = vmatpush.bf16.msra.mxu0 %v1850
    %2998 = vmatpush.bf16.msra.mxu0 %v1842
    %2999 = vmatpush.bf16.msra.mxu0 %v1834
    %3000 = vmatpush.bf16.msra.mxu0 %v1826
    %3001 = vmatpush.bf16.msra.mxu0 %v1818
    %3002 = vmatmul.bf16.gmra.mxu0 %v183
    %v3003 = vpop.f32.mrf.mxu0
    %v3004 = vadd.f32 %v626, %v3003
    %v3005 = vpop.f32.mrf.mxu0
    %v3006 = vadd.f32 %v634, %v3005
    %3007 = vdwg.mxu0
    %3008 = vmatpush.bf16.msra.mxu0 %v1938
    %3009 = vmatpush.bf16.msra.mxu0 %v1930
    %3010 = vmatpush.bf16.msra.mxu0 %v1922
    %3011 = vmatpush.bf16.msra.mxu0 %v1914
    %3012 = vmatpush.bf16.msra.mxu0 %v1906
    %3013 = vmatpush.bf16.msra.mxu0 %v1898
    %3014 = vmatpush.bf16.msra.mxu0 %v1890
    %3015 = vmatpush.bf16.msra.mxu0 %v1882
    %3016 = vmatmul.bf16.gmra.mxu0 %v184
    %v3017 = vpop.f32.mrf.mxu0
    %v3018 = vadd.f32 %v3004, %v3017
    %v3019 = vpop.f32.mrf.mxu0
    %v3020 = vadd.f32 %v3006, %v3019
    %3021 = vdwg.mxu0
    %3022 = vmatpush.bf16.msra.mxu0 %v2002
    %3023 = vmatpush.bf16.msra.mxu0 %v1994
    %3024 = vmatpush.bf16.msra.mxu0 %v1986
    %3025 = vmatpush.bf16.msra.mxu0 %v1978
    %3026 = vmatpush.bf16.msra.mxu0 %v1970
    %3027 = vmatpush.bf16.msra.mxu0 %v1962
    %3028 = vmatpush.bf16.msra.mxu0 %v1954
    %3029 = vmatpush.bf16.msra.mxu0 %v1946
    %3030 = vmatmul.bf16.gmra.mxu0 %v185
    %v3031 = vpop.f32.mrf.mxu0
    %v3032 = vadd.f32 %v3018, %v3031
    %v3033 = vpop.f32.mrf.mxu0
    %v3034 = vadd.f32 %v3020, %v3033
    %3035 = vdwg.mxu0
    %3036 = vmatpush.bf16.msra.mxu0 %v2066
    %3037 = vmatpush.bf16.msra.mxu0 %v2058
    %3038 = vmatpush.bf16.msra.mxu0 %v2050
    %3039 = vmatpush.bf16.msra.mxu0 %v2042
    %3040 = vmatpush.bf16.msra.mxu0 %v2034
    %3041 = vmatpush.bf16.msra.mxu0 %v2026
    %3042 = vmatpush.bf16.msra.mxu0 %v2018
    %3043 = vmatpush.bf16.msra.mxu0 %v2010
    %3044 = vmatmul.bf16.gmra.mxu0 %v186
    %v3045 = vpop.f32.mrf.mxu0
    %v3046 = vadd.f32 %v3032, %v3045
    %v3047 = vpop.f32.mrf.mxu0
    %v3048 = vadd.f32 %v3034, %v3047
    %3049 = vdwg.mxu0
    %3050 = vmatpush.bf16.msra.mxu0 %v2130
    %3051 = vmatpush.bf16.msra.mxu0 %v2122
    %3052 = vmatpush.bf16.msra.mxu0 %v2114
    %3053 = vmatpush.bf16.msra.mxu0 %v2106
    %3054 = vmatpush.bf16.msra.mxu0 %v2098
    %3055 = vmatpush.bf16.msra.mxu0 %v2090
    %3056 = vmatpush.bf16.msra.mxu0 %v2082
    %3057 = vmatpush.bf16.msra.mxu0 %v2074
    %3058 = vmatmul.bf16.gmra.mxu0 %v187
    %v3059 = vpop.f32.mrf.mxu0
    %v3060 = vadd.f32 %v3046, %v3059
    %v3061 = vpop.f32.mrf.mxu0
    %v3062 = vadd.f32 %v3048, %v3061
    %3063 = vdwg.mxu0
    %3064 = vmatpush.bf16.msra.mxu0 %v2194
    %3065 = vmatpush.bf16.msra.mxu0 %v2186
    %3066 = vmatpush.bf16.msra.mxu0 %v2178
    %3067 = vmatpush.bf16.msra.mxu0 %v2170
    %3068 = vmatpush.bf16.msra.mxu0 %v2162
    %3069 = vmatpush.bf16.msra.mxu0 %v2154
    %3070 = vmatpush.bf16.msra.mxu0 %v2146
    %3071 = vmatpush.bf16.msra.mxu0 %v2138
    %3072 = vmatmul.bf16.gmra.mxu0 %v188
    %v3073 = vpop.f32.mrf.mxu0
    %v3074 = vadd.f32 %v3060, %v3073
    %v3075 = vpop.f32.mrf.mxu0
    %v3076 = vadd.f32 %v3062, %v3075
    %3077 = vdwg.mxu0
    %3078 = vmatpush.bf16.msra.mxu0 0
    %3079 = vmatpush.bf16.msra.mxu0 0
    %3080 = vmatpush.bf16.msra.mxu0 0
    %3081 = vmatpush.bf16.msra.mxu0 0
    %3082 = vmatpush.bf16.msra.mxu0 0
    %3083 = vmatpush.bf16.msra.mxu0 0
    %3084 = vmatpush.bf16.msra.mxu0 0
    %3085 = vmatpush.bf16.msra.mxu0 %v2202
    %3086 = vmatmul.bf16.gmra.mxu0 %v2600
    %v3087 = vpop.f32.mrf.mxu0
    %v3088 = vadd.f32 %v3074, %v3087
    %v3089 = vpop.f32.mrf.mxu0
    %v3090 = vadd.f32 %v3076, %v3089
    %3091 = vdwg.mxu0
    %3092 = vmatpush.bf16.msra.mxu0 %v1875
    %3093 = vmatpush.bf16.msra.mxu0 %v1867
    %3094 = vmatpush.bf16.msra.mxu0 %v1859
    %3095 = vmatpush.bf16.msra.mxu0 %v1851
    %3096 = vmatpush.bf16.msra.mxu0 %v1843
    %3097 = vmatpush.bf16.msra.mxu0 %v1835
    %3098 = vmatpush.bf16.msra.mxu0 %v1827
    %3099 = vmatpush.bf16.msra.mxu0 %v1819
    %3100 = vmatmul.bf16.gmra.mxu0 %v183
    %v3101 = vpop.f32.mrf.mxu0
    %v3102 = vadd.f32 %v627, %v3101
    %v3103 = vpop.f32.mrf.mxu0
    %v3104 = vadd.f32 %v635, %v3103
    %3105 = vdwg.mxu0
    %3106 = vmatpush.bf16.msra.mxu0 %v1939
    %3107 = vmatpush.bf16.msra.mxu0 %v1931
    %3108 = vmatpush.bf16.msra.mxu0 %v1923
    %3109 = vmatpush.bf16.msra.mxu0 %v1915
    %3110 = vmatpush.bf16.msra.mxu0 %v1907
    %3111 = vmatpush.bf16.msra.mxu0 %v1899
    %3112 = vmatpush.bf16.msra.mxu0 %v1891
    %3113 = vmatpush.bf16.msra.mxu0 %v1883
    %3114 = vmatmul.bf16.gmra.mxu0 %v184
    %v3115 = vpop.f32.mrf.mxu0
    %v3116 = vadd.f32 %v3102, %v3115
    %v3117 = vpop.f32.mrf.mxu0
    %v3118 = vadd.f32 %v3104, %v3117
    %3119 = vdwg.mxu0
    %3120 = vmatpush.bf16.msra.mxu0 %v2003
    %3121 = vmatpush.bf16.msra.mxu0 %v1995
    %3122 = vmatpush.bf16.msra.mxu0 %v1987
    %3123 = vmatpush.bf16.msra.mxu0 %v1979
    %3124 = vmatpush.bf16.msra.mxu0 %v1971
    %3125 = vmatpush.bf16.msra.mxu0 %v1963
    %3126 = vmatpush.bf16.msra.mxu0 %v1955
    %3127 = vmatpush.bf16.msra.mxu0 %v1947
    %3128 = vmatmul.bf16.gmra.mxu0 %v185
    %v3129 = vpop.f32.mrf.mxu0
    %v3130 = vadd.f32 %v3116, %v3129
    %v3131 = vpop.f32.mrf.mxu0
    %v3132 = vadd.f32 %v3118, %v3131
    %3133 = vdwg.mxu0
    %3134 = vmatpush.bf16.msra.mxu0 %v2067
    %3135 = vmatpush.bf16.msra.mxu0 %v2059
    %3136 = vmatpush.bf16.msra.mxu0 %v2051
    %3137 = vmatpush.bf16.msra.mxu0 %v2043
    %3138 = vmatpush.bf16.msra.mxu0 %v2035
    %3139 = vmatpush.bf16.msra.mxu0 %v2027
    %3140 = vmatpush.bf16.msra.mxu0 %v2019
    %3141 = vmatpush.bf16.msra.mxu0 %v2011
    %3142 = vmatmul.bf16.gmra.mxu0 %v186
    %v3143 = vpop.f32.mrf.mxu0
    %v3144 = vadd.f32 %v3130, %v3143
    %v3145 = vpop.f32.mrf.mxu0
    %v3146 = vadd.f32 %v3132, %v3145
    %3147 = vdwg.mxu0
    %3148 = vmatpush.bf16.msra.mxu0 %v2131
    %3149 = vmatpush.bf16.msra.mxu0 %v2123
    %3150 = vmatpush.bf16.msra.mxu0 %v2115
    %3151 = vmatpush.bf16.msra.mxu0 %v2107
    %3152 = vmatpush.bf16.msra.mxu0 %v2099
    %3153 = vmatpush.bf16.msra.mxu0 %v2091
    %3154 = vmatpush.bf16.msra.mxu0 %v2083
    %3155 = vmatpush.bf16.msra.mxu0 %v2075
    %3156 = vmatmul.bf16.gmra.mxu0 %v187
    %v3157 = vpop.f32.mrf.mxu0
    %v3158 = vadd.f32 %v3144, %v3157
    %v3159 = vpop.f32.mrf.mxu0
    %v3160 = vadd.f32 %v3146, %v3159
    %3161 = vdwg.mxu0
    %3162 = vmatpush.bf16.msra.mxu0 %v2195
    %3163 = vmatpush.bf16.msra.mxu0 %v2187
    %3164 = vmatpush.bf16.msra.mxu0 %v2179
    %3165 = vmatpush.bf16.msra.mxu0 %v2171
    %3166 = vmatpush.bf16.msra.mxu0 %v2163
    %3167 = vmatpush.bf16.msra.mxu0 %v2155
    %3168 = vmatpush.bf16.msra.mxu0 %v2147
    %3169 = vmatpush.bf16.msra.mxu0 %v2139
    %3170 = vmatmul.bf16.gmra.mxu0 %v188
    %v3171 = vpop.f32.mrf.mxu0
    %v3172 = vadd.f32 %v3158, %v3171
    %v3173 = vpop.f32.mrf.mxu0
    %v3174 = vadd.f32 %v3160, %v3173
    %3175 = vdwg.mxu0
    %3176 = vmatpush.bf16.msra.mxu0 0
    %3177 = vmatpush.bf16.msra.mxu0 0
    %3178 = vmatpush.bf16.msra.mxu0 0
    %3179 = vmatpush.bf16.msra.mxu0 0
    %3180 = vmatpush.bf16.msra.mxu0 0
    %3181 = vmatpush.bf16.msra.mxu0 0
    %3182 = vmatpush.bf16.msra.mxu0 0
    %3183 = vmatpush.bf16.msra.mxu0 %v2203
    %3184 = vmatmul.bf16.gmra.mxu0 %v2600
    %v3185 = vpop.f32.mrf.mxu0
    %v3186 = vadd.f32 %v3172, %v3185
    %v3187 = vpop.f32.mrf.mxu0
    %v3188 = vadd.f32 %v3174, %v3187
    %3189 = vdwg.mxu0
    %3190 = vmatpush.bf16.msra.mxu0 %v1876
    %3191 = vmatpush.bf16.msra.mxu0 %v1868
    %3192 = vmatpush.bf16.msra.mxu0 %v1860
    %3193 = vmatpush.bf16.msra.mxu0 %v1852
    %3194 = vmatpush.bf16.msra.mxu0 %v1844
    %3195 = vmatpush.bf16.msra.mxu0 %v1836
    %3196 = vmatpush.bf16.msra.mxu0 %v1828
    %3197 = vmatpush.bf16.msra.mxu0 %v1820
    %3198 = vmatmul.bf16.gmra.mxu0 %v183
    %v3199 = vpop.f32.mrf.mxu0
    %v3200 = vadd.f32 %v628, %v3199
    %v3201 = vpop.f32.mrf.mxu0
    %v3202 = vadd.f32 %v636, %v3201
    %3203 = vdwg.mxu0
    %3204 = vmatpush.bf16.msra.mxu0 %v1940
    %3205 = vmatpush.bf16.msra.mxu0 %v1932
    %3206 = vmatpush.bf16.msra.mxu0 %v1924
    %3207 = vmatpush.bf16.msra.mxu0 %v1916
    %3208 = vmatpush.bf16.msra.mxu0 %v1908
    %3209 = vmatpush.bf16.msra.mxu0 %v1900
    %3210 = vmatpush.bf16.msra.mxu0 %v1892
    %3211 = vmatpush.bf16.msra.mxu0 %v1884
    %3212 = vmatmul.bf16.gmra.mxu0 %v184
    %v3213 = vpop.f32.mrf.mxu0
    %v3214 = vadd.f32 %v3200, %v3213
    %v3215 = vpop.f32.mrf.mxu0
    %v3216 = vadd.f32 %v3202, %v3215
    %3217 = vdwg.mxu0
    %3218 = vmatpush.bf16.msra.mxu0 %v2004
    %3219 = vmatpush.bf16.msra.mxu0 %v1996
    %3220 = vmatpush.bf16.msra.mxu0 %v1988
    %3221 = vmatpush.bf16.msra.mxu0 %v1980
    %3222 = vmatpush.bf16.msra.mxu0 %v1972
    %3223 = vmatpush.bf16.msra.mxu0 %v1964
    %3224 = vmatpush.bf16.msra.mxu0 %v1956
    %3225 = vmatpush.bf16.msra.mxu0 %v1948
    %3226 = vmatmul.bf16.gmra.mxu0 %v185
    %v3227 = vpop.f32.mrf.mxu0
    %v3228 = vadd.f32 %v3214, %v3227
    %v3229 = vpop.f32.mrf.mxu0
    %v3230 = vadd.f32 %v3216, %v3229
    %3231 = vdwg.mxu0
    %3232 = vmatpush.bf16.msra.mxu0 %v2068
    %3233 = vmatpush.bf16.msra.mxu0 %v2060
    %3234 = vmatpush.bf16.msra.mxu0 %v2052
    %3235 = vmatpush.bf16.msra.mxu0 %v2044
    %3236 = vmatpush.bf16.msra.mxu0 %v2036
    %3237 = vmatpush.bf16.msra.mxu0 %v2028
    %3238 = vmatpush.bf16.msra.mxu0 %v2020
    %3239 = vmatpush.bf16.msra.mxu0 %v2012
    %3240 = vmatmul.bf16.gmra.mxu0 %v186
    %v3241 = vpop.f32.mrf.mxu0
    %v3242 = vadd.f32 %v3228, %v3241
    %v3243 = vpop.f32.mrf.mxu0
    %v3244 = vadd.f32 %v3230, %v3243
    %3245 = vdwg.mxu0
    %3246 = vmatpush.bf16.msra.mxu0 %v2132
    %3247 = vmatpush.bf16.msra.mxu0 %v2124
    %3248 = vmatpush.bf16.msra.mxu0 %v2116
    %3249 = vmatpush.bf16.msra.mxu0 %v2108
    %3250 = vmatpush.bf16.msra.mxu0 %v2100
    %3251 = vmatpush.bf16.msra.mxu0 %v2092
    %3252 = vmatpush.bf16.msra.mxu0 %v2084
    %3253 = vmatpush.bf16.msra.mxu0 %v2076
    %3254 = vmatmul.bf16.gmra.mxu0 %v187
    %v3255 = vpop.f32.mrf.mxu0
    %v3256 = vadd.f32 %v3242, %v3255
    %v3257 = vpop.f32.mrf.mxu0
    %v3258 = vadd.f32 %v3244, %v3257
    %3259 = vdwg.mxu0
    %3260 = vmatpush.bf16.msra.mxu0 %v2196
    %3261 = vmatpush.bf16.msra.mxu0 %v2188
    %3262 = vmatpush.bf16.msra.mxu0 %v2180
    %3263 = vmatpush.bf16.msra.mxu0 %v2172
    %3264 = vmatpush.bf16.msra.mxu0 %v2164
    %3265 = vmatpush.bf16.msra.mxu0 %v2156
    %3266 = vmatpush.bf16.msra.mxu0 %v2148
    %3267 = vmatpush.bf16.msra.mxu0 %v2140
    %3268 = vmatmul.bf16.gmra.mxu0 %v188
    %v3269 = vpop.f32.mrf.mxu0
    %v3270 = vadd.f32 %v3256, %v3269
    %v3271 = vpop.f32.mrf.mxu0
    %v3272 = vadd.f32 %v3258, %v3271
    %3273 = vdwg.mxu0
    %3274 = vmatpush.bf16.msra.mxu0 0
    %3275 = vmatpush.bf16.msra.mxu0 0
    %3276 = vmatpush.bf16.msra.mxu0 0
    %3277 = vmatpush.bf16.msra.mxu0 0
    %3278 = vmatpush.bf16.msra.mxu0 0
    %3279 = vmatpush.bf16.msra.mxu0 0
    %3280 = vmatpush.bf16.msra.mxu0 0
    %3281 = vmatpush.bf16.msra.mxu0 %v2204
    %3282 = vmatmul.bf16.gmra.mxu0 %v2600
    %v3283 = vpop.f32.mrf.mxu0
    %v3284 = vadd.f32 %v3270, %v3283
    %v3285 = vpop.f32.mrf.mxu0
    %v3286 = vadd.f32 %v3272, %v3285
    %3287 = vdwg.mxu0
    %3288 = vmatpush.bf16.msra.mxu0 %v1877
    %3289 = vmatpush.bf16.msra.mxu0 %v1869
    %3290 = vmatpush.bf16.msra.mxu0 %v1861
    %3291 = vmatpush.bf16.msra.mxu0 %v1853
    %3292 = vmatpush.bf16.msra.mxu0 %v1845
    %3293 = vmatpush.bf16.msra.mxu0 %v1837
    %3294 = vmatpush.bf16.msra.mxu0 %v1829
    %3295 = vmatpush.bf16.msra.mxu0 %v1821
    %3296 = vmatmul.bf16.gmra.mxu0 %v183
    %v3297 = vpop.f32.mrf.mxu0
    %v3298 = vadd.f32 %v629, %v3297
    %v3299 = vpop.f32.mrf.mxu0
    %v3300 = vadd.f32 %v637, %v3299
    %3301 = vdwg.mxu0
    %3302 = vmatpush.bf16.msra.mxu0 %v1941
    %3303 = vmatpush.bf16.msra.mxu0 %v1933
    %3304 = vmatpush.bf16.msra.mxu0 %v1925
    %3305 = vmatpush.bf16.msra.mxu0 %v1917
    %3306 = vmatpush.bf16.msra.mxu0 %v1909
    %3307 = vmatpush.bf16.msra.mxu0 %v1901
    %3308 = vmatpush.bf16.msra.mxu0 %v1893
    %3309 = vmatpush.bf16.msra.mxu0 %v1885
    %3310 = vmatmul.bf16.gmra.mxu0 %v184
    %v3311 = vpop.f32.mrf.mxu0
    %v3312 = vadd.f32 %v3298, %v3311
    %v3313 = vpop.f32.mrf.mxu0
    %v3314 = vadd.f32 %v3300, %v3313
    %3315 = vdwg.mxu0
    %3316 = vmatpush.bf16.msra.mxu0 %v2005
    %3317 = vmatpush.bf16.msra.mxu0 %v1997
    %3318 = vmatpush.bf16.msra.mxu0 %v1989
    %3319 = vmatpush.bf16.msra.mxu0 %v1981
    %3320 = vmatpush.bf16.msra.mxu0 %v1973
    %3321 = vmatpush.bf16.msra.mxu0 %v1965
    %3322 = vmatpush.bf16.msra.mxu0 %v1957
    %3323 = vmatpush.bf16.msra.mxu0 %v1949
    %3324 = vmatmul.bf16.gmra.mxu0 %v185
    %v3325 = vpop.f32.mrf.mxu0
    %v3326 = vadd.f32 %v3312, %v3325
    %v3327 = vpop.f32.mrf.mxu0
    %v3328 = vadd.f32 %v3314, %v3327
    %3329 = vdwg.mxu0
    %3330 = vmatpush.bf16.msra.mxu0 %v2069
    %3331 = vmatpush.bf16.msra.mxu0 %v2061
    %3332 = vmatpush.bf16.msra.mxu0 %v2053
    %3333 = vmatpush.bf16.msra.mxu0 %v2045
    %3334 = vmatpush.bf16.msra.mxu0 %v2037
    %3335 = vmatpush.bf16.msra.mxu0 %v2029
    %3336 = vmatpush.bf16.msra.mxu0 %v2021
    %3337 = vmatpush.bf16.msra.mxu0 %v2013
    %3338 = vmatmul.bf16.gmra.mxu0 %v186
    %v3339 = vpop.f32.mrf.mxu0
    %v3340 = vadd.f32 %v3326, %v3339
    %v3341 = vpop.f32.mrf.mxu0
    %v3342 = vadd.f32 %v3328, %v3341
    %3343 = vdwg.mxu0
    %3344 = vmatpush.bf16.msra.mxu0 %v2133
    %3345 = vmatpush.bf16.msra.mxu0 %v2125
    %3346 = vmatpush.bf16.msra.mxu0 %v2117
    %3347 = vmatpush.bf16.msra.mxu0 %v2109
    %3348 = vmatpush.bf16.msra.mxu0 %v2101
    %3349 = vmatpush.bf16.msra.mxu0 %v2093
    %3350 = vmatpush.bf16.msra.mxu0 %v2085
    %3351 = vmatpush.bf16.msra.mxu0 %v2077
    %3352 = vmatmul.bf16.gmra.mxu0 %v187
    %v3353 = vpop.f32.mrf.mxu0
    %v3354 = vadd.f32 %v3340, %v3353
    %v3355 = vpop.f32.mrf.mxu0
    %v3356 = vadd.f32 %v3342, %v3355
    %3357 = vdwg.mxu0
    %3358 = vmatpush.bf16.msra.mxu0 %v2197
    %3359 = vmatpush.bf16.msra.mxu0 %v2189
    %3360 = vmatpush.bf16.msra.mxu0 %v2181
    %3361 = vmatpush.bf16.msra.mxu0 %v2173
    %3362 = vmatpush.bf16.msra.mxu0 %v2165
    %3363 = vmatpush.bf16.msra.mxu0 %v2157
    %3364 = vmatpush.bf16.msra.mxu0 %v2149
    %3365 = vmatpush.bf16.msra.mxu0 %v2141
    %3366 = vmatmul.bf16.gmra.mxu0 %v188
    %v3367 = vpop.f32.mrf.mxu0
    %v3368 = vadd.f32 %v3354, %v3367
    %v3369 = vpop.f32.mrf.mxu0
    %v3370 = vadd.f32 %v3356, %v3369
    %3371 = vdwg.mxu0
    %3372 = vmatpush.bf16.msra.mxu0 0
    %3373 = vmatpush.bf16.msra.mxu0 0
    %3374 = vmatpush.bf16.msra.mxu0 0
    %3375 = vmatpush.bf16.msra.mxu0 0
    %3376 = vmatpush.bf16.msra.mxu0 0
    %3377 = vmatpush.bf16.msra.mxu0 0
    %3378 = vmatpush.bf16.msra.mxu0 0
    %3379 = vmatpush.bf16.msra.mxu0 %v2205
    %3380 = vmatmul.bf16.gmra.mxu0 %v2600
    %v3381 = vpop.f32.mrf.mxu0
    %v3382 = vadd.f32 %v3368, %v3381
    %v3383 = vpop.f32.mrf.mxu0
    %v3384 = vadd.f32 %v3370, %v3383
    %3385 = vdwg.mxu0
    %3386 = vset.pattern.permute.xlu0 1
    %3387 = vperm.xlu0 %3386, %v582
    %v3388 = vpop.permute.xlu0 %3387
    %3390 = vset.pattern.permute.xlu0 1
    %3391 = vperm.xlu0 %3390, %v583
    %v3392 = vpop.permute.xlu0 %3391
    %v3394 = vperm.slane %v584, 1
    %v3395 = vperm.slane %v584, 3
    %v3396 = vperm.slane %v584, 5
    %v3397 = vperm.slane %v584, 7
    %v3398 = vperm.slane %v585, 1
    %v3399 = vperm.slane %v585, 3
    %v3400 = vperm.slane %v585, 5
    %v3401 = vperm.slane %v585, 7
    %v3410 = vperm.slane %v3394, 1
    %v3411 = vperm.slane %v3395, 1
    %v3412 = vperm.slane %v3396, 1
    %v3413 = vperm.slane %v3397, 1
    %v3414 = vperm.slane %v3398, 1
    %v3415 = vperm.slane %v3399, 1
    %v3416 = vperm.slane %v3400, 1
    %v3417 = vperm.slane %v3401, 1
    %v3418 = vmul.f32 %v3388, %v3410
    %v3419 = vmul.f32 %v3388, %v3411
    %v3420 = vmul.f32 %v3388, %v3412
    %v3421 = vmul.f32 %v3388, %v3413
    %v3422 = vmul.f32 %v3388, %v3414
    %v3423 = vmul.f32 %v3388, %v3415
    %v3424 = vmul.f32 %v3388, %v3416
    %v3425 = vmul.f32 %v3388, %v3417
    %v3426 = vmul.f32 %v3392, %v3410
    %v3427 = vmul.f32 %v3392, %v3411
    %v3428 = vmul.f32 %v3392, %v3412
    %v3429 = vmul.f32 %v3392, %v3413
    %v3430 = vmul.f32 %v3392, %v3414
    %v3431 = vmul.f32 %v3392, %v3415
    %v3432 = vmul.f32 %v3392, %v3416
    %v3433 = vmul.f32 %v3392, %v3417
    %v3434 = vadd.f32 %v2696, %v3418
    %v3435 = vadd.f32 %v2794, %v3419
    %v3436 = vadd.f32 %v2892, %v3420
    %v3437 = vadd.f32 %v2990, %v3421
    %v3438 = vadd.f32 %v3088, %v3422
    %v3439 = vadd.f32 %v3186, %v3423
    %v3440 = vadd.f32 %v3284, %v3424
    %v3441 = vadd.f32 %v3382, %v3425
    %v3442 = vadd.f32 %v2698, %v3426
    %v3443 = vadd.f32 %v2796, %v3427
    %v3444 = vadd.f32 %v2894, %v3428
    %v3445 = vadd.f32 %v2992, %v3429
    %v3446 = vadd.f32 %v3090, %v3430
    %v3447 = vadd.f32 %v3188, %v3431
    %v3448 = vadd.f32 %v3286, %v3432
    %v3449 = vadd.f32 %v3384, %v3433
    %v3450 = vld [vmem:[#allocation8] sm:$0xff]
    %v3452 = vperm.slane %v3450, 0
    %v3453 = vperm.slane %v3450, 1
    %v3454 = vperm.slane %v3450, 2
    %v3455 = vperm.slane %v3450, 3
    %v3456 = vperm.slane %v3450, 4
    %v3457 = vperm.slane %v3450, 5
    %v3458 = vperm.slane %v3450, 6
    %v3459 = vperm.slane %v3450, 7
    %v3468 = vadd.f32 %v3434, %v3452
    %v3469 = vadd.f32 %v3435, %v3453
    %v3470 = vadd.f32 %v3436, %v3454
    %v3471 = vadd.f32 %v3437, %v3455
    %v3472 = vadd.f32 %v3438, %v3456
    %v3473 = vadd.f32 %v3439, %v3457
    %v3474 = vadd.f32 %v3440, %v3458
    %v3475 = vadd.f32 %v3441, %v3459
    %v3476 = vadd.f32 %v3442, %v3452
    %v3477 = vadd.f32 %v3443, %v3453
    %v3478 = vadd.f32 %v3444, %v3454
    %v3479 = vadd.f32 %v3445, %v3455
    %v3480 = vadd.f32 %v3446, %v3456
    %v3481 = vadd.f32 %v3447, %v3457
    %v3482 = vadd.f32 %v3448, %v3458
    %v3483 = vadd.f32 %v3449, %v3459
    %v3484 = vmax.f32 %v3468, 0.0
    %v3485 = vmax.f32 %v3469, 0.0
    %v3486 = vmax.f32 %v3470, 0.0
    %v3487 = vmax.f32 %v3471, 0.0
    %v3488 = vmax.f32 %v3472, 0.0
    %v3489 = vmax.f32 %v3473, 0.0
    %v3490 = vmax.f32 %v3474, 0.0
    %v3491 = vmax.f32 %v3475, 0.0
    %v3492 = vmax.f32 %v3476, 0.0
    %v3493 = vmax.f32 %v3477, 0.0
    %v3494 = vmax.f32 %v3478, 0.0
    %v3495 = vmax.f32 %v3479, 0.0
    %v3496 = vmax.f32 %v3480, 0.0
    %v3497 = vmax.f32 %v3481, 0.0
    %v3498 = vmax.f32 %v3482, 0.0
    %v3499 = vmax.f32 %v3483, 0.0
    %v3500 = vpack.c.bf16 %v3492, %v3484
    %v3501 = vpack.c.bf16 %v3493, %v3485
    %v3502 = vpack.c.bf16 %v3494, %v3486
    %v3503 = vpack.c.bf16 %v3495, %v3487
    %v3504 = vpack.c.bf16 %v3496, %v3488
    %v3505 = vpack.c.bf16 %v3497, %v3489
    %v3506 = vpack.c.bf16 %v3498, %v3490
    %v3507 = vpack.c.bf16 %v3499, %v3491
    %v3508 = vld [vmem:[#allocation10] sm:$0xff]
    %v3509 = vld [vmem:[#allocation10 + $0x8] sm:$0xff]
    %v3510 = vld [vmem:[#allocation10 + $0x10] sm:$0xff]
    %v3511 = vld [vmem:[#allocation10 + $0x18] sm:$0xff]
    %v3512 = vld [vmem:[#allocation10 + $0x20] sm:$0xff]
    %v3513 = vld [vmem:[#allocation10 + $0x28] sm:$0xff]
    %v3514 = vld [vmem:[#allocation10 + $0x30] sm:$0xff]
    %v3515 = vld [vmem:[#allocation10 + $0x38] sm:$0xff]
    %v3516 = vld [vmem:[#allocation10 + $0x40] sm:$0xff]
    %v3517 = vld [vmem:[#allocation10 + $0x48] sm:$0xff]
    %v3518 = vld [vmem:[#allocation10 + $0x50] sm:$0xff]
    %v3519 = vld [vmem:[#allocation10 + $0x58] sm:$0xff]
    %v3520 = vld [vmem:[#allocation10 + $0x60] sm:$0xff]
    %v3521 = vld [vmem:[#allocation10 + $0x68] sm:$0xff]
    %v3522 = vld [vmem:[#allocation10 + $0x70] sm:$0xff]
    %v3523 = vld [vmem:[#allocation10 + $0x78] sm:$0xff]
    %v3524 = vld [vmem:[#allocation10 + $0x80] sm:$0xff]
    %v3525 = vld [vmem:[#allocation10 + $0x88] sm:$0xff]
    %v3526 = vld [vmem:[#allocation10 + $0x90] sm:$0xff]
    %v3527 = vld [vmem:[#allocation10 + $0x98] sm:$0xff]
    %v3528 = vld [vmem:[#allocation10 + $0xa0] sm:$0xff]
    %v3529 = vld [vmem:[#allocation10 + $0xa8] sm:$0xff]
    %v3530 = vld [vmem:[#allocation10 + $0xb0] sm:$0xff]
    %v3531 = vld [vmem:[#allocation10 + $0xb8] sm:$0xff]
    %v3532 = vld [vmem:[#allocation10 + $0xc0] sm:$0xff]
    %v3533 = vld [vmem:[#allocation10 + $0xc8] sm:$0xff]
    %v3534 = vld [vmem:[#allocation10 + $0xd0] sm:$0xff]
    %v3535 = vld [vmem:[#allocation10 + $0xd8] sm:$0xff]
    %v3536 = vld [vmem:[#allocation10 + $0xe0] sm:$0xff]
    %v3537 = vld [vmem:[#allocation10 + $0xe8] sm:$0xff]
    %v3538 = vld [vmem:[#allocation10 + $0xf0] sm:$0xff]
    %v3539 = vld [vmem:[#allocation10 + $0xf8] sm:$0xff]
    %v3540 = vld [vmem:[#allocation10 + $0x100] sm:$0xff]
    %v3541 = vld [vmem:[#allocation10 + $0x108] sm:$0xff]
    %v3542 = vld [vmem:[#allocation10 + $0x110] sm:$0xff]
    %v3543 = vld [vmem:[#allocation10 + $0x118] sm:$0xff]
    %v3544 = vld [vmem:[#allocation10 + $0x120] sm:$0xff]
    %v3545 = vld [vmem:[#allocation10 + $0x128] sm:$0xff]
    %v3546 = vld [vmem:[#allocation10 + $0x130] sm:$0xff]
    %v3547 = vld [vmem:[#allocation10 + $0x138] sm:$0xff]
    %v3548 = vld [vmem:[#allocation10 + $0x140] sm:$0xff]
    %v3549 = vld [vmem:[#allocation10 + $0x148] sm:$0xff]
    %v3550 = vld [vmem:[#allocation10 + $0x150] sm:$0xff]
    %v3551 = vld [vmem:[#allocation10 + $0x158] sm:$0xff]
    %v3552 = vld [vmem:[#allocation10 + $0x160] sm:$0xff]
    %v3553 = vld [vmem:[#allocation10 + $0x168] sm:$0xff]
    %v3554 = vld [vmem:[#allocation10 + $0x170] sm:$0xff]
    %v3555 = vld [vmem:[#allocation10 + $0x178] sm:$0xff]
    %v3556 = vld [vmem:[#allocation10 + $0x180] sm:$0xff]
    %v3557 = vld [vmem:[#allocation10 + $0x188] sm:$0xff]
    %v3558 = vld [vmem:[#allocation10 + $0x190] sm:$0xff]
    %v3559 = vld [vmem:[#allocation10 + $0x198] sm:$0xff]
    %v3560 = vld [vmem:[#allocation10 + $0x1a0] sm:$0xff]
    %v3561 = vld [vmem:[#allocation10 + $0x1a8] sm:$0xff]
    %v3562 = vld [vmem:[#allocation10 + $0x1b0] sm:$0xff]
    %v3563 = vld [vmem:[#allocation10 + $0x1b8] sm:$0xff]
    %v3564 = vld [vmem:[#allocation10 + $0x1c0] sm:$0xff]
    %v3565 = vld [vmem:[#allocation10 + $0x1c8] sm:$0xff]
    %v3566 = vld [vmem:[#allocation10 + $0x1d0] sm:$0xff]
    %v3567 = vld [vmem:[#allocation10 + $0x1d8] sm:$0xff]
    %v3568 = vld [vmem:[#allocation10 + $0x1e0] sm:$0xff]
    %v3569 = vld [vmem:[#allocation10 + $0x1e8] sm:$0xff]
    %v3570 = vld [vmem:[#allocation10 + $0x1f0] sm:$0xff]
    %v3571 = vld [vmem:[#allocation10 + $0x1f8] sm:$0xff]
    %v3572 = vld [vmem:[#allocation10 + $0x200] sm:$0xff]
    %v3573 = vld [vmem:[#allocation10 + $0x208] sm:$0xff]
    %v3574 = vld [vmem:[#allocation10 + $0x210] sm:$0xff]
    %v3575 = vld [vmem:[#allocation10 + $0x218] sm:$0xff]
    %v3576 = vld [vmem:[#allocation10 + $0x220] sm:$0xff]
    %v3577 = vld [vmem:[#allocation10 + $0x228] sm:$0xff]
    %v3578 = vld [vmem:[#allocation10 + $0x230] sm:$0xff]
    %v3579 = vld [vmem:[#allocation10 + $0x238] sm:$0xff]
    %v3580 = vld [vmem:[#allocation10 + $0x240] sm:$0xff]
    %v3581 = vld [vmem:[#allocation10 + $0x248] sm:$0xff]
    %v3582 = vld [vmem:[#allocation10 + $0x250] sm:$0xff]
    %v3583 = vld [vmem:[#allocation10 + $0x258] sm:$0xff]
    %v3584 = vld [vmem:[#allocation10 + $0x260] sm:$0xff]
    %v3585 = vld [vmem:[#allocation10 + $0x268] sm:$0xff]
    %v3586 = vld [vmem:[#allocation10 + $0x270] sm:$0xff]
    %v3587 = vld [vmem:[#allocation10 + $0x278] sm:$0xff]
    %v3588 = vld [vmem:[#allocation10 + $0x280] sm:$0xff]
    %v3589 = vld [vmem:[#allocation10 + $0x288] sm:$0xff]
    %v3590 = vld [vmem:[#allocation10 + $0x290] sm:$0xff]
    %v3591 = vld [vmem:[#allocation10 + $0x298] sm:$0xff]
    %v3592 = vld [vmem:[#allocation10 + $0x2a0] sm:$0xff]
    %v3593 = vld [vmem:[#allocation10 + $0x2a8] sm:$0xff]
    %v3594 = vld [vmem:[#allocation10 + $0x2b0] sm:$0xff]
    %v3595 = vld [vmem:[#allocation10 + $0x2b8] sm:$0xff]
    %v3596 = vld [vmem:[#allocation10 + $0x2c0] sm:$0xff]
    %v3597 = vld [vmem:[#allocation10 + $0x2c8] sm:$0xff]
    %v3598 = vld [vmem:[#allocation10 + $0x2d0] sm:$0xff]
    %v3599 = vld [vmem:[#allocation10 + $0x2d8] sm:$0xff]
    %v3600 = vld [vmem:[#allocation10 + $0x2e0] sm:$0xff]
    %v3601 = vld [vmem:[#allocation10 + $0x2e8] sm:$0xff]
    %v3602 = vld [vmem:[#allocation10 + $0x2f0] sm:$0xff]
    %v3603 = vld [vmem:[#allocation10 + $0x2f8] sm:$0xff]
    %v3604 = vld [vmem:[#allocation10 + $0x300] sm:$0xff]
    %v3605 = vld [vmem:[#allocation10 + $0x308] sm:$0xff]
    %v3606 = vld [vmem:[#allocation10 + $0x310] sm:$0xff]
    %v3607 = vld [vmem:[#allocation10 + $0x318] sm:$0xff]
    %v3608 = vld [vmem:[#allocation10 + $0x320] sm:$0xff]
    %v3609 = vld [vmem:[#allocation10 + $0x328] sm:$0xff]
    %v3610 = vld [vmem:[#allocation10 + $0x330] sm:$0xff]
    %v3611 = vld [vmem:[#allocation10 + $0x338] sm:$0xff]
    %v3612 = vld [vmem:[#allocation10 + $0x340] sm:$0xff]
    %v3613 = vld [vmem:[#allocation10 + $0x348] sm:$0xff]
    %v3614 = vld [vmem:[#allocation10 + $0x350] sm:$0xff]
    %v3615 = vld [vmem:[#allocation10 + $0x358] sm:$0xff]
    %v3616 = vld [vmem:[#allocation10 + $0x360] sm:$0xff]
    %v3617 = vld [vmem:[#allocation10 + $0x368] sm:$0xff]
    %v3618 = vld [vmem:[#allocation10 + $0x370] sm:$0xff]
    %v3619 = vld [vmem:[#allocation10 + $0x378] sm:$0xff]
    %v3620 = vld [vmem:[#allocation10 + $0x380] sm:$0xff]
    %v3621 = vld [vmem:[#allocation10 + $0x388] sm:$0xff]
    %v3622 = vld [vmem:[#allocation10 + $0x390] sm:$0xff]
    %v3623 = vld [vmem:[#allocation10 + $0x398] sm:$0xff]
    %v3624 = vld [vmem:[#allocation10 + $0x3a0] sm:$0xff]
    %v3625 = vld [vmem:[#allocation10 + $0x3a8] sm:$0xff]
    %v3626 = vld [vmem:[#allocation10 + $0x3b0] sm:$0xff]
    %v3627 = vld [vmem:[#allocation10 + $0x3b8] sm:$0xff]
    %v3628 = vld [vmem:[#allocation10 + $0x3c0] sm:$0xff]
    %v3629 = vld [vmem:[#allocation10 + $0x3c8] sm:$0xff]
    %v3630 = vld [vmem:[#allocation10 + $0x3d0] sm:$0xff]
    %v3631 = vld [vmem:[#allocation10 + $0x3d8] sm:$0xff]
    %v3632 = vld [vmem:[#allocation10 + $0x3e0] sm:$0xff]
    %v3633 = vld [vmem:[#allocation10 + $0x3e8] sm:$0xff]
    %v3634 = vld [vmem:[#allocation10 + $0x3f0] sm:$0xff]
    %v3635 = vld [vmem:[#allocation10 + $0x3f8] sm:$0xff]
    %v3636 = vld [vmem:[#allocation10 + $0x400] sm:$0xff]
    %v3637 = vld [vmem:[#allocation10 + $0x408] sm:$0xff]
    %v3638 = vld [vmem:[#allocation10 + $0x410] sm:$0xff]
    %v3639 = vld [vmem:[#allocation10 + $0x418] sm:$0xff]
    %v3640 = vld [vmem:[#allocation10 + $0x420] sm:$0xff]
    %v3641 = vld [vmem:[#allocation10 + $0x428] sm:$0xff]
    %v3642 = vld [vmem:[#allocation10 + $0x430] sm:$0xff]
    %v3643 = vld [vmem:[#allocation10 + $0x438] sm:$0xff]
    %v3644 = vld [vmem:[#allocation10 + $0x440] sm:$0xff]
    %v3645 = vld [vmem:[#allocation10 + $0x448] sm:$0xff]
    %v3646 = vld [vmem:[#allocation10 + $0x450] sm:$0xff]
    %v3647 = vld [vmem:[#allocation10 + $0x458] sm:$0xff]
    %v3648 = vld [vmem:[#allocation10 + $0x460] sm:$0xff]
    %v3649 = vld [vmem:[#allocation10 + $0x468] sm:$0xff]
    %v3650 = vld [vmem:[#allocation10 + $0x470] sm:$0xff]
    %v3651 = vld [vmem:[#allocation10 + $0x478] sm:$0xff]
    %v3652 = vld [vmem:[#allocation10 + $0x480] sm:$0xff]
    %v3653 = vld [vmem:[#allocation10 + $0x488] sm:$0xff]
    %v3654 = vld [vmem:[#allocation10 + $0x490] sm:$0xff]
    %v3655 = vld [vmem:[#allocation10 + $0x498] sm:$0xff]
    %v3656 = vld [vmem:[#allocation10 + $0x4a0] sm:$0xff]
    %v3657 = vld [vmem:[#allocation10 + $0x4a8] sm:$0xff]
    %v3658 = vld [vmem:[#allocation10 + $0x4b0] sm:$0xff]
    %v3659 = vld [vmem:[#allocation10 + $0x4b8] sm:$0xff]
    %v3660 = vld [vmem:[#allocation10 + $0x4c0] sm:$0xff]
    %v3661 = vld [vmem:[#allocation10 + $0x4c8] sm:$0xff]
    %v3662 = vld [vmem:[#allocation10 + $0x4d0] sm:$0xff]
    %v3663 = vld [vmem:[#allocation10 + $0x4d8] sm:$0xff]
    %v3664 = vld [vmem:[#allocation10 + $0x4e0] sm:$0xff]
    %v3665 = vld [vmem:[#allocation10 + $0x4e8] sm:$0xff]
    %v3666 = vld [vmem:[#allocation10 + $0x4f0] sm:$0xff]
    %v3667 = vld [vmem:[#allocation10 + $0x4f8] sm:$0xff]
    %v3668 = vld [vmem:[#allocation10 + $0x500] sm:$0xff]
    %v3669 = vld [vmem:[#allocation10 + $0x508] sm:$0xff]
    %v3670 = vld [vmem:[#allocation10 + $0x510] sm:$0xff]
    %v3671 = vld [vmem:[#allocation10 + $0x518] sm:$0xff]
    %v3672 = vld [vmem:[#allocation10 + $0x520] sm:$0xff]
    %v3673 = vld [vmem:[#allocation10 + $0x528] sm:$0xff]
    %v3674 = vld [vmem:[#allocation10 + $0x530] sm:$0xff]
    %v3675 = vld [vmem:[#allocation10 + $0x538] sm:$0xff]
    %v3676 = vld [vmem:[#allocation10 + $0x540] sm:$0xff]
    %v3677 = vld [vmem:[#allocation10 + $0x548] sm:$0xff]
    %v3678 = vld [vmem:[#allocation10 + $0x550] sm:$0xff]
    %v3679 = vld [vmem:[#allocation10 + $0x558] sm:$0xff]
    %v3680 = vld [vmem:[#allocation10 + $0x560] sm:$0xff]
    %v3681 = vld [vmem:[#allocation10 + $0x568] sm:$0xff]
    %v3682 = vld [vmem:[#allocation10 + $0x570] sm:$0xff]
    %v3683 = vld [vmem:[#allocation10 + $0x578] sm:$0xff]
    %v3684 = vld [vmem:[#allocation10 + $0x580] sm:$0xff]
    %v3685 = vld [vmem:[#allocation10 + $0x588] sm:$0xff]
    %v3686 = vld [vmem:[#allocation10 + $0x590] sm:$0xff]
    %v3687 = vld [vmem:[#allocation10 + $0x598] sm:$0xff]
    %v3688 = vld [vmem:[#allocation10 + $0x5a0] sm:$0xff]
    %v3689 = vld [vmem:[#allocation10 + $0x5a8] sm:$0xff]
    %v3690 = vld [vmem:[#allocation10 + $0x5b0] sm:$0xff]
    %v3691 = vld [vmem:[#allocation10 + $0x5b8] sm:$0xff]
    %v3692 = vld [vmem:[#allocation10 + $0x5c0] sm:$0xff]
    %v3693 = vld [vmem:[#allocation10 + $0x5c8] sm:$0xff]
    %v3694 = vld [vmem:[#allocation10 + $0x5d0] sm:$0xff]
    %v3695 = vld [vmem:[#allocation10 + $0x5d8] sm:$0xff]
    %v3696 = vld [vmem:[#allocation10 + $0x5e0] sm:$0xff]
    %v3697 = vld [vmem:[#allocation10 + $0x5e8] sm:$0xff]
    %v3698 = vld [vmem:[#allocation10 + $0x5f0] sm:$0xff]
    %v3699 = vld [vmem:[#allocation10 + $0x5f8] sm:$0xff]
    %v3700 = vld [vmem:[#allocation10 + $0x600] sm:$0xff]
    %v3701 = vld [vmem:[#allocation10 + $0x608] sm:$0xff]
    %v3702 = vld [vmem:[#allocation10 + $0x610] sm:$0xff]
    %v3703 = vld [vmem:[#allocation10 + $0x618] sm:$0xff]
    %v3704 = vld [vmem:[#allocation10 + $0x620] sm:$0xff]
    %v3705 = vld [vmem:[#allocation10 + $0x628] sm:$0xff]
    %v3706 = vld [vmem:[#allocation10 + $0x630] sm:$0xff]
    %v3707 = vld [vmem:[#allocation10 + $0x638] sm:$0xff]
    %v3708 = vld [vmem:[#allocation10 + $0x640] sm:$0xff]
    %v3709 = vld [vmem:[#allocation10 + $0x648] sm:$0xff]
    %v3710 = vld [vmem:[#allocation10 + $0x650] sm:$0xff]
    %v3711 = vld [vmem:[#allocation10 + $0x658] sm:$0xff]
    %v3712 = vld [vmem:[#allocation10 + $0x660] sm:$0xff]
    %v3713 = vld [vmem:[#allocation10 + $0x668] sm:$0xff]
    %v3714 = vld [vmem:[#allocation10 + $0x670] sm:$0xff]
    %v3715 = vld [vmem:[#allocation10 + $0x678] sm:$0xff]
    %v3716 = vld [vmem:[#allocation10 + $0x680] sm:$0xff]
    %v3717 = vld [vmem:[#allocation10 + $0x688] sm:$0xff]
    %v3718 = vld [vmem:[#allocation10 + $0x690] sm:$0xff]
    %v3719 = vld [vmem:[#allocation10 + $0x698] sm:$0xff]
    %v3720 = vld [vmem:[#allocation10 + $0x6a0] sm:$0xff]
    %v3721 = vld [vmem:[#allocation10 + $0x6a8] sm:$0xff]
    %v3722 = vld [vmem:[#allocation10 + $0x6b0] sm:$0xff]
    %v3723 = vld [vmem:[#allocation10 + $0x6b8] sm:$0xff]
    %v3724 = vld [vmem:[#allocation10 + $0x6c0] sm:$0xff]
    %v3725 = vld [vmem:[#allocation10 + $0x6c8] sm:$0xff]
    %v3726 = vld [vmem:[#allocation10 + $0x6d0] sm:$0xff]
    %v3727 = vld [vmem:[#allocation10 + $0x6d8] sm:$0xff]
    %v3728 = vld [vmem:[#allocation10 + $0x6e0] sm:$0xff]
    %v3729 = vld [vmem:[#allocation10 + $0x6e8] sm:$0xff]
    %v3730 = vld [vmem:[#allocation10 + $0x6f0] sm:$0xff]
    %v3731 = vld [vmem:[#allocation10 + $0x6f8] sm:$0xff]
    %v3732 = vld [vmem:[#allocation10 + $0x700] sm:$0xff]
    %v3733 = vld [vmem:[#allocation10 + $0x708] sm:$0xff]
    %v3734 = vld [vmem:[#allocation10 + $0x710] sm:$0xff]
    %v3735 = vld [vmem:[#allocation10 + $0x718] sm:$0xff]
    %v3736 = vld [vmem:[#allocation10 + $0x720] sm:$0xff]
    %v3737 = vld [vmem:[#allocation10 + $0x728] sm:$0xff]
    %v3738 = vld [vmem:[#allocation10 + $0x730] sm:$0xff]
    %v3739 = vld [vmem:[#allocation10 + $0x738] sm:$0xff]
    %v3740 = vld [vmem:[#allocation10 + $0x740] sm:$0xff]
    %v3741 = vld [vmem:[#allocation10 + $0x748] sm:$0xff]
    %v3742 = vld [vmem:[#allocation10 + $0x750] sm:$0xff]
    %v3743 = vld [vmem:[#allocation10 + $0x758] sm:$0xff]
    %v3744 = vld [vmem:[#allocation10 + $0x760] sm:$0xff]
    %v3745 = vld [vmem:[#allocation10 + $0x768] sm:$0xff]
    %v3746 = vld [vmem:[#allocation10 + $0x770] sm:$0xff]
    %v3747 = vld [vmem:[#allocation10 + $0x778] sm:$0xff]
    %v3748 = vld [vmem:[#allocation10 + $0x780] sm:$0xff]
    %v3749 = vld [vmem:[#allocation10 + $0x788] sm:$0xff]
    %v3750 = vld [vmem:[#allocation10 + $0x790] sm:$0xff]
    %v3751 = vld [vmem:[#allocation10 + $0x798] sm:$0xff]
    %v3752 = vld [vmem:[#allocation10 + $0x7a0] sm:$0xff]
    %v3753 = vld [vmem:[#allocation10 + $0x7a8] sm:$0xff]
    %v3754 = vld [vmem:[#allocation10 + $0x7b0] sm:$0xff]
    %v3755 = vld [vmem:[#allocation10 + $0x7b8] sm:$0xff]
    %v3756 = vld [vmem:[#allocation10 + $0x7c0] sm:$0xff]
    %v3757 = vld [vmem:[#allocation10 + $0x7c8] sm:$0xff]
    %v3758 = vld [vmem:[#allocation10 + $0x7d0] sm:$0xff]
    %v3759 = vld [vmem:[#allocation10 + $0x7d8] sm:$0xff]
    %v3760 = vld [vmem:[#allocation10 + $0x7e0] sm:$0xff]
    %v3761 = vld [vmem:[#allocation10 + $0x7e8] sm:$0xff]
    %v3762 = vld [vmem:[#allocation10 + $0x7f0] sm:$0xff]
    %v3763 = vld [vmem:[#allocation10 + $0x7f8] sm:$0xff]
    %v3764 = vld [vmem:[#allocation10 + $0x800] sm:$0xff]
    %v3765 = vld [vmem:[#allocation10 + $0x808] sm:$0xff]
    %v3766 = vld [vmem:[#allocation10 + $0x810] sm:$0xff]
    %v3767 = vld [vmem:[#allocation10 + $0x818] sm:$0xff]
    %v3768 = vld [vmem:[#allocation10 + $0x820] sm:$0xff]
    %v3769 = vld [vmem:[#allocation10 + $0x828] sm:$0xff]
    %v3770 = vld [vmem:[#allocation10 + $0x830] sm:$0xff]
    %v3771 = vld [vmem:[#allocation10 + $0x838] sm:$0xff]
    %v3772 = vld [vmem:[#allocation10 + $0x840] sm:$0xff]
    %v3773 = vld [vmem:[#allocation10 + $0x848] sm:$0xff]
    %v3774 = vld [vmem:[#allocation10 + $0x850] sm:$0xff]
    %v3775 = vld [vmem:[#allocation10 + $0x858] sm:$0xff]
    %v3776 = vld [vmem:[#allocation10 + $0x860] sm:$0xff]
    %v3777 = vld [vmem:[#allocation10 + $0x868] sm:$0xff]
    %v3778 = vld [vmem:[#allocation10 + $0x870] sm:$0xff]
    %v3779 = vld [vmem:[#allocation10 + $0x878] sm:$0xff]
    %v3780 = vld [vmem:[#allocation10 + $0x880] sm:$0xff]
    %v3781 = vld [vmem:[#allocation10 + $0x888] sm:$0xff]
    %v3782 = vld [vmem:[#allocation10 + $0x890] sm:$0xff]
    %v3783 = vld [vmem:[#allocation10 + $0x898] sm:$0xff]
    %v3784 = vld [vmem:[#allocation10 + $0x8a0] sm:$0xff]
    %v3785 = vld [vmem:[#allocation10 + $0x8a8] sm:$0xff]
    %v3786 = vld [vmem:[#allocation10 + $0x8b0] sm:$0xff]
    %v3787 = vld [vmem:[#allocation10 + $0x8b8] sm:$0xff]
    %v3788 = vld [vmem:[#allocation10 + $0x8c0] sm:$0xff]
    %v3789 = vld [vmem:[#allocation10 + $0x8c8] sm:$0xff]
    %v3790 = vld [vmem:[#allocation10 + $0x8d0] sm:$0xff]
    %v3791 = vld [vmem:[#allocation10 + $0x8d8] sm:$0xff]
    %v3792 = vld [vmem:[#allocation10 + $0x8e0] sm:$0xff]
    %v3793 = vld [vmem:[#allocation10 + $0x8e8] sm:$0xff]
    %v3794 = vld [vmem:[#allocation10 + $0x8f0] sm:$0xff]
    %v3795 = vld [vmem:[#allocation10 + $0x8f8] sm:$0xff]
    %v3796 = vld [vmem:[#allocation10 + $0x900] sm:$0xff]
    %v3797 = vld [vmem:[#allocation10 + $0x908] sm:$0xff]
    %v3798 = vld [vmem:[#allocation10 + $0x910] sm:$0xff]
    %v3799 = vld [vmem:[#allocation10 + $0x918] sm:$0xff]
    %v3800 = vld [vmem:[#allocation10 + $0x920] sm:$0xff]
    %v3801 = vld [vmem:[#allocation10 + $0x928] sm:$0xff]
    %v3802 = vld [vmem:[#allocation10 + $0x930] sm:$0xff]
    %v3803 = vld [vmem:[#allocation10 + $0x938] sm:$0xff]
    %v3804 = vld [vmem:[#allocation10 + $0x940] sm:$0xff]
    %v3805 = vld [vmem:[#allocation10 + $0x948] sm:$0xff]
    %v3806 = vld [vmem:[#allocation10 + $0x950] sm:$0xff]
    %v3807 = vld [vmem:[#allocation10 + $0x958] sm:$0xff]
    %v3808 = vld [vmem:[#allocation10 + $0x960] sm:$0xff]
    %v3809 = vld [vmem:[#allocation10 + $0x968] sm:$0xff]
    %v3810 = vld [vmem:[#allocation10 + $0x970] sm:$0xff]
    %v3811 = vld [vmem:[#allocation10 + $0x978] sm:$0xff]
    %v3812 = vld [vmem:[#allocation10 + $0x980] sm:$0xff]
    %v3813 = vld [vmem:[#allocation10 + $0x988] sm:$0xff]
    %v3814 = vld [vmem:[#allocation10 + $0x990] sm:$0xff]
    %v3815 = vld [vmem:[#allocation10 + $0x998] sm:$0xff]
    %v3816 = vld [vmem:[#allocation10 + $0x9a0] sm:$0xff]
    %v3817 = vld [vmem:[#allocation10 + $0x9a8] sm:$0xff]
    %v3818 = vld [vmem:[#allocation10 + $0x9b0] sm:$0xff]
    %v3819 = vld [vmem:[#allocation10 + $0x9b8] sm:$0xff]
    %v3820 = vld [vmem:[#allocation10 + $0x9c0] sm:$0xff]
    %v3821 = vld [vmem:[#allocation10 + $0x9c8] sm:$0xff]
    %v3822 = vld [vmem:[#allocation10 + $0x9d0] sm:$0xff]
    %v3823 = vld [vmem:[#allocation10 + $0x9d8] sm:$0xff]
    %v3824 = vld [vmem:[#allocation10 + $0x9e0] sm:$0xff]
    %v3825 = vld [vmem:[#allocation10 + $0x9e8] sm:$0xff]
    %v3826 = vld [vmem:[#allocation10 + $0x9f0] sm:$0xff]
    %v3827 = vld [vmem:[#allocation10 + $0x9f8] sm:$0xff]
    %v3828 = vld [vmem:[#allocation10 + $0xa00] sm:$0xff]
    %v3829 = vld [vmem:[#allocation10 + $0xa08] sm:$0xff]
    %v3830 = vld [vmem:[#allocation10 + $0xa10] sm:$0xff]
    %v3831 = vld [vmem:[#allocation10 + $0xa18] sm:$0xff]
    %v3832 = vld [vmem:[#allocation10 + $0xa20] sm:$0xff]
    %v3833 = vld [vmem:[#allocation10 + $0xa28] sm:$0xff]
    %v3834 = vld [vmem:[#allocation10 + $0xa30] sm:$0xff]
    %v3835 = vld [vmem:[#allocation10 + $0xa38] sm:$0xff]
    %v3836 = vld [vmem:[#allocation10 + $0xa40] sm:$0xff]
    %v3837 = vld [vmem:[#allocation10 + $0xa48] sm:$0xff]
    %v3838 = vld [vmem:[#allocation10 + $0xa50] sm:$0xff]
    %v3839 = vld [vmem:[#allocation10 + $0xa58] sm:$0xff]
    %v3840 = vld [vmem:[#allocation10 + $0xa60] sm:$0xff]
    %v3841 = vld [vmem:[#allocation10 + $0xa68] sm:$0xff]
    %v3842 = vld [vmem:[#allocation10 + $0xa70] sm:$0xff]
    %v3843 = vld [vmem:[#allocation10 + $0xa78] sm:$0xff]
    %v3844 = vld [vmem:[#allocation10 + $0xa80] sm:$0xff]
    %v3845 = vld [vmem:[#allocation10 + $0xa88] sm:$0xff]
    %v3846 = vld [vmem:[#allocation10 + $0xa90] sm:$0xff]
    %v3847 = vld [vmem:[#allocation10 + $0xa98] sm:$0xff]
    %v3848 = vld [vmem:[#allocation10 + $0xaa0] sm:$0xff]
    %v3849 = vld [vmem:[#allocation10 + $0xaa8] sm:$0xff]
    %v3850 = vld [vmem:[#allocation10 + $0xab0] sm:$0xff]
    %v3851 = vld [vmem:[#allocation10 + $0xab8] sm:$0xff]
    %v3852 = vld [vmem:[#allocation10 + $0xac0] sm:$0xff]
    %v3853 = vld [vmem:[#allocation10 + $0xac8] sm:$0xff]
    %v3854 = vld [vmem:[#allocation10 + $0xad0] sm:$0xff]
    %v3855 = vld [vmem:[#allocation10 + $0xad8] sm:$0xff]
    %v3856 = vld [vmem:[#allocation10 + $0xae0] sm:$0xff]
    %v3857 = vld [vmem:[#allocation10 + $0xae8] sm:$0xff]
    %v3858 = vld [vmem:[#allocation10 + $0xaf0] sm:$0xff]
    %v3859 = vld [vmem:[#allocation10 + $0xaf8] sm:$0xff]
    %v3860 = vld [vmem:[#allocation10 + $0xb00] sm:$0xff]
    %v3861 = vld [vmem:[#allocation10 + $0xb08] sm:$0xff]
    %v3862 = vld [vmem:[#allocation10 + $0xb10] sm:$0xff]
    %v3863 = vld [vmem:[#allocation10 + $0xb18] sm:$0xff]
    %v3864 = vld [vmem:[#allocation10 + $0xb20] sm:$0xff]
    %v3865 = vld [vmem:[#allocation10 + $0xb28] sm:$0xff]
    %v3866 = vld [vmem:[#allocation10 + $0xb30] sm:$0xff]
    %v3867 = vld [vmem:[#allocation10 + $0xb38] sm:$0xff]
    %v3868 = vld [vmem:[#allocation10 + $0xb40] sm:$0xff]
    %v3869 = vld [vmem:[#allocation10 + $0xb48] sm:$0xff]
    %v3870 = vld [vmem:[#allocation10 + $0xb50] sm:$0xff]
    %v3871 = vld [vmem:[#allocation10 + $0xb58] sm:$0xff]
    %v3872 = vld [vmem:[#allocation10 + $0xb60] sm:$0xff]
    %v3873 = vld [vmem:[#allocation10 + $0xb68] sm:$0xff]
    %v3874 = vld [vmem:[#allocation10 + $0xb70] sm:$0xff]
    %v3875 = vld [vmem:[#allocation10 + $0xb78] sm:$0xff]
    %v3876 = vld [vmem:[#allocation10 + $0xb80] sm:$0xff]
    %v3877 = vld [vmem:[#allocation10 + $0xb88] sm:$0xff]
    %v3878 = vld [vmem:[#allocation10 + $0xb90] sm:$0xff]
    %v3879 = vld [vmem:[#allocation10 + $0xb98] sm:$0xff]
    %v3880 = vld [vmem:[#allocation10 + $0xba0] sm:$0xff]
    %v3881 = vld [vmem:[#allocation10 + $0xba8] sm:$0xff]
    %v3882 = vld [vmem:[#allocation10 + $0xbb0] sm:$0xff]
    %v3883 = vld [vmem:[#allocation10 + $0xbb8] sm:$0xff]
    %v3884 = vld [vmem:[#allocation10 + $0xbc0] sm:$0xff]
    %v3885 = vld [vmem:[#allocation10 + $0xbc8] sm:$0xff]
    %v3886 = vld [vmem:[#allocation10 + $0xbd0] sm:$0xff]
    %v3887 = vld [vmem:[#allocation10 + $0xbd8] sm:$0xff]
    %v3888 = vld [vmem:[#allocation10 + $0xbe0] sm:$0xff]
    %v3889 = vld [vmem:[#allocation10 + $0xbe8] sm:$0xff]
    %v3890 = vld [vmem:[#allocation10 + $0xbf0] sm:$0xff]
    %v3891 = vld [vmem:[#allocation10 + $0xbf8] sm:$0xff]
    %v3892 = vld [vmem:[#allocation10 + $0xc00] sm:$0xff]
    %v3893 = vld [vmem:[#allocation10 + $0xc08] sm:$0xff]
    %v3894 = vld [vmem:[#allocation10 + $0xc10] sm:$0xff]
    %v3895 = vld [vmem:[#allocation10 + $0xc18] sm:$0xff]
    %v3896 = vld [vmem:[#allocation10 + $0xc20] sm:$0xff]
    %v3897 = vld [vmem:[#allocation10 + $0xc28] sm:$0xff]
    %v3898 = vld [vmem:[#allocation10 + $0xc30] sm:$0xff]
    %v3899 = vld [vmem:[#allocation10 + $0xc38] sm:$0xff]
    %v3900 = vld [vmem:[#allocation10 + $0xc40] sm:$0xff]
    %v3901 = vld [vmem:[#allocation10 + $0xc48] sm:$0xff]
    %v3902 = vld [vmem:[#allocation10 + $0xc50] sm:$0xff]
    %v3903 = vld [vmem:[#allocation10 + $0xc58] sm:$0xff]
    %v3904 = vld [vmem:[#allocation10 + $0xc60] sm:$0xff]
    %v3905 = vld [vmem:[#allocation10 + $0xc68] sm:$0xff]
    %v3906 = vld [vmem:[#allocation10 + $0xc70] sm:$0xff]
    %v3907 = vld [vmem:[#allocation10 + $0xc78] sm:$0xff]
    %v3908 = vld [vmem:[#allocation10 + $0xc80] sm:$0xff]
    %v3909 = vld [vmem:[#allocation10 + $0xc88] sm:$0xff]
    %v3910 = vld [vmem:[#allocation10 + $0xc90] sm:$0xff]
    %v3911 = vld [vmem:[#allocation10 + $0xc98] sm:$0xff]
    %v3912 = vld [vmem:[#allocation10 + $0xca0] sm:$0xff]
    %v3913 = vld [vmem:[#allocation10 + $0xca8] sm:$0xff]
    %v3914 = vld [vmem:[#allocation10 + $0xcb0] sm:$0xff]
    %v3915 = vld [vmem:[#allocation10 + $0xcb8] sm:$0xff]
    %v3916 = vld [vmem:[#allocation10 + $0xcc0] sm:$0xff]
    %v3917 = vld [vmem:[#allocation10 + $0xcc8] sm:$0xff]
    %v3918 = vld [vmem:[#allocation10 + $0xcd0] sm:$0xff]
    %v3919 = vld [vmem:[#allocation10 + $0xcd8] sm:$0xff]
    %v3920 = vld [vmem:[#allocation10 + $0xce0] sm:$0xff]
    %v3921 = vld [vmem:[#allocation10 + $0xce8] sm:$0xff]
    %v3922 = vld [vmem:[#allocation10 + $0xcf0] sm:$0xff]
    %v3923 = vld [vmem:[#allocation10 + $0xcf8] sm:$0xff]
    %v3924 = vld [vmem:[#allocation10 + $0xd00] sm:$0xff]
    %v3925 = vld [vmem:[#allocation10 + $0xd08] sm:$0xff]
    %v3926 = vld [vmem:[#allocation10 + $0xd10] sm:$0xff]
    %v3927 = vld [vmem:[#allocation10 + $0xd18] sm:$0xff]
    %v3928 = vld [vmem:[#allocation10 + $0xd20] sm:$0xff]
    %v3929 = vld [vmem:[#allocation10 + $0xd28] sm:$0xff]
    %v3930 = vld [vmem:[#allocation10 + $0xd30] sm:$0xff]
    %v3931 = vld [vmem:[#allocation10 + $0xd38] sm:$0xff]
    %v3932 = vld [vmem:[#allocation10 + $0xd40] sm:$0xff]
    %v3933 = vld [vmem:[#allocation10 + $0xd48] sm:$0xff]
    %v3934 = vld [vmem:[#allocation10 + $0xd50] sm:$0xff]
    %v3935 = vld [vmem:[#allocation10 + $0xd58] sm:$0xff]
    %v3936 = vld [vmem:[#allocation10 + $0xd60] sm:$0xff]
    %v3937 = vld [vmem:[#allocation10 + $0xd68] sm:$0xff]
    %v3938 = vld [vmem:[#allocation10 + $0xd70] sm:$0xff]
    %v3939 = vld [vmem:[#allocation10 + $0xd78] sm:$0xff]
    %v3940 = vld [vmem:[#allocation10 + $0xd80] sm:$0xff]
    %v3941 = vld [vmem:[#allocation10 + $0xd88] sm:$0xff]
    %v3942 = vld [vmem:[#allocation10 + $0xd90] sm:$0xff]
    %v3943 = vld [vmem:[#allocation10 + $0xd98] sm:$0xff]
    %v3944 = vld [vmem:[#allocation10 + $0xda0] sm:$0xff]
    %v3945 = vld [vmem:[#allocation10 + $0xda8] sm:$0xff]
    %v3946 = vld [vmem:[#allocation10 + $0xdb0] sm:$0xff]
    %v3947 = vld [vmem:[#allocation10 + $0xdb8] sm:$0xff]
    %v3948 = vld [vmem:[#allocation10 + $0xdc0] sm:$0xff]
    %v3949 = vld [vmem:[#allocation10 + $0xdc8] sm:$0xff]
    %v3950 = vld [vmem:[#allocation10 + $0xdd0] sm:$0xff]
    %v3951 = vld [vmem:[#allocation10 + $0xdd8] sm:$0xff]
    %v3952 = vld [vmem:[#allocation10 + $0xde0] sm:$0xff]
    %v3953 = vld [vmem:[#allocation10 + $0xde8] sm:$0xff]
    %v3954 = vld [vmem:[#allocation10 + $0xdf0] sm:$0xff]
    %v3955 = vld [vmem:[#allocation10 + $0xdf8] sm:$0xff]
    %v3956 = vld [vmem:[#allocation10 + $0xe00] sm:$0xff]
    %v3957 = vld [vmem:[#allocation10 + $0xe08] sm:$0xff]
    %v3958 = vld [vmem:[#allocation10 + $0xe10] sm:$0xff]
    %v3959 = vld [vmem:[#allocation10 + $0xe18] sm:$0xff]
    %v3960 = vld [vmem:[#allocation10 + $0xe20] sm:$0xff]
    %v3961 = vld [vmem:[#allocation10 + $0xe28] sm:$0xff]
    %v3962 = vld [vmem:[#allocation10 + $0xe30] sm:$0xff]
    %v3963 = vld [vmem:[#allocation10 + $0xe38] sm:$0xff]
    %v3964 = vld [vmem:[#allocation10 + $0xe40] sm:$0xff]
    %v3965 = vld [vmem:[#allocation10 + $0xe48] sm:$0xff]
    %v3966 = vld [vmem:[#allocation10 + $0xe50] sm:$0xff]
    %v3967 = vld [vmem:[#allocation10 + $0xe58] sm:$0xff]
    %v3968 = vld [vmem:[#allocation10 + $0xe60] sm:$0xff]
    %v3969 = vld [vmem:[#allocation10 + $0xe68] sm:$0xff]
    %v3970 = vld [vmem:[#allocation10 + $0xe70] sm:$0xff]
    %v3971 = vld [vmem:[#allocation10 + $0xe78] sm:$0xff]
    %v3972 = vld [vmem:[#allocation10 + $0xe80] sm:$0xff]
    %v3973 = vld [vmem:[#allocation10 + $0xe88] sm:$0xff]
    %v3974 = vld [vmem:[#allocation10 + $0xe90] sm:$0xff]
    %v3975 = vld [vmem:[#allocation10 + $0xe98] sm:$0xff]
    %v3976 = vld [vmem:[#allocation10 + $0xea0] sm:$0xff]
    %v3977 = vld [vmem:[#allocation10 + $0xea8] sm:$0xff]
    %v3978 = vld [vmem:[#allocation10 + $0xeb0] sm:$0xff]
    %v3979 = vld [vmem:[#allocation10 + $0xeb8] sm:$0xff]
    %v3980 = vld [vmem:[#allocation10 + $0xec0] sm:$0xff]
    %v3981 = vld [vmem:[#allocation10 + $0xec8] sm:$0xff]
    %v3982 = vld [vmem:[#allocation10 + $0xed0] sm:$0xff]
    %v3983 = vld [vmem:[#allocation10 + $0xed8] sm:$0xff]
    %v3984 = vld [vmem:[#allocation10 + $0xee0] sm:$0xff]
    %v3985 = vld [vmem:[#allocation10 + $0xee8] sm:$0xff]
    %v3986 = vld [vmem:[#allocation10 + $0xef0] sm:$0xff]
    %v3987 = vld [vmem:[#allocation10 + $0xef8] sm:$0xff]
    %v3988 = vld [vmem:[#allocation10 + $0xf00] sm:$0xff]
    %v3989 = vld [vmem:[#allocation10 + $0xf08] sm:$0xff]
    %v3990 = vld [vmem:[#allocation10 + $0xf10] sm:$0xff]
    %v3991 = vld [vmem:[#allocation10 + $0xf18] sm:$0xff]
    %v3992 = vld [vmem:[#allocation10 + $0xf20] sm:$0xff]
    %v3993 = vld [vmem:[#allocation10 + $0xf28] sm:$0xff]
    %v3994 = vld [vmem:[#allocation10 + $0xf30] sm:$0xff]
    %v3995 = vld [vmem:[#allocation10 + $0xf38] sm:$0xff]
    %v3996 = vld [vmem:[#allocation10 + $0xf40] sm:$0xff]
    %v3997 = vld [vmem:[#allocation10 + $0xf48] sm:$0xff]
    %v3998 = vld [vmem:[#allocation10 + $0xf50] sm:$0xff]
    %v3999 = vld [vmem:[#allocation10 + $0xf58] sm:$0xff]
    %v4000 = vld [vmem:[#allocation10 + $0xf60] sm:$0xff]
    %v4001 = vld [vmem:[#allocation10 + $0xf68] sm:$0xff]
    %v4002 = vld [vmem:[#allocation10 + $0xf70] sm:$0xff]
    %v4003 = vld [vmem:[#allocation10 + $0xf78] sm:$0xff]
    %v4004 = vld [vmem:[#allocation10 + $0xf80] sm:$0xff]
    %v4005 = vld [vmem:[#allocation10 + $0xf88] sm:$0xff]
    %v4006 = vld [vmem:[#allocation10 + $0xf90] sm:$0xff]
    %v4007 = vld [vmem:[#allocation10 + $0xf98] sm:$0xff]
    %v4008 = vld [vmem:[#allocation10 + $0xfa0] sm:$0xff]
    %v4009 = vld [vmem:[#allocation10 + $0xfa8] sm:$0xff]
    %v4010 = vld [vmem:[#allocation10 + $0xfb0] sm:$0xff]
    %v4011 = vld [vmem:[#allocation10 + $0xfb8] sm:$0xff]
    %v4012 = vld [vmem:[#allocation10 + $0xfc0] sm:$0xff]
    %v4013 = vld [vmem:[#allocation10 + $0xfc8] sm:$0xff]
    %v4014 = vld [vmem:[#allocation10 + $0xfd0] sm:$0xff]
    %v4015 = vld [vmem:[#allocation10 + $0xfd8] sm:$0xff]
    %v4016 = vld [vmem:[#allocation10 + $0xfe0] sm:$0xff]
    %v4017 = vld [vmem:[#allocation10 + $0xfe8] sm:$0xff]
    %v4018 = vld [vmem:[#allocation10 + $0xff0] sm:$0xff]
    %v4019 = vld [vmem:[#allocation10 + $0xff8] sm:$0xff]
    %v4020 = vld [vmem:[#allocation11] sm:$0xff]
    %v4022 = vperm.slane %v4020, 0
    %v4023 = vperm.slane %v4020, 1
    %v4024 = vperm.slane %v4020, 2
    %v4025 = vperm.slane %v4020, 3
    %v4026 = vperm.slane %v4020, 4
    %v4027 = vperm.slane %v4020, 5
    %v4028 = vperm.slane %v4020, 6
    %v4029 = vperm.slane %v4020, 7
    %v4550 = vunpack.c.l.b16 %v3508
    %v4551 = vunpack.c.h.b16 %v3508
    %v4552 = vunpack.c.l.b16 %v3509
    %v4553 = vunpack.c.h.b16 %v3509
    %v4554 = vunpack.c.l.b16 %v3510
    %v4555 = vunpack.c.h.b16 %v3510
    %v4556 = vunpack.c.l.b16 %v3511
    %v4557 = vunpack.c.h.b16 %v3511
    %v4558 = vunpack.c.l.b16 %v3512
    %v4559 = vunpack.c.h.b16 %v3512
    %v4560 = vunpack.c.l.b16 %v3513
    %v4561 = vunpack.c.h.b16 %v3513
    %v4562 = vunpack.c.l.b16 %v3514
    %v4563 = vunpack.c.h.b16 %v3514
    %v4564 = vunpack.c.l.b16 %v3515
    %v4565 = vunpack.c.h.b16 %v3515
    %v4566 = vunpack.c.l.b16 %v3516
    %v4567 = vunpack.c.h.b16 %v3516
    %v4568 = vunpack.c.l.b16 %v3517
    %v4569 = vunpack.c.h.b16 %v3517
    %v4570 = vunpack.c.l.b16 %v3518
    %v4571 = vunpack.c.h.b16 %v3518
    %v4572 = vunpack.c.l.b16 %v3519
    %v4573 = vunpack.c.h.b16 %v3519
    %v4574 = vunpack.c.l.b16 %v3520
    %v4575 = vunpack.c.h.b16 %v3520
    %v4576 = vunpack.c.l.b16 %v3521
    %v4577 = vunpack.c.h.b16 %v3521
    %v4578 = vunpack.c.l.b16 %v3522
    %v4579 = vunpack.c.h.b16 %v3522
    %v4580 = vunpack.c.l.b16 %v3523
    %v4581 = vunpack.c.h.b16 %v3523
    %v4582 = vunpack.c.l.b16 %v3524
    %v4583 = vunpack.c.h.b16 %v3524
    %v4584 = vunpack.c.l.b16 %v3525
    %v4585 = vunpack.c.h.b16 %v3525
    %v4586 = vunpack.c.l.b16 %v3526
    %v4587 = vunpack.c.h.b16 %v3526
    %v4588 = vunpack.c.l.b16 %v3527
    %v4589 = vunpack.c.h.b16 %v3527
    %v4590 = vunpack.c.l.b16 %v3528
    %v4591 = vunpack.c.h.b16 %v3528
    %v4592 = vunpack.c.l.b16 %v3529
    %v4593 = vunpack.c.h.b16 %v3529
    %v4594 = vunpack.c.l.b16 %v3530
    %v4595 = vunpack.c.h.b16 %v3530
    %v4596 = vunpack.c.l.b16 %v3531
    %v4597 = vunpack.c.h.b16 %v3531
    %v4598 = vunpack.c.l.b16 %v3532
    %v4599 = vunpack.c.h.b16 %v3532
    %v4600 = vunpack.c.l.b16 %v3533
    %v4601 = vunpack.c.h.b16 %v3533
    %v4602 = vunpack.c.l.b16 %v3534
    %v4603 = vunpack.c.h.b16 %v3534
    %v4604 = vunpack.c.l.b16 %v3535
    %v4605 = vunpack.c.h.b16 %v3535
    %v4606 = vunpack.c.l.b16 %v3536
    %v4607 = vunpack.c.h.b16 %v3536
    %v4608 = vunpack.c.l.b16 %v3537
    %v4609 = vunpack.c.h.b16 %v3537
    %v4610 = vunpack.c.l.b16 %v3538
    %v4611 = vunpack.c.h.b16 %v3538
    %v4612 = vunpack.c.l.b16 %v3539
    %v4613 = vunpack.c.h.b16 %v3539
    %v4614 = vunpack.c.l.b16 %v3540
    %v4615 = vunpack.c.h.b16 %v3540
    %v4616 = vunpack.c.l.b16 %v3541
    %v4617 = vunpack.c.h.b16 %v3541
    %v4618 = vunpack.c.l.b16 %v3542
    %v4619 = vunpack.c.h.b16 %v3542
    %v4620 = vunpack.c.l.b16 %v3543
    %v4621 = vunpack.c.h.b16 %v3543
    %v4622 = vunpack.c.l.b16 %v3544
    %v4623 = vunpack.c.h.b16 %v3544
    %v4624 = vunpack.c.l.b16 %v3545
    %v4625 = vunpack.c.h.b16 %v3545
    %v4626 = vunpack.c.l.b16 %v3546
    %v4627 = vunpack.c.h.b16 %v3546
    %v4628 = vunpack.c.l.b16 %v3547
    %v4629 = vunpack.c.h.b16 %v3547
    %v4630 = vunpack.c.l.b16 %v3548
    %v4631 = vunpack.c.h.b16 %v3548
    %v4632 = vunpack.c.l.b16 %v3549
    %v4633 = vunpack.c.h.b16 %v3549
    %v4634 = vunpack.c.l.b16 %v3550
    %v4635 = vunpack.c.h.b16 %v3550
    %v4636 = vunpack.c.l.b16 %v3551
    %v4637 = vunpack.c.h.b16 %v3551
    %v4638 = vunpack.c.l.b16 %v3552
    %v4639 = vunpack.c.h.b16 %v3552
    %v4640 = vunpack.c.l.b16 %v3553
    %v4641 = vunpack.c.h.b16 %v3553
    %v4642 = vunpack.c.l.b16 %v3554
    %v4643 = vunpack.c.h.b16 %v3554
    %v4644 = vunpack.c.l.b16 %v3555
    %v4645 = vunpack.c.h.b16 %v3555
    %v4646 = vunpack.c.l.b16 %v3556
    %v4647 = vunpack.c.h.b16 %v3556
    %v4648 = vunpack.c.l.b16 %v3557
    %v4649 = vunpack.c.h.b16 %v3557
    %v4650 = vunpack.c.l.b16 %v3558
    %v4651 = vunpack.c.h.b16 %v3558
    %v4652 = vunpack.c.l.b16 %v3559
    %v4653 = vunpack.c.h.b16 %v3559
    %v4654 = vunpack.c.l.b16 %v3560
    %v4655 = vunpack.c.h.b16 %v3560
    %v4656 = vunpack.c.l.b16 %v3561
    %v4657 = vunpack.c.h.b16 %v3561
    %v4658 = vunpack.c.l.b16 %v3562
    %v4659 = vunpack.c.h.b16 %v3562
    %v4660 = vunpack.c.l.b16 %v3563
    %v4661 = vunpack.c.h.b16 %v3563
    %v4662 = vunpack.c.l.b16 %v3564
    %v4663 = vunpack.c.h.b16 %v3564
    %v4664 = vunpack.c.l.b16 %v3565
    %v4665 = vunpack.c.h.b16 %v3565
    %v4666 = vunpack.c.l.b16 %v3566
    %v4667 = vunpack.c.h.b16 %v3566
    %v4668 = vunpack.c.l.b16 %v3567
    %v4669 = vunpack.c.h.b16 %v3567
    %v4670 = vunpack.c.l.b16 %v3568
    %v4671 = vunpack.c.h.b16 %v3568
    %v4672 = vunpack.c.l.b16 %v3569
    %v4673 = vunpack.c.h.b16 %v3569
    %v4674 = vunpack.c.l.b16 %v3570
    %v4675 = vunpack.c.h.b16 %v3570
    %v4676 = vunpack.c.l.b16 %v3571
    %v4677 = vunpack.c.h.b16 %v3571
    %v4678 = vunpack.c.l.b16 %v3572
    %v4679 = vunpack.c.h.b16 %v3572
    %v4680 = vunpack.c.l.b16 %v3573
    %v4681 = vunpack.c.h.b16 %v3573
    %v4682 = vunpack.c.l.b16 %v3574
    %v4683 = vunpack.c.h.b16 %v3574
    %v4684 = vunpack.c.l.b16 %v3575
    %v4685 = vunpack.c.h.b16 %v3575
    %v4686 = vunpack.c.l.b16 %v3576
    %v4687 = vunpack.c.h.b16 %v3576
    %v4688 = vunpack.c.l.b16 %v3577
    %v4689 = vunpack.c.h.b16 %v3577
    %v4690 = vunpack.c.l.b16 %v3578
    %v4691 = vunpack.c.h.b16 %v3578
    %v4692 = vunpack.c.l.b16 %v3579
    %v4693 = vunpack.c.h.b16 %v3579
    %v4694 = vunpack.c.l.b16 %v3580
    %v4695 = vunpack.c.h.b16 %v3580
    %v4696 = vunpack.c.l.b16 %v3581
    %v4697 = vunpack.c.h.b16 %v3581
    %v4698 = vunpack.c.l.b16 %v3582
    %v4699 = vunpack.c.h.b16 %v3582
    %v4700 = vunpack.c.l.b16 %v3583
    %v4701 = vunpack.c.h.b16 %v3583
    %v4702 = vunpack.c.l.b16 %v3584
    %v4703 = vunpack.c.h.b16 %v3584
    %v4704 = vunpack.c.l.b16 %v3585
    %v4705 = vunpack.c.h.b16 %v3585
    %v4706 = vunpack.c.l.b16 %v3586
    %v4707 = vunpack.c.h.b16 %v3586
    %v4708 = vunpack.c.l.b16 %v3587
    %v4709 = vunpack.c.h.b16 %v3587
    %v4710 = vunpack.c.l.b16 %v3588
    %v4711 = vunpack.c.h.b16 %v3588
    %v4712 = vunpack.c.l.b16 %v3589
    %v4713 = vunpack.c.h.b16 %v3589
    %v4714 = vunpack.c.l.b16 %v3590
    %v4715 = vunpack.c.h.b16 %v3590
    %v4716 = vunpack.c.l.b16 %v3591
    %v4717 = vunpack.c.h.b16 %v3591
    %v4718 = vunpack.c.l.b16 %v3592
    %v4719 = vunpack.c.h.b16 %v3592
    %v4720 = vunpack.c.l.b16 %v3593
    %v4721 = vunpack.c.h.b16 %v3593
    %v4722 = vunpack.c.l.b16 %v3594
    %v4723 = vunpack.c.h.b16 %v3594
    %v4724 = vunpack.c.l.b16 %v3595
    %v4725 = vunpack.c.h.b16 %v3595
    %v4726 = vunpack.c.l.b16 %v3596
    %v4727 = vunpack.c.h.b16 %v3596
    %v4728 = vunpack.c.l.b16 %v3597
    %v4729 = vunpack.c.h.b16 %v3597
    %v4730 = vunpack.c.l.b16 %v3598
    %v4731 = vunpack.c.h.b16 %v3598
    %v4732 = vunpack.c.l.b16 %v3599
    %v4733 = vunpack.c.h.b16 %v3599
    %v4734 = vunpack.c.l.b16 %v3600
    %v4735 = vunpack.c.h.b16 %v3600
    %v4736 = vunpack.c.l.b16 %v3601
    %v4737 = vunpack.c.h.b16 %v3601
    %v4738 = vunpack.c.l.b16 %v3602
    %v4739 = vunpack.c.h.b16 %v3602
    %v4740 = vunpack.c.l.b16 %v3603
    %v4741 = vunpack.c.h.b16 %v3603
    %v4742 = vunpack.c.l.b16 %v3604
    %v4743 = vunpack.c.h.b16 %v3604
    %v4744 = vunpack.c.l.b16 %v3605
    %v4745 = vunpack.c.h.b16 %v3605
    %v4746 = vunpack.c.l.b16 %v3606
    %v4747 = vunpack.c.h.b16 %v3606
    %v4748 = vunpack.c.l.b16 %v3607
    %v4749 = vunpack.c.h.b16 %v3607
    %v4750 = vunpack.c.l.b16 %v3608
    %v4751 = vunpack.c.h.b16 %v3608
    %v4752 = vunpack.c.l.b16 %v3609
    %v4753 = vunpack.c.h.b16 %v3609
    %v4754 = vunpack.c.l.b16 %v3610
    %v4755 = vunpack.c.h.b16 %v3610
    %v4756 = vunpack.c.l.b16 %v3611
    %v4757 = vunpack.c.h.b16 %v3611
    %v4758 = vunpack.c.l.b16 %v3612
    %v4759 = vunpack.c.h.b16 %v3612
    %v4760 = vunpack.c.l.b16 %v3613
    %v4761 = vunpack.c.h.b16 %v3613
    %v4762 = vunpack.c.l.b16 %v3614
    %v4763 = vunpack.c.h.b16 %v3614
    %v4764 = vunpack.c.l.b16 %v3615
    %v4765 = vunpack.c.h.b16 %v3615
    %v4766 = vunpack.c.l.b16 %v3616
    %v4767 = vunpack.c.h.b16 %v3616
    %v4768 = vunpack.c.l.b16 %v3617
    %v4769 = vunpack.c.h.b16 %v3617
    %v4770 = vunpack.c.l.b16 %v3618
    %v4771 = vunpack.c.h.b16 %v3618
    %v4772 = vunpack.c.l.b16 %v3619
    %v4773 = vunpack.c.h.b16 %v3619
    %v4774 = vunpack.c.l.b16 %v3620
    %v4775 = vunpack.c.h.b16 %v3620
    %v4776 = vunpack.c.l.b16 %v3621
    %v4777 = vunpack.c.h.b16 %v3621
    %v4778 = vunpack.c.l.b16 %v3622
    %v4779 = vunpack.c.h.b16 %v3622
    %v4780 = vunpack.c.l.b16 %v3623
    %v4781 = vunpack.c.h.b16 %v3623
    %v4782 = vunpack.c.l.b16 %v3624
    %v4783 = vunpack.c.h.b16 %v3624
    %v4784 = vunpack.c.l.b16 %v3625
    %v4785 = vunpack.c.h.b16 %v3625
    %v4786 = vunpack.c.l.b16 %v3626
    %v4787 = vunpack.c.h.b16 %v3626
    %v4788 = vunpack.c.l.b16 %v3627
    %v4789 = vunpack.c.h.b16 %v3627
    %v4790 = vunpack.c.l.b16 %v3628
    %v4791 = vunpack.c.h.b16 %v3628
    %v4792 = vunpack.c.l.b16 %v3629
    %v4793 = vunpack.c.h.b16 %v3629
    %v4794 = vunpack.c.l.b16 %v3630
    %v4795 = vunpack.c.h.b16 %v3630
    %v4796 = vunpack.c.l.b16 %v3631
    %v4797 = vunpack.c.h.b16 %v3631
    %v4798 = vunpack.c.l.b16 %v3632
    %v4799 = vunpack.c.h.b16 %v3632
    %v4800 = vunpack.c.l.b16 %v3633
    %v4801 = vunpack.c.h.b16 %v3633
    %v4802 = vunpack.c.l.b16 %v3634
    %v4803 = vunpack.c.h.b16 %v3634
    %v4804 = vunpack.c.l.b16 %v3635
    %v4805 = vunpack.c.h.b16 %v3635
    %v4806 = vunpack.c.l.b16 %v3636
    %v4807 = vunpack.c.h.b16 %v3636
    %v4808 = vunpack.c.l.b16 %v3637
    %v4809 = vunpack.c.h.b16 %v3637
    %v4810 = vunpack.c.l.b16 %v3638
    %v4811 = vunpack.c.h.b16 %v3638
    %v4812 = vunpack.c.l.b16 %v3639
    %v4813 = vunpack.c.h.b16 %v3639
    %v4814 = vunpack.c.l.b16 %v3640
    %v4815 = vunpack.c.h.b16 %v3640
    %v4816 = vunpack.c.l.b16 %v3641
    %v4817 = vunpack.c.h.b16 %v3641
    %v4818 = vunpack.c.l.b16 %v3642
    %v4819 = vunpack.c.h.b16 %v3642
    %v4820 = vunpack.c.l.b16 %v3643
    %v4821 = vunpack.c.h.b16 %v3643
    %v4822 = vunpack.c.l.b16 %v3644
    %v4823 = vunpack.c.h.b16 %v3644
    %v4824 = vunpack.c.l.b16 %v3645
    %v4825 = vunpack.c.h.b16 %v3645
    %v4826 = vunpack.c.l.b16 %v3646
    %v4827 = vunpack.c.h.b16 %v3646
    %v4828 = vunpack.c.l.b16 %v3647
    %v4829 = vunpack.c.h.b16 %v3647
    %v4830 = vunpack.c.l.b16 %v3648
    %v4831 = vunpack.c.h.b16 %v3648
    %v4832 = vunpack.c.l.b16 %v3649
    %v4833 = vunpack.c.h.b16 %v3649
    %v4834 = vunpack.c.l.b16 %v3650
    %v4835 = vunpack.c.h.b16 %v3650
    %v4836 = vunpack.c.l.b16 %v3651
    %v4837 = vunpack.c.h.b16 %v3651
    %v4838 = vunpack.c.l.b16 %v3652
    %v4839 = vunpack.c.h.b16 %v3652
    %v4840 = vunpack.c.l.b16 %v3653
    %v4841 = vunpack.c.h.b16 %v3653
    %v4842 = vunpack.c.l.b16 %v3654
    %v4843 = vunpack.c.h.b16 %v3654
    %v4844 = vunpack.c.l.b16 %v3655
    %v4845 = vunpack.c.h.b16 %v3655
    %v4846 = vunpack.c.l.b16 %v3656
    %v4847 = vunpack.c.h.b16 %v3656
    %v4848 = vunpack.c.l.b16 %v3657
    %v4849 = vunpack.c.h.b16 %v3657
    %v4850 = vunpack.c.l.b16 %v3658
    %v4851 = vunpack.c.h.b16 %v3658
    %v4852 = vunpack.c.l.b16 %v3659
    %v4853 = vunpack.c.h.b16 %v3659
    %v4854 = vunpack.c.l.b16 %v3660
    %v4855 = vunpack.c.h.b16 %v3660
    %v4856 = vunpack.c.l.b16 %v3661
    %v4857 = vunpack.c.h.b16 %v3661
    %v4858 = vunpack.c.l.b16 %v3662
    %v4859 = vunpack.c.h.b16 %v3662
    %v4860 = vunpack.c.l.b16 %v3663
    %v4861 = vunpack.c.h.b16 %v3663
    %v4862 = vunpack.c.l.b16 %v3664
    %v4863 = vunpack.c.h.b16 %v3664
    %v4864 = vunpack.c.l.b16 %v3665
    %v4865 = vunpack.c.h.b16 %v3665
    %v4866 = vunpack.c.l.b16 %v3666
    %v4867 = vunpack.c.h.b16 %v3666
    %v4868 = vunpack.c.l.b16 %v3667
    %v4869 = vunpack.c.h.b16 %v3667
    %v4870 = vunpack.c.l.b16 %v3668
    %v4871 = vunpack.c.h.b16 %v3668
    %v4872 = vunpack.c.l.b16 %v3669
    %v4873 = vunpack.c.h.b16 %v3669
    %v4874 = vunpack.c.l.b16 %v3670
    %v4875 = vunpack.c.h.b16 %v3670
    %v4876 = vunpack.c.l.b16 %v3671
    %v4877 = vunpack.c.h.b16 %v3671
    %v4878 = vunpack.c.l.b16 %v3672
    %v4879 = vunpack.c.h.b16 %v3672
    %v4880 = vunpack.c.l.b16 %v3673
    %v4881 = vunpack.c.h.b16 %v3673
    %v4882 = vunpack.c.l.b16 %v3674
    %v4883 = vunpack.c.h.b16 %v3674
    %v4884 = vunpack.c.l.b16 %v3675
    %v4885 = vunpack.c.h.b16 %v3675
    %v4886 = vunpack.c.l.b16 %v3676
    %v4887 = vunpack.c.h.b16 %v3676
    %v4888 = vunpack.c.l.b16 %v3677
    %v4889 = vunpack.c.h.b16 %v3677
    %v4890 = vunpack.c.l.b16 %v3678
    %v4891 = vunpack.c.h.b16 %v3678
    %v4892 = vunpack.c.l.b16 %v3679
    %v4893 = vunpack.c.h.b16 %v3679
    %v4894 = vunpack.c.l.b16 %v3680
    %v4895 = vunpack.c.h.b16 %v3680
    %v4896 = vunpack.c.l.b16 %v3681
    %v4897 = vunpack.c.h.b16 %v3681
    %v4898 = vunpack.c.l.b16 %v3682
    %v4899 = vunpack.c.h.b16 %v3682
    %v4900 = vunpack.c.l.b16 %v3683
    %v4901 = vunpack.c.h.b16 %v3683
    %v4902 = vunpack.c.l.b16 %v3684
    %v4903 = vunpack.c.h.b16 %v3684
    %v4904 = vunpack.c.l.b16 %v3685
    %v4905 = vunpack.c.h.b16 %v3685
    %v4906 = vunpack.c.l.b16 %v3686
    %v4907 = vunpack.c.h.b16 %v3686
    %v4908 = vunpack.c.l.b16 %v3687
    %v4909 = vunpack.c.h.b16 %v3687
    %v4910 = vunpack.c.l.b16 %v3688
    %v4911 = vunpack.c.h.b16 %v3688
    %v4912 = vunpack.c.l.b16 %v3689
    %v4913 = vunpack.c.h.b16 %v3689
    %v4914 = vunpack.c.l.b16 %v3690
    %v4915 = vunpack.c.h.b16 %v3690
    %v4916 = vunpack.c.l.b16 %v3691
    %v4917 = vunpack.c.h.b16 %v3691
    %v4918 = vunpack.c.l.b16 %v3692
    %v4919 = vunpack.c.h.b16 %v3692
    %v4920 = vunpack.c.l.b16 %v3693
    %v4921 = vunpack.c.h.b16 %v3693
    %v4922 = vunpack.c.l.b16 %v3694
    %v4923 = vunpack.c.h.b16 %v3694
    %v4924 = vunpack.c.l.b16 %v3695
    %v4925 = vunpack.c.h.b16 %v3695
    %v4926 = vunpack.c.l.b16 %v3696
    %v4927 = vunpack.c.h.b16 %v3696
    %v4928 = vunpack.c.l.b16 %v3697
    %v4929 = vunpack.c.h.b16 %v3697
    %v4930 = vunpack.c.l.b16 %v3698
    %v4931 = vunpack.c.h.b16 %v3698
    %v4932 = vunpack.c.l.b16 %v3699
    %v4933 = vunpack.c.h.b16 %v3699
    %v4934 = vunpack.c.l.b16 %v3700
    %v4935 = vunpack.c.h.b16 %v3700
    %v4936 = vunpack.c.l.b16 %v3701
    %v4937 = vunpack.c.h.b16 %v3701
    %v4938 = vunpack.c.l.b16 %v3702
    %v4939 = vunpack.c.h.b16 %v3702
    %v4940 = vunpack.c.l.b16 %v3703
    %v4941 = vunpack.c.h.b16 %v3703
    %v4942 = vunpack.c.l.b16 %v3704
    %v4943 = vunpack.c.h.b16 %v3704
    %v4944 = vunpack.c.l.b16 %v3705
    %v4945 = vunpack.c.h.b16 %v3705
    %v4946 = vunpack.c.l.b16 %v3706
    %v4947 = vunpack.c.h.b16 %v3706
    %v4948 = vunpack.c.l.b16 %v3707
    %v4949 = vunpack.c.h.b16 %v3707
    %v4950 = vunpack.c.l.b16 %v3708
    %v4951 = vunpack.c.h.b16 %v3708
    %v4952 = vunpack.c.l.b16 %v3709
    %v4953 = vunpack.c.h.b16 %v3709
    %v4954 = vunpack.c.l.b16 %v3710
    %v4955 = vunpack.c.h.b16 %v3710
    %v4956 = vunpack.c.l.b16 %v3711
    %v4957 = vunpack.c.h.b16 %v3711
    %v4958 = vunpack.c.l.b16 %v3712
    %v4959 = vunpack.c.h.b16 %v3712
    %v4960 = vunpack.c.l.b16 %v3713
    %v4961 = vunpack.c.h.b16 %v3713
    %v4962 = vunpack.c.l.b16 %v3714
    %v4963 = vunpack.c.h.b16 %v3714
    %v4964 = vunpack.c.l.b16 %v3715
    %v4965 = vunpack.c.h.b16 %v3715
    %v4966 = vunpack.c.l.b16 %v3716
    %v4967 = vunpack.c.h.b16 %v3716
    %v4968 = vunpack.c.l.b16 %v3717
    %v4969 = vunpack.c.h.b16 %v3717
    %v4970 = vunpack.c.l.b16 %v3718
    %v4971 = vunpack.c.h.b16 %v3718
    %v4972 = vunpack.c.l.b16 %v3719
    %v4973 = vunpack.c.h.b16 %v3719
    %v4974 = vunpack.c.l.b16 %v3720
    %v4975 = vunpack.c.h.b16 %v3720
    %v4976 = vunpack.c.l.b16 %v3721
    %v4977 = vunpack.c.h.b16 %v3721
    %v4978 = vunpack.c.l.b16 %v3722
    %v4979 = vunpack.c.h.b16 %v3722
    %v4980 = vunpack.c.l.b16 %v3723
    %v4981 = vunpack.c.h.b16 %v3723
    %v4982 = vunpack.c.l.b16 %v3724
    %v4983 = vunpack.c.h.b16 %v3724
    %v4984 = vunpack.c.l.b16 %v3725
    %v4985 = vunpack.c.h.b16 %v3725
    %v4986 = vunpack.c.l.b16 %v3726
    %v4987 = vunpack.c.h.b16 %v3726
    %v4988 = vunpack.c.l.b16 %v3727
    %v4989 = vunpack.c.h.b16 %v3727
    %v4990 = vunpack.c.l.b16 %v3728
    %v4991 = vunpack.c.h.b16 %v3728
    %v4992 = vunpack.c.l.b16 %v3729
    %v4993 = vunpack.c.h.b16 %v3729
    %v4994 = vunpack.c.l.b16 %v3730
    %v4995 = vunpack.c.h.b16 %v3730
    %v4996 = vunpack.c.l.b16 %v3731
    %v4997 = vunpack.c.h.b16 %v3731
    %v4998 = vunpack.c.l.b16 %v3732
    %v4999 = vunpack.c.h.b16 %v3732
    %v5000 = vunpack.c.l.b16 %v3733
    %v5001 = vunpack.c.h.b16 %v3733
    %v5002 = vunpack.c.l.b16 %v3734
    %v5003 = vunpack.c.h.b16 %v3734
    %v5004 = vunpack.c.l.b16 %v3735
    %v5005 = vunpack.c.h.b16 %v3735
    %v5006 = vunpack.c.l.b16 %v3736
    %v5007 = vunpack.c.h.b16 %v3736
    %v5008 = vunpack.c.l.b16 %v3737
    %v5009 = vunpack.c.h.b16 %v3737
    %v5010 = vunpack.c.l.b16 %v3738
    %v5011 = vunpack.c.h.b16 %v3738
    %v5012 = vunpack.c.l.b16 %v3739
    %v5013 = vunpack.c.h.b16 %v3739
    %v5014 = vunpack.c.l.b16 %v3740
    %v5015 = vunpack.c.h.b16 %v3740
    %v5016 = vunpack.c.l.b16 %v3741
    %v5017 = vunpack.c.h.b16 %v3741
    %v5018 = vunpack.c.l.b16 %v3742
    %v5019 = vunpack.c.h.b16 %v3742
    %v5020 = vunpack.c.l.b16 %v3743
    %v5021 = vunpack.c.h.b16 %v3743
    %v5022 = vunpack.c.l.b16 %v3744
    %v5023 = vunpack.c.h.b16 %v3744
    %v5024 = vunpack.c.l.b16 %v3745
    %v5025 = vunpack.c.h.b16 %v3745
    %v5026 = vunpack.c.l.b16 %v3746
    %v5027 = vunpack.c.h.b16 %v3746
    %v5028 = vunpack.c.l.b16 %v3747
    %v5029 = vunpack.c.h.b16 %v3747
    %v5030 = vunpack.c.l.b16 %v3748
    %v5031 = vunpack.c.h.b16 %v3748
    %v5032 = vunpack.c.l.b16 %v3749
    %v5033 = vunpack.c.h.b16 %v3749
    %v5034 = vunpack.c.l.b16 %v3750
    %v5035 = vunpack.c.h.b16 %v3750
    %v5036 = vunpack.c.l.b16 %v3751
    %v5037 = vunpack.c.h.b16 %v3751
    %v5038 = vunpack.c.l.b16 %v3752
    %v5039 = vunpack.c.h.b16 %v3752
    %v5040 = vunpack.c.l.b16 %v3753
    %v5041 = vunpack.c.h.b16 %v3753
    %v5042 = vunpack.c.l.b16 %v3754
    %v5043 = vunpack.c.h.b16 %v3754
    %v5044 = vunpack.c.l.b16 %v3755
    %v5045 = vunpack.c.h.b16 %v3755
    %v5046 = vunpack.c.l.b16 %v3756
    %v5047 = vunpack.c.h.b16 %v3756
    %v5048 = vunpack.c.l.b16 %v3757
    %v5049 = vunpack.c.h.b16 %v3757
    %v5050 = vunpack.c.l.b16 %v3758
    %v5051 = vunpack.c.h.b16 %v3758
    %v5052 = vunpack.c.l.b16 %v3759
    %v5053 = vunpack.c.h.b16 %v3759
    %v5054 = vunpack.c.l.b16 %v3760
    %v5055 = vunpack.c.h.b16 %v3760
    %v5056 = vunpack.c.l.b16 %v3761
    %v5057 = vunpack.c.h.b16 %v3761
    %v5058 = vunpack.c.l.b16 %v3762
    %v5059 = vunpack.c.h.b16 %v3762
    %v5060 = vunpack.c.l.b16 %v3763
    %v5061 = vunpack.c.h.b16 %v3763
    %v5062 = vunpack.c.l.b16 %v3764
    %v5063 = vunpack.c.h.b16 %v3764
    %v5064 = vunpack.c.l.b16 %v3765
    %v5065 = vunpack.c.h.b16 %v3765
    %v5066 = vunpack.c.l.b16 %v3766
    %v5067 = vunpack.c.h.b16 %v3766
    %v5068 = vunpack.c.l.b16 %v3767
    %v5069 = vunpack.c.h.b16 %v3767
    %v5070 = vunpack.c.l.b16 %v3768
    %v5071 = vunpack.c.h.b16 %v3768
    %v5072 = vunpack.c.l.b16 %v3769
    %v5073 = vunpack.c.h.b16 %v3769
    %v5074 = vunpack.c.l.b16 %v3770
    %v5075 = vunpack.c.h.b16 %v3770
    %v5076 = vunpack.c.l.b16 %v3771
    %v5077 = vunpack.c.h.b16 %v3771
    %v5078 = vunpack.c.l.b16 %v3772
    %v5079 = vunpack.c.h.b16 %v3772
    %v5080 = vunpack.c.l.b16 %v3773
    %v5081 = vunpack.c.h.b16 %v3773
    %v5082 = vunpack.c.l.b16 %v3774
    %v5083 = vunpack.c.h.b16 %v3774
    %v5084 = vunpack.c.l.b16 %v3775
    %v5085 = vunpack.c.h.b16 %v3775
    %v5086 = vunpack.c.l.b16 %v3776
    %v5087 = vunpack.c.h.b16 %v3776
    %v5088 = vunpack.c.l.b16 %v3777
    %v5089 = vunpack.c.h.b16 %v3777
    %v5090 = vunpack.c.l.b16 %v3778
    %v5091 = vunpack.c.h.b16 %v3778
    %v5092 = vunpack.c.l.b16 %v3779
    %v5093 = vunpack.c.h.b16 %v3779
    %v5094 = vunpack.c.l.b16 %v3780
    %v5095 = vunpack.c.h.b16 %v3780
    %v5096 = vunpack.c.l.b16 %v3781
    %v5097 = vunpack.c.h.b16 %v3781
    %v5098 = vunpack.c.l.b16 %v3782
    %v5099 = vunpack.c.h.b16 %v3782
    %v5100 = vunpack.c.l.b16 %v3783
    %v5101 = vunpack.c.h.b16 %v3783
    %v5102 = vunpack.c.l.b16 %v3784
    %v5103 = vunpack.c.h.b16 %v3784
    %v5104 = vunpack.c.l.b16 %v3785
    %v5105 = vunpack.c.h.b16 %v3785
    %v5106 = vunpack.c.l.b16 %v3786
    %v5107 = vunpack.c.h.b16 %v3786
    %v5108 = vunpack.c.l.b16 %v3787
    %v5109 = vunpack.c.h.b16 %v3787
    %v5110 = vunpack.c.l.b16 %v3788
    %v5111 = vunpack.c.h.b16 %v3788
    %v5112 = vunpack.c.l.b16 %v3789
    %v5113 = vunpack.c.h.b16 %v3789
    %v5114 = vunpack.c.l.b16 %v3790
    %v5115 = vunpack.c.h.b16 %v3790
    %v5116 = vunpack.c.l.b16 %v3791
    %v5117 = vunpack.c.h.b16 %v3791
    %v5118 = vunpack.c.l.b16 %v3792
    %v5119 = vunpack.c.h.b16 %v3792
    %v5120 = vunpack.c.l.b16 %v3793
    %v5121 = vunpack.c.h.b16 %v3793
    %v5122 = vunpack.c.l.b16 %v3794
    %v5123 = vunpack.c.h.b16 %v3794
    %v5124 = vunpack.c.l.b16 %v3795
    %v5125 = vunpack.c.h.b16 %v3795
    %v5126 = vunpack.c.l.b16 %v3796
    %v5127 = vunpack.c.h.b16 %v3796
    %v5128 = vunpack.c.l.b16 %v3797
    %v5129 = vunpack.c.h.b16 %v3797
    %v5130 = vunpack.c.l.b16 %v3798
    %v5131 = vunpack.c.h.b16 %v3798
    %v5132 = vunpack.c.l.b16 %v3799
    %v5133 = vunpack.c.h.b16 %v3799
    %v5134 = vunpack.c.l.b16 %v3800
    %v5135 = vunpack.c.h.b16 %v3800
    %v5136 = vunpack.c.l.b16 %v3801
    %v5137 = vunpack.c.h.b16 %v3801
    %v5138 = vunpack.c.l.b16 %v3802
    %v5139 = vunpack.c.h.b16 %v3802
    %v5140 = vunpack.c.l.b16 %v3803
    %v5141 = vunpack.c.h.b16 %v3803
    %v5142 = vunpack.c.l.b16 %v3804
    %v5143 = vunpack.c.h.b16 %v3804
    %v5144 = vunpack.c.l.b16 %v3805
    %v5145 = vunpack.c.h.b16 %v3805
    %v5146 = vunpack.c.l.b16 %v3806
    %v5147 = vunpack.c.h.b16 %v3806
    %v5148 = vunpack.c.l.b16 %v3807
    %v5149 = vunpack.c.h.b16 %v3807
    %v5150 = vunpack.c.l.b16 %v3808
    %v5151 = vunpack.c.h.b16 %v3808
    %v5152 = vunpack.c.l.b16 %v3809
    %v5153 = vunpack.c.h.b16 %v3809
    %v5154 = vunpack.c.l.b16 %v3810
    %v5155 = vunpack.c.h.b16 %v3810
    %v5156 = vunpack.c.l.b16 %v3811
    %v5157 = vunpack.c.h.b16 %v3811
    %v5158 = vunpack.c.l.b16 %v3812
    %v5159 = vunpack.c.h.b16 %v3812
    %v5160 = vunpack.c.l.b16 %v3813
    %v5161 = vunpack.c.h.b16 %v3813
    %v5162 = vunpack.c.l.b16 %v3814
    %v5163 = vunpack.c.h.b16 %v3814
    %v5164 = vunpack.c.l.b16 %v3815
    %v5165 = vunpack.c.h.b16 %v3815
    %v5166 = vunpack.c.l.b16 %v3816
    %v5167 = vunpack.c.h.b16 %v3816
    %v5168 = vunpack.c.l.b16 %v3817
    %v5169 = vunpack.c.h.b16 %v3817
    %v5170 = vunpack.c.l.b16 %v3818
    %v5171 = vunpack.c.h.b16 %v3818
    %v5172 = vunpack.c.l.b16 %v3819
    %v5173 = vunpack.c.h.b16 %v3819
    %v5174 = vunpack.c.l.b16 %v3820
    %v5175 = vunpack.c.h.b16 %v3820
    %v5176 = vunpack.c.l.b16 %v3821
    %v5177 = vunpack.c.h.b16 %v3821
    %v5178 = vunpack.c.l.b16 %v3822
    %v5179 = vunpack.c.h.b16 %v3822
    %v5180 = vunpack.c.l.b16 %v3823
    %v5181 = vunpack.c.h.b16 %v3823
    %v5182 = vunpack.c.l.b16 %v3824
    %v5183 = vunpack.c.h.b16 %v3824
    %v5184 = vunpack.c.l.b16 %v3825
    %v5185 = vunpack.c.h.b16 %v3825
    %v5186 = vunpack.c.l.b16 %v3826
    %v5187 = vunpack.c.h.b16 %v3826
    %v5188 = vunpack.c.l.b16 %v3827
    %v5189 = vunpack.c.h.b16 %v3827
    %v5190 = vunpack.c.l.b16 %v3828
    %v5191 = vunpack.c.h.b16 %v3828
    %v5192 = vunpack.c.l.b16 %v3829
    %v5193 = vunpack.c.h.b16 %v3829
    %v5194 = vunpack.c.l.b16 %v3830
    %v5195 = vunpack.c.h.b16 %v3830
    %v5196 = vunpack.c.l.b16 %v3831
    %v5197 = vunpack.c.h.b16 %v3831
    %v5198 = vunpack.c.l.b16 %v3832
    %v5199 = vunpack.c.h.b16 %v3832
    %v5200 = vunpack.c.l.b16 %v3833
    %v5201 = vunpack.c.h.b16 %v3833
    %v5202 = vunpack.c.l.b16 %v3834
    %v5203 = vunpack.c.h.b16 %v3834
    %v5204 = vunpack.c.l.b16 %v3835
    %v5205 = vunpack.c.h.b16 %v3835
    %v5206 = vunpack.c.l.b16 %v3836
    %v5207 = vunpack.c.h.b16 %v3836
    %v5208 = vunpack.c.l.b16 %v3837
    %v5209 = vunpack.c.h.b16 %v3837
    %v5210 = vunpack.c.l.b16 %v3838
    %v5211 = vunpack.c.h.b16 %v3838
    %v5212 = vunpack.c.l.b16 %v3839
    %v5213 = vunpack.c.h.b16 %v3839
    %v5214 = vunpack.c.l.b16 %v3840
    %v5215 = vunpack.c.h.b16 %v3840
    %v5216 = vunpack.c.l.b16 %v3841
    %v5217 = vunpack.c.h.b16 %v3841
    %v5218 = vunpack.c.l.b16 %v3842
    %v5219 = vunpack.c.h.b16 %v3842
    %v5220 = vunpack.c.l.b16 %v3843
    %v5221 = vunpack.c.h.b16 %v3843
    %v5222 = vunpack.c.l.b16 %v3844
    %v5223 = vunpack.c.h.b16 %v3844
    %v5224 = vunpack.c.l.b16 %v3845
    %v5225 = vunpack.c.h.b16 %v3845
    %v5226 = vunpack.c.l.b16 %v3846
    %v5227 = vunpack.c.h.b16 %v3846
    %v5228 = vunpack.c.l.b16 %v3847
    %v5229 = vunpack.c.h.b16 %v3847
    %v5230 = vunpack.c.l.b16 %v3848
    %v5231 = vunpack.c.h.b16 %v3848
    %v5232 = vunpack.c.l.b16 %v3849
    %v5233 = vunpack.c.h.b16 %v3849
    %v5234 = vunpack.c.l.b16 %v3850
    %v5235 = vunpack.c.h.b16 %v3850
    %v5236 = vunpack.c.l.b16 %v3851
    %v5237 = vunpack.c.h.b16 %v3851
    %v5238 = vunpack.c.l.b16 %v3852
    %v5239 = vunpack.c.h.b16 %v3852
    %v5240 = vunpack.c.l.b16 %v3853
    %v5241 = vunpack.c.h.b16 %v3853
    %v5242 = vunpack.c.l.b16 %v3854
    %v5243 = vunpack.c.h.b16 %v3854
    %v5244 = vunpack.c.l.b16 %v3855
    %v5245 = vunpack.c.h.b16 %v3855
    %v5246 = vunpack.c.l.b16 %v3856
    %v5247 = vunpack.c.h.b16 %v3856
    %v5248 = vunpack.c.l.b16 %v3857
    %v5249 = vunpack.c.h.b16 %v3857
    %v5250 = vunpack.c.l.b16 %v3858
    %v5251 = vunpack.c.h.b16 %v3858
    %v5252 = vunpack.c.l.b16 %v3859
    %v5253 = vunpack.c.h.b16 %v3859
    %v5254 = vunpack.c.l.b16 %v3860
    %v5255 = vunpack.c.h.b16 %v3860
    %v5256 = vunpack.c.l.b16 %v3861
    %v5257 = vunpack.c.h.b16 %v3861
    %v5258 = vunpack.c.l.b16 %v3862
    %v5259 = vunpack.c.h.b16 %v3862
    %v5260 = vunpack.c.l.b16 %v3863
    %v5261 = vunpack.c.h.b16 %v3863
    %v5262 = vunpack.c.l.b16 %v3864
    %v5263 = vunpack.c.h.b16 %v3864
    %v5264 = vunpack.c.l.b16 %v3865
    %v5265 = vunpack.c.h.b16 %v3865
    %v5266 = vunpack.c.l.b16 %v3866
    %v5267 = vunpack.c.h.b16 %v3866
    %v5268 = vunpack.c.l.b16 %v3867
    %v5269 = vunpack.c.h.b16 %v3867
    %v5270 = vunpack.c.l.b16 %v3868
    %v5271 = vunpack.c.h.b16 %v3868
    %v5272 = vunpack.c.l.b16 %v3869
    %v5273 = vunpack.c.h.b16 %v3869
    %v5274 = vunpack.c.l.b16 %v3870
    %v5275 = vunpack.c.h.b16 %v3870
    %v5276 = vunpack.c.l.b16 %v3871
    %v5277 = vunpack.c.h.b16 %v3871
    %v5278 = vunpack.c.l.b16 %v3872
    %v5279 = vunpack.c.h.b16 %v3872
    %v5280 = vunpack.c.l.b16 %v3873
    %v5281 = vunpack.c.h.b16 %v3873
    %v5282 = vunpack.c.l.b16 %v3874
    %v5283 = vunpack.c.h.b16 %v3874
    %v5284 = vunpack.c.l.b16 %v3875
    %v5285 = vunpack.c.h.b16 %v3875
    %v5286 = vunpack.c.l.b16 %v3876
    %v5287 = vunpack.c.h.b16 %v3876
    %v5288 = vunpack.c.l.b16 %v3877
    %v5289 = vunpack.c.h.b16 %v3877
    %v5290 = vunpack.c.l.b16 %v3878
    %v5291 = vunpack.c.h.b16 %v3878
    %v5292 = vunpack.c.l.b16 %v3879
    %v5293 = vunpack.c.h.b16 %v3879
    %v5294 = vunpack.c.l.b16 %v3880
    %v5295 = vunpack.c.h.b16 %v3880
    %v5296 = vunpack.c.l.b16 %v3881
    %v5297 = vunpack.c.h.b16 %v3881
    %v5298 = vunpack.c.l.b16 %v3882
    %v5299 = vunpack.c.h.b16 %v3882
    %v5300 = vunpack.c.l.b16 %v3883
    %v5301 = vunpack.c.h.b16 %v3883
    %v5302 = vunpack.c.l.b16 %v3884
    %v5303 = vunpack.c.h.b16 %v3884
    %v5304 = vunpack.c.l.b16 %v3885
    %v5305 = vunpack.c.h.b16 %v3885
    %v5306 = vunpack.c.l.b16 %v3886
    %v5307 = vunpack.c.h.b16 %v3886
    %v5308 = vunpack.c.l.b16 %v3887
    %v5309 = vunpack.c.h.b16 %v3887
    %v5310 = vunpack.c.l.b16 %v3888
    %v5311 = vunpack.c.h.b16 %v3888
    %v5312 = vunpack.c.l.b16 %v3889
    %v5313 = vunpack.c.h.b16 %v3889
    %v5314 = vunpack.c.l.b16 %v3890
    %v5315 = vunpack.c.h.b16 %v3890
    %v5316 = vunpack.c.l.b16 %v3891
    %v5317 = vunpack.c.h.b16 %v3891
    %v5318 = vunpack.c.l.b16 %v3892
    %v5319 = vunpack.c.h.b16 %v3892
    %v5320 = vunpack.c.l.b16 %v3893
    %v5321 = vunpack.c.h.b16 %v3893
    %v5322 = vunpack.c.l.b16 %v3894
    %v5323 = vunpack.c.h.b16 %v3894
    %v5324 = vunpack.c.l.b16 %v3895
    %v5325 = vunpack.c.h.b16 %v3895
    %v5326 = vunpack.c.l.b16 %v3896
    %v5327 = vunpack.c.h.b16 %v3896
    %v5328 = vunpack.c.l.b16 %v3897
    %v5329 = vunpack.c.h.b16 %v3897
    %v5330 = vunpack.c.l.b16 %v3898
    %v5331 = vunpack.c.h.b16 %v3898
    %v5332 = vunpack.c.l.b16 %v3899
    %v5333 = vunpack.c.h.b16 %v3899
    %v5334 = vunpack.c.l.b16 %v3900
    %v5335 = vunpack.c.h.b16 %v3900
    %v5336 = vunpack.c.l.b16 %v3901
    %v5337 = vunpack.c.h.b16 %v3901
    %v5338 = vunpack.c.l.b16 %v3902
    %v5339 = vunpack.c.h.b16 %v3902
    %v5340 = vunpack.c.l.b16 %v3903
    %v5341 = vunpack.c.h.b16 %v3903
    %v5342 = vunpack.c.l.b16 %v3904
    %v5343 = vunpack.c.h.b16 %v3904
    %v5344 = vunpack.c.l.b16 %v3905
    %v5345 = vunpack.c.h.b16 %v3905
    %v5346 = vunpack.c.l.b16 %v3906
    %v5347 = vunpack.c.h.b16 %v3906
    %v5348 = vunpack.c.l.b16 %v3907
    %v5349 = vunpack.c.h.b16 %v3907
    %v5350 = vunpack.c.l.b16 %v3908
    %v5351 = vunpack.c.h.b16 %v3908
    %v5352 = vunpack.c.l.b16 %v3909
    %v5353 = vunpack.c.h.b16 %v3909
    %v5354 = vunpack.c.l.b16 %v3910
    %v5355 = vunpack.c.h.b16 %v3910
    %v5356 = vunpack.c.l.b16 %v3911
    %v5357 = vunpack.c.h.b16 %v3911
    %v5358 = vunpack.c.l.b16 %v3912
    %v5359 = vunpack.c.h.b16 %v3912
    %v5360 = vunpack.c.l.b16 %v3913
    %v5361 = vunpack.c.h.b16 %v3913
    %v5362 = vunpack.c.l.b16 %v3914
    %v5363 = vunpack.c.h.b16 %v3914
    %v5364 = vunpack.c.l.b16 %v3915
    %v5365 = vunpack.c.h.b16 %v3915
    %v5366 = vunpack.c.l.b16 %v3916
    %v5367 = vunpack.c.h.b16 %v3916
    %v5368 = vunpack.c.l.b16 %v3917
    %v5369 = vunpack.c.h.b16 %v3917
    %v5370 = vunpack.c.l.b16 %v3918
    %v5371 = vunpack.c.h.b16 %v3918
    %v5372 = vunpack.c.l.b16 %v3919
    %v5373 = vunpack.c.h.b16 %v3919
    %v5374 = vunpack.c.l.b16 %v3920
    %v5375 = vunpack.c.h.b16 %v3920
    %v5376 = vunpack.c.l.b16 %v3921
    %v5377 = vunpack.c.h.b16 %v3921
    %v5378 = vunpack.c.l.b16 %v3922
    %v5379 = vunpack.c.h.b16 %v3922
    %v5380 = vunpack.c.l.b16 %v3923
    %v5381 = vunpack.c.h.b16 %v3923
    %v5382 = vunpack.c.l.b16 %v3924
    %v5383 = vunpack.c.h.b16 %v3924
    %v5384 = vunpack.c.l.b16 %v3925
    %v5385 = vunpack.c.h.b16 %v3925
    %v5386 = vunpack.c.l.b16 %v3926
    %v5387 = vunpack.c.h.b16 %v3926
    %v5388 = vunpack.c.l.b16 %v3927
    %v5389 = vunpack.c.h.b16 %v3927
    %v5390 = vunpack.c.l.b16 %v3928
    %v5391 = vunpack.c.h.b16 %v3928
    %v5392 = vunpack.c.l.b16 %v3929
    %v5393 = vunpack.c.h.b16 %v3929
    %v5394 = vunpack.c.l.b16 %v3930
    %v5395 = vunpack.c.h.b16 %v3930
    %v5396 = vunpack.c.l.b16 %v3931
    %v5397 = vunpack.c.h.b16 %v3931
    %v5398 = vunpack.c.l.b16 %v3932
    %v5399 = vunpack.c.h.b16 %v3932
    %v5400 = vunpack.c.l.b16 %v3933
    %v5401 = vunpack.c.h.b16 %v3933
    %v5402 = vunpack.c.l.b16 %v3934
    %v5403 = vunpack.c.h.b16 %v3934
    %v5404 = vunpack.c.l.b16 %v3935
    %v5405 = vunpack.c.h.b16 %v3935
    %v5406 = vunpack.c.l.b16 %v3936
    %v5407 = vunpack.c.h.b16 %v3936
    %v5408 = vunpack.c.l.b16 %v3937
    %v5409 = vunpack.c.h.b16 %v3937
    %v5410 = vunpack.c.l.b16 %v3938
    %v5411 = vunpack.c.h.b16 %v3938
    %v5412 = vunpack.c.l.b16 %v3939
    %v5413 = vunpack.c.h.b16 %v3939
    %v5414 = vunpack.c.l.b16 %v3940
    %v5415 = vunpack.c.h.b16 %v3940
    %v5416 = vunpack.c.l.b16 %v3941
    %v5417 = vunpack.c.h.b16 %v3941
    %v5418 = vunpack.c.l.b16 %v3942
    %v5419 = vunpack.c.h.b16 %v3942
    %v5420 = vunpack.c.l.b16 %v3943
    %v5421 = vunpack.c.h.b16 %v3943
    %v5422 = vunpack.c.l.b16 %v3944
    %v5423 = vunpack.c.h.b16 %v3944
    %v5424 = vunpack.c.l.b16 %v3945
    %v5425 = vunpack.c.h.b16 %v3945
    %v5426 = vunpack.c.l.b16 %v3946
    %v5427 = vunpack.c.h.b16 %v3946
    %v5428 = vunpack.c.l.b16 %v3947
    %v5429 = vunpack.c.h.b16 %v3947
    %v5430 = vunpack.c.l.b16 %v3948
    %v5431 = vunpack.c.h.b16 %v3948
    %v5432 = vunpack.c.l.b16 %v3949
    %v5433 = vunpack.c.h.b16 %v3949
    %v5434 = vunpack.c.l.b16 %v3950
    %v5435 = vunpack.c.h.b16 %v3950
    %v5436 = vunpack.c.l.b16 %v3951
    %v5437 = vunpack.c.h.b16 %v3951
    %v5438 = vunpack.c.l.b16 %v3952
    %v5439 = vunpack.c.h.b16 %v3952
    %v5440 = vunpack.c.l.b16 %v3953
    %v5441 = vunpack.c.h.b16 %v3953
    %v5442 = vunpack.c.l.b16 %v3954
    %v5443 = vunpack.c.h.b16 %v3954
    %v5444 = vunpack.c.l.b16 %v3955
    %v5445 = vunpack.c.h.b16 %v3955
    %v5446 = vunpack.c.l.b16 %v3956
    %v5447 = vunpack.c.h.b16 %v3956
    %v5448 = vunpack.c.l.b16 %v3957
    %v5449 = vunpack.c.h.b16 %v3957
    %v5450 = vunpack.c.l.b16 %v3958
    %v5451 = vunpack.c.h.b16 %v3958
    %v5452 = vunpack.c.l.b16 %v3959
    %v5453 = vunpack.c.h.b16 %v3959
    %v5454 = vunpack.c.l.b16 %v3960
    %v5455 = vunpack.c.h.b16 %v3960
    %v5456 = vunpack.c.l.b16 %v3961
    %v5457 = vunpack.c.h.b16 %v3961
    %v5458 = vunpack.c.l.b16 %v3962
    %v5459 = vunpack.c.h.b16 %v3962
    %v5460 = vunpack.c.l.b16 %v3963
    %v5461 = vunpack.c.h.b16 %v3963
    %v5462 = vunpack.c.l.b16 %v3964
    %v5463 = vunpack.c.h.b16 %v3964
    %v5464 = vunpack.c.l.b16 %v3965
    %v5465 = vunpack.c.h.b16 %v3965
    %v5466 = vunpack.c.l.b16 %v3966
    %v5467 = vunpack.c.h.b16 %v3966
    %v5468 = vunpack.c.l.b16 %v3967
    %v5469 = vunpack.c.h.b16 %v3967
    %v5470 = vunpack.c.l.b16 %v3968
    %v5471 = vunpack.c.h.b16 %v3968
    %v5472 = vunpack.c.l.b16 %v3969
    %v5473 = vunpack.c.h.b16 %v3969
    %v5474 = vunpack.c.l.b16 %v3970
    %v5475 = vunpack.c.h.b16 %v3970
    %v5476 = vunpack.c.l.b16 %v3971
    %v5477 = vunpack.c.h.b16 %v3971
    %v5478 = vunpack.c.l.b16 %v3972
    %v5479 = vunpack.c.h.b16 %v3972
    %v5480 = vunpack.c.l.b16 %v3973
    %v5481 = vunpack.c.h.b16 %v3973
    %v5482 = vunpack.c.l.b16 %v3974
    %v5483 = vunpack.c.h.b16 %v3974
    %v5484 = vunpack.c.l.b16 %v3975
    %v5485 = vunpack.c.h.b16 %v3975
    %v5486 = vunpack.c.l.b16 %v3976
    %v5487 = vunpack.c.h.b16 %v3976
    %v5488 = vunpack.c.l.b16 %v3977
    %v5489 = vunpack.c.h.b16 %v3977
    %v5490 = vunpack.c.l.b16 %v3978
    %v5491 = vunpack.c.h.b16 %v3978
    %v5492 = vunpack.c.l.b16 %v3979
    %v5493 = vunpack.c.h.b16 %v3979
    %v5494 = vunpack.c.l.b16 %v3980
    %v5495 = vunpack.c.h.b16 %v3980
    %v5496 = vunpack.c.l.b16 %v3981
    %v5497 = vunpack.c.h.b16 %v3981
    %v5498 = vunpack.c.l.b16 %v3982
    %v5499 = vunpack.c.h.b16 %v3982
    %v5500 = vunpack.c.l.b16 %v3983
    %v5501 = vunpack.c.h.b16 %v3983
    %v5502 = vunpack.c.l.b16 %v3984
    %v5503 = vunpack.c.h.b16 %v3984
    %v5504 = vunpack.c.l.b16 %v3985
    %v5505 = vunpack.c.h.b16 %v3985
    %v5506 = vunpack.c.l.b16 %v3986
    %v5507 = vunpack.c.h.b16 %v3986
    %v5508 = vunpack.c.l.b16 %v3987
    %v5509 = vunpack.c.h.b16 %v3987
    %v5510 = vunpack.c.l.b16 %v3988
    %v5511 = vunpack.c.h.b16 %v3988
    %v5512 = vunpack.c.l.b16 %v3989
    %v5513 = vunpack.c.h.b16 %v3989
    %v5514 = vunpack.c.l.b16 %v3990
    %v5515 = vunpack.c.h.b16 %v3990
    %v5516 = vunpack.c.l.b16 %v3991
    %v5517 = vunpack.c.h.b16 %v3991
    %v5518 = vunpack.c.l.b16 %v3992
    %v5519 = vunpack.c.h.b16 %v3992
    %v5520 = vunpack.c.l.b16 %v3993
    %v5521 = vunpack.c.h.b16 %v3993
    %v5522 = vunpack.c.l.b16 %v3994
    %v5523 = vunpack.c.h.b16 %v3994
    %v5524 = vunpack.c.l.b16 %v3995
    %v5525 = vunpack.c.h.b16 %v3995
    %v5526 = vunpack.c.l.b16 %v3996
    %v5527 = vunpack.c.h.b16 %v3996
    %v5528 = vunpack.c.l.b16 %v3997
    %v5529 = vunpack.c.h.b16 %v3997
    %v5530 = vunpack.c.l.b16 %v3998
    %v5531 = vunpack.c.h.b16 %v3998
    %v5532 = vunpack.c.l.b16 %v3999
    %v5533 = vunpack.c.h.b16 %v3999
    %v5534 = vunpack.c.l.b16 %v4000
    %v5535 = vunpack.c.h.b16 %v4000
    %v5536 = vunpack.c.l.b16 %v4001
    %v5537 = vunpack.c.h.b16 %v4001
    %v5538 = vunpack.c.l.b16 %v4002
    %v5539 = vunpack.c.h.b16 %v4002
    %v5540 = vunpack.c.l.b16 %v4003
    %v5541 = vunpack.c.h.b16 %v4003
    %v5542 = vunpack.c.l.b16 %v4004
    %v5543 = vunpack.c.h.b16 %v4004
    %v5544 = vunpack.c.l.b16 %v4005
    %v5545 = vunpack.c.h.b16 %v4005
    %v5546 = vunpack.c.l.b16 %v4006
    %v5547 = vunpack.c.h.b16 %v4006
    %v5548 = vunpack.c.l.b16 %v4007
    %v5549 = vunpack.c.h.b16 %v4007
    %v5550 = vunpack.c.l.b16 %v4008
    %v5551 = vunpack.c.h.b16 %v4008
    %v5552 = vunpack.c.l.b16 %v4009
    %v5553 = vunpack.c.h.b16 %v4009
    %v5554 = vunpack.c.l.b16 %v4010
    %v5555 = vunpack.c.h.b16 %v4010
    %v5556 = vunpack.c.l.b16 %v4011
    %v5557 = vunpack.c.h.b16 %v4011
    %v5558 = vunpack.c.l.b16 %v4012
    %v5559 = vunpack.c.h.b16 %v4012
    %v5560 = vunpack.c.l.b16 %v4013
    %v5561 = vunpack.c.h.b16 %v4013
    %v5562 = vunpack.c.l.b16 %v4014
    %v5563 = vunpack.c.h.b16 %v4014
    %v5564 = vunpack.c.l.b16 %v4015
    %v5565 = vunpack.c.h.b16 %v4015
    %v5566 = vunpack.c.l.b16 %v4016
    %v5567 = vunpack.c.h.b16 %v4016
    %v5568 = vunpack.c.l.b16 %v4017
    %v5569 = vunpack.c.h.b16 %v4017
    %v5570 = vunpack.c.l.b16 %v4018
    %v5571 = vunpack.c.h.b16 %v4018
    %v5572 = vunpack.c.l.b16 %v4019
    %v5573 = vunpack.c.h.b16 %v4019
    %v5574 = vpack.c.b16 %v4558, %v4550
    %v5575 = vpack.c.b16 %v4559, %v4551
    %v5576 = vpack.c.b16 %v4560, %v4552
    %v5577 = vpack.c.b16 %v4561, %v4553
    %v5578 = vpack.c.b16 %v4562, %v4554
    %v5579 = vpack.c.b16 %v4563, %v4555
    %v5580 = vpack.c.b16 %v4564, %v4556
    %v5581 = vpack.c.b16 %v4565, %v4557
    %v5582 = vpack.c.b16 %v4574, %v4566
    %v5583 = vpack.c.b16 %v4575, %v4567
    %v5584 = vpack.c.b16 %v4576, %v4568
    %v5585 = vpack.c.b16 %v4577, %v4569
    %v5586 = vpack.c.b16 %v4578, %v4570
    %v5587 = vpack.c.b16 %v4579, %v4571
    %v5588 = vpack.c.b16 %v4580, %v4572
    %v5589 = vpack.c.b16 %v4581, %v4573
    %v5590 = vpack.c.b16 %v4590, %v4582
    %v5591 = vpack.c.b16 %v4591, %v4583
    %v5592 = vpack.c.b16 %v4592, %v4584
    %v5593 = vpack.c.b16 %v4593, %v4585
    %v5594 = vpack.c.b16 %v4594, %v4586
    %v5595 = vpack.c.b16 %v4595, %v4587
    %v5596 = vpack.c.b16 %v4596, %v4588
    %v5597 = vpack.c.b16 %v4597, %v4589
    %v5598 = vpack.c.b16 %v4606, %v4598
    %v5599 = vpack.c.b16 %v4607, %v4599
    %v5600 = vpack.c.b16 %v4608, %v4600
    %v5601 = vpack.c.b16 %v4609, %v4601
    %v5602 = vpack.c.b16 %v4610, %v4602
    %v5603 = vpack.c.b16 %v4611, %v4603
    %v5604 = vpack.c.b16 %v4612, %v4604
    %v5605 = vpack.c.b16 %v4613, %v4605
    %v5606 = vpack.c.b16 %v4622, %v4614
    %v5607 = vpack.c.b16 %v4623, %v4615
    %v5608 = vpack.c.b16 %v4624, %v4616
    %v5609 = vpack.c.b16 %v4625, %v4617
    %v5610 = vpack.c.b16 %v4626, %v4618
    %v5611 = vpack.c.b16 %v4627, %v4619
    %v5612 = vpack.c.b16 %v4628, %v4620
    %v5613 = vpack.c.b16 %v4629, %v4621
    %v5614 = vpack.c.b16 %v4638, %v4630
    %v5615 = vpack.c.b16 %v4639, %v4631
    %v5616 = vpack.c.b16 %v4640, %v4632
    %v5617 = vpack.c.b16 %v4641, %v4633
    %v5618 = vpack.c.b16 %v4642, %v4634
    %v5619 = vpack.c.b16 %v4643, %v4635
    %v5620 = vpack.c.b16 %v4644, %v4636
    %v5621 = vpack.c.b16 %v4645, %v4637
    %v5622 = vpack.c.b16 %v4654, %v4646
    %v5623 = vpack.c.b16 %v4655, %v4647
    %v5624 = vpack.c.b16 %v4656, %v4648
    %v5625 = vpack.c.b16 %v4657, %v4649
    %v5626 = vpack.c.b16 %v4658, %v4650
    %v5627 = vpack.c.b16 %v4659, %v4651
    %v5628 = vpack.c.b16 %v4660, %v4652
    %v5629 = vpack.c.b16 %v4661, %v4653
    %v5630 = vpack.c.b16 %v4670, %v4662
    %v5631 = vpack.c.b16 %v4671, %v4663
    %v5632 = vpack.c.b16 %v4672, %v4664
    %v5633 = vpack.c.b16 %v4673, %v4665
    %v5634 = vpack.c.b16 %v4674, %v4666
    %v5635 = vpack.c.b16 %v4675, %v4667
    %v5636 = vpack.c.b16 %v4676, %v4668
    %v5637 = vpack.c.b16 %v4677, %v4669
    %v5638 = vpack.c.b16 %v4686, %v4678
    %v5639 = vpack.c.b16 %v4687, %v4679
    %v5640 = vpack.c.b16 %v4688, %v4680
    %v5641 = vpack.c.b16 %v4689, %v4681
    %v5642 = vpack.c.b16 %v4690, %v4682
    %v5643 = vpack.c.b16 %v4691, %v4683
    %v5644 = vpack.c.b16 %v4692, %v4684
    %v5645 = vpack.c.b16 %v4693, %v4685
    %v5646 = vpack.c.b16 %v4702, %v4694
    %v5647 = vpack.c.b16 %v4703, %v4695
    %v5648 = vpack.c.b16 %v4704, %v4696
    %v5649 = vpack.c.b16 %v4705, %v4697
    %v5650 = vpack.c.b16 %v4706, %v4698
    %v5651 = vpack.c.b16 %v4707, %v4699
    %v5652 = vpack.c.b16 %v4708, %v4700
    %v5653 = vpack.c.b16 %v4709, %v4701
    %v5654 = vpack.c.b16 %v4718, %v4710
    %v5655 = vpack.c.b16 %v4719, %v4711
    %v5656 = vpack.c.b16 %v4720, %v4712
    %v5657 = vpack.c.b16 %v4721, %v4713
    %v5658 = vpack.c.b16 %v4722, %v4714
    %v5659 = vpack.c.b16 %v4723, %v4715
    %v5660 = vpack.c.b16 %v4724, %v4716
    %v5661 = vpack.c.b16 %v4725, %v4717
    %v5662 = vpack.c.b16 %v4734, %v4726
    %v5663 = vpack.c.b16 %v4735, %v4727
    %v5664 = vpack.c.b16 %v4736, %v4728
    %v5665 = vpack.c.b16 %v4737, %v4729
    %v5666 = vpack.c.b16 %v4738, %v4730
    %v5667 = vpack.c.b16 %v4739, %v4731
    %v5668 = vpack.c.b16 %v4740, %v4732
    %v5669 = vpack.c.b16 %v4741, %v4733
    %v5670 = vpack.c.b16 %v4750, %v4742
    %v5671 = vpack.c.b16 %v4751, %v4743
    %v5672 = vpack.c.b16 %v4752, %v4744
    %v5673 = vpack.c.b16 %v4753, %v4745
    %v5674 = vpack.c.b16 %v4754, %v4746
    %v5675 = vpack.c.b16 %v4755, %v4747
    %v5676 = vpack.c.b16 %v4756, %v4748
    %v5677 = vpack.c.b16 %v4757, %v4749
    %v5678 = vpack.c.b16 %v4766, %v4758
    %v5679 = vpack.c.b16 %v4767, %v4759
    %v5680 = vpack.c.b16 %v4768, %v4760
    %v5681 = vpack.c.b16 %v4769, %v4761
    %v5682 = vpack.c.b16 %v4770, %v4762
    %v5683 = vpack.c.b16 %v4771, %v4763
    %v5684 = vpack.c.b16 %v4772, %v4764
    %v5685 = vpack.c.b16 %v4773, %v4765
    %v5686 = vpack.c.b16 %v4782, %v4774
    %v5687 = vpack.c.b16 %v4783, %v4775
    %v5688 = vpack.c.b16 %v4784, %v4776
    %v5689 = vpack.c.b16 %v4785, %v4777
    %v5690 = vpack.c.b16 %v4786, %v4778
    %v5691 = vpack.c.b16 %v4787, %v4779
    %v5692 = vpack.c.b16 %v4788, %v4780
    %v5693 = vpack.c.b16 %v4789, %v4781
    %v5694 = vpack.c.b16 %v4798, %v4790
    %v5695 = vpack.c.b16 %v4799, %v4791
    %v5696 = vpack.c.b16 %v4800, %v4792
    %v5697 = vpack.c.b16 %v4801, %v4793
    %v5698 = vpack.c.b16 %v4802, %v4794
    %v5699 = vpack.c.b16 %v4803, %v4795
    %v5700 = vpack.c.b16 %v4804, %v4796
    %v5701 = vpack.c.b16 %v4805, %v4797
    %v5702 = vpack.c.b16 %v4814, %v4806
    %v5703 = vpack.c.b16 %v4815, %v4807
    %v5704 = vpack.c.b16 %v4816, %v4808
    %v5705 = vpack.c.b16 %v4817, %v4809
    %v5706 = vpack.c.b16 %v4818, %v4810
    %v5707 = vpack.c.b16 %v4819, %v4811
    %v5708 = vpack.c.b16 %v4820, %v4812
    %v5709 = vpack.c.b16 %v4821, %v4813
    %v5710 = vpack.c.b16 %v4830, %v4822
    %v5711 = vpack.c.b16 %v4831, %v4823
    %v5712 = vpack.c.b16 %v4832, %v4824
    %v5713 = vpack.c.b16 %v4833, %v4825
    %v5714 = vpack.c.b16 %v4834, %v4826
    %v5715 = vpack.c.b16 %v4835, %v4827
    %v5716 = vpack.c.b16 %v4836, %v4828
    %v5717 = vpack.c.b16 %v4837, %v4829
    %v5718 = vpack.c.b16 %v4846, %v4838
    %v5719 = vpack.c.b16 %v4847, %v4839
    %v5720 = vpack.c.b16 %v4848, %v4840
    %v5721 = vpack.c.b16 %v4849, %v4841
    %v5722 = vpack.c.b16 %v4850, %v4842
    %v5723 = vpack.c.b16 %v4851, %v4843
    %v5724 = vpack.c.b16 %v4852, %v4844
    %v5725 = vpack.c.b16 %v4853, %v4845
    %v5726 = vpack.c.b16 %v4862, %v4854
    %v5727 = vpack.c.b16 %v4863, %v4855
    %v5728 = vpack.c.b16 %v4864, %v4856
    %v5729 = vpack.c.b16 %v4865, %v4857
    %v5730 = vpack.c.b16 %v4866, %v4858
    %v5731 = vpack.c.b16 %v4867, %v4859
    %v5732 = vpack.c.b16 %v4868, %v4860
    %v5733 = vpack.c.b16 %v4869, %v4861
    %v5734 = vpack.c.b16 %v4878, %v4870
    %v5735 = vpack.c.b16 %v4879, %v4871
    %v5736 = vpack.c.b16 %v4880, %v4872
    %v5737 = vpack.c.b16 %v4881, %v4873
    %v5738 = vpack.c.b16 %v4882, %v4874
    %v5739 = vpack.c.b16 %v4883, %v4875
    %v5740 = vpack.c.b16 %v4884, %v4876
    %v5741 = vpack.c.b16 %v4885, %v4877
    %v5742 = vpack.c.b16 %v4894, %v4886
    %v5743 = vpack.c.b16 %v4895, %v4887
    %v5744 = vpack.c.b16 %v4896, %v4888
    %v5745 = vpack.c.b16 %v4897, %v4889
    %v5746 = vpack.c.b16 %v4898, %v4890
    %v5747 = vpack.c.b16 %v4899, %v4891
    %v5748 = vpack.c.b16 %v4900, %v4892
    %v5749 = vpack.c.b16 %v4901, %v4893
    %v5750 = vpack.c.b16 %v4910, %v4902
    %v5751 = vpack.c.b16 %v4911, %v4903
    %v5752 = vpack.c.b16 %v4912, %v4904
    %v5753 = vpack.c.b16 %v4913, %v4905
    %v5754 = vpack.c.b16 %v4914, %v4906
    %v5755 = vpack.c.b16 %v4915, %v4907
    %v5756 = vpack.c.b16 %v4916, %v4908
    %v5757 = vpack.c.b16 %v4917, %v4909
    %v5758 = vpack.c.b16 %v4926, %v4918
    %v5759 = vpack.c.b16 %v4927, %v4919
    %v5760 = vpack.c.b16 %v4928, %v4920
    %v5761 = vpack.c.b16 %v4929, %v4921
    %v5762 = vpack.c.b16 %v4930, %v4922
    %v5763 = vpack.c.b16 %v4931, %v4923
    %v5764 = vpack.c.b16 %v4932, %v4924
    %v5765 = vpack.c.b16 %v4933, %v4925
    %v5766 = vpack.c.b16 %v4942, %v4934
    %v5767 = vpack.c.b16 %v4943, %v4935
    %v5768 = vpack.c.b16 %v4944, %v4936
    %v5769 = vpack.c.b16 %v4945, %v4937
    %v5770 = vpack.c.b16 %v4946, %v4938
    %v5771 = vpack.c.b16 %v4947, %v4939
    %v5772 = vpack.c.b16 %v4948, %v4940
    %v5773 = vpack.c.b16 %v4949, %v4941
    %v5774 = vpack.c.b16 %v4958, %v4950
    %v5775 = vpack.c.b16 %v4959, %v4951
    %v5776 = vpack.c.b16 %v4960, %v4952
    %v5777 = vpack.c.b16 %v4961, %v4953
    %v5778 = vpack.c.b16 %v4962, %v4954
    %v5779 = vpack.c.b16 %v4963, %v4955
    %v5780 = vpack.c.b16 %v4964, %v4956
    %v5781 = vpack.c.b16 %v4965, %v4957
    %v5782 = vpack.c.b16 %v4974, %v4966
    %v5783 = vpack.c.b16 %v4975, %v4967
    %v5784 = vpack.c.b16 %v4976, %v4968
    %v5785 = vpack.c.b16 %v4977, %v4969
    %v5786 = vpack.c.b16 %v4978, %v4970
    %v5787 = vpack.c.b16 %v4979, %v4971
    %v5788 = vpack.c.b16 %v4980, %v4972
    %v5789 = vpack.c.b16 %v4981, %v4973
    %v5790 = vpack.c.b16 %v4990, %v4982
    %v5791 = vpack.c.b16 %v4991, %v4983
    %v5792 = vpack.c.b16 %v4992, %v4984
    %v5793 = vpack.c.b16 %v4993, %v4985
    %v5794 = vpack.c.b16 %v4994, %v4986
    %v5795 = vpack.c.b16 %v4995, %v4987
    %v5796 = vpack.c.b16 %v4996, %v4988
    %v5797 = vpack.c.b16 %v4997, %v4989
    %v5798 = vpack.c.b16 %v5006, %v4998
    %v5799 = vpack.c.b16 %v5007, %v4999
    %v5800 = vpack.c.b16 %v5008, %v5000
    %v5801 = vpack.c.b16 %v5009, %v5001
    %v5802 = vpack.c.b16 %v5010, %v5002
    %v5803 = vpack.c.b16 %v5011, %v5003
    %v5804 = vpack.c.b16 %v5012, %v5004
    %v5805 = vpack.c.b16 %v5013, %v5005
    %v5806 = vpack.c.b16 %v5022, %v5014
    %v5807 = vpack.c.b16 %v5023, %v5015
    %v5808 = vpack.c.b16 %v5024, %v5016
    %v5809 = vpack.c.b16 %v5025, %v5017
    %v5810 = vpack.c.b16 %v5026, %v5018
    %v5811 = vpack.c.b16 %v5027, %v5019
    %v5812 = vpack.c.b16 %v5028, %v5020
    %v5813 = vpack.c.b16 %v5029, %v5021
    %v5814 = vpack.c.b16 %v5038, %v5030
    %v5815 = vpack.c.b16 %v5039, %v5031
    %v5816 = vpack.c.b16 %v5040, %v5032
    %v5817 = vpack.c.b16 %v5041, %v5033
    %v5818 = vpack.c.b16 %v5042, %v5034
    %v5819 = vpack.c.b16 %v5043, %v5035
    %v5820 = vpack.c.b16 %v5044, %v5036
    %v5821 = vpack.c.b16 %v5045, %v5037
    %v5822 = vpack.c.b16 %v5054, %v5046
    %v5823 = vpack.c.b16 %v5055, %v5047
    %v5824 = vpack.c.b16 %v5056, %v5048
    %v5825 = vpack.c.b16 %v5057, %v5049
    %v5826 = vpack.c.b16 %v5058, %v5050
    %v5827 = vpack.c.b16 %v5059, %v5051
    %v5828 = vpack.c.b16 %v5060, %v5052
    %v5829 = vpack.c.b16 %v5061, %v5053
    %v5830 = vpack.c.b16 %v5070, %v5062
    %v5831 = vpack.c.b16 %v5071, %v5063
    %v5832 = vpack.c.b16 %v5072, %v5064
    %v5833 = vpack.c.b16 %v5073, %v5065
    %v5834 = vpack.c.b16 %v5074, %v5066
    %v5835 = vpack.c.b16 %v5075, %v5067
    %v5836 = vpack.c.b16 %v5076, %v5068
    %v5837 = vpack.c.b16 %v5077, %v5069
    %v5838 = vpack.c.b16 %v5086, %v5078
    %v5839 = vpack.c.b16 %v5087, %v5079
    %v5840 = vpack.c.b16 %v5088, %v5080
    %v5841 = vpack.c.b16 %v5089, %v5081
    %v5842 = vpack.c.b16 %v5090, %v5082
    %v5843 = vpack.c.b16 %v5091, %v5083
    %v5844 = vpack.c.b16 %v5092, %v5084
    %v5845 = vpack.c.b16 %v5093, %v5085
    %v5846 = vpack.c.b16 %v5102, %v5094
    %v5847 = vpack.c.b16 %v5103, %v5095
    %v5848 = vpack.c.b16 %v5104, %v5096
    %v5849 = vpack.c.b16 %v5105, %v5097
    %v5850 = vpack.c.b16 %v5106, %v5098
    %v5851 = vpack.c.b16 %v5107, %v5099
    %v5852 = vpack.c.b16 %v5108, %v5100
    %v5853 = vpack.c.b16 %v5109, %v5101
    %v5854 = vpack.c.b16 %v5118, %v5110
    %v5855 = vpack.c.b16 %v5119, %v5111
    %v5856 = vpack.c.b16 %v5120, %v5112
    %v5857 = vpack.c.b16 %v5121, %v5113
    %v5858 = vpack.c.b16 %v5122, %v5114
    %v5859 = vpack.c.b16 %v5123, %v5115
    %v5860 = vpack.c.b16 %v5124, %v5116
    %v5861 = vpack.c.b16 %v5125, %v5117
    %v5862 = vpack.c.b16 %v5134, %v5126
    %v5863 = vpack.c.b16 %v5135, %v5127
    %v5864 = vpack.c.b16 %v5136, %v5128
    %v5865 = vpack.c.b16 %v5137, %v5129
    %v5866 = vpack.c.b16 %v5138, %v5130
    %v5867 = vpack.c.b16 %v5139, %v5131
    %v5868 = vpack.c.b16 %v5140, %v5132
    %v5869 = vpack.c.b16 %v5141, %v5133
    %v5870 = vpack.c.b16 %v5150, %v5142
    %v5871 = vpack.c.b16 %v5151, %v5143
    %v5872 = vpack.c.b16 %v5152, %v5144
    %v5873 = vpack.c.b16 %v5153, %v5145
    %v5874 = vpack.c.b16 %v5154, %v5146
    %v5875 = vpack.c.b16 %v5155, %v5147
    %v5876 = vpack.c.b16 %v5156, %v5148
    %v5877 = vpack.c.b16 %v5157, %v5149
    %v5878 = vpack.c.b16 %v5166, %v5158
    %v5879 = vpack.c.b16 %v5167, %v5159
    %v5880 = vpack.c.b16 %v5168, %v5160
    %v5881 = vpack.c.b16 %v5169, %v5161
    %v5882 = vpack.c.b16 %v5170, %v5162
    %v5883 = vpack.c.b16 %v5171, %v5163
    %v5884 = vpack.c.b16 %v5172, %v5164
    %v5885 = vpack.c.b16 %v5173, %v5165
    %v5886 = vpack.c.b16 %v5182, %v5174
    %v5887 = vpack.c.b16 %v5183, %v5175
    %v5888 = vpack.c.b16 %v5184, %v5176
    %v5889 = vpack.c.b16 %v5185, %v5177
    %v5890 = vpack.c.b16 %v5186, %v5178
    %v5891 = vpack.c.b16 %v5187, %v5179
    %v5892 = vpack.c.b16 %v5188, %v5180
    %v5893 = vpack.c.b16 %v5189, %v5181
    %v5894 = vpack.c.b16 %v5198, %v5190
    %v5895 = vpack.c.b16 %v5199, %v5191
    %v5896 = vpack.c.b16 %v5200, %v5192
    %v5897 = vpack.c.b16 %v5201, %v5193
    %v5898 = vpack.c.b16 %v5202, %v5194
    %v5899 = vpack.c.b16 %v5203, %v5195
    %v5900 = vpack.c.b16 %v5204, %v5196
    %v5901 = vpack.c.b16 %v5205, %v5197
    %v5902 = vpack.c.b16 %v5214, %v5206
    %v5903 = vpack.c.b16 %v5215, %v5207
    %v5904 = vpack.c.b16 %v5216, %v5208
    %v5905 = vpack.c.b16 %v5217, %v5209
    %v5906 = vpack.c.b16 %v5218, %v5210
    %v5907 = vpack.c.b16 %v5219, %v5211
    %v5908 = vpack.c.b16 %v5220, %v5212
    %v5909 = vpack.c.b16 %v5221, %v5213
    %v5910 = vpack.c.b16 %v5230, %v5222
    %v5911 = vpack.c.b16 %v5231, %v5223
    %v5912 = vpack.c.b16 %v5232, %v5224
    %v5913 = vpack.c.b16 %v5233, %v5225
    %v5914 = vpack.c.b16 %v5234, %v5226
    %v5915 = vpack.c.b16 %v5235, %v5227
    %v5916 = vpack.c.b16 %v5236, %v5228
    %v5917 = vpack.c.b16 %v5237, %v5229
    %v5918 = vpack.c.b16 %v5246, %v5238
    %v5919 = vpack.c.b16 %v5247, %v5239
    %v5920 = vpack.c.b16 %v5248, %v5240
    %v5921 = vpack.c.b16 %v5249, %v5241
    %v5922 = vpack.c.b16 %v5250, %v5242
    %v5923 = vpack.c.b16 %v5251, %v5243
    %v5924 = vpack.c.b16 %v5252, %v5244
    %v5925 = vpack.c.b16 %v5253, %v5245
    %v5926 = vpack.c.b16 %v5262, %v5254
    %v5927 = vpack.c.b16 %v5263, %v5255
    %v5928 = vpack.c.b16 %v5264, %v5256
    %v5929 = vpack.c.b16 %v5265, %v5257
    %v5930 = vpack.c.b16 %v5266, %v5258
    %v5931 = vpack.c.b16 %v5267, %v5259
    %v5932 = vpack.c.b16 %v5268, %v5260
    %v5933 = vpack.c.b16 %v5269, %v5261
    %v5934 = vpack.c.b16 %v5278, %v5270
    %v5935 = vpack.c.b16 %v5279, %v5271
    %v5936 = vpack.c.b16 %v5280, %v5272
    %v5937 = vpack.c.b16 %v5281, %v5273
    %v5938 = vpack.c.b16 %v5282, %v5274
    %v5939 = vpack.c.b16 %v5283, %v5275
    %v5940 = vpack.c.b16 %v5284, %v5276
    %v5941 = vpack.c.b16 %v5285, %v5277
    %v5942 = vpack.c.b16 %v5294, %v5286
    %v5943 = vpack.c.b16 %v5295, %v5287
    %v5944 = vpack.c.b16 %v5296, %v5288
    %v5945 = vpack.c.b16 %v5297, %v5289
    %v5946 = vpack.c.b16 %v5298, %v5290
    %v5947 = vpack.c.b16 %v5299, %v5291
    %v5948 = vpack.c.b16 %v5300, %v5292
    %v5949 = vpack.c.b16 %v5301, %v5293
    %v5950 = vpack.c.b16 %v5310, %v5302
    %v5951 = vpack.c.b16 %v5311, %v5303
    %v5952 = vpack.c.b16 %v5312, %v5304
    %v5953 = vpack.c.b16 %v5313, %v5305
    %v5954 = vpack.c.b16 %v5314, %v5306
    %v5955 = vpack.c.b16 %v5315, %v5307
    %v5956 = vpack.c.b16 %v5316, %v5308
    %v5957 = vpack.c.b16 %v5317, %v5309
    %v5958 = vpack.c.b16 %v5326, %v5318
    %v5959 = vpack.c.b16 %v5327, %v5319
    %v5960 = vpack.c.b16 %v5328, %v5320
    %v5961 = vpack.c.b16 %v5329, %v5321
    %v5962 = vpack.c.b16 %v5330, %v5322
    %v5963 = vpack.c.b16 %v5331, %v5323
    %v5964 = vpack.c.b16 %v5332, %v5324
    %v5965 = vpack.c.b16 %v5333, %v5325
    %v5966 = vpack.c.b16 %v5342, %v5334
    %v5967 = vpack.c.b16 %v5343, %v5335
    %v5968 = vpack.c.b16 %v5344, %v5336
    %v5969 = vpack.c.b16 %v5345, %v5337
    %v5970 = vpack.c.b16 %v5346, %v5338
    %v5971 = vpack.c.b16 %v5347, %v5339
    %v5972 = vpack.c.b16 %v5348, %v5340
    %v5973 = vpack.c.b16 %v5349, %v5341
    %v5974 = vpack.c.b16 %v5358, %v5350
    %v5975 = vpack.c.b16 %v5359, %v5351
    %v5976 = vpack.c.b16 %v5360, %v5352
    %v5977 = vpack.c.b16 %v5361, %v5353
    %v5978 = vpack.c.b16 %v5362, %v5354
    %v5979 = vpack.c.b16 %v5363, %v5355
    %v5980 = vpack.c.b16 %v5364, %v5356
    %v5981 = vpack.c.b16 %v5365, %v5357
    %v5982 = vpack.c.b16 %v5374, %v5366
    %v5983 = vpack.c.b16 %v5375, %v5367
    %v5984 = vpack.c.b16 %v5376, %v5368
    %v5985 = vpack.c.b16 %v5377, %v5369
    %v5986 = vpack.c.b16 %v5378, %v5370
    %v5987 = vpack.c.b16 %v5379, %v5371
    %v5988 = vpack.c.b16 %v5380, %v5372
    %v5989 = vpack.c.b16 %v5381, %v5373
    %v5990 = vpack.c.b16 %v5390, %v5382
    %v5991 = vpack.c.b16 %v5391, %v5383
    %v5992 = vpack.c.b16 %v5392, %v5384
    %v5993 = vpack.c.b16 %v5393, %v5385
    %v5994 = vpack.c.b16 %v5394, %v5386
    %v5995 = vpack.c.b16 %v5395, %v5387
    %v5996 = vpack.c.b16 %v5396, %v5388
    %v5997 = vpack.c.b16 %v5397, %v5389
    %v5998 = vpack.c.b16 %v5406, %v5398
    %v5999 = vpack.c.b16 %v5407, %v5399
    %v6000 = vpack.c.b16 %v5408, %v5400
    %v6001 = vpack.c.b16 %v5409, %v5401
    %v6002 = vpack.c.b16 %v5410, %v5402
    %v6003 = vpack.c.b16 %v5411, %v5403
    %v6004 = vpack.c.b16 %v5412, %v5404
    %v6005 = vpack.c.b16 %v5413, %v5405
    %v6006 = vpack.c.b16 %v5422, %v5414
    %v6007 = vpack.c.b16 %v5423, %v5415
    %v6008 = vpack.c.b16 %v5424, %v5416
    %v6009 = vpack.c.b16 %v5425, %v5417
    %v6010 = vpack.c.b16 %v5426, %v5418
    %v6011 = vpack.c.b16 %v5427, %v5419
    %v6012 = vpack.c.b16 %v5428, %v5420
    %v6013 = vpack.c.b16 %v5429, %v5421
    %v6014 = vpack.c.b16 %v5438, %v5430
    %v6015 = vpack.c.b16 %v5439, %v5431
    %v6016 = vpack.c.b16 %v5440, %v5432
    %v6017 = vpack.c.b16 %v5441, %v5433
    %v6018 = vpack.c.b16 %v5442, %v5434
    %v6019 = vpack.c.b16 %v5443, %v5435
    %v6020 = vpack.c.b16 %v5444, %v5436
    %v6021 = vpack.c.b16 %v5445, %v5437
    %v6022 = vpack.c.b16 %v5454, %v5446
    %v6023 = vpack.c.b16 %v5455, %v5447
    %v6024 = vpack.c.b16 %v5456, %v5448
    %v6025 = vpack.c.b16 %v5457, %v5449
    %v6026 = vpack.c.b16 %v5458, %v5450
    %v6027 = vpack.c.b16 %v5459, %v5451
    %v6028 = vpack.c.b16 %v5460, %v5452
    %v6029 = vpack.c.b16 %v5461, %v5453
    %v6030 = vpack.c.b16 %v5470, %v5462
    %v6031 = vpack.c.b16 %v5471, %v5463
    %v6032 = vpack.c.b16 %v5472, %v5464
    %v6033 = vpack.c.b16 %v5473, %v5465
    %v6034 = vpack.c.b16 %v5474, %v5466
    %v6035 = vpack.c.b16 %v5475, %v5467
    %v6036 = vpack.c.b16 %v5476, %v5468
    %v6037 = vpack.c.b16 %v5477, %v5469
    %v6038 = vpack.c.b16 %v5486, %v5478
    %v6039 = vpack.c.b16 %v5487, %v5479
    %v6040 = vpack.c.b16 %v5488, %v5480
    %v6041 = vpack.c.b16 %v5489, %v5481
    %v6042 = vpack.c.b16 %v5490, %v5482
    %v6043 = vpack.c.b16 %v5491, %v5483
    %v6044 = vpack.c.b16 %v5492, %v5484
    %v6045 = vpack.c.b16 %v5493, %v5485
    %v6046 = vpack.c.b16 %v5502, %v5494
    %v6047 = vpack.c.b16 %v5503, %v5495
    %v6048 = vpack.c.b16 %v5504, %v5496
    %v6049 = vpack.c.b16 %v5505, %v5497
    %v6050 = vpack.c.b16 %v5506, %v5498
    %v6051 = vpack.c.b16 %v5507, %v5499
    %v6052 = vpack.c.b16 %v5508, %v5500
    %v6053 = vpack.c.b16 %v5509, %v5501
    %v6054 = vpack.c.b16 %v5518, %v5510
    %v6055 = vpack.c.b16 %v5519, %v5511
    %v6056 = vpack.c.b16 %v5520, %v5512
    %v6057 = vpack.c.b16 %v5521, %v5513
    %v6058 = vpack.c.b16 %v5522, %v5514
    %v6059 = vpack.c.b16 %v5523, %v5515
    %v6060 = vpack.c.b16 %v5524, %v5516
    %v6061 = vpack.c.b16 %v5525, %v5517
    %v6062 = vpack.c.b16 %v5534, %v5526
    %v6063 = vpack.c.b16 %v5535, %v5527
    %v6064 = vpack.c.b16 %v5536, %v5528
    %v6065 = vpack.c.b16 %v5537, %v5529
    %v6066 = vpack.c.b16 %v5538, %v5530
    %v6067 = vpack.c.b16 %v5539, %v5531
    %v6068 = vpack.c.b16 %v5540, %v5532
    %v6069 = vpack.c.b16 %v5541, %v5533
    %v6070 = vpack.c.b16 %v5550, %v5542
    %v6071 = vpack.c.b16 %v5551, %v5543
    %v6072 = vpack.c.b16 %v5552, %v5544
    %v6073 = vpack.c.b16 %v5553, %v5545
    %v6074 = vpack.c.b16 %v5554, %v5546
    %v6075 = vpack.c.b16 %v5555, %v5547
    %v6076 = vpack.c.b16 %v5556, %v5548
    %v6077 = vpack.c.b16 %v5557, %v5549
    %v6078 = vpack.c.b16 %v5566, %v5558
    %v6079 = vpack.c.b16 %v5567, %v5559
    %v6080 = vpack.c.b16 %v5568, %v5560
    %v6081 = vpack.c.b16 %v5569, %v5561
    %v6082 = vpack.c.b16 %v5570, %v5562
    %v6083 = vpack.c.b16 %v5571, %v5563
    %v6084 = vpack.c.b16 %v5572, %v5564
    %v6085 = vpack.c.b16 %v5573, %v5565
    %6598 = vmatpush.bf16.msra.mxu0 %v5630
    %6599 = vmatpush.bf16.msra.mxu0 %v5622
    %6600 = vmatpush.bf16.msra.mxu0 %v5614
    %6601 = vmatpush.bf16.msra.mxu0 %v5606
    %6602 = vmatpush.bf16.msra.mxu0 %v5598
    %6603 = vmatpush.bf16.msra.mxu0 %v5590
    %6604 = vmatpush.bf16.msra.mxu0 %v5582
    %6605 = vmatpush.bf16.msra.mxu0 %v5574
    %6606 = vmatmul.bf16.gmra.mxu0 %v3500
    %v6607 = vpop.f32.mrf.mxu0
    %v6608 = vadd.f32 %v4022, %v6607
    %v6609 = vpop.f32.mrf.mxu0
    %v6610 = vadd.f32 %v4022, %v6609
    %6611 = vdwg.mxu0
    %6612 = vmatpush.bf16.msra.mxu0 %v5694
    %6613 = vmatpush.bf16.msra.mxu0 %v5686
    %6614 = vmatpush.bf16.msra.mxu0 %v5678
    %6615 = vmatpush.bf16.msra.mxu0 %v5670
    %6616 = vmatpush.bf16.msra.mxu0 %v5662
    %6617 = vmatpush.bf16.msra.mxu0 %v5654
    %6618 = vmatpush.bf16.msra.mxu0 %v5646
    %6619 = vmatpush.bf16.msra.mxu0 %v5638
    %6620 = vmatmul.bf16.gmra.mxu0 %v3501
    %v6621 = vpop.f32.mrf.mxu0
    %v6622 = vadd.f32 %v6608, %v6621
    %v6623 = vpop.f32.mrf.mxu0
    %v6624 = vadd.f32 %v6610, %v6623
    %6625 = vdwg.mxu0
    %6626 = vmatpush.bf16.msra.mxu0 %v5758
    %6627 = vmatpush.bf16.msra.mxu0 %v5750
    %6628 = vmatpush.bf16.msra.mxu0 %v5742
    %6629 = vmatpush.bf16.msra.mxu0 %v5734
    %6630 = vmatpush.bf16.msra.mxu0 %v5726
    %6631 = vmatpush.bf16.msra.mxu0 %v5718
    %6632 = vmatpush.bf16.msra.mxu0 %v5710
    %6633 = vmatpush.bf16.msra.mxu0 %v5702
    %6634 = vmatmul.bf16.gmra.mxu0 %v3502
    %v6635 = vpop.f32.mrf.mxu0
    %v6636 = vadd.f32 %v6622, %v6635
    %v6637 = vpop.f32.mrf.mxu0
    %v6638 = vadd.f32 %v6624, %v6637
    %6639 = vdwg.mxu0
    %6640 = vmatpush.bf16.msra.mxu0 %v5822
    %6641 = vmatpush.bf16.msra.mxu0 %v5814
    %6642 = vmatpush.bf16.msra.mxu0 %v5806
    %6643 = vmatpush.bf16.msra.mxu0 %v5798
    %6644 = vmatpush.bf16.msra.mxu0 %v5790
    %6645 = vmatpush.bf16.msra.mxu0 %v5782
    %6646 = vmatpush.bf16.msra.mxu0 %v5774
    %6647 = vmatpush.bf16.msra.mxu0 %v5766
    %6648 = vmatmul.bf16.gmra.mxu0 %v3503
    %v6649 = vpop.f32.mrf.mxu0
    %v6650 = vadd.f32 %v6636, %v6649
    %v6651 = vpop.f32.mrf.mxu0
    %v6652 = vadd.f32 %v6638, %v6651
    %6653 = vdwg.mxu0
    %6654 = vmatpush.bf16.msra.mxu0 %v5886
    %6655 = vmatpush.bf16.msra.mxu0 %v5878
    %6656 = vmatpush.bf16.msra.mxu0 %v5870
    %6657 = vmatpush.bf16.msra.mxu0 %v5862
    %6658 = vmatpush.bf16.msra.mxu0 %v5854
    %6659 = vmatpush.bf16.msra.mxu0 %v5846
    %6660 = vmatpush.bf16.msra.mxu0 %v5838
    %6661 = vmatpush.bf16.msra.mxu0 %v5830
    %6662 = vmatmul.bf16.gmra.mxu0 %v3504
    %v6663 = vpop.f32.mrf.mxu0
    %v6664 = vadd.f32 %v6650, %v6663
    %v6665 = vpop.f32.mrf.mxu0
    %v6666 = vadd.f32 %v6652, %v6665
    %6667 = vdwg.mxu0
    %6668 = vmatpush.bf16.msra.mxu0 %v5950
    %6669 = vmatpush.bf16.msra.mxu0 %v5942
    %6670 = vmatpush.bf16.msra.mxu0 %v5934
    %6671 = vmatpush.bf16.msra.mxu0 %v5926
    %6672 = vmatpush.bf16.msra.mxu0 %v5918
    %6673 = vmatpush.bf16.msra.mxu0 %v5910
    %6674 = vmatpush.bf16.msra.mxu0 %v5902
    %6675 = vmatpush.bf16.msra.mxu0 %v5894
    %6676 = vmatmul.bf16.gmra.mxu0 %v3505
    %v6677 = vpop.f32.mrf.mxu0
    %v6678 = vadd.f32 %v6664, %v6677
    %v6679 = vpop.f32.mrf.mxu0
    %v6680 = vadd.f32 %v6666, %v6679
    %6681 = vdwg.mxu0
    %6682 = vmatpush.bf16.msra.mxu0 %v6014
    %6683 = vmatpush.bf16.msra.mxu0 %v6006
    %6684 = vmatpush.bf16.msra.mxu0 %v5998
    %6685 = vmatpush.bf16.msra.mxu0 %v5990
    %6686 = vmatpush.bf16.msra.mxu0 %v5982
    %6687 = vmatpush.bf16.msra.mxu0 %v5974
    %6688 = vmatpush.bf16.msra.mxu0 %v5966
    %6689 = vmatpush.bf16.msra.mxu0 %v5958
    %6690 = vmatmul.bf16.gmra.mxu0 %v3506
    %v6691 = vpop.f32.mrf.mxu0
    %v6692 = vadd.f32 %v6678, %v6691
    %v6693 = vpop.f32.mrf.mxu0
    %v6694 = vadd.f32 %v6680, %v6693
    %6695 = vdwg.mxu0
    %6696 = vmatpush.bf16.msra.mxu0 %v6078
    %6697 = vmatpush.bf16.msra.mxu0 %v6070
    %6698 = vmatpush.bf16.msra.mxu0 %v6062
    %6699 = vmatpush.bf16.msra.mxu0 %v6054
    %6700 = vmatpush.bf16.msra.mxu0 %v6046
    %6701 = vmatpush.bf16.msra.mxu0 %v6038
    %6702 = vmatpush.bf16.msra.mxu0 %v6030
    %6703 = vmatpush.bf16.msra.mxu0 %v6022
    %6704 = vmatmul.bf16.gmra.mxu0 %v3507
    %v6705 = vpop.f32.mrf.mxu0
    %v6706 = vadd.f32 %v6692, %v6705
    %v6707 = vpop.f32.mrf.mxu0
    %v6708 = vadd.f32 %v6694, %v6707
    %6709 = vdwg.mxu0
    %6710 = vmatpush.bf16.msra.mxu0 %v5631
    %6711 = vmatpush.bf16.msra.mxu0 %v5623
    %6712 = vmatpush.bf16.msra.mxu0 %v5615
    %6713 = vmatpush.bf16.msra.mxu0 %v5607
    %6714 = vmatpush.bf16.msra.mxu0 %v5599
    %6715 = vmatpush.bf16.msra.mxu0 %v5591
    %6716 = vmatpush.bf16.msra.mxu0 %v5583
    %6717 = vmatpush.bf16.msra.mxu0 %v5575
    %6718 = vmatmul.bf16.gmra.mxu0 %v3500
    %v6719 = vpop.f32.mrf.mxu0
    %v6720 = vadd.f32 %v4023, %v6719
    %v6721 = vpop.f32.mrf.mxu0
    %v6722 = vadd.f32 %v4023, %v6721
    %6723 = vdwg.mxu0
    %6724 = vmatpush.bf16.msra.mxu0 %v5695
    %6725 = vmatpush.bf16.msra.mxu0 %v5687
    %6726 = vmatpush.bf16.msra.mxu0 %v5679
    %6727 = vmatpush.bf16.msra.mxu0 %v5671
    %6728 = vmatpush.bf16.msra.mxu0 %v5663
    %6729 = vmatpush.bf16.msra.mxu0 %v5655
    %6730 = vmatpush.bf16.msra.mxu0 %v5647
    %6731 = vmatpush.bf16.msra.mxu0 %v5639
    %6732 = vmatmul.bf16.gmra.mxu0 %v3501
    %v6733 = vpop.f32.mrf.mxu0
    %v6734 = vadd.f32 %v6720, %v6733
    %v6735 = vpop.f32.mrf.mxu0
    %v6736 = vadd.f32 %v6722, %v6735
    %6737 = vdwg.mxu0
    %6738 = vmatpush.bf16.msra.mxu0 %v5759
    %6739 = vmatpush.bf16.msra.mxu0 %v5751
    %6740 = vmatpush.bf16.msra.mxu0 %v5743
    %6741 = vmatpush.bf16.msra.mxu0 %v5735
    %6742 = vmatpush.bf16.msra.mxu0 %v5727
    %6743 = vmatpush.bf16.msra.mxu0 %v5719
    %6744 = vmatpush.bf16.msra.mxu0 %v5711
    %6745 = vmatpush.bf16.msra.mxu0 %v5703
    %6746 = vmatmul.bf16.gmra.mxu0 %v3502
    %v6747 = vpop.f32.mrf.mxu0
    %v6748 = vadd.f32 %v6734, %v6747
    %v6749 = vpop.f32.mrf.mxu0
    %v6750 = vadd.f32 %v6736, %v6749
    %6751 = vdwg.mxu0
    %6752 = vmatpush.bf16.msra.mxu0 %v5823
    %6753 = vmatpush.bf16.msra.mxu0 %v5815
    %6754 = vmatpush.bf16.msra.mxu0 %v5807
    %6755 = vmatpush.bf16.msra.mxu0 %v5799
    %6756 = vmatpush.bf16.msra.mxu0 %v5791
    %6757 = vmatpush.bf16.msra.mxu0 %v5783
    %6758 = vmatpush.bf16.msra.mxu0 %v5775
    %6759 = vmatpush.bf16.msra.mxu0 %v5767
    %6760 = vmatmul.bf16.gmra.mxu0 %v3503
    %v6761 = vpop.f32.mrf.mxu0
    %v6762 = vadd.f32 %v6748, %v6761
    %v6763 = vpop.f32.mrf.mxu0
    %v6764 = vadd.f32 %v6750, %v6763
    %6765 = vdwg.mxu0
    %6766 = vmatpush.bf16.msra.mxu0 %v5887
    %6767 = vmatpush.bf16.msra.mxu0 %v5879
    %6768 = vmatpush.bf16.msra.mxu0 %v5871
    %6769 = vmatpush.bf16.msra.mxu0 %v5863
    %6770 = vmatpush.bf16.msra.mxu0 %v5855
    %6771 = vmatpush.bf16.msra.mxu0 %v5847
    %6772 = vmatpush.bf16.msra.mxu0 %v5839
    %6773 = vmatpush.bf16.msra.mxu0 %v5831
    %6774 = vmatmul.bf16.gmra.mxu0 %v3504
    %v6775 = vpop.f32.mrf.mxu0
    %v6776 = vadd.f32 %v6762, %v6775
    %v6777 = vpop.f32.mrf.mxu0
    %v6778 = vadd.f32 %v6764, %v6777
    %6779 = vdwg.mxu0
    %6780 = vmatpush.bf16.msra.mxu0 %v5951
    %6781 = vmatpush.bf16.msra.mxu0 %v5943
    %6782 = vmatpush.bf16.msra.mxu0 %v5935
    %6783 = vmatpush.bf16.msra.mxu0 %v5927
    %6784 = vmatpush.bf16.msra.mxu0 %v5919
    %6785 = vmatpush.bf16.msra.mxu0 %v5911
    %6786 = vmatpush.bf16.msra.mxu0 %v5903
    %6787 = vmatpush.bf16.msra.mxu0 %v5895
    %6788 = vmatmul.bf16.gmra.mxu0 %v3505
    %v6789 = vpop.f32.mrf.mxu0
    %v6790 = vadd.f32 %v6776, %v6789
    %v6791 = vpop.f32.mrf.mxu0
    %v6792 = vadd.f32 %v6778, %v6791
    %6793 = vdwg.mxu0
    %6794 = vmatpush.bf16.msra.mxu0 %v6015
    %6795 = vmatpush.bf16.msra.mxu0 %v6007
    %6796 = vmatpush.bf16.msra.mxu0 %v5999
    %6797 = vmatpush.bf16.msra.mxu0 %v5991
    %6798 = vmatpush.bf16.msra.mxu0 %v5983
    %6799 = vmatpush.bf16.msra.mxu0 %v5975
    %6800 = vmatpush.bf16.msra.mxu0 %v5967
    %6801 = vmatpush.bf16.msra.mxu0 %v5959
    %6802 = vmatmul.bf16.gmra.mxu0 %v3506
    %v6803 = vpop.f32.mrf.mxu0
    %v6804 = vadd.f32 %v6790, %v6803
    %v6805 = vpop.f32.mrf.mxu0
    %v6806 = vadd.f32 %v6792, %v6805
    %6807 = vdwg.mxu0
    %6808 = vmatpush.bf16.msra.mxu0 %v6079
    %6809 = vmatpush.bf16.msra.mxu0 %v6071
    %6810 = vmatpush.bf16.msra.mxu0 %v6063
    %6811 = vmatpush.bf16.msra.mxu0 %v6055
    %6812 = vmatpush.bf16.msra.mxu0 %v6047
    %6813 = vmatpush.bf16.msra.mxu0 %v6039
    %6814 = vmatpush.bf16.msra.mxu0 %v6031
    %6815 = vmatpush.bf16.msra.mxu0 %v6023
    %6816 = vmatmul.bf16.gmra.mxu0 %v3507
    %v6817 = vpop.f32.mrf.mxu0
    %v6818 = vadd.f32 %v6804, %v6817
    %v6819 = vpop.f32.mrf.mxu0
    %v6820 = vadd.f32 %v6806, %v6819
    %6821 = vdwg.mxu0
    %6822 = vmatpush.bf16.msra.mxu0 %v5632
    %6823 = vmatpush.bf16.msra.mxu0 %v5624
    %6824 = vmatpush.bf16.msra.mxu0 %v5616
    %6825 = vmatpush.bf16.msra.mxu0 %v5608
    %6826 = vmatpush.bf16.msra.mxu0 %v5600
    %6827 = vmatpush.bf16.msra.mxu0 %v5592
    %6828 = vmatpush.bf16.msra.mxu0 %v5584
    %6829 = vmatpush.bf16.msra.mxu0 %v5576
    %6830 = vmatmul.bf16.gmra.mxu0 %v3500
    %v6831 = vpop.f32.mrf.mxu0
    %v6832 = vadd.f32 %v4024, %v6831
    %v6833 = vpop.f32.mrf.mxu0
    %v6834 = vadd.f32 %v4024, %v6833
    %6835 = vdwg.mxu0
    %6836 = vmatpush.bf16.msra.mxu0 %v5696
    %6837 = vmatpush.bf16.msra.mxu0 %v5688
    %6838 = vmatpush.bf16.msra.mxu0 %v5680
    %6839 = vmatpush.bf16.msra.mxu0 %v5672
    %6840 = vmatpush.bf16.msra.mxu0 %v5664
    %6841 = vmatpush.bf16.msra.mxu0 %v5656
    %6842 = vmatpush.bf16.msra.mxu0 %v5648
    %6843 = vmatpush.bf16.msra.mxu0 %v5640
    %6844 = vmatmul.bf16.gmra.mxu0 %v3501
    %v6845 = vpop.f32.mrf.mxu0
    %v6846 = vadd.f32 %v6832, %v6845
    %v6847 = vpop.f32.mrf.mxu0
    %v6848 = vadd.f32 %v6834, %v6847
    %6849 = vdwg.mxu0
    %6850 = vmatpush.bf16.msra.mxu0 %v5760
    %6851 = vmatpush.bf16.msra.mxu0 %v5752
    %6852 = vmatpush.bf16.msra.mxu0 %v5744
    %6853 = vmatpush.bf16.msra.mxu0 %v5736
    %6854 = vmatpush.bf16.msra.mxu0 %v5728
    %6855 = vmatpush.bf16.msra.mxu0 %v5720
    %6856 = vmatpush.bf16.msra.mxu0 %v5712
    %6857 = vmatpush.bf16.msra.mxu0 %v5704
    %6858 = vmatmul.bf16.gmra.mxu0 %v3502
    %v6859 = vpop.f32.mrf.mxu0
    %v6860 = vadd.f32 %v6846, %v6859
    %v6861 = vpop.f32.mrf.mxu0
    %v6862 = vadd.f32 %v6848, %v6861
    %6863 = vdwg.mxu0
    %6864 = vmatpush.bf16.msra.mxu0 %v5824
    %6865 = vmatpush.bf16.msra.mxu0 %v5816
    %6866 = vmatpush.bf16.msra.mxu0 %v5808
    %6867 = vmatpush.bf16.msra.mxu0 %v5800
    %6868 = vmatpush.bf16.msra.mxu0 %v5792
    %6869 = vmatpush.bf16.msra.mxu0 %v5784
    %6870 = vmatpush.bf16.msra.mxu0 %v5776
    %6871 = vmatpush.bf16.msra.mxu0 %v5768
    %6872 = vmatmul.bf16.gmra.mxu0 %v3503
    %v6873 = vpop.f32.mrf.mxu0
    %v6874 = vadd.f32 %v6860, %v6873
    %v6875 = vpop.f32.mrf.mxu0
    %v6876 = vadd.f32 %v6862, %v6875
    %6877 = vdwg.mxu0
    %6878 = vmatpush.bf16.msra.mxu0 %v5888
    %6879 = vmatpush.bf16.msra.mxu0 %v5880
    %6880 = vmatpush.bf16.msra.mxu0 %v5872
    %6881 = vmatpush.bf16.msra.mxu0 %v5864
    %6882 = vmatpush.bf16.msra.mxu0 %v5856
    %6883 = vmatpush.bf16.msra.mxu0 %v5848
    %6884 = vmatpush.bf16.msra.mxu0 %v5840
    %6885 = vmatpush.bf16.msra.mxu0 %v5832
    %6886 = vmatmul.bf16.gmra.mxu0 %v3504
    %v6887 = vpop.f32.mrf.mxu0
    %v6888 = vadd.f32 %v6874, %v6887
    %v6889 = vpop.f32.mrf.mxu0
    %v6890 = vadd.f32 %v6876, %v6889
    %6891 = vdwg.mxu0
    %6892 = vmatpush.bf16.msra.mxu0 %v5952
    %6893 = vmatpush.bf16.msra.mxu0 %v5944
    %6894 = vmatpush.bf16.msra.mxu0 %v5936
    %6895 = vmatpush.bf16.msra.mxu0 %v5928
    %6896 = vmatpush.bf16.msra.mxu0 %v5920
    %6897 = vmatpush.bf16.msra.mxu0 %v5912
    %6898 = vmatpush.bf16.msra.mxu0 %v5904
    %6899 = vmatpush.bf16.msra.mxu0 %v5896
    %6900 = vmatmul.bf16.gmra.mxu0 %v3505
    %v6901 = vpop.f32.mrf.mxu0
    %v6902 = vadd.f32 %v6888, %v6901
    %v6903 = vpop.f32.mrf.mxu0
    %v6904 = vadd.f32 %v6890, %v6903
    %6905 = vdwg.mxu0
    %6906 = vmatpush.bf16.msra.mxu0 %v6016
    %6907 = vmatpush.bf16.msra.mxu0 %v6008
    %6908 = vmatpush.bf16.msra.mxu0 %v6000
    %6909 = vmatpush.bf16.msra.mxu0 %v5992
    %6910 = vmatpush.bf16.msra.mxu0 %v5984
    %6911 = vmatpush.bf16.msra.mxu0 %v5976
    %6912 = vmatpush.bf16.msra.mxu0 %v5968
    %6913 = vmatpush.bf16.msra.mxu0 %v5960
    %6914 = vmatmul.bf16.gmra.mxu0 %v3506
    %v6915 = vpop.f32.mrf.mxu0
    %v6916 = vadd.f32 %v6902, %v6915
    %v6917 = vpop.f32.mrf.mxu0
    %v6918 = vadd.f32 %v6904, %v6917
    %6919 = vdwg.mxu0
    %6920 = vmatpush.bf16.msra.mxu0 %v6080
    %6921 = vmatpush.bf16.msra.mxu0 %v6072
    %6922 = vmatpush.bf16.msra.mxu0 %v6064
    %6923 = vmatpush.bf16.msra.mxu0 %v6056
    %6924 = vmatpush.bf16.msra.mxu0 %v6048
    %6925 = vmatpush.bf16.msra.mxu0 %v6040
    %6926 = vmatpush.bf16.msra.mxu0 %v6032
    %6927 = vmatpush.bf16.msra.mxu0 %v6024
    %6928 = vmatmul.bf16.gmra.mxu0 %v3507
    %v6929 = vpop.f32.mrf.mxu0
    %v6930 = vadd.f32 %v6916, %v6929
    %v6931 = vpop.f32.mrf.mxu0
    %v6932 = vadd.f32 %v6918, %v6931
    %6933 = vdwg.mxu0
    %6934 = vmatpush.bf16.msra.mxu0 %v5633
    %6935 = vmatpush.bf16.msra.mxu0 %v5625
    %6936 = vmatpush.bf16.msra.mxu0 %v5617
    %6937 = vmatpush.bf16.msra.mxu0 %v5609
    %6938 = vmatpush.bf16.msra.mxu0 %v5601
    %6939 = vmatpush.bf16.msra.mxu0 %v5593
    %6940 = vmatpush.bf16.msra.mxu0 %v5585
    %6941 = vmatpush.bf16.msra.mxu0 %v5577
    %6942 = vmatmul.bf16.gmra.mxu0 %v3500
    %v6943 = vpop.f32.mrf.mxu0
    %v6944 = vadd.f32 %v4025, %v6943
    %v6945 = vpop.f32.mrf.mxu0
    %v6946 = vadd.f32 %v4025, %v6945
    %6947 = vdwg.mxu0
    %6948 = vmatpush.bf16.msra.mxu0 %v5697
    %6949 = vmatpush.bf16.msra.mxu0 %v5689
    %6950 = vmatpush.bf16.msra.mxu0 %v5681
    %6951 = vmatpush.bf16.msra.mxu0 %v5673
    %6952 = vmatpush.bf16.msra.mxu0 %v5665
    %6953 = vmatpush.bf16.msra.mxu0 %v5657
    %6954 = vmatpush.bf16.msra.mxu0 %v5649
    %6955 = vmatpush.bf16.msra.mxu0 %v5641
    %6956 = vmatmul.bf16.gmra.mxu0 %v3501
    %v6957 = vpop.f32.mrf.mxu0
    %v6958 = vadd.f32 %v6944, %v6957
    %v6959 = vpop.f32.mrf.mxu0
    %v6960 = vadd.f32 %v6946, %v6959
    %6961 = vdwg.mxu0
    %6962 = vmatpush.bf16.msra.mxu0 %v5761
    %6963 = vmatpush.bf16.msra.mxu0 %v5753
    %6964 = vmatpush.bf16.msra.mxu0 %v5745
    %6965 = vmatpush.bf16.msra.mxu0 %v5737
    %6966 = vmatpush.bf16.msra.mxu0 %v5729
    %6967 = vmatpush.bf16.msra.mxu0 %v5721
    %6968 = vmatpush.bf16.msra.mxu0 %v5713
    %6969 = vmatpush.bf16.msra.mxu0 %v5705
    %6970 = vmatmul.bf16.gmra.mxu0 %v3502
    %v6971 = vpop.f32.mrf.mxu0
    %v6972 = vadd.f32 %v6958, %v6971
    %v6973 = vpop.f32.mrf.mxu0
    %v6974 = vadd.f32 %v6960, %v6973
    %6975 = vdwg.mxu0
    %6976 = vmatpush.bf16.msra.mxu0 %v5825
    %6977 = vmatpush.bf16.msra.mxu0 %v5817
    %6978 = vmatpush.bf16.msra.mxu0 %v5809
    %6979 = vmatpush.bf16.msra.mxu0 %v5801
    %6980 = vmatpush.bf16.msra.mxu0 %v5793
    %6981 = vmatpush.bf16.msra.mxu0 %v5785
    %6982 = vmatpush.bf16.msra.mxu0 %v5777
    %6983 = vmatpush.bf16.msra.mxu0 %v5769
    %6984 = vmatmul.bf16.gmra.mxu0 %v3503
    %v6985 = vpop.f32.mrf.mxu0
    %v6986 = vadd.f32 %v6972, %v6985
    %v6987 = vpop.f32.mrf.mxu0
    %v6988 = vadd.f32 %v6974, %v6987
    %6989 = vdwg.mxu0
    %6990 = vmatpush.bf16.msra.mxu0 %v5889
    %6991 = vmatpush.bf16.msra.mxu0 %v5881
    %6992 = vmatpush.bf16.msra.mxu0 %v5873
    %6993 = vmatpush.bf16.msra.mxu0 %v5865
    %6994 = vmatpush.bf16.msra.mxu0 %v5857
    %6995 = vmatpush.bf16.msra.mxu0 %v5849
    %6996 = vmatpush.bf16.msra.mxu0 %v5841
    %6997 = vmatpush.bf16.msra.mxu0 %v5833
    %6998 = vmatmul.bf16.gmra.mxu0 %v3504
    %v6999 = vpop.f32.mrf.mxu0
    %v7000 = vadd.f32 %v6986, %v6999
    %v7001 = vpop.f32.mrf.mxu0
    %v7002 = vadd.f32 %v6988, %v7001
    %7003 = vdwg.mxu0
    %7004 = vmatpush.bf16.msra.mxu0 %v5953
    %7005 = vmatpush.bf16.msra.mxu0 %v5945
    %7006 = vmatpush.bf16.msra.mxu0 %v5937
    %7007 = vmatpush.bf16.msra.mxu0 %v5929
    %7008 = vmatpush.bf16.msra.mxu0 %v5921
    %7009 = vmatpush.bf16.msra.mxu0 %v5913
    %7010 = vmatpush.bf16.msra.mxu0 %v5905
    %7011 = vmatpush.bf16.msra.mxu0 %v5897
    %7012 = vmatmul.bf16.gmra.mxu0 %v3505
    %v7013 = vpop.f32.mrf.mxu0
    %v7014 = vadd.f32 %v7000, %v7013
    %v7015 = vpop.f32.mrf.mxu0
    %v7016 = vadd.f32 %v7002, %v7015
    %7017 = vdwg.mxu0
    %7018 = vmatpush.bf16.msra.mxu0 %v6017
    %7019 = vmatpush.bf16.msra.mxu0 %v6009
    %7020 = vmatpush.bf16.msra.mxu0 %v6001
    %7021 = vmatpush.bf16.msra.mxu0 %v5993
    %7022 = vmatpush.bf16.msra.mxu0 %v5985
    %7023 = vmatpush.bf16.msra.mxu0 %v5977
    %7024 = vmatpush.bf16.msra.mxu0 %v5969
    %7025 = vmatpush.bf16.msra.mxu0 %v5961
    %7026 = vmatmul.bf16.gmra.mxu0 %v3506
    %v7027 = vpop.f32.mrf.mxu0
    %v7028 = vadd.f32 %v7014, %v7027
    %v7029 = vpop.f32.mrf.mxu0
    %v7030 = vadd.f32 %v7016, %v7029
    %7031 = vdwg.mxu0
    %7032 = vmatpush.bf16.msra.mxu0 %v6081
    %7033 = vmatpush.bf16.msra.mxu0 %v6073
    %7034 = vmatpush.bf16.msra.mxu0 %v6065
    %7035 = vmatpush.bf16.msra.mxu0 %v6057
    %7036 = vmatpush.bf16.msra.mxu0 %v6049
    %7037 = vmatpush.bf16.msra.mxu0 %v6041
    %7038 = vmatpush.bf16.msra.mxu0 %v6033
    %7039 = vmatpush.bf16.msra.mxu0 %v6025
    %7040 = vmatmul.bf16.gmra.mxu0 %v3507
    %v7041 = vpop.f32.mrf.mxu0
    %v7042 = vadd.f32 %v7028, %v7041
    %v7043 = vpop.f32.mrf.mxu0
    %v7044 = vadd.f32 %v7030, %v7043
    %7045 = vdwg.mxu0
    %7046 = vmatpush.bf16.msra.mxu0 %v5634
    %7047 = vmatpush.bf16.msra.mxu0 %v5626
    %7048 = vmatpush.bf16.msra.mxu0 %v5618
    %7049 = vmatpush.bf16.msra.mxu0 %v5610
    %7050 = vmatpush.bf16.msra.mxu0 %v5602
    %7051 = vmatpush.bf16.msra.mxu0 %v5594
    %7052 = vmatpush.bf16.msra.mxu0 %v5586
    %7053 = vmatpush.bf16.msra.mxu0 %v5578
    %7054 = vmatmul.bf16.gmra.mxu0 %v3500
    %v7055 = vpop.f32.mrf.mxu0
    %v7056 = vadd.f32 %v4026, %v7055
    %v7057 = vpop.f32.mrf.mxu0
    %v7058 = vadd.f32 %v4026, %v7057
    %7059 = vdwg.mxu0
    %7060 = vmatpush.bf16.msra.mxu0 %v5698
    %7061 = vmatpush.bf16.msra.mxu0 %v5690
    %7062 = vmatpush.bf16.msra.mxu0 %v5682
    %7063 = vmatpush.bf16.msra.mxu0 %v5674
    %7064 = vmatpush.bf16.msra.mxu0 %v5666
    %7065 = vmatpush.bf16.msra.mxu0 %v5658
    %7066 = vmatpush.bf16.msra.mxu0 %v5650
    %7067 = vmatpush.bf16.msra.mxu0 %v5642
    %7068 = vmatmul.bf16.gmra.mxu0 %v3501
    %v7069 = vpop.f32.mrf.mxu0
    %v7070 = vadd.f32 %v7056, %v7069
    %v7071 = vpop.f32.mrf.mxu0
    %v7072 = vadd.f32 %v7058, %v7071
    %7073 = vdwg.mxu0
    %7074 = vmatpush.bf16.msra.mxu0 %v5762
    %7075 = vmatpush.bf16.msra.mxu0 %v5754
    %7076 = vmatpush.bf16.msra.mxu0 %v5746
    %7077 = vmatpush.bf16.msra.mxu0 %v5738
    %7078 = vmatpush.bf16.msra.mxu0 %v5730
    %7079 = vmatpush.bf16.msra.mxu0 %v5722
    %7080 = vmatpush.bf16.msra.mxu0 %v5714
    %7081 = vmatpush.bf16.msra.mxu0 %v5706
    %7082 = vmatmul.bf16.gmra.mxu0 %v3502
    %v7083 = vpop.f32.mrf.mxu0
    %v7084 = vadd.f32 %v7070, %v7083
    %v7085 = vpop.f32.mrf.mxu0
    %v7086 = vadd.f32 %v7072, %v7085
    %7087 = vdwg.mxu0
    %7088 = vmatpush.bf16.msra.mxu0 %v5826
    %7089 = vmatpush.bf16.msra.mxu0 %v5818
    %7090 = vmatpush.bf16.msra.mxu0 %v5810
    %7091 = vmatpush.bf16.msra.mxu0 %v5802
    %7092 = vmatpush.bf16.msra.mxu0 %v5794
    %7093 = vmatpush.bf16.msra.mxu0 %v5786
    %7094 = vmatpush.bf16.msra.mxu0 %v5778
    %7095 = vmatpush.bf16.msra.mxu0 %v5770
    %7096 = vmatmul.bf16.gmra.mxu0 %v3503
    %v7097 = vpop.f32.mrf.mxu0
    %v7098 = vadd.f32 %v7084, %v7097
    %v7099 = vpop.f32.mrf.mxu0
    %v7100 = vadd.f32 %v7086, %v7099
    %7101 = vdwg.mxu0
    %7102 = vmatpush.bf16.msra.mxu0 %v5890
    %7103 = vmatpush.bf16.msra.mxu0 %v5882
    %7104 = vmatpush.bf16.msra.mxu0 %v5874
    %7105 = vmatpush.bf16.msra.mxu0 %v5866
    %7106 = vmatpush.bf16.msra.mxu0 %v5858
    %7107 = vmatpush.bf16.msra.mxu0 %v5850
    %7108 = vmatpush.bf16.msra.mxu0 %v5842
    %7109 = vmatpush.bf16.msra.mxu0 %v5834
    %7110 = vmatmul.bf16.gmra.mxu0 %v3504
    %v7111 = vpop.f32.mrf.mxu0
    %v7112 = vadd.f32 %v7098, %v7111
    %v7113 = vpop.f32.mrf.mxu0
    %v7114 = vadd.f32 %v7100, %v7113
    %7115 = vdwg.mxu0
    %7116 = vmatpush.bf16.msra.mxu0 %v5954
    %7117 = vmatpush.bf16.msra.mxu0 %v5946
    %7118 = vmatpush.bf16.msra.mxu0 %v5938
    %7119 = vmatpush.bf16.msra.mxu0 %v5930
    %7120 = vmatpush.bf16.msra.mxu0 %v5922
    %7121 = vmatpush.bf16.msra.mxu0 %v5914
    %7122 = vmatpush.bf16.msra.mxu0 %v5906
    %7123 = vmatpush.bf16.msra.mxu0 %v5898
    %7124 = vmatmul.bf16.gmra.mxu0 %v3505
    %v7125 = vpop.f32.mrf.mxu0
    %v7126 = vadd.f32 %v7112, %v7125
    %v7127 = vpop.f32.mrf.mxu0
    %v7128 = vadd.f32 %v7114, %v7127
    %7129 = vdwg.mxu0
    %7130 = vmatpush.bf16.msra.mxu0 %v6018
    %7131 = vmatpush.bf16.msra.mxu0 %v6010
    %7132 = vmatpush.bf16.msra.mxu0 %v6002
    %7133 = vmatpush.bf16.msra.mxu0 %v5994
    %7134 = vmatpush.bf16.msra.mxu0 %v5986
    %7135 = vmatpush.bf16.msra.mxu0 %v5978
    %7136 = vmatpush.bf16.msra.mxu0 %v5970
    %7137 = vmatpush.bf16.msra.mxu0 %v5962
    %7138 = vmatmul.bf16.gmra.mxu0 %v3506
    %v7139 = vpop.f32.mrf.mxu0
    %v7140 = vadd.f32 %v7126, %v7139
    %v7141 = vpop.f32.mrf.mxu0
    %v7142 = vadd.f32 %v7128, %v7141
    %7143 = vdwg.mxu0
    %7144 = vmatpush.bf16.msra.mxu0 %v6082
    %7145 = vmatpush.bf16.msra.mxu0 %v6074
    %7146 = vmatpush.bf16.msra.mxu0 %v6066
    %7147 = vmatpush.bf16.msra.mxu0 %v6058
    %7148 = vmatpush.bf16.msra.mxu0 %v6050
    %7149 = vmatpush.bf16.msra.mxu0 %v6042
    %7150 = vmatpush.bf16.msra.mxu0 %v6034
    %7151 = vmatpush.bf16.msra.mxu0 %v6026
    %7152 = vmatmul.bf16.gmra.mxu0 %v3507
    %v7153 = vpop.f32.mrf.mxu0
    %v7154 = vadd.f32 %v7140, %v7153
    %v7155 = vpop.f32.mrf.mxu0
    %v7156 = vadd.f32 %v7142, %v7155
    %7157 = vdwg.mxu0
    %7158 = vmatpush.bf16.msra.mxu0 %v5635
    %7159 = vmatpush.bf16.msra.mxu0 %v5627
    %7160 = vmatpush.bf16.msra.mxu0 %v5619
    %7161 = vmatpush.bf16.msra.mxu0 %v5611
    %7162 = vmatpush.bf16.msra.mxu0 %v5603
    %7163 = vmatpush.bf16.msra.mxu0 %v5595
    %7164 = vmatpush.bf16.msra.mxu0 %v5587
    %7165 = vmatpush.bf16.msra.mxu0 %v5579
    %7166 = vmatmul.bf16.gmra.mxu0 %v3500
    %v7167 = vpop.f32.mrf.mxu0
    %v7168 = vadd.f32 %v4027, %v7167
    %v7169 = vpop.f32.mrf.mxu0
    %v7170 = vadd.f32 %v4027, %v7169
    %7171 = vdwg.mxu0
    %7172 = vmatpush.bf16.msra.mxu0 %v5699
    %7173 = vmatpush.bf16.msra.mxu0 %v5691
    %7174 = vmatpush.bf16.msra.mxu0 %v5683
    %7175 = vmatpush.bf16.msra.mxu0 %v5675
    %7176 = vmatpush.bf16.msra.mxu0 %v5667
    %7177 = vmatpush.bf16.msra.mxu0 %v5659
    %7178 = vmatpush.bf16.msra.mxu0 %v5651
    %7179 = vmatpush.bf16.msra.mxu0 %v5643
    %7180 = vmatmul.bf16.gmra.mxu0 %v3501
    %v7181 = vpop.f32.mrf.mxu0
    %v7182 = vadd.f32 %v7168, %v7181
    %v7183 = vpop.f32.mrf.mxu0
    %v7184 = vadd.f32 %v7170, %v7183
    %7185 = vdwg.mxu0
    %7186 = vmatpush.bf16.msra.mxu0 %v5763
    %7187 = vmatpush.bf16.msra.mxu0 %v5755
    %7188 = vmatpush.bf16.msra.mxu0 %v5747
    %7189 = vmatpush.bf16.msra.mxu0 %v5739
    %7190 = vmatpush.bf16.msra.mxu0 %v5731
    %7191 = vmatpush.bf16.msra.mxu0 %v5723
    %7192 = vmatpush.bf16.msra.mxu0 %v5715
    %7193 = vmatpush.bf16.msra.mxu0 %v5707
    %7194 = vmatmul.bf16.gmra.mxu0 %v3502
    %v7195 = vpop.f32.mrf.mxu0
    %v7196 = vadd.f32 %v7182, %v7195
    %v7197 = vpop.f32.mrf.mxu0
    %v7198 = vadd.f32 %v7184, %v7197
    %7199 = vdwg.mxu0
    %7200 = vmatpush.bf16.msra.mxu0 %v5827
    %7201 = vmatpush.bf16.msra.mxu0 %v5819
    %7202 = vmatpush.bf16.msra.mxu0 %v5811
    %7203 = vmatpush.bf16.msra.mxu0 %v5803
    %7204 = vmatpush.bf16.msra.mxu0 %v5795
    %7205 = vmatpush.bf16.msra.mxu0 %v5787
    %7206 = vmatpush.bf16.msra.mxu0 %v5779
    %7207 = vmatpush.bf16.msra.mxu0 %v5771
    %7208 = vmatmul.bf16.gmra.mxu0 %v3503
    %v7209 = vpop.f32.mrf.mxu0
    %v7210 = vadd.f32 %v7196, %v7209
    %v7211 = vpop.f32.mrf.mxu0
    %v7212 = vadd.f32 %v7198, %v7211
    %7213 = vdwg.mxu0
    %7214 = vmatpush.bf16.msra.mxu0 %v5891
    %7215 = vmatpush.bf16.msra.mxu0 %v5883
    %7216 = vmatpush.bf16.msra.mxu0 %v5875
    %7217 = vmatpush.bf16.msra.mxu0 %v5867
    %7218 = vmatpush.bf16.msra.mxu0 %v5859
    %7219 = vmatpush.bf16.msra.mxu0 %v5851
    %7220 = vmatpush.bf16.msra.mxu0 %v5843
    %7221 = vmatpush.bf16.msra.mxu0 %v5835
    %7222 = vmatmul.bf16.gmra.mxu0 %v3504
    %v7223 = vpop.f32.mrf.mxu0
    %v7224 = vadd.f32 %v7210, %v7223
    %v7225 = vpop.f32.mrf.mxu0
    %v7226 = vadd.f32 %v7212, %v7225
    %7227 = vdwg.mxu0
    %7228 = vmatpush.bf16.msra.mxu0 %v5955
    %7229 = vmatpush.bf16.msra.mxu0 %v5947
    %7230 = vmatpush.bf16.msra.mxu0 %v5939
    %7231 = vmatpush.bf16.msra.mxu0 %v5931
    %7232 = vmatpush.bf16.msra.mxu0 %v5923
    %7233 = vmatpush.bf16.msra.mxu0 %v5915
    %7234 = vmatpush.bf16.msra.mxu0 %v5907
    %7235 = vmatpush.bf16.msra.mxu0 %v5899
    %7236 = vmatmul.bf16.gmra.mxu0 %v3505
    %v7237 = vpop.f32.mrf.mxu0
    %v7238 = vadd.f32 %v7224, %v7237
    %v7239 = vpop.f32.mrf.mxu0
    %v7240 = vadd.f32 %v7226, %v7239
    %7241 = vdwg.mxu0
    %7242 = vmatpush.bf16.msra.mxu0 %v6019
    %7243 = vmatpush.bf16.msra.mxu0 %v6011
    %7244 = vmatpush.bf16.msra.mxu0 %v6003
    %7245 = vmatpush.bf16.msra.mxu0 %v5995
    %7246 = vmatpush.bf16.msra.mxu0 %v5987
    %7247 = vmatpush.bf16.msra.mxu0 %v5979
    %7248 = vmatpush.bf16.msra.mxu0 %v5971
    %7249 = vmatpush.bf16.msra.mxu0 %v5963
    %7250 = vmatmul.bf16.gmra.mxu0 %v3506
    %v7251 = vpop.f32.mrf.mxu0
    %v7252 = vadd.f32 %v7238, %v7251
    %v7253 = vpop.f32.mrf.mxu0
    %v7254 = vadd.f32 %v7240, %v7253
    %7255 = vdwg.mxu0
    %7256 = vmatpush.bf16.msra.mxu0 %v6083
    %7257 = vmatpush.bf16.msra.mxu0 %v6075
    %7258 = vmatpush.bf16.msra.mxu0 %v6067
    %7259 = vmatpush.bf16.msra.mxu0 %v6059
    %7260 = vmatpush.bf16.msra.mxu0 %v6051
    %7261 = vmatpush.bf16.msra.mxu0 %v6043
    %7262 = vmatpush.bf16.msra.mxu0 %v6035
    %7263 = vmatpush.bf16.msra.mxu0 %v6027
    %7264 = vmatmul.bf16.gmra.mxu0 %v3507
    %v7265 = vpop.f32.mrf.mxu0
    %v7266 = vadd.f32 %v7252, %v7265
    %v7267 = vpop.f32.mrf.mxu0
    %v7268 = vadd.f32 %v7254, %v7267
    %7269 = vdwg.mxu0
    %7270 = vmatpush.bf16.msra.mxu0 %v5636
    %7271 = vmatpush.bf16.msra.mxu0 %v5628
    %7272 = vmatpush.bf16.msra.mxu0 %v5620
    %7273 = vmatpush.bf16.msra.mxu0 %v5612
    %7274 = vmatpush.bf16.msra.mxu0 %v5604
    %7275 = vmatpush.bf16.msra.mxu0 %v5596
    %7276 = vmatpush.bf16.msra.mxu0 %v5588
    %7277 = vmatpush.bf16.msra.mxu0 %v5580
    %7278 = vmatmul.bf16.gmra.mxu0 %v3500
    %v7279 = vpop.f32.mrf.mxu0
    %v7280 = vadd.f32 %v4028, %v7279
    %v7281 = vpop.f32.mrf.mxu0
    %v7282 = vadd.f32 %v4028, %v7281
    %7283 = vdwg.mxu0
    %7284 = vmatpush.bf16.msra.mxu0 %v5700
    %7285 = vmatpush.bf16.msra.mxu0 %v5692
    %7286 = vmatpush.bf16.msra.mxu0 %v5684
    %7287 = vmatpush.bf16.msra.mxu0 %v5676
    %7288 = vmatpush.bf16.msra.mxu0 %v5668
    %7289 = vmatpush.bf16.msra.mxu0 %v5660
    %7290 = vmatpush.bf16.msra.mxu0 %v5652
    %7291 = vmatpush.bf16.msra.mxu0 %v5644
    %7292 = vmatmul.bf16.gmra.mxu0 %v3501
    %v7293 = vpop.f32.mrf.mxu0
    %v7294 = vadd.f32 %v7280, %v7293
    %v7295 = vpop.f32.mrf.mxu0
    %v7296 = vadd.f32 %v7282, %v7295
    %7297 = vdwg.mxu0
    %7298 = vmatpush.bf16.msra.mxu0 %v5764
    %7299 = vmatpush.bf16.msra.mxu0 %v5756
    %7300 = vmatpush.bf16.msra.mxu0 %v5748
    %7301 = vmatpush.bf16.msra.mxu0 %v5740
    %7302 = vmatpush.bf16.msra.mxu0 %v5732
    %7303 = vmatpush.bf16.msra.mxu0 %v5724
    %7304 = vmatpush.bf16.msra.mxu0 %v5716
    %7305 = vmatpush.bf16.msra.mxu0 %v5708
    %7306 = vmatmul.bf16.gmra.mxu0 %v3502
    %v7307 = vpop.f32.mrf.mxu0
    %v7308 = vadd.f32 %v7294, %v7307
    %v7309 = vpop.f32.mrf.mxu0
    %v7310 = vadd.f32 %v7296, %v7309
    %7311 = vdwg.mxu0
    %7312 = vmatpush.bf16.msra.mxu0 %v5828
    %7313 = vmatpush.bf16.msra.mxu0 %v5820
    %7314 = vmatpush.bf16.msra.mxu0 %v5812
    %7315 = vmatpush.bf16.msra.mxu0 %v5804
    %7316 = vmatpush.bf16.msra.mxu0 %v5796
    %7317 = vmatpush.bf16.msra.mxu0 %v5788
    %7318 = vmatpush.bf16.msra.mxu0 %v5780
    %7319 = vmatpush.bf16.msra.mxu0 %v5772
    %7320 = vmatmul.bf16.gmra.mxu0 %v3503
    %v7321 = vpop.f32.mrf.mxu0
    %v7322 = vadd.f32 %v7308, %v7321
    %v7323 = vpop.f32.mrf.mxu0
    %v7324 = vadd.f32 %v7310, %v7323
    %7325 = vdwg.mxu0
    %7326 = vmatpush.bf16.msra.mxu0 %v5892
    %7327 = vmatpush.bf16.msra.mxu0 %v5884
    %7328 = vmatpush.bf16.msra.mxu0 %v5876
    %7329 = vmatpush.bf16.msra.mxu0 %v5868
    %7330 = vmatpush.bf16.msra.mxu0 %v5860
    %7331 = vmatpush.bf16.msra.mxu0 %v5852
    %7332 = vmatpush.bf16.msra.mxu0 %v5844
    %7333 = vmatpush.bf16.msra.mxu0 %v5836
    %7334 = vmatmul.bf16.gmra.mxu0 %v3504
    %v7335 = vpop.f32.mrf.mxu0
    %v7336 = vadd.f32 %v7322, %v7335
    %v7337 = vpop.f32.mrf.mxu0
    %v7338 = vadd.f32 %v7324, %v7337
    %7339 = vdwg.mxu0
    %7340 = vmatpush.bf16.msra.mxu0 %v5956
    %7341 = vmatpush.bf16.msra.mxu0 %v5948
    %7342 = vmatpush.bf16.msra.mxu0 %v5940
    %7343 = vmatpush.bf16.msra.mxu0 %v5932
    %7344 = vmatpush.bf16.msra.mxu0 %v5924
    %7345 = vmatpush.bf16.msra.mxu0 %v5916
    %7346 = vmatpush.bf16.msra.mxu0 %v5908
    %7347 = vmatpush.bf16.msra.mxu0 %v5900
    %7348 = vmatmul.bf16.gmra.mxu0 %v3505
    %v7349 = vpop.f32.mrf.mxu0
    %v7350 = vadd.f32 %v7336, %v7349
    %v7351 = vpop.f32.mrf.mxu0
    %v7352 = vadd.f32 %v7338, %v7351
    %7353 = vdwg.mxu0
    %7354 = vmatpush.bf16.msra.mxu0 %v6020
    %7355 = vmatpush.bf16.msra.mxu0 %v6012
    %7356 = vmatpush.bf16.msra.mxu0 %v6004
    %7357 = vmatpush.bf16.msra.mxu0 %v5996
    %7358 = vmatpush.bf16.msra.mxu0 %v5988
    %7359 = vmatpush.bf16.msra.mxu0 %v5980
    %7360 = vmatpush.bf16.msra.mxu0 %v5972
    %7361 = vmatpush.bf16.msra.mxu0 %v5964
    %7362 = vmatmul.bf16.gmra.mxu0 %v3506
    %v7363 = vpop.f32.mrf.mxu0
    %v7364 = vadd.f32 %v7350, %v7363
    %v7365 = vpop.f32.mrf.mxu0
    %v7366 = vadd.f32 %v7352, %v7365
    %7367 = vdwg.mxu0
    %7368 = vmatpush.bf16.msra.mxu0 %v6084
    %7369 = vmatpush.bf16.msra.mxu0 %v6076
    %7370 = vmatpush.bf16.msra.mxu0 %v6068
    %7371 = vmatpush.bf16.msra.mxu0 %v6060
    %7372 = vmatpush.bf16.msra.mxu0 %v6052
    %7373 = vmatpush.bf16.msra.mxu0 %v6044
    %7374 = vmatpush.bf16.msra.mxu0 %v6036
    %7375 = vmatpush.bf16.msra.mxu0 %v6028
    %7376 = vmatmul.bf16.gmra.mxu0 %v3507
    %v7377 = vpop.f32.mrf.mxu0
    %v7378 = vadd.f32 %v7364, %v7377
    %v7379 = vpop.f32.mrf.mxu0
    %v7380 = vadd.f32 %v7366, %v7379
    %7381 = vdwg.mxu0
    %7382 = vmatpush.bf16.msra.mxu0 %v5637
    %7383 = vmatpush.bf16.msra.mxu0 %v5629
    %7384 = vmatpush.bf16.msra.mxu0 %v5621
    %7385 = vmatpush.bf16.msra.mxu0 %v5613
    %7386 = vmatpush.bf16.msra.mxu0 %v5605
    %7387 = vmatpush.bf16.msra.mxu0 %v5597
    %7388 = vmatpush.bf16.msra.mxu0 %v5589
    %7389 = vmatpush.bf16.msra.mxu0 %v5581
    %7390 = vmatmul.bf16.gmra.mxu0 %v3500
    %v7391 = vpop.f32.mrf.mxu0
    %v7392 = vadd.f32 %v4029, %v7391
    %v7393 = vpop.f32.mrf.mxu0
    %v7394 = vadd.f32 %v4029, %v7393
    %7395 = vdwg.mxu0
    %7396 = vmatpush.bf16.msra.mxu0 %v5701
    %7397 = vmatpush.bf16.msra.mxu0 %v5693
    %7398 = vmatpush.bf16.msra.mxu0 %v5685
    %7399 = vmatpush.bf16.msra.mxu0 %v5677
    %7400 = vmatpush.bf16.msra.mxu0 %v5669
    %7401 = vmatpush.bf16.msra.mxu0 %v5661
    %7402 = vmatpush.bf16.msra.mxu0 %v5653
    %7403 = vmatpush.bf16.msra.mxu0 %v5645
    %7404 = vmatmul.bf16.gmra.mxu0 %v3501
    %v7405 = vpop.f32.mrf.mxu0
    %v7406 = vadd.f32 %v7392, %v7405
    %v7407 = vpop.f32.mrf.mxu0
    %v7408 = vadd.f32 %v7394, %v7407
    %7409 = vdwg.mxu0
    %7410 = vmatpush.bf16.msra.mxu0 %v5765
    %7411 = vmatpush.bf16.msra.mxu0 %v5757
    %7412 = vmatpush.bf16.msra.mxu0 %v5749
    %7413 = vmatpush.bf16.msra.mxu0 %v5741
    %7414 = vmatpush.bf16.msra.mxu0 %v5733
    %7415 = vmatpush.bf16.msra.mxu0 %v5725
    %7416 = vmatpush.bf16.msra.mxu0 %v5717
    %7417 = vmatpush.bf16.msra.mxu0 %v5709
    %7418 = vmatmul.bf16.gmra.mxu0 %v3502
    %v7419 = vpop.f32.mrf.mxu0
    %v7420 = vadd.f32 %v7406, %v7419
    %v7421 = vpop.f32.mrf.mxu0
    %v7422 = vadd.f32 %v7408, %v7421
    %7423 = vdwg.mxu0
    %7424 = vmatpush.bf16.msra.mxu0 %v5829
    %7425 = vmatpush.bf16.msra.mxu0 %v5821
    %7426 = vmatpush.bf16.msra.mxu0 %v5813
    %7427 = vmatpush.bf16.msra.mxu0 %v5805
    %7428 = vmatpush.bf16.msra.mxu0 %v5797
    %7429 = vmatpush.bf16.msra.mxu0 %v5789
    %7430 = vmatpush.bf16.msra.mxu0 %v5781
    %7431 = vmatpush.bf16.msra.mxu0 %v5773
    %7432 = vmatmul.bf16.gmra.mxu0 %v3503
    %v7433 = vpop.f32.mrf.mxu0
    %v7434 = vadd.f32 %v7420, %v7433
    %v7435 = vpop.f32.mrf.mxu0
    %v7436 = vadd.f32 %v7422, %v7435
    %7437 = vdwg.mxu0
    %7438 = vmatpush.bf16.msra.mxu0 %v5893
    %7439 = vmatpush.bf16.msra.mxu0 %v5885
    %7440 = vmatpush.bf16.msra.mxu0 %v5877
    %7441 = vmatpush.bf16.msra.mxu0 %v5869
    %7442 = vmatpush.bf16.msra.mxu0 %v5861
    %7443 = vmatpush.bf16.msra.mxu0 %v5853
    %7444 = vmatpush.bf16.msra.mxu0 %v5845
    %7445 = vmatpush.bf16.msra.mxu0 %v5837
    %7446 = vmatmul.bf16.gmra.mxu0 %v3504
    %v7447 = vpop.f32.mrf.mxu0
    %v7448 = vadd.f32 %v7434, %v7447
    %v7449 = vpop.f32.mrf.mxu0
    %v7450 = vadd.f32 %v7436, %v7449
    %7451 = vdwg.mxu0
    %7452 = vmatpush.bf16.msra.mxu0 %v5957
    %7453 = vmatpush.bf16.msra.mxu0 %v5949
    %7454 = vmatpush.bf16.msra.mxu0 %v5941
    %7455 = vmatpush.bf16.msra.mxu0 %v5933
    %7456 = vmatpush.bf16.msra.mxu0 %v5925
    %7457 = vmatpush.bf16.msra.mxu0 %v5917
    %7458 = vmatpush.bf16.msra.mxu0 %v5909
    %7459 = vmatpush.bf16.msra.mxu0 %v5901
    %7460 = vmatmul.bf16.gmra.mxu0 %v3505
    %v7461 = vpop.f32.mrf.mxu0
    %v7462 = vadd.f32 %v7448, %v7461
    %v7463 = vpop.f32.mrf.mxu0
    %v7464 = vadd.f32 %v7450, %v7463
    %7465 = vdwg.mxu0
    %7466 = vmatpush.bf16.msra.mxu0 %v6021
    %7467 = vmatpush.bf16.msra.mxu0 %v6013
    %7468 = vmatpush.bf16.msra.mxu0 %v6005
    %7469 = vmatpush.bf16.msra.mxu0 %v5997
    %7470 = vmatpush.bf16.msra.mxu0 %v5989
    %7471 = vmatpush.bf16.msra.mxu0 %v5981
    %7472 = vmatpush.bf16.msra.mxu0 %v5973
    %7473 = vmatpush.bf16.msra.mxu0 %v5965
    %7474 = vmatmul.bf16.gmra.mxu0 %v3506
    %v7475 = vpop.f32.mrf.mxu0
    %v7476 = vadd.f32 %v7462, %v7475
    %v7477 = vpop.f32.mrf.mxu0
    %v7478 = vadd.f32 %v7464, %v7477
    %7479 = vdwg.mxu0
    %7480 = vmatpush.bf16.msra.mxu0 %v6085
    %7481 = vmatpush.bf16.msra.mxu0 %v6077
    %7482 = vmatpush.bf16.msra.mxu0 %v6069
    %7483 = vmatpush.bf16.msra.mxu0 %v6061
    %7484 = vmatpush.bf16.msra.mxu0 %v6053
    %7485 = vmatpush.bf16.msra.mxu0 %v6045
    %7486 = vmatpush.bf16.msra.mxu0 %v6037
    %7487 = vmatpush.bf16.msra.mxu0 %v6029
    %7488 = vmatmul.bf16.gmra.mxu0 %v3507
    %v7489 = vpop.f32.mrf.mxu0
    %v7490 = vadd.f32 %v7476, %v7489
    %v7491 = vpop.f32.mrf.mxu0
    %v7492 = vadd.f32 %v7478, %v7491
    %7493 = vdwg.mxu0
    %v7494 = vmax.f32 %v6706, 0.0
    %v7495 = vmax.f32 %v6818, 0.0
    %v7496 = vmax.f32 %v6930, 0.0
    %v7497 = vmax.f32 %v7042, 0.0
    %v7498 = vmax.f32 %v7154, 0.0
    %v7499 = vmax.f32 %v7266, 0.0
    %v7500 = vmax.f32 %v7378, 0.0
    %v7501 = vmax.f32 %v7490, 0.0
    %v7502 = vmax.f32 %v6708, 0.0
    %v7503 = vmax.f32 %v6820, 0.0
    %v7504 = vmax.f32 %v6932, 0.0
    %v7505 = vmax.f32 %v7044, 0.0
    %v7506 = vmax.f32 %v7156, 0.0
    %v7507 = vmax.f32 %v7268, 0.0
    %v7508 = vmax.f32 %v7380, 0.0
    %v7509 = vmax.f32 %v7492, 0.0
    %v7510 = vpack.c.bf16 %v7502, %v7494
    %v7511 = vpack.c.bf16 %v7503, %v7495
    %v7512 = vpack.c.bf16 %v7504, %v7496
    %v7513 = vpack.c.bf16 %v7505, %v7497
    %v7514 = vpack.c.bf16 %v7506, %v7498
    %v7515 = vpack.c.bf16 %v7507, %v7499
    %v7516 = vpack.c.bf16 %v7508, %v7500
    %v7517 = vpack.c.bf16 %v7509, %v7501
    %v7518 = vld [vmem:[#allocation13] sm:$0xff]
    %v7519 = vld [vmem:[#allocation13 + $0x8] sm:$0xff]
    %v7520 = vld [vmem:[#allocation13 + $0x10] sm:$0xff]
    %v7521 = vld [vmem:[#allocation13 + $0x18] sm:$0xff]
    %v7522 = vld [vmem:[#allocation13 + $0x20] sm:$0xff]
    %v7523 = vld [vmem:[#allocation13 + $0x28] sm:$0xff]
    %v7524 = vld [vmem:[#allocation13 + $0x30] sm:$0xff]
    %v7525 = vld [vmem:[#allocation13 + $0x38] sm:$0xff]
    %v7526 = vld [vmem:[#allocation13 + $0x40] sm:$0xff]
    %v7527 = vld [vmem:[#allocation13 + $0x48] sm:$0xff]
    %v7528 = vld [vmem:[#allocation13 + $0x50] sm:$0xff]
    %v7529 = vld [vmem:[#allocation13 + $0x58] sm:$0xff]
    %v7530 = vld [vmem:[#allocation13 + $0x60] sm:$0xff]
    %v7531 = vld [vmem:[#allocation13 + $0x68] sm:$0xff]
    %v7532 = vld [vmem:[#allocation13 + $0x70] sm:$0xff]
    %v7533 = vld [vmem:[#allocation13 + $0x78] sm:$0xff]
    %v7534 = vld [vmem:[#allocation13 + $0x80] sm:$0xff]
    %v7535 = vld [vmem:[#allocation13 + $0x88] sm:$0xff]
    %v7536 = vld [vmem:[#allocation13 + $0x90] sm:$0xff]
    %v7537 = vld [vmem:[#allocation13 + $0x98] sm:$0xff]
    %v7538 = vld [vmem:[#allocation13 + $0xa0] sm:$0xff]
    %v7539 = vld [vmem:[#allocation13 + $0xa8] sm:$0xff]
    %v7540 = vld [vmem:[#allocation13 + $0xb0] sm:$0xff]
    %v7541 = vld [vmem:[#allocation13 + $0xb8] sm:$0xff]
    %v7542 = vld [vmem:[#allocation13 + $0xc0] sm:$0xff]
    %v7543 = vld [vmem:[#allocation13 + $0xc8] sm:$0xff]
    %v7544 = vld [vmem:[#allocation13 + $0xd0] sm:$0xff]
    %v7545 = vld [vmem:[#allocation13 + $0xd8] sm:$0xff]
    %v7546 = vld [vmem:[#allocation13 + $0xe0] sm:$0xff]
    %v7547 = vld [vmem:[#allocation13 + $0xe8] sm:$0xff]
    %v7548 = vld [vmem:[#allocation13 + $0xf0] sm:$0xff]
    %v7549 = vld [vmem:[#allocation13 + $0xf8] sm:$0xff]
    %v7550 = vld [vmem:[#allocation13 + $0x100] sm:$0xff]
    %v7551 = vld [vmem:[#allocation13 + $0x108] sm:$0xff]
    %v7552 = vld [vmem:[#allocation13 + $0x110] sm:$0xff]
    %v7553 = vld [vmem:[#allocation13 + $0x118] sm:$0xff]
    %v7554 = vld [vmem:[#allocation13 + $0x120] sm:$0xff]
    %v7555 = vld [vmem:[#allocation13 + $0x128] sm:$0xff]
    %v7556 = vld [vmem:[#allocation13 + $0x130] sm:$0xff]
    %v7557 = vld [vmem:[#allocation13 + $0x138] sm:$0xff]
    %v7558 = vld [vmem:[#allocation13 + $0x140] sm:$0xff]
    %v7559 = vld [vmem:[#allocation13 + $0x148] sm:$0xff]
    %v7560 = vld [vmem:[#allocation13 + $0x150] sm:$0xff]
    %v7561 = vld [vmem:[#allocation13 + $0x158] sm:$0xff]
    %v7562 = vld [vmem:[#allocation13 + $0x160] sm:$0xff]
    %v7563 = vld [vmem:[#allocation13 + $0x168] sm:$0xff]
    %v7564 = vld [vmem:[#allocation13 + $0x170] sm:$0xff]
    %v7565 = vld [vmem:[#allocation13 + $0x178] sm:$0xff]
    %v7566 = vld [vmem:[#allocation13 + $0x180] sm:$0xff]
    %v7567 = vld [vmem:[#allocation13 + $0x188] sm:$0xff]
    %v7568 = vld [vmem:[#allocation13 + $0x190] sm:$0xff]
    %v7569 = vld [vmem:[#allocation13 + $0x198] sm:$0xff]
    %v7570 = vld [vmem:[#allocation13 + $0x1a0] sm:$0xff]
    %v7571 = vld [vmem:[#allocation13 + $0x1a8] sm:$0xff]
    %v7572 = vld [vmem:[#allocation13 + $0x1b0] sm:$0xff]
    %v7573 = vld [vmem:[#allocation13 + $0x1b8] sm:$0xff]
    %v7574 = vld [vmem:[#allocation13 + $0x1c0] sm:$0xff]
    %v7575 = vld [vmem:[#allocation13 + $0x1c8] sm:$0xff]
    %v7576 = vld [vmem:[#allocation13 + $0x1d0] sm:$0xff]
    %v7577 = vld [vmem:[#allocation13 + $0x1d8] sm:$0xff]
    %v7578 = vld [vmem:[#allocation13 + $0x1e0] sm:$0xff]
    %v7579 = vld [vmem:[#allocation13 + $0x1e8] sm:$0xff]
    %v7580 = vld [vmem:[#allocation13 + $0x1f0] sm:$0xff]
    %v7581 = vld [vmem:[#allocation13 + $0x1f8] sm:$0xff]
    %v7582 = vld [vmem:[#allocation13 + $0x200] sm:$0xff]
    %v7583 = vld [vmem:[#allocation13 + $0x208] sm:$0xff]
    %v7584 = vld [vmem:[#allocation13 + $0x210] sm:$0xff]
    %v7585 = vld [vmem:[#allocation13 + $0x218] sm:$0xff]
    %v7586 = vld [vmem:[#allocation13 + $0x220] sm:$0xff]
    %v7587 = vld [vmem:[#allocation13 + $0x228] sm:$0xff]
    %v7588 = vld [vmem:[#allocation13 + $0x230] sm:$0xff]
    %v7589 = vld [vmem:[#allocation13 + $0x238] sm:$0xff]
    %v7590 = vld [vmem:[#allocation13 + $0x240] sm:$0xff]
    %v7591 = vld [vmem:[#allocation13 + $0x248] sm:$0xff]
    %v7592 = vld [vmem:[#allocation13 + $0x250] sm:$0xff]
    %v7593 = vld [vmem:[#allocation13 + $0x258] sm:$0xff]
    %v7594 = vld [vmem:[#allocation13 + $0x260] sm:$0xff]
    %v7595 = vld [vmem:[#allocation13 + $0x268] sm:$0xff]
    %v7596 = vld [vmem:[#allocation13 + $0x270] sm:$0xff]
    %v7597 = vld [vmem:[#allocation13 + $0x278] sm:$0xff]
    %v7598 = vld [vmem:[#allocation13 + $0x280] sm:$0xff]
    %v7599 = vld [vmem:[#allocation13 + $0x288] sm:$0xff]
    %v7600 = vld [vmem:[#allocation13 + $0x290] sm:$0xff]
    %v7601 = vld [vmem:[#allocation13 + $0x298] sm:$0xff]
    %v7602 = vld [vmem:[#allocation13 + $0x2a0] sm:$0xff]
    %v7603 = vld [vmem:[#allocation13 + $0x2a8] sm:$0xff]
    %v7604 = vld [vmem:[#allocation13 + $0x2b0] sm:$0xff]
    %v7605 = vld [vmem:[#allocation13 + $0x2b8] sm:$0xff]
    %v7606 = vld [vmem:[#allocation13 + $0x2c0] sm:$0xff]
    %v7607 = vld [vmem:[#allocation13 + $0x2c8] sm:$0xff]
    %v7608 = vld [vmem:[#allocation13 + $0x2d0] sm:$0xff]
    %v7609 = vld [vmem:[#allocation13 + $0x2d8] sm:$0xff]
    %v7610 = vld [vmem:[#allocation13 + $0x2e0] sm:$0xff]
    %v7611 = vld [vmem:[#allocation13 + $0x2e8] sm:$0xff]
    %v7612 = vld [vmem:[#allocation13 + $0x2f0] sm:$0xff]
    %v7613 = vld [vmem:[#allocation13 + $0x2f8] sm:$0xff]
    %v7614 = vld [vmem:[#allocation13 + $0x300] sm:$0xff]
    %v7615 = vld [vmem:[#allocation13 + $0x308] sm:$0xff]
    %v7616 = vld [vmem:[#allocation13 + $0x310] sm:$0xff]
    %v7617 = vld [vmem:[#allocation13 + $0x318] sm:$0xff]
    %v7618 = vld [vmem:[#allocation13 + $0x320] sm:$0xff]
    %v7619 = vld [vmem:[#allocation13 + $0x328] sm:$0xff]
    %v7620 = vld [vmem:[#allocation13 + $0x330] sm:$0xff]
    %v7621 = vld [vmem:[#allocation13 + $0x338] sm:$0xff]
    %v7622 = vld [vmem:[#allocation13 + $0x340] sm:$0xff]
    %v7623 = vld [vmem:[#allocation13 + $0x348] sm:$0xff]
    %v7624 = vld [vmem:[#allocation13 + $0x350] sm:$0xff]
    %v7625 = vld [vmem:[#allocation13 + $0x358] sm:$0xff]
    %v7626 = vld [vmem:[#allocation13 + $0x360] sm:$0xff]
    %v7627 = vld [vmem:[#allocation13 + $0x368] sm:$0xff]
    %v7628 = vld [vmem:[#allocation13 + $0x370] sm:$0xff]
    %v7629 = vld [vmem:[#allocation13 + $0x378] sm:$0xff]
    %v7630 = vld [vmem:[#allocation13 + $0x380] sm:$0xff]
    %v7631 = vld [vmem:[#allocation13 + $0x388] sm:$0xff]
    %v7632 = vld [vmem:[#allocation13 + $0x390] sm:$0xff]
    %v7633 = vld [vmem:[#allocation13 + $0x398] sm:$0xff]
    %v7634 = vld [vmem:[#allocation13 + $0x3a0] sm:$0xff]
    %v7635 = vld [vmem:[#allocation13 + $0x3a8] sm:$0xff]
    %v7636 = vld [vmem:[#allocation13 + $0x3b0] sm:$0xff]
    %v7637 = vld [vmem:[#allocation13 + $0x3b8] sm:$0xff]
    %v7638 = vld [vmem:[#allocation13 + $0x3c0] sm:$0xff]
    %v7639 = vld [vmem:[#allocation13 + $0x3c8] sm:$0xff]
    %v7640 = vld [vmem:[#allocation13 + $0x3d0] sm:$0xff]
    %v7641 = vld [vmem:[#allocation13 + $0x3d8] sm:$0xff]
    %v7642 = vld [vmem:[#allocation13 + $0x3e0] sm:$0xff]
    %v7643 = vld [vmem:[#allocation13 + $0x3e8] sm:$0xff]
    %v7644 = vld [vmem:[#allocation13 + $0x3f0] sm:$0xff]
    %v7645 = vld [vmem:[#allocation13 + $0x3f8] sm:$0xff]
    %v7646 = vld [vmem:[#allocation14] sm:$0x3]
    %v7648 = vperm.slane %v7646, 0
    %v7649 = vperm.slane %v7646, 1
    %v7780 = vunpack.c.l.b16 %v7518
    %v7781 = vunpack.c.h.b16 %v7518
    %v7782 = vunpack.c.l.b16 %v7519
    %v7783 = vunpack.c.h.b16 %v7519
    %v7784 = vunpack.c.l.b16 %v7520
    %v7785 = vunpack.c.h.b16 %v7520
    %v7786 = vunpack.c.l.b16 %v7521
    %v7787 = vunpack.c.h.b16 %v7521
    %v7788 = vunpack.c.l.b16 %v7522
    %v7789 = vunpack.c.h.b16 %v7522
    %v7790 = vunpack.c.l.b16 %v7523
    %v7791 = vunpack.c.h.b16 %v7523
    %v7792 = vunpack.c.l.b16 %v7524
    %v7793 = vunpack.c.h.b16 %v7524
    %v7794 = vunpack.c.l.b16 %v7525
    %v7795 = vunpack.c.h.b16 %v7525
    %v7796 = vunpack.c.l.b16 %v7526
    %v7797 = vunpack.c.h.b16 %v7526
    %v7798 = vunpack.c.l.b16 %v7527
    %v7799 = vunpack.c.h.b16 %v7527
    %v7800 = vunpack.c.l.b16 %v7528
    %v7801 = vunpack.c.h.b16 %v7528
    %v7802 = vunpack.c.l.b16 %v7529
    %v7803 = vunpack.c.h.b16 %v7529
    %v7804 = vunpack.c.l.b16 %v7530
    %v7805 = vunpack.c.h.b16 %v7530
    %v7806 = vunpack.c.l.b16 %v7531
    %v7807 = vunpack.c.h.b16 %v7531
    %v7808 = vunpack.c.l.b16 %v7532
    %v7809 = vunpack.c.h.b16 %v7532
    %v7810 = vunpack.c.l.b16 %v7533
    %v7811 = vunpack.c.h.b16 %v7533
    %v7812 = vunpack.c.l.b16 %v7534
    %v7813 = vunpack.c.h.b16 %v7534
    %v7814 = vunpack.c.l.b16 %v7535
    %v7815 = vunpack.c.h.b16 %v7535
    %v7816 = vunpack.c.l.b16 %v7536
    %v7817 = vunpack.c.h.b16 %v7536
    %v7818 = vunpack.c.l.b16 %v7537
    %v7819 = vunpack.c.h.b16 %v7537
    %v7820 = vunpack.c.l.b16 %v7538
    %v7821 = vunpack.c.h.b16 %v7538
    %v7822 = vunpack.c.l.b16 %v7539
    %v7823 = vunpack.c.h.b16 %v7539
    %v7824 = vunpack.c.l.b16 %v7540
    %v7825 = vunpack.c.h.b16 %v7540
    %v7826 = vunpack.c.l.b16 %v7541
    %v7827 = vunpack.c.h.b16 %v7541
    %v7828 = vunpack.c.l.b16 %v7542
    %v7829 = vunpack.c.h.b16 %v7542
    %v7830 = vunpack.c.l.b16 %v7543
    %v7831 = vunpack.c.h.b16 %v7543
    %v7832 = vunpack.c.l.b16 %v7544
    %v7833 = vunpack.c.h.b16 %v7544
    %v7834 = vunpack.c.l.b16 %v7545
    %v7835 = vunpack.c.h.b16 %v7545
    %v7836 = vunpack.c.l.b16 %v7546
    %v7837 = vunpack.c.h.b16 %v7546
    %v7838 = vunpack.c.l.b16 %v7547
    %v7839 = vunpack.c.h.b16 %v7547
    %v7840 = vunpack.c.l.b16 %v7548
    %v7841 = vunpack.c.h.b16 %v7548
    %v7842 = vunpack.c.l.b16 %v7549
    %v7843 = vunpack.c.h.b16 %v7549
    %v7844 = vunpack.c.l.b16 %v7550
    %v7845 = vunpack.c.h.b16 %v7550
    %v7846 = vunpack.c.l.b16 %v7551
    %v7847 = vunpack.c.h.b16 %v7551
    %v7848 = vunpack.c.l.b16 %v7552
    %v7849 = vunpack.c.h.b16 %v7552
    %v7850 = vunpack.c.l.b16 %v7553
    %v7851 = vunpack.c.h.b16 %v7553
    %v7852 = vunpack.c.l.b16 %v7554
    %v7853 = vunpack.c.h.b16 %v7554
    %v7854 = vunpack.c.l.b16 %v7555
    %v7855 = vunpack.c.h.b16 %v7555
    %v7856 = vunpack.c.l.b16 %v7556
    %v7857 = vunpack.c.h.b16 %v7556
    %v7858 = vunpack.c.l.b16 %v7557
    %v7859 = vunpack.c.h.b16 %v7557
    %v7860 = vunpack.c.l.b16 %v7558
    %v7861 = vunpack.c.h.b16 %v7558
    %v7862 = vunpack.c.l.b16 %v7559
    %v7863 = vunpack.c.h.b16 %v7559
    %v7864 = vunpack.c.l.b16 %v7560
    %v7865 = vunpack.c.h.b16 %v7560
    %v7866 = vunpack.c.l.b16 %v7561
    %v7867 = vunpack.c.h.b16 %v7561
    %v7868 = vunpack.c.l.b16 %v7562
    %v7869 = vunpack.c.h.b16 %v7562
    %v7870 = vunpack.c.l.b16 %v7563
    %v7871 = vunpack.c.h.b16 %v7563
    %v7872 = vunpack.c.l.b16 %v7564
    %v7873 = vunpack.c.h.b16 %v7564
    %v7874 = vunpack.c.l.b16 %v7565
    %v7875 = vunpack.c.h.b16 %v7565
    %v7876 = vunpack.c.l.b16 %v7566
    %v7877 = vunpack.c.h.b16 %v7566
    %v7878 = vunpack.c.l.b16 %v7567
    %v7879 = vunpack.c.h.b16 %v7567
    %v7880 = vunpack.c.l.b16 %v7568
    %v7881 = vunpack.c.h.b16 %v7568
    %v7882 = vunpack.c.l.b16 %v7569
    %v7883 = vunpack.c.h.b16 %v7569
    %v7884 = vunpack.c.l.b16 %v7570
    %v7885 = vunpack.c.h.b16 %v7570
    %v7886 = vunpack.c.l.b16 %v7571
    %v7887 = vunpack.c.h.b16 %v7571
    %v7888 = vunpack.c.l.b16 %v7572
    %v7889 = vunpack.c.h.b16 %v7572
    %v7890 = vunpack.c.l.b16 %v7573
    %v7891 = vunpack.c.h.b16 %v7573
    %v7892 = vunpack.c.l.b16 %v7574
    %v7893 = vunpack.c.h.b16 %v7574
    %v7894 = vunpack.c.l.b16 %v7575
    %v7895 = vunpack.c.h.b16 %v7575
    %v7896 = vunpack.c.l.b16 %v7576
    %v7897 = vunpack.c.h.b16 %v7576
    %v7898 = vunpack.c.l.b16 %v7577
    %v7899 = vunpack.c.h.b16 %v7577
    %v7900 = vunpack.c.l.b16 %v7578
    %v7901 = vunpack.c.h.b16 %v7578
    %v7902 = vunpack.c.l.b16 %v7579
    %v7903 = vunpack.c.h.b16 %v7579
    %v7904 = vunpack.c.l.b16 %v7580
    %v7905 = vunpack.c.h.b16 %v7580
    %v7906 = vunpack.c.l.b16 %v7581
    %v7907 = vunpack.c.h.b16 %v7581
    %v7908 = vunpack.c.l.b16 %v7582
    %v7909 = vunpack.c.h.b16 %v7582
    %v7910 = vunpack.c.l.b16 %v7583
    %v7911 = vunpack.c.h.b16 %v7583
    %v7912 = vunpack.c.l.b16 %v7584
    %v7913 = vunpack.c.h.b16 %v7584
    %v7914 = vunpack.c.l.b16 %v7585
    %v7915 = vunpack.c.h.b16 %v7585
    %v7916 = vunpack.c.l.b16 %v7586
    %v7917 = vunpack.c.h.b16 %v7586
    %v7918 = vunpack.c.l.b16 %v7587
    %v7919 = vunpack.c.h.b16 %v7587
    %v7920 = vunpack.c.l.b16 %v7588
    %v7921 = vunpack.c.h.b16 %v7588
    %v7922 = vunpack.c.l.b16 %v7589
    %v7923 = vunpack.c.h.b16 %v7589
    %v7924 = vunpack.c.l.b16 %v7590
    %v7925 = vunpack.c.h.b16 %v7590
    %v7926 = vunpack.c.l.b16 %v7591
    %v7927 = vunpack.c.h.b16 %v7591
    %v7928 = vunpack.c.l.b16 %v7592
    %v7929 = vunpack.c.h.b16 %v7592
    %v7930 = vunpack.c.l.b16 %v7593
    %v7931 = vunpack.c.h.b16 %v7593
    %v7932 = vunpack.c.l.b16 %v7594
    %v7933 = vunpack.c.h.b16 %v7594
    %v7934 = vunpack.c.l.b16 %v7595
    %v7935 = vunpack.c.h.b16 %v7595
    %v7936 = vunpack.c.l.b16 %v7596
    %v7937 = vunpack.c.h.b16 %v7596
    %v7938 = vunpack.c.l.b16 %v7597
    %v7939 = vunpack.c.h.b16 %v7597
    %v7940 = vunpack.c.l.b16 %v7598
    %v7941 = vunpack.c.h.b16 %v7598
    %v7942 = vunpack.c.l.b16 %v7599
    %v7943 = vunpack.c.h.b16 %v7599
    %v7944 = vunpack.c.l.b16 %v7600
    %v7945 = vunpack.c.h.b16 %v7600
    %v7946 = vunpack.c.l.b16 %v7601
    %v7947 = vunpack.c.h.b16 %v7601
    %v7948 = vunpack.c.l.b16 %v7602
    %v7949 = vunpack.c.h.b16 %v7602
    %v7950 = vunpack.c.l.b16 %v7603
    %v7951 = vunpack.c.h.b16 %v7603
    %v7952 = vunpack.c.l.b16 %v7604
    %v7953 = vunpack.c.h.b16 %v7604
    %v7954 = vunpack.c.l.b16 %v7605
    %v7955 = vunpack.c.h.b16 %v7605
    %v7956 = vunpack.c.l.b16 %v7606
    %v7957 = vunpack.c.h.b16 %v7606
    %v7958 = vunpack.c.l.b16 %v7607
    %v7959 = vunpack.c.h.b16 %v7607
    %v7960 = vunpack.c.l.b16 %v7608
    %v7961 = vunpack.c.h.b16 %v7608
    %v7962 = vunpack.c.l.b16 %v7609
    %v7963 = vunpack.c.h.b16 %v7609
    %v7964 = vunpack.c.l.b16 %v7610
    %v7965 = vunpack.c.h.b16 %v7610
    %v7966 = vunpack.c.l.b16 %v7611
    %v7967 = vunpack.c.h.b16 %v7611
    %v7968 = vunpack.c.l.b16 %v7612
    %v7969 = vunpack.c.h.b16 %v7612
    %v7970 = vunpack.c.l.b16 %v7613
    %v7971 = vunpack.c.h.b16 %v7613
    %v7972 = vunpack.c.l.b16 %v7614
    %v7973 = vunpack.c.h.b16 %v7614
    %v7974 = vunpack.c.l.b16 %v7615
    %v7975 = vunpack.c.h.b16 %v7615
    %v7976 = vunpack.c.l.b16 %v7616
    %v7977 = vunpack.c.h.b16 %v7616
    %v7978 = vunpack.c.l.b16 %v7617
    %v7979 = vunpack.c.h.b16 %v7617
    %v7980 = vunpack.c.l.b16 %v7618
    %v7981 = vunpack.c.h.b16 %v7618
    %v7982 = vunpack.c.l.b16 %v7619
    %v7983 = vunpack.c.h.b16 %v7619
    %v7984 = vunpack.c.l.b16 %v7620
    %v7985 = vunpack.c.h.b16 %v7620
    %v7986 = vunpack.c.l.b16 %v7621
    %v7987 = vunpack.c.h.b16 %v7621
    %v7988 = vunpack.c.l.b16 %v7622
    %v7989 = vunpack.c.h.b16 %v7622
    %v7990 = vunpack.c.l.b16 %v7623
    %v7991 = vunpack.c.h.b16 %v7623
    %v7992 = vunpack.c.l.b16 %v7624
    %v7993 = vunpack.c.h.b16 %v7624
    %v7994 = vunpack.c.l.b16 %v7625
    %v7995 = vunpack.c.h.b16 %v7625
    %v7996 = vunpack.c.l.b16 %v7626
    %v7997 = vunpack.c.h.b16 %v7626
    %v7998 = vunpack.c.l.b16 %v7627
    %v7999 = vunpack.c.h.b16 %v7627
    %v8000 = vunpack.c.l.b16 %v7628
    %v8001 = vunpack.c.h.b16 %v7628
    %v8002 = vunpack.c.l.b16 %v7629
    %v8003 = vunpack.c.h.b16 %v7629
    %v8004 = vunpack.c.l.b16 %v7630
    %v8005 = vunpack.c.h.b16 %v7630
    %v8006 = vunpack.c.l.b16 %v7631
    %v8007 = vunpack.c.h.b16 %v7631
    %v8008 = vunpack.c.l.b16 %v7632
    %v8009 = vunpack.c.h.b16 %v7632
    %v8010 = vunpack.c.l.b16 %v7633
    %v8011 = vunpack.c.h.b16 %v7633
    %v8012 = vunpack.c.l.b16 %v7634
    %v8013 = vunpack.c.h.b16 %v7634
    %v8014 = vunpack.c.l.b16 %v7635
    %v8015 = vunpack.c.h.b16 %v7635
    %v8016 = vunpack.c.l.b16 %v7636
    %v8017 = vunpack.c.h.b16 %v7636
    %v8018 = vunpack.c.l.b16 %v7637
    %v8019 = vunpack.c.h.b16 %v7637
    %v8020 = vunpack.c.l.b16 %v7638
    %v8021 = vunpack.c.h.b16 %v7638
    %v8022 = vunpack.c.l.b16 %v7639
    %v8023 = vunpack.c.h.b16 %v7639
    %v8024 = vunpack.c.l.b16 %v7640
    %v8025 = vunpack.c.h.b16 %v7640
    %v8026 = vunpack.c.l.b16 %v7641
    %v8027 = vunpack.c.h.b16 %v7641
    %v8028 = vunpack.c.l.b16 %v7642
    %v8029 = vunpack.c.h.b16 %v7642
    %v8030 = vunpack.c.l.b16 %v7643
    %v8031 = vunpack.c.h.b16 %v7643
    %v8032 = vunpack.c.l.b16 %v7644
    %v8033 = vunpack.c.h.b16 %v7644
    %v8034 = vunpack.c.l.b16 %v7645
    %v8035 = vunpack.c.h.b16 %v7645
    %v8036 = vpack.c.b16 %v7782, %v7780
    %v8037 = vpack.c.b16 %v7783, %v7781
    %v8038 = vpack.c.b16 %v7786, %v7784
    %v8039 = vpack.c.b16 %v7787, %v7785
    %v8040 = vpack.c.b16 %v7790, %v7788
    %v8041 = vpack.c.b16 %v7791, %v7789
    %v8042 = vpack.c.b16 %v7794, %v7792
    %v8043 = vpack.c.b16 %v7795, %v7793
    %v8044 = vpack.c.b16 %v7798, %v7796
    %v8045 = vpack.c.b16 %v7799, %v7797
    %v8046 = vpack.c.b16 %v7802, %v7800
    %v8047 = vpack.c.b16 %v7803, %v7801
    %v8048 = vpack.c.b16 %v7806, %v7804
    %v8049 = vpack.c.b16 %v7807, %v7805
    %v8050 = vpack.c.b16 %v7810, %v7808
    %v8051 = vpack.c.b16 %v7811, %v7809
    %v8052 = vpack.c.b16 %v7814, %v7812
    %v8053 = vpack.c.b16 %v7815, %v7813
    %v8054 = vpack.c.b16 %v7818, %v7816
    %v8055 = vpack.c.b16 %v7819, %v7817
    %v8056 = vpack.c.b16 %v7822, %v7820
    %v8057 = vpack.c.b16 %v7823, %v7821
    %v8058 = vpack.c.b16 %v7826, %v7824
    %v8059 = vpack.c.b16 %v7827, %v7825
    %v8060 = vpack.c.b16 %v7830, %v7828
    %v8061 = vpack.c.b16 %v7831, %v7829
    %v8062 = vpack.c.b16 %v7834, %v7832
    %v8063 = vpack.c.b16 %v7835, %v7833
    %v8064 = vpack.c.b16 %v7838, %v7836
    %v8065 = vpack.c.b16 %v7839, %v7837
    %v8066 = vpack.c.b16 %v7842, %v7840
    %v8067 = vpack.c.b16 %v7843, %v7841
    %v8068 = vpack.c.b16 %v7846, %v7844
    %v8069 = vpack.c.b16 %v7847, %v7845
    %v8070 = vpack.c.b16 %v7850, %v7848
    %v8071 = vpack.c.b16 %v7851, %v7849
    %v8072 = vpack.c.b16 %v7854, %v7852
    %v8073 = vpack.c.b16 %v7855, %v7853
    %v8074 = vpack.c.b16 %v7858, %v7856
    %v8075 = vpack.c.b16 %v7859, %v7857
    %v8076 = vpack.c.b16 %v7862, %v7860
    %v8077 = vpack.c.b16 %v7863, %v7861
    %v8078 = vpack.c.b16 %v7866, %v7864
    %v8079 = vpack.c.b16 %v7867, %v7865
    %v8080 = vpack.c.b16 %v7870, %v7868
    %v8081 = vpack.c.b16 %v7871, %v7869
    %v8082 = vpack.c.b16 %v7874, %v7872
    %v8083 = vpack.c.b16 %v7875, %v7873
    %v8084 = vpack.c.b16 %v7878, %v7876
    %v8085 = vpack.c.b16 %v7879, %v7877
    %v8086 = vpack.c.b16 %v7882, %v7880
    %v8087 = vpack.c.b16 %v7883, %v7881
    %v8088 = vpack.c.b16 %v7886, %v7884
    %v8089 = vpack.c.b16 %v7887, %v7885
    %v8090 = vpack.c.b16 %v7890, %v7888
    %v8091 = vpack.c.b16 %v7891, %v7889
    %v8092 = vpack.c.b16 %v7894, %v7892
    %v8093 = vpack.c.b16 %v7895, %v7893
    %v8094 = vpack.c.b16 %v7898, %v7896
    %v8095 = vpack.c.b16 %v7899, %v7897
    %v8096 = vpack.c.b16 %v7902, %v7900
    %v8097 = vpack.c.b16 %v7903, %v7901
    %v8098 = vpack.c.b16 %v7906, %v7904
    %v8099 = vpack.c.b16 %v7907, %v7905
    %v8100 = vpack.c.b16 %v7910, %v7908
    %v8101 = vpack.c.b16 %v7911, %v7909
    %v8102 = vpack.c.b16 %v7914, %v7912
    %v8103 = vpack.c.b16 %v7915, %v7913
    %v8104 = vpack.c.b16 %v7918, %v7916
    %v8105 = vpack.c.b16 %v7919, %v7917
    %v8106 = vpack.c.b16 %v7922, %v7920
    %v8107 = vpack.c.b16 %v7923, %v7921
    %v8108 = vpack.c.b16 %v7926, %v7924
    %v8109 = vpack.c.b16 %v7927, %v7925
    %v8110 = vpack.c.b16 %v7930, %v7928
    %v8111 = vpack.c.b16 %v7931, %v7929
    %v8112 = vpack.c.b16 %v7934, %v7932
    %v8113 = vpack.c.b16 %v7935, %v7933
    %v8114 = vpack.c.b16 %v7938, %v7936
    %v8115 = vpack.c.b16 %v7939, %v7937
    %v8116 = vpack.c.b16 %v7942, %v7940
    %v8117 = vpack.c.b16 %v7943, %v7941
    %v8118 = vpack.c.b16 %v7946, %v7944
    %v8119 = vpack.c.b16 %v7947, %v7945
    %v8120 = vpack.c.b16 %v7950, %v7948
    %v8121 = vpack.c.b16 %v7951, %v7949
    %v8122 = vpack.c.b16 %v7954, %v7952
    %v8123 = vpack.c.b16 %v7955, %v7953
    %v8124 = vpack.c.b16 %v7958, %v7956
    %v8125 = vpack.c.b16 %v7959, %v7957
    %v8126 = vpack.c.b16 %v7962, %v7960
    %v8127 = vpack.c.b16 %v7963, %v7961
    %v8128 = vpack.c.b16 %v7966, %v7964
    %v8129 = vpack.c.b16 %v7967, %v7965
    %v8130 = vpack.c.b16 %v7970, %v7968
    %v8131 = vpack.c.b16 %v7971, %v7969
    %v8132 = vpack.c.b16 %v7974, %v7972
    %v8133 = vpack.c.b16 %v7975, %v7973
    %v8134 = vpack.c.b16 %v7978, %v7976
    %v8135 = vpack.c.b16 %v7979, %v7977
    %v8136 = vpack.c.b16 %v7982, %v7980
    %v8137 = vpack.c.b16 %v7983, %v7981
    %v8138 = vpack.c.b16 %v7986, %v7984
    %v8139 = vpack.c.b16 %v7987, %v7985
    %v8140 = vpack.c.b16 %v7990, %v7988
    %v8141 = vpack.c.b16 %v7991, %v7989
    %v8142 = vpack.c.b16 %v7994, %v7992
    %v8143 = vpack.c.b16 %v7995, %v7993
    %v8144 = vpack.c.b16 %v7998, %v7996
    %v8145 = vpack.c.b16 %v7999, %v7997
    %v8146 = vpack.c.b16 %v8002, %v8000
    %v8147 = vpack.c.b16 %v8003, %v8001
    %v8148 = vpack.c.b16 %v8006, %v8004
    %v8149 = vpack.c.b16 %v8007, %v8005
    %v8150 = vpack.c.b16 %v8010, %v8008
    %v8151 = vpack.c.b16 %v8011, %v8009
    %v8152 = vpack.c.b16 %v8014, %v8012
    %v8153 = vpack.c.b16 %v8015, %v8013
    %v8154 = vpack.c.b16 %v8018, %v8016
    %v8155 = vpack.c.b16 %v8019, %v8017
    %v8156 = vpack.c.b16 %v8022, %v8020
    %v8157 = vpack.c.b16 %v8023, %v8021
    %v8158 = vpack.c.b16 %v8026, %v8024
    %v8159 = vpack.c.b16 %v8027, %v8025
    %v8160 = vpack.c.b16 %v8030, %v8028
    %v8161 = vpack.c.b16 %v8031, %v8029
    %v8162 = vpack.c.b16 %v8034, %v8032
    %v8163 = vpack.c.b16 %v8035, %v8033
    %8292 = vmatpush.bf16.msra.mxu0 %v8050
    %8293 = vmatpush.bf16.msra.mxu0 %v8048
    %8294 = vmatpush.bf16.msra.mxu0 %v8046
    %8295 = vmatpush.bf16.msra.mxu0 %v8044
    %8296 = vmatpush.bf16.msra.mxu0 %v8042
    %8297 = vmatpush.bf16.msra.mxu0 %v8040
    %8298 = vmatpush.bf16.msra.mxu0 %v8038
    %8299 = vmatpush.bf16.msra.mxu0 %v8036
    %8300 = vmatmul.bf16.gmra.mxu0 %v7510
    %v8301 = vpop.f32.mrf.mxu0
    %v8302 = vadd.f32 %v7648, %v8301
    %v8303 = vpop.f32.mrf.mxu0
    %v8304 = vadd.f32 %v7648, %v8303
    %8305 = vdwg.mxu0
    %8306 = vmatpush.bf16.msra.mxu0 %v8066
    %8307 = vmatpush.bf16.msra.mxu0 %v8064
    %8308 = vmatpush.bf16.msra.mxu0 %v8062
    %8309 = vmatpush.bf16.msra.mxu0 %v8060
    %8310 = vmatpush.bf16.msra.mxu0 %v8058
    %8311 = vmatpush.bf16.msra.mxu0 %v8056
    %8312 = vmatpush.bf16.msra.mxu0 %v8054
    %8313 = vmatpush.bf16.msra.mxu0 %v8052
    %8314 = vmatmul.bf16.gmra.mxu0 %v7511
    %v8315 = vpop.f32.mrf.mxu0
    %v8316 = vadd.f32 %v8302, %v8315
    %v8317 = vpop.f32.mrf.mxu0
    %v8318 = vadd.f32 %v8304, %v8317
    %8319 = vdwg.mxu0
    %8320 = vmatpush.bf16.msra.mxu0 %v8082
    %8321 = vmatpush.bf16.msra.mxu0 %v8080
    %8322 = vmatpush.bf16.msra.mxu0 %v8078
    %8323 = vmatpush.bf16.msra.mxu0 %v8076
    %8324 = vmatpush.bf16.msra.mxu0 %v8074
    %8325 = vmatpush.bf16.msra.mxu0 %v8072
    %8326 = vmatpush.bf16.msra.mxu0 %v8070
    %8327 = vmatpush.bf16.msra.mxu0 %v8068
    %8328 = vmatmul.bf16.gmra.mxu0 %v7512
    %v8329 = vpop.f32.mrf.mxu0
    %v8330 = vadd.f32 %v8316, %v8329
    %v8331 = vpop.f32.mrf.mxu0
    %v8332 = vadd.f32 %v8318, %v8331
    %8333 = vdwg.mxu0
    %8334 = vmatpush.bf16.msra.mxu0 %v8098
    %8335 = vmatpush.bf16.msra.mxu0 %v8096
    %8336 = vmatpush.bf16.msra.mxu0 %v8094
    %8337 = vmatpush.bf16.msra.mxu0 %v8092
    %8338 = vmatpush.bf16.msra.mxu0 %v8090
    %8339 = vmatpush.bf16.msra.mxu0 %v8088
    %8340 = vmatpush.bf16.msra.mxu0 %v8086
    %8341 = vmatpush.bf16.msra.mxu0 %v8084
    %8342 = vmatmul.bf16.gmra.mxu0 %v7513
    %v8343 = vpop.f32.mrf.mxu0
    %v8344 = vadd.f32 %v8330, %v8343
    %v8345 = vpop.f32.mrf.mxu0
    %v8346 = vadd.f32 %v8332, %v8345
    %8347 = vdwg.mxu0
    %8348 = vmatpush.bf16.msra.mxu0 %v8114
    %8349 = vmatpush.bf16.msra.mxu0 %v8112
    %8350 = vmatpush.bf16.msra.mxu0 %v8110
    %8351 = vmatpush.bf16.msra.mxu0 %v8108
    %8352 = vmatpush.bf16.msra.mxu0 %v8106
    %8353 = vmatpush.bf16.msra.mxu0 %v8104
    %8354 = vmatpush.bf16.msra.mxu0 %v8102
    %8355 = vmatpush.bf16.msra.mxu0 %v8100
    %8356 = vmatmul.bf16.gmra.mxu0 %v7514
    %v8357 = vpop.f32.mrf.mxu0
    %v8358 = vadd.f32 %v8344, %v8357
    %v8359 = vpop.f32.mrf.mxu0
    %v8360 = vadd.f32 %v8346, %v8359
    %8361 = vdwg.mxu0
    %8362 = vmatpush.bf16.msra.mxu0 %v8130
    %8363 = vmatpush.bf16.msra.mxu0 %v8128
    %8364 = vmatpush.bf16.msra.mxu0 %v8126
    %8365 = vmatpush.bf16.msra.mxu0 %v8124
    %8366 = vmatpush.bf16.msra.mxu0 %v8122
    %8367 = vmatpush.bf16.msra.mxu0 %v8120
    %8368 = vmatpush.bf16.msra.mxu0 %v8118
    %8369 = vmatpush.bf16.msra.mxu0 %v8116
    %8370 = vmatmul.bf16.gmra.mxu0 %v7515
    %v8371 = vpop.f32.mrf.mxu0
    %v8372 = vadd.f32 %v8358, %v8371
    %v8373 = vpop.f32.mrf.mxu0
    %v8374 = vadd.f32 %v8360, %v8373
    %8375 = vdwg.mxu0
    %8376 = vmatpush.bf16.msra.mxu0 %v8146
    %8377 = vmatpush.bf16.msra.mxu0 %v8144
    %8378 = vmatpush.bf16.msra.mxu0 %v8142
    %8379 = vmatpush.bf16.msra.mxu0 %v8140
    %8380 = vmatpush.bf16.msra.mxu0 %v8138
    %8381 = vmatpush.bf16.msra.mxu0 %v8136
    %8382 = vmatpush.bf16.msra.mxu0 %v8134
    %8383 = vmatpush.bf16.msra.mxu0 %v8132
    %8384 = vmatmul.bf16.gmra.mxu0 %v7516
    %v8385 = vpop.f32.mrf.mxu0
    %v8386 = vadd.f32 %v8372, %v8385
    %v8387 = vpop.f32.mrf.mxu0
    %v8388 = vadd.f32 %v8374, %v8387
    %8389 = vdwg.mxu0
    %8390 = vmatpush.bf16.msra.mxu0 %v8162
    %8391 = vmatpush.bf16.msra.mxu0 %v8160
    %8392 = vmatpush.bf16.msra.mxu0 %v8158
    %8393 = vmatpush.bf16.msra.mxu0 %v8156
    %8394 = vmatpush.bf16.msra.mxu0 %v8154
    %8395 = vmatpush.bf16.msra.mxu0 %v8152
    %8396 = vmatpush.bf16.msra.mxu0 %v8150
    %8397 = vmatpush.bf16.msra.mxu0 %v8148
    %8398 = vmatmul.bf16.gmra.mxu0 %v7517
    %v8399 = vpop.f32.mrf.mxu0
    %v8400 = vadd.f32 %v8386, %v8399
    %v8401 = vpop.f32.mrf.mxu0
    %v8402 = vadd.f32 %v8388, %v8401
    %8403 = vdwg.mxu0
    %8404 = vmatpush.bf16.msra.mxu0 %v8051
    %8405 = vmatpush.bf16.msra.mxu0 %v8049
    %8406 = vmatpush.bf16.msra.mxu0 %v8047
    %8407 = vmatpush.bf16.msra.mxu0 %v8045
    %8408 = vmatpush.bf16.msra.mxu0 %v8043
    %8409 = vmatpush.bf16.msra.mxu0 %v8041
    %8410 = vmatpush.bf16.msra.mxu0 %v8039
    %8411 = vmatpush.bf16.msra.mxu0 %v8037
    %8412 = vmatmul.bf16.gmra.mxu0 %v7510
    %v8413 = vpop.f32.mrf.mxu0
    %v8414 = vadd.f32 %v7649, %v8413
    %v8415 = vpop.f32.mrf.mxu0
    %v8416 = vadd.f32 %v7649, %v8415
    %8417 = vdwg.mxu0
    %8418 = vmatpush.bf16.msra.mxu0 %v8067
    %8419 = vmatpush.bf16.msra.mxu0 %v8065
    %8420 = vmatpush.bf16.msra.mxu0 %v8063
    %8421 = vmatpush.bf16.msra.mxu0 %v8061
    %8422 = vmatpush.bf16.msra.mxu0 %v8059
    %8423 = vmatpush.bf16.msra.mxu0 %v8057
    %8424 = vmatpush.bf16.msra.mxu0 %v8055
    %8425 = vmatpush.bf16.msra.mxu0 %v8053
    %8426 = vmatmul.bf16.gmra.mxu0 %v7511
    %v8427 = vpop.f32.mrf.mxu0
    %v8428 = vadd.f32 %v8414, %v8427
    %v8429 = vpop.f32.mrf.mxu0
    %v8430 = vadd.f32 %v8416, %v8429
    %8431 = vdwg.mxu0
    %8432 = vmatpush.bf16.msra.mxu0 %v8083
    %8433 = vmatpush.bf16.msra.mxu0 %v8081
    %8434 = vmatpush.bf16.msra.mxu0 %v8079
    %8435 = vmatpush.bf16.msra.mxu0 %v8077
    %8436 = vmatpush.bf16.msra.mxu0 %v8075
    %8437 = vmatpush.bf16.msra.mxu0 %v8073
    %8438 = vmatpush.bf16.msra.mxu0 %v8071
    %8439 = vmatpush.bf16.msra.mxu0 %v8069
    %8440 = vmatmul.bf16.gmra.mxu0 %v7512
    %v8441 = vpop.f32.mrf.mxu0
    %v8442 = vadd.f32 %v8428, %v8441
    %v8443 = vpop.f32.mrf.mxu0
    %v8444 = vadd.f32 %v8430, %v8443
    %8445 = vdwg.mxu0
    %8446 = vmatpush.bf16.msra.mxu0 %v8099
    %8447 = vmatpush.bf16.msra.mxu0 %v8097
    %8448 = vmatpush.bf16.msra.mxu0 %v8095
    %8449 = vmatpush.bf16.msra.mxu0 %v8093
    %8450 = vmatpush.bf16.msra.mxu0 %v8091
    %8451 = vmatpush.bf16.msra.mxu0 %v8089
    %8452 = vmatpush.bf16.msra.mxu0 %v8087
    %8453 = vmatpush.bf16.msra.mxu0 %v8085
    %8454 = vmatmul.bf16.gmra.mxu0 %v7513
    %v8455 = vpop.f32.mrf.mxu0
    %v8456 = vadd.f32 %v8442, %v8455
    %v8457 = vpop.f32.mrf.mxu0
    %v8458 = vadd.f32 %v8444, %v8457
    %8459 = vdwg.mxu0
    %8460 = vmatpush.bf16.msra.mxu0 %v8115
    %8461 = vmatpush.bf16.msra.mxu0 %v8113
    %8462 = vmatpush.bf16.msra.mxu0 %v8111
    %8463 = vmatpush.bf16.msra.mxu0 %v8109
    %8464 = vmatpush.bf16.msra.mxu0 %v8107
    %8465 = vmatpush.bf16.msra.mxu0 %v8105
    %8466 = vmatpush.bf16.msra.mxu0 %v8103
    %8467 = vmatpush.bf16.msra.mxu0 %v8101
    %8468 = vmatmul.bf16.gmra.mxu0 %v7514
    %v8469 = vpop.f32.mrf.mxu0
    %v8470 = vadd.f32 %v8456, %v8469
    %v8471 = vpop.f32.mrf.mxu0
    %v8472 = vadd.f32 %v8458, %v8471
    %8473 = vdwg.mxu0
    %8474 = vmatpush.bf16.msra.mxu0 %v8131
    %8475 = vmatpush.bf16.msra.mxu0 %v8129
    %8476 = vmatpush.bf16.msra.mxu0 %v8127
    %8477 = vmatpush.bf16.msra.mxu0 %v8125
    %8478 = vmatpush.bf16.msra.mxu0 %v8123
    %8479 = vmatpush.bf16.msra.mxu0 %v8121
    %8480 = vmatpush.bf16.msra.mxu0 %v8119
    %8481 = vmatpush.bf16.msra.mxu0 %v8117
    %8482 = vmatmul.bf16.gmra.mxu0 %v7515
    %v8483 = vpop.f32.mrf.mxu0
    %v8484 = vadd.f32 %v8470, %v8483
    %v8485 = vpop.f32.mrf.mxu0
    %v8486 = vadd.f32 %v8472, %v8485
    %8487 = vdwg.mxu0
    %8488 = vmatpush.bf16.msra.mxu0 %v8147
    %8489 = vmatpush.bf16.msra.mxu0 %v8145
    %8490 = vmatpush.bf16.msra.mxu0 %v8143
    %8491 = vmatpush.bf16.msra.mxu0 %v8141
    %8492 = vmatpush.bf16.msra.mxu0 %v8139
    %8493 = vmatpush.bf16.msra.mxu0 %v8137
    %8494 = vmatpush.bf16.msra.mxu0 %v8135
    %8495 = vmatpush.bf16.msra.mxu0 %v8133
    %8496 = vmatmul.bf16.gmra.mxu0 %v7516
    %v8497 = vpop.f32.mrf.mxu0
    %v8498 = vadd.f32 %v8484, %v8497
    %v8499 = vpop.f32.mrf.mxu0
    %v8500 = vadd.f32 %v8486, %v8499
    %8501 = vdwg.mxu0
    %8502 = vmatpush.bf16.msra.mxu0 %v8163
    %8503 = vmatpush.bf16.msra.mxu0 %v8161
    %8504 = vmatpush.bf16.msra.mxu0 %v8159
    %8505 = vmatpush.bf16.msra.mxu0 %v8157
    %8506 = vmatpush.bf16.msra.mxu0 %v8155
    %8507 = vmatpush.bf16.msra.mxu0 %v8153
    %8508 = vmatpush.bf16.msra.mxu0 %v8151
    %8509 = vmatpush.bf16.msra.mxu0 %v8149
    %8510 = vmatmul.bf16.gmra.mxu0 %v7517
    %v8511 = vpop.f32.mrf.mxu0
    %v8512 = vadd.f32 %v8498, %v8511
    %v8513 = vpop.f32.mrf.mxu0
    %v8514 = vadd.f32 %v8500, %v8513
    %8515 = vdwg.mxu0
    %v8516 = vmax.f32 %v8400, 0.0
    %v8517 = vmax.f32 %v8512, 0.0
    %v8518 = vmax.f32 %v8402, 0.0
    %v8519 = vmax.f32 %v8514, 0.0
    %v8520 = vpack.c.bf16 %v8518, %v8516
    %v8521 = vpack.c.bf16 %v8519, %v8517
    %v8522 = vld [vmem:[#allocation16] sm:$0xf]
    %v8523 = vld [vmem:[#allocation16 + $0x4] sm:$0xf]
    %v8524 = vld [vmem:[#allocation16 + $0x8] sm:$0xf]
    %v8525 = vld [vmem:[#allocation16 + $0xc] sm:$0xf]
    %v8526 = vld [vmem:[#allocation16 + $0x10] sm:$0xf]
    %v8527 = vld [vmem:[#allocation16 + $0x14] sm:$0xf]
    %v8528 = vld [vmem:[#allocation16 + $0x18] sm:$0xf]
    %v8529 = vld [vmem:[#allocation16 + $0x1c] sm:$0xf]
    %v8530 = vld [vmem:[#allocation16 + $0x20] sm:$0xf]
    %v8531 = vld [vmem:[#allocation16 + $0x24] sm:$0xf]
    %v8532 = vld [vmem:[#allocation16 + $0x28] sm:$0xf]
    %v8533 = vld [vmem:[#allocation16 + $0x2c] sm:$0xf]
    %v8534 = vld [vmem:[#allocation16 + $0x30] sm:$0xf]
    %v8535 = vld [vmem:[#allocation16 + $0x34] sm:$0xf]
    %v8536 = vld [vmem:[#allocation16 + $0x38] sm:$0xf]
    %v8537 = vld [vmem:[#allocation16 + $0x3c] sm:$0xf]
    %v8538 = vld [vmem:[#allocation16 + $0x40] sm:$0xf]
    %v8539 = vld [vmem:[#allocation16 + $0x44] sm:$0xf]
    %v8540 = vld [vmem:[#allocation16 + $0x48] sm:$0xf]
    %v8541 = vld [vmem:[#allocation16 + $0x4c] sm:$0xf]
    %v8542 = vld [vmem:[#allocation16 + $0x50] sm:$0xf]
    %v8543 = vld [vmem:[#allocation16 + $0x54] sm:$0xf]
    %v8544 = vld [vmem:[#allocation16 + $0x58] sm:$0xf]
    %v8545 = vld [vmem:[#allocation16 + $0x5c] sm:$0xf]
    %v8546 = vld [vmem:[#allocation16 + $0x60] sm:$0xf]
    %v8547 = vld [vmem:[#allocation16 + $0x64] sm:$0xf]
    %v8548 = vld [vmem:[#allocation16 + $0x68] sm:$0xf]
    %v8549 = vld [vmem:[#allocation16 + $0x6c] sm:$0xf]
    %v8550 = vld [vmem:[#allocation16 + $0x70] sm:$0xf]
    %v8551 = vld [vmem:[#allocation16 + $0x74] sm:$0xf]
    %v8552 = vld [vmem:[#allocation16 + $0x78] sm:$0xf]
    %v8553 = vld [vmem:[#allocation16 + $0x7c] sm:$0xf]
    %v8586 = vunpack.c.l.b16 %v8522
    %v8587 = vunpack.c.l.b16 %v8523
    %v8588 = vunpack.c.l.b16 %v8524
    %v8589 = vunpack.c.l.b16 %v8525
    %v8590 = vunpack.c.l.b16 %v8526
    %v8591 = vunpack.c.l.b16 %v8527
    %v8592 = vunpack.c.l.b16 %v8528
    %v8593 = vunpack.c.l.b16 %v8529
    %v8594 = vunpack.c.l.b16 %v8530
    %v8595 = vunpack.c.l.b16 %v8531
    %v8596 = vunpack.c.l.b16 %v8532
    %v8597 = vunpack.c.l.b16 %v8533
    %v8598 = vunpack.c.l.b16 %v8534
    %v8599 = vunpack.c.l.b16 %v8535
    %v8600 = vunpack.c.l.b16 %v8536
    %v8601 = vunpack.c.l.b16 %v8537
    %v8602 = vunpack.c.l.b16 %v8538
    %v8603 = vunpack.c.l.b16 %v8539
    %v8604 = vunpack.c.l.b16 %v8540
    %v8605 = vunpack.c.l.b16 %v8541
    %v8606 = vunpack.c.l.b16 %v8542
    %v8607 = vunpack.c.l.b16 %v8543
    %v8608 = vunpack.c.l.b16 %v8544
    %v8609 = vunpack.c.l.b16 %v8545
    %v8610 = vunpack.c.l.b16 %v8546
    %v8611 = vunpack.c.l.b16 %v8547
    %v8612 = vunpack.c.l.b16 %v8548
    %v8613 = vunpack.c.l.b16 %v8549
    %v8614 = vunpack.c.l.b16 %v8550
    %v8615 = vunpack.c.l.b16 %v8551
    %v8616 = vunpack.c.l.b16 %v8552
    %v8617 = vunpack.c.l.b16 %v8553
    %v8618 = vpack.c.b16 %v8587, %v8586
    %v8619 = vpack.c.b16 %v8589, %v8588
    %v8620 = vpack.c.b16 %v8591, %v8590
    %v8621 = vpack.c.b16 %v8593, %v8592
    %v8622 = vpack.c.b16 %v8595, %v8594
    %v8623 = vpack.c.b16 %v8597, %v8596
    %v8624 = vpack.c.b16 %v8599, %v8598
    %v8625 = vpack.c.b16 %v8601, %v8600
    %v8626 = vpack.c.b16 %v8603, %v8602
    %v8627 = vpack.c.b16 %v8605, %v8604
    %v8628 = vpack.c.b16 %v8607, %v8606
    %v8629 = vpack.c.b16 %v8609, %v8608
    %v8630 = vpack.c.b16 %v8611, %v8610
    %v8631 = vpack.c.b16 %v8613, %v8612
    %v8632 = vpack.c.b16 %v8615, %v8614
    %v8633 = vpack.c.b16 %v8617, %v8616
    %8650 = vmatpush.bf16.msra.mxu0 %v8625
    %8651 = vmatpush.bf16.msra.mxu0 %v8624
    %8652 = vmatpush.bf16.msra.mxu0 %v8623
    %8653 = vmatpush.bf16.msra.mxu0 %v8622
    %8654 = vmatpush.bf16.msra.mxu0 %v8621
    %8655 = vmatpush.bf16.msra.mxu0 %v8620
    %8656 = vmatpush.bf16.msra.mxu0 %v8619
    %8657 = vmatpush.bf16.msra.mxu0 %v8618
    %8658 = vmatmul.bf16.gmra.mxu0 %v8520
    %v8659 = vpop.f32.mrf.mxu0
    %v8660 = vadd.f32 0.0, %v8659
    %v8661 = vpop.f32.mrf.mxu0
    %v8662 = vadd.f32 0.0, %v8661
    %8663 = vdwg.mxu0
    %8664 = vmatpush.bf16.msra.mxu0 %v8633
    %8665 = vmatpush.bf16.msra.mxu0 %v8632
    %8666 = vmatpush.bf16.msra.mxu0 %v8631
    %8667 = vmatpush.bf16.msra.mxu0 %v8630
    %8668 = vmatpush.bf16.msra.mxu0 %v8629
    %8669 = vmatpush.bf16.msra.mxu0 %v8628
    %8670 = vmatpush.bf16.msra.mxu0 %v8627
    %8671 = vmatpush.bf16.msra.mxu0 %v8626
    %8672 = vmatmul.bf16.gmra.mxu0 %v8521
    %v8673 = vpop.f32.mrf.mxu0
    %v8674 = vadd.f32 %v8660, %v8673
    %v8675 = vpop.f32.mrf.mxu0
    %v8676 = vadd.f32 %v8662, %v8675
    %8677 = vdwg.mxu0
    %8678 = vst [vmem:[#allocation17] sm:$0xff] %v8674
    %8679 = vst [vmem:[#allocation17 + $0x8] sm:$0xff] %v8676
    // Predicated region
    $region78: #{tpu_custom_call.1} parent=1 // pred_check
      _
    $region79: #{tpu_custom_call.1} parent=1 // pred_check_branch
      %8681 = sbr.rel (0) target = $region81
    $region80: #{tpu_custom_call.1} parent=1 // pred_region
      %8683 = vsyncadd [#allocation4], 0
      %s8684 = sshll.u32 [#allocation17], 4
      %s8685 = int_to_ptr.vmem [resolvable:$true] %s8684
      %s8686 = sshll.u32 %s10, 4
      %s8687 = int_to_ptr.hbm [resolvable:$true] %s8686
      %8692 = dma.vmem_to_hbm [thread:$0]  %s8685, 256, %s8687, [#allocation4], 128, 128, 8
    $region81: #{tpu_custom_call.1} parent=1 // pred_fallthru
      _
    // Predicated region
    $region82: #{tpu_custom_call.1} parent=1 // pred_check
      _
    $region83: #{tpu_custom_call.1} parent=1 // pred_check_branch
      %8694 = sbr.rel (0) target = $region85
    $region84: #{tpu_custom_call.1} parent=1 // pred_region
      %8696 = dma.done [#allocation4], 256
    $region85: #{tpu_custom_call.1} parent=1 // pred_fallthru
      _
    %8697 = vsyncpa [#allocation3], 1
    %8698 = vsyncpa [#allocation6], 1
    %8699 = vsyncpa [#allocation9], 1
    %8700 = vsyncpa [#allocation12], 1
    %8701 = vsyncpa [#allocation15], 1
    %8702 = vsyncpa [#allocation4], 1

</llo_original>
